<compile_context>
chip_gen: v7x
topology: tpu7x:2x2x1
jax: 0.10.0
libtpu: 0.0.40
codegen_flags: <defaults>
</compile_context>

<pallas_src>
import jax
import jax.numpy as jnp
from jax.experimental import pallas as pl
from jax.experimental.pallas import tpu as pltpu

INTER_CHANNEL_NUM_BLOCK = 512
LANE = 128
ROWS_TARGET = 128     # target matmul rows per chunk (chunk_h * W <= ROWS_TARGET)


def _round_up(n, m):
    return ((n + m - 1) // m) * m


def _pick_chunk_h(H, W, rows_target=ROWS_TARGET):
    """Largest divisor of H whose chunk (chunk_h * W rows) stays within budget."""
    best = 1
    for d in range(1, H + 1):
        if H % d == 0 and d * W <= rows_target:
            best = d
    return best


# --------------------------------------------------------------------------- #
# Kernel
# --------------------------------------------------------------------------- #
def initial_stage_kernel(x_ref,
                         w1_ref, b1_ref, w2_ref, b2_ref, w3_ref, b3_ref,
                         wm1_ref, bm1_ref, wm2_ref, bm2_ref,
                         o_ref, padA_ref, padB_ref):
    H, W, C_pad = x_ref.shape
    M_pad = o_ref.shape[-1]
    chunk_h = _pick_chunk_h(H, W)
    n_chunks = H // chunk_h
    rows = chunk_h * W

    # ---- zero ONLY the 1-px halo border (interior is fully rewritten below).
    # Done every grid step (each TC has its own, uninitialized, scratch).
    for p_ref in (padA_ref, padB_ref):
        z_row = jnp.zeros((1, W + 2, C_pad), p_ref.dtype)
        z_col = jnp.zeros((H + 2, 1, C_pad), p_ref.dtype)
        p_ref[0:1, :, :] = z_row
        p_ref[H + 1:H + 2, :, :] = z_row
        p_ref[:, 0:1, :] = z_col
        p_ref[:, W + 1:W + 2, :] = z_col

    # input -> padA interior
    padA_ref[1:H + 1, 1:W + 1, :] = x_ref[...]

    def maybe_align(h0):
        return pl.multiple_of(h0, 8) if chunk_h % 8 == 0 else h0

    def conv_chunk(src_ref, w_ref, b_ref, h0):
        """3x3 'same' conv + bias + ReLU for output rows [h0, h0+chunk_h)."""
        acc = jnp.zeros((rows, C_pad), jnp.float32)
        for tap in range(9):                       # 9 accumulating tap dots
            dy, dx = tap // 3, tap % 3
            view = src_ref[pl.ds(h0 + dy, chunk_h), pl.ds(dx, W), :]
            acc = acc + jnp.dot(view.reshape(rows, C_pad), w_ref[tap],
                                preferred_element_type=jnp.float32)
        return jnp.maximum(acc + b_ref[...], 0.0)  # (rows, C_pad) f32

    def trunk_layer(src_ref, dst_ref, w_ref, b_ref):
        def body(c, carry):
            h0 = maybe_align(c * chunk_h)
            f = conv_chunk(src_ref, w_ref, b_ref, h0)
            dst_ref[pl.ds(h0 + 1, chunk_h), pl.ds(1, W), :] = (
                f.reshape(chunk_h, W, C_pad).astype(dst_ref.dtype))
            return carry
        jax.lax.fori_loop(0, n_chunks, body, 0)

    # trunk layers 1 & 2 ping-pong between the two pad buffers
    trunk_layer(padA_ref, padB_ref, w1_ref, b1_ref)   # layer 1: A -> B
    trunk_layer(padB_ref, padA_ref, w2_ref, b2_ref)   # layer 2: B -> A

    # trunk layer 3 fused with the mask head, written chunk-by-chunk
    def body3(c, carry):
        h0 = maybe_align(c * chunk_h)
        f = conv_chunk(padA_ref, w3_ref, b3_ref, h0)                    # (rows, C_pad) f32
        h = jnp.dot(f.astype(jnp.bfloat16), wm1_ref[...],
                    preferred_element_type=jnp.float32)
        h = jnp.maximum(h + bm1_ref[...], 0.0)                          # (rows, 512) f32
        m = jnp.dot(h.astype(jnp.bfloat16), wm2_ref[...],
                    preferred_element_type=jnp.float32) + bm2_ref[...]  # (rows, M_pad)
        o_ref[pl.ds(h0, chunk_h), :, :] = m.reshape(chunk_h, W, M_pad)
        return carry
    jax.lax.fori_loop(0, n_chunks, body3, 0)


# --------------------------------------------------------------------------- #
# Wrappers
# --------------------------------------------------------------------------- #
def _pack_params(params, C, num_masks):
    """Pad channel dims to multiples of 128, split 3x3 weights per tap, cast bf16."""
    (w1, b1, w2, b2, w3, b3, wm1, bm1, wm2, bm2) = params
    C_pad = max(LANE, _round_up(C, LANE))
    M_pad = max(LANE, _round_up(num_masks, LANE))

    def pack_w3(w):  # (3,3,C,C) HWIO -> (9, C_pad, C_pad) bf16, tap-major
        wp = jnp.zeros((3, 3, C_pad, C_pad), jnp.float32).at[:, :, :C, :C].set(w)
        return wp.reshape(9, C_pad, C_pad).astype(jnp.bfloat16)

    def pack_b(b, n_pad):  # (1,n) -> (1,n_pad) f32
        return jnp.zeros((1, n_pad), jnp.float32).at[:, :b.shape[1]].set(b)

    wm1_p = jnp.zeros((C_pad, INTER_CHANNEL_NUM_BLOCK), jnp.float32).at[:C, :].set(wm1)
    wm2_p = jnp.zeros((INTER_CHANNEL_NUM_BLOCK, M_pad), jnp.float32).at[:, :num_masks].set(wm2)

    packed = (
        pack_w3(w1), pack_b(b1, C_pad),
        pack_w3(w2), pack_b(b2, C_pad),
        pack_w3(w3), pack_b(b3, C_pad),
        wm1_p.astype(jnp.bfloat16), pack_b(bm1, INTER_CHANNEL_NUM_BLOCK),
        wm2_p.astype(jnp.bfloat16), pack_b(bm2, M_pad),
    )
    return packed, C_pad, M_pad


def initial_stage_forward_nhwc(x_nhwc, params, num_masks):
    """NHWC Pallas forward. x_nhwc: (B,H,W,C) f32. Returns [masks_nhwc] (B,H,W,num_masks).
    NOTE: keep W a multiple of 8 for zero-cost (H,W,C)<->(H*W,C) reshapes."""
    B, H, W, C = x_nhwc.shape
    packed, C_pad, M_pad = _pack_params(params, C, num_masks)
    (w1, b1, w2, b2, w3, b3, wm1, bm1, wm2, bm2) = packed

    # lane-dense, bf16 input activations
    x = jnp.zeros((B, H, W, C_pad), jnp.float32).at[..., :C].set(x_nhwc).astype(jnp.bfloat16)

    def full(shape):
        return pl.BlockSpec(shape, lambda b, _n=len(shape): (0,) * _n)

    out_pad = pl.pallas_call(
        initial_stage_kernel,
        out_shape=jax.ShapeDtypeStruct((B, H, W, M_pad), jnp.float32),
        grid_spec=pltpu.PrefetchScalarGridSpec(
            num_scalar_prefetch=0,
            grid=(B,),
            in_specs=[
                pl.BlockSpec((None, H, W, C_pad), lambda b: (b, 0, 0, 0)),
                full(w1.shape), full(b1.shape),
                full(w2.shape), full(b2.shape),
                full(w3.shape), full(b3.shape),
                full(wm1.shape), full(bm1.shape),
                full(wm2.shape), full(bm2.shape),
            ],
            out_specs=pl.BlockSpec((None, H, W, M_pad), lambda b: (b, 0, 0, 0)),
            scratch_shapes=[
                pltpu.VMEM((H + 2, W + 2, C_pad), jnp.bfloat16),   # pad buffer A
                pltpu.VMEM((H + 2, W + 2, C_pad), jnp.bfloat16),   # pad buffer B
            ],
        ),
        compiler_params=pltpu.CompilerParams(
            dimension_semantics=("parallel",),      # batch shards across v7x's 2 TCs
            vmem_limit_bytes=64 * 1024 * 1024,
        ),
    )(x, w1, b1, w2, b2, w3, b3, wm1, bm1, wm2, bm2)

    return [out_pad[..., :num_masks]]


def initial_stage_forward(x_nchw, params, num_masks):
    """PyTorch-interface wrapper (NCHW in / NCHW out). Prefer the NHWC entry point
    in an NHWC pipeline to skip both boundary transposes."""
    x_nhwc = jnp.transpose(x_nchw, (0, 2, 3, 1))
    masks_nhwc = initial_stage_forward_nhwc(x_nhwc, params, num_masks)[0]
    return [jnp.transpose(masks_nhwc, (0, 3, 1, 2))]


# --------------------------------------------------------------------------- #
# Parameters + pure-JAX reference
# --------------------------------------------------------------------------- #
def init_params(key, num_channels, num_masks):
    """Deterministic synthetic parameters (shapes match the PyTorch module)."""
    ks = jax.random.split(key, 10)
    C = num_channels

    def w3(k, cin, cout):   # (kh, kw, Cin, Cout) == HWIO
        return jax.random.normal(k, (3, 3, cin, cout), jnp.float32) * 0.1

    def w1(k, cin, cout):   # 1x1 conv as (Cin, Cout)
        return jax.random.normal(k, (cin, cout), jnp.float32) * 0.05

    def bias(k, c):
        return jax.random.normal(k, (1, c), jnp.float32) * 0.01

    return (
        w3(ks[0], C, C), bias(ks[1], C),
        w3(ks[2], C, C), bias(ks[3], C),
        w3(ks[4], C, C), bias(ks[5], C),
        w1(ks[6], C, INTER_CHANNEL_NUM_BLOCK), bias(ks[7], INTER_CHANNEL_NUM_BLOCK),
        w1(ks[8], INTER_CHANNEL_NUM_BLOCK, num_masks), bias(ks[9], num_masks),
    )


def initial_stage_reference(x_nchw, params):
    """Pure-JAX (f32) reference of the PyTorch forward."""
    (w1, b1, w2, b2, w3, b3, wm1, bm1, wm2, bm2) = params

    def conv3x3_relu(x, w, b):
        y = jax.lax.conv_general_dilated(
            x, w, (1, 1), 'SAME',
            dimension_numbers=('NCHW', 'HWIO', 'NCHW'),
            precision=jax.lax.Precision.HIGHEST)
        return jax.nn.relu(y + b.reshape(1, -1, 1, 1))

    def conv1x1(x, w, b, relu):
        y = jax.lax.conv_general_dilated(
            x, w.reshape(1, 1, *w.shape), (1, 1), 'VALID',
            dimension_numbers=('NCHW', 'HWIO', 'NCHW'),
            precision=jax.lax.Precision.HIGHEST)
        y = y + b.reshape(1, -1, 1, 1)
        return jax.nn.relu(y) if relu else y

    t = conv3x3_relu(conv3x3_relu(conv3x3_relu(x_nchw, w1, b1), w2, b2), w3, b3)
    h = conv1x1(t, wm1, bm1, relu=True)
    return [conv1x1(h, wm2, bm2, relu=False)]


# --------------------------------------------------------------------------- #
if __name__ == "__main__":
    B, num_channels, H, W = 2, 4, 16, 16
    num_masks = 8

    key = jax.random.PRNGKey(0)
    kx, kp = jax.random.split(key)
    x = jax.random.normal(kx, (B, num_channels, H, W), jnp.float32)
    params = init_params(kp, num_channels, num_masks)

    out = initial_stage_forward(x, params, num_masks)
    out = [jax.block_until_ready(o) for o in out]

    ref = initial_stage_reference(x, params)
    assert out[0].shape == (B, num_masks, H, W)
    # Tolerance accounts for bf16 MXU operands (f32 accumulation) vs the f32 reference.
    assert jnp.allclose(out[0], ref[0], atol=2e-2, rtol=2e-2), \
        f"max abs err {jnp.max(jnp.abs(out[0] - ref[0]))}"

    print("KERNEL_OK")
</pallas_src>

<mosaic_0001>
module attributes {stable_mosaic.version = 11 : i64} {
  func.func @initial_stage_kernel(%arg0: i32, %arg1: memref<1x16x16x128xbf16, #tpu.memory_space<vmem>>, %arg2: memref<9x128x128xbf16, #tpu.memory_space<vmem>>, %arg3: memref<1x128xf32, #tpu.memory_space<vmem>>, %arg4: memref<9x128x128xbf16, #tpu.memory_space<vmem>>, %arg5: memref<1x128xf32, #tpu.memory_space<vmem>>, %arg6: memref<9x128x128xbf16, #tpu.memory_space<vmem>>, %arg7: memref<1x128xf32, #tpu.memory_space<vmem>>, %arg8: memref<128x512xbf16, #tpu.memory_space<vmem>>, %arg9: memref<1x512xf32, #tpu.memory_space<vmem>>, %arg10: memref<512x128xbf16, #tpu.memory_space<vmem>>, %arg11: memref<1x128xf32, #tpu.memory_space<vmem>>, %arg12: memref<1x16x16x128xf32, #tpu.memory_space<vmem>>, %arg13: memref<18x18x128xbf16, #tpu.memory_space<vmem>>, %arg14: memref<18x18x128xbf16, #tpu.memory_space<vmem>>) attributes {dimension_semantics = [#tpu.dimension_semantics<parallel>], iteration_bounds = array<i64: 2>, scalar_prefetch = 0 : i64, scratch_operands = 2 : i64, tpu.core_type = #tpu.core_type<tc>, window_params = [{transform_indices = @transform_0, window_bounds = array<i64: 1, 16, 16, 128>}, {pipeline_mode = #tpu.pipeline_mode<synchronous>, transform_indices = @transform_1, window_bounds = array<i64: 9, 128, 128>}, {pipeline_mode = #tpu.pipeline_mode<synchronous>, transform_indices = @transform_2, window_bounds = array<i64: 1, 128>}, {pipeline_mode = #tpu.pipeline_mode<synchronous>, transform_indices = @transform_3, window_bounds = array<i64: 9, 128, 128>}, {pipeline_mode = #tpu.pipeline_mode<synchronous>, transform_indices = @transform_4, window_bounds = array<i64: 1, 128>}, {pipeline_mode = #tpu.pipeline_mode<synchronous>, transform_indices = @transform_5, window_bounds = array<i64: 9, 128, 128>}, {pipeline_mode = #tpu.pipeline_mode<synchronous>, transform_indices = @transform_6, window_bounds = array<i64: 1, 128>}, {pipeline_mode = #tpu.pipeline_mode<synchronous>, transform_indices = @transform_7, window_bounds = array<i64: 128, 512>}, {pipeline_mode = #tpu.pipeline_mode<synchronous>, transform_indices = @transform_8, window_bounds = array<i64: 1, 512>}, {pipeline_mode = #tpu.pipeline_mode<synchronous>, transform_indices = @transform_9, window_bounds = array<i64: 512, 128>}, {pipeline_mode = #tpu.pipeline_mode<synchronous>, transform_indices = @transform_10, window_bounds = array<i64: 1, 128>}, {transform_indices = @transform_11, window_bounds = array<i64: 1, 16, 16, 128>}]} {
    %cst = arith.constant 0.000000e+00 : bf16
    %0 = vector.broadcast %cst : bf16 to vector<1x18x128xbf16>
    %cst_0 = arith.constant 0.000000e+00 : bf16
    %1 = vector.broadcast %cst_0 : bf16 to vector<18x1x128xbf16>
    %c0 = arith.constant 0 : index
    %c0_1 = arith.constant 0 : index
    %c0_2 = arith.constant 0 : index
    %2 = vector.load %arg13[%c0, %c0_1, %c0_2] : memref<18x18x128xbf16, #tpu.memory_space<vmem>>, vector<1x18x128xbf16>
    tpu.vector_store %arg13[%c0, %c0_1, %c0_2], %0 {strides = array<i32>} : memref<18x18x128xbf16, #tpu.memory_space<vmem>>, vector<1x18x128xbf16>,
    %c17 = arith.constant 17 : index
    %c0_3 = arith.constant 0 : index
    %c0_4 = arith.constant 0 : index
    %3 = vector.load %arg13[%c17, %c0_3, %c0_4] : memref<18x18x128xbf16, #tpu.memory_space<vmem>>, vector<1x18x128xbf16>
    tpu.vector_store %arg13[%c17, %c0_3, %c0_4], %0 {strides = array<i32>} : memref<18x18x128xbf16, #tpu.memory_space<vmem>>, vector<1x18x128xbf16>,
    %c0_5 = arith.constant 0 : index
    %c0_6 = arith.constant 0 : index
    %c0_7 = arith.constant 0 : index
    %4 = vector.load %arg13[%c0_5, %c0_6, %c0_7] : memref<18x18x128xbf16, #tpu.memory_space<vmem>>, vector<18x1x128xbf16>
    tpu.vector_store %arg13[%c0_5, %c0_6, %c0_7], %1 {strides = array<i32>} : memref<18x18x128xbf16, #tpu.memory_space<vmem>>, vector<18x1x128xbf16>,
    %c0_8 = arith.constant 0 : index
    %c17_9 = arith.constant 17 : index
    %c0_10 = arith.constant 0 : index
    %5 = vector.load %arg13[%c0_8, %c17_9, %c0_10] : memref<18x18x128xbf16, #tpu.memory_space<vmem>>, vector<18x1x128xbf16>
    tpu.vector_store %arg13[%c0_8, %c17_9, %c0_10], %1 {strides = array<i32>} : memref<18x18x128xbf16, #tpu.memory_space<vmem>>, vector<18x1x128xbf16>,
    %cst_11 = arith.constant 0.000000e+00 : bf16
    %6 = vector.broadcast %cst_11 : bf16 to vector<1x18x128xbf16>
    %cst_12 = arith.constant 0.000000e+00 : bf16
    %7 = vector.broadcast %cst_12 : bf16 to vector<18x1x128xbf16>
    %c0_13 = arith.constant 0 : index
    %c0_14 = arith.constant 0 : index
    %c0_15 = arith.constant 0 : index
    %8 = vector.load %arg14[%c0_13, %c0_14, %c0_15] : memref<18x18x128xbf16, #tpu.memory_space<vmem>>, vector<1x18x128xbf16>
    tpu.vector_store %arg14[%c0_13, %c0_14, %c0_15], %6 {strides = array<i32>} : memref<18x18x128xbf16, #tpu.memory_space<vmem>>, vector<1x18x128xbf16>,
    %c17_16 = arith.constant 17 : index
    %c0_17 = arith.constant 0 : index
    %c0_18 = arith.constant 0 : index
    %9 = vector.load %arg14[%c17_16, %c0_17, %c0_18] : memref<18x18x128xbf16, #tpu.memory_space<vmem>>, vector<1x18x128xbf16>
    tpu.vector_store %arg14[%c17_16, %c0_17, %c0_18], %6 {strides = array<i32>} : memref<18x18x128xbf16, #tpu.memory_space<vmem>>, vector<1x18x128xbf16>,
    %c0_19 = arith.constant 0 : index
    %c0_20 = arith.constant 0 : index
    %c0_21 = arith.constant 0 : index
    %10 = vector.load %arg14[%c0_19, %c0_20, %c0_21] : memref<18x18x128xbf16, #tpu.memory_space<vmem>>, vector<18x1x128xbf16>
    tpu.vector_store %arg14[%c0_19, %c0_20, %c0_21], %7 {strides = array<i32>} : memref<18x18x128xbf16, #tpu.memory_space<vmem>>, vector<18x1x128xbf16>,
    %c0_22 = arith.constant 0 : index
    %c17_23 = arith.constant 17 : index
    %c0_24 = arith.constant 0 : index
    %11 = vector.load %arg14[%c0_22, %c17_23, %c0_24] : memref<18x18x128xbf16, #tpu.memory_space<vmem>>, vector<18x1x128xbf16>
    tpu.vector_store %arg14[%c0_22, %c17_23, %c0_24], %7 {strides = array<i32>} : memref<18x18x128xbf16, #tpu.memory_space<vmem>>, vector<18x1x128xbf16>,
    %c0_25 = arith.constant 0 : index
    %c0_26 = arith.constant 0 : index
    %c0_27 = arith.constant 0 : index
    %c0_28 = arith.constant 0 : index
    %12 = vector.load %arg1[%c0_25, %c0_26, %c0_27, %c0_28] : memref<1x16x16x128xbf16, #tpu.memory_space<vmem>>, vector<1x16x16x128xbf16>
    %13 = vector.shape_cast %12 : vector<1x16x16x128xbf16> to vector<16x16x128xbf16>
    %c1 = arith.constant 1 : index
    %c1_29 = arith.constant 1 : index
    %c0_30 = arith.constant 0 : index
    %14 = vector.load %arg13[%c1, %c1_29, %c0_30] : memref<18x18x128xbf16, #tpu.memory_space<vmem>>, vector<16x16x128xbf16>
    tpu.vector_store %arg13[%c1, %c1_29, %c0_30], %13 {strides = array<i32>} : memref<18x18x128xbf16, #tpu.memory_space<vmem>>, vector<16x16x128xbf16>,
    %c0_i32 = arith.constant 0 : i32
    %c2_i32 = arith.constant 2 : i32
    %15 = arith.addi %c0_i32, %c2_i32 : i32
    %c1_i32 = arith.constant 1 : i32
    scf.for %arg15 = %c0_i32 to %15 step %c1_i32  : i32 {
      %c8_i32 = arith.constant 8 : i32
      %18 = arith.muli %arg15, %c8_i32 : i32
      %19 = tpu.assume_multiple %18, 8 : i32
      %cst_40 = arith.constant 0.000000e+00 : f32
      %20 = vector.broadcast %cst_40 : f32 to vector<128x128xf32>
      %c0_i32_41 = arith.constant 0 : i32
      %21 = arith.addi %19, %c0_i32_41 : i32
      %22 = arith.index_cast %21 : i32 to index
      %c0_42 = arith.constant 0 : index
      %c0_43 = arith.constant 0 : index
      %23 = vector.load %arg13[%22, %c0_42, %c0_43] : memref<18x18x128xbf16, #tpu.memory_space<vmem>>, vector<8x16x128xbf16>
      %24 = vector.shape_cast %23 : vector<8x16x128xbf16> to vector<128x128xbf16>
      %c0_44 = arith.constant 0 : index
      %c0_45 = arith.constant 0 : index
      %c0_46 = arith.constant 0 : index
      %25 = vector.load %arg2[%c0_44, %c0_45, %c0_46] : memref<9x128x128xbf16, #tpu.memory_space<vmem>>, vector<1x128x128xbf16>
      %26 = vector.shape_cast %25 : vector<1x128x128xbf16> to vector<128x128xbf16>
      %cst_47 = arith.constant dense<0.000000e+00> : vector<128x128xf32>
      %27 = tpu.matmul %24, %26, %cst_47 {dimension_numbers = #tpu.dot_dimension_numbers<[1], [0], [0], [1], [0, 0, 1, 1], [], []>} : vector<128x128xbf16>, vector<128x128xbf16>, vector<128x128xf32> -> vector<128x128xf32>
      %28 = arith.addf %20, %27 : vector<128x128xf32>
      %c0_i32_48 = arith.constant 0 : i32
      %29 = arith.addi %19, %c0_i32_48 : i32
      %30 = arith.index_cast %29 : i32 to index
      %c1_49 = arith.constant 1 : index
      %c0_50 = arith.constant 0 : index
      %31 = vector.load %arg13[%30, %c1_49, %c0_50] : memref<18x18x128xbf16, #tpu.memory_space<vmem>>, vector<8x16x128xbf16>
      %32 = vector.shape_cast %31 : vector<8x16x128xbf16> to vector<128x128xbf16>
      %c1_51 = arith.constant 1 : index
      %c0_52 = arith.constant 0 : index
      %c0_53 = arith.constant 0 : index
      %33 = vector.load %arg2[%c1_51, %c0_52, %c0_53] : memref<9x128x128xbf16, #tpu.memory_space<vmem>>, vector<1x128x128xbf16>
      %34 = vector.shape_cast %33 : vector<1x128x128xbf16> to vector<128x128xbf16>
      %cst_54 = arith.constant dense<0.000000e+00> : vector<128x128xf32>
      %35 = tpu.matmul %32, %34, %cst_54 {dimension_numbers = #tpu.dot_dimension_numbers<[1], [0], [0], [1], [0, 0, 1, 1], [], []>} : vector<128x128xbf16>, vector<128x128xbf16>, vector<128x128xf32> -> vector<128x128xf32>
      %36 = arith.addf %28, %35 : vector<128x128xf32>
      %c0_i32_55 = arith.constant 0 : i32
      %37 = arith.addi %19, %c0_i32_55 : i32
      %38 = arith.index_cast %37 : i32 to index
      %c2 = arith.constant 2 : index
      %c0_56 = arith.constant 0 : index
      %39 = vector.load %arg13[%38, %c2, %c0_56] : memref<18x18x128xbf16, #tpu.memory_space<vmem>>, vector<8x16x128xbf16>
      %40 = vector.shape_cast %39 : vector<8x16x128xbf16> to vector<128x128xbf16>
      %c2_57 = arith.constant 2 : index
      %c0_58 = arith.constant 0 : index
      %c0_59 = arith.constant 0 : index
      %41 = vector.load %arg2[%c2_57, %c0_58, %c0_59] : memref<9x128x128xbf16, #tpu.memory_space<vmem>>, vector<1x128x128xbf16>
      %42 = vector.shape_cast %41 : vector<1x128x128xbf16> to vector<128x128xbf16>
      %cst_60 = arith.constant dense<0.000000e+00> : vector<128x128xf32>
      %43 = tpu.matmul %40, %42, %cst_60 {dimension_numbers = #tpu.dot_dimension_numbers<[1], [0], [0], [1], [0, 0, 1, 1], [], []>} : vector<128x128xbf16>, vector<128x128xbf16>, vector<128x128xf32> -> vector<128x128xf32>
      %44 = arith.addf %36, %43 : vector<128x128xf32>
      %c1_i32_61 = arith.constant 1 : i32
      %45 = arith.addi %19, %c1_i32_61 : i32
      %46 = arith.index_cast %45 : i32 to index
      %c0_62 = arith.constant 0 : index
      %c0_63 = arith.constant 0 : index
      %47 = vector.load %arg13[%46, %c0_62, %c0_63] : memref<18x18x128xbf16, #tpu.memory_space<vmem>>, vector<8x16x128xbf16>
      %48 = vector.shape_cast %47 : vector<8x16x128xbf16> to vector<128x128xbf16>
      %c3 = arith.constant 3 : index
      %c0_64 = arith.constant 0 : index
      %c0_65 = arith.constant 0 : index
      %49 = vector.load %arg2[%c3, %c0_64, %c0_65] : memref<9x128x128xbf16, #tpu.memory_space<vmem>>, vector<1x128x128xbf16>
      %50 = vector.shape_cast %49 : vector<1x128x128xbf16> to vector<128x128xbf16>
      %cst_66 = arith.constant dense<0.000000e+00> : vector<128x128xf32>
      %51 = tpu.matmul %48, %50, %cst_66 {dimension_numbers = #tpu.dot_dimension_numbers<[1], [0], [0], [1], [0, 0, 1, 1], [], []>} : vector<128x128xbf16>, vector<128x128xbf16>, vector<128x128xf32> -> vector<128x128xf32>
      %52 = arith.addf %44, %51 : vector<128x128xf32>
      %c1_i32_67 = arith.constant 1 : i32
      %53 = arith.addi %19, %c1_i32_67 : i32
      %54 = arith.index_cast %53 : i32 to index
      %c1_68 = arith.constant 1 : index
      %c0_69 = arith.constant 0 : index
      %55 = vector.load %arg13[%54, %c1_68, %c0_69] : memref<18x18x128xbf16, #tpu.memory_space<vmem>>, vector<8x16x128xbf16>
      %56 = vector.shape_cast %55 : vector<8x16x128xbf16> to vector<128x128xbf16>
      %c4 = arith.constant 4 : index
      %c0_70 = arith.constant 0 : index
      %c0_71 = arith.constant 0 : index
      %57 = vector.load %arg2[%c4, %c0_70, %c0_71] : memref<9x128x128xbf16, #tpu.memory_space<vmem>>, vector<1x128x128xbf16>
      %58 = vector.shape_cast %57 : vector<1x128x128xbf16> to vector<128x128xbf16>
      %cst_72 = arith.constant dense<0.000000e+00> : vector<128x128xf32>
      %59 = tpu.matmul %56, %58, %cst_72 {dimension_numbers = #tpu.dot_dimension_numbers<[1], [0], [0], [1], [0, 0, 1, 1], [], []>} : vector<128x128xbf16>, vector<128x128xbf16>, vector<128x128xf32> -> vector<128x128xf32>
      %60 = arith.addf %52, %59 : vector<128x128xf32>
      %c1_i32_73 = arith.constant 1 : i32
      %61 = arith.addi %19, %c1_i32_73 : i32
      %62 = arith.index_cast %61 : i32 to index
      %c2_74 = arith.constant 2 : index
      %c0_75 = arith.constant 0 : index
      %63 = vector.load %arg13[%62, %c2_74, %c0_75] : memref<18x18x128xbf16, #tpu.memory_space<vmem>>, vector<8x16x128xbf16>
      %64 = vector.shape_cast %63 : vector<8x16x128xbf16> to vector<128x128xbf16>
      %c5 = arith.constant 5 : index
      %c0_76 = arith.constant 0 : index
      %c0_77 = arith.constant 0 : index
      %65 = vector.load %arg2[%c5, %c0_76, %c0_77] : memref<9x128x128xbf16, #tpu.memory_space<vmem>>, vector<1x128x128xbf16>
      %66 = vector.shape_cast %65 : vector<1x128x128xbf16> to vector<128x128xbf16>
      %cst_78 = arith.constant dense<0.000000e+00> : vector<128x128xf32>
      %67 = tpu.matmul %64, %66, %cst_78 {dimension_numbers = #tpu.dot_dimension_numbers<[1], [0], [0], [1], [0, 0, 1, 1], [], []>} : vector<128x128xbf16>, vector<128x128xbf16>, vector<128x128xf32> -> vector<128x128xf32>
      %68 = arith.addf %60, %67 : vector<128x128xf32>
      %c2_i32_79 = arith.constant 2 : i32
      %69 = arith.addi %19, %c2_i32_79 : i32
      %70 = arith.index_cast %69 : i32 to index
      %c0_80 = arith.constant 0 : index
      %c0_81 = arith.constant 0 : index
      %71 = vector.load %arg13[%70, %c0_80, %c0_81] : memref<18x18x128xbf16, #tpu.memory_space<vmem>>, vector<8x16x128xbf16>
      %72 = vector.shape_cast %71 : vector<8x16x128xbf16> to vector<128x128xbf16>
      %c6 = arith.constant 6 : index
      %c0_82 = arith.constant 0 : index
      %c0_83 = arith.constant 0 : index
      %73 = vector.load %arg2[%c6, %c0_82, %c0_83] : memref<9x128x128xbf16, #tpu.memory_space<vmem>>, vector<1x128x128xbf16>
      %74 = vector.shape_cast %73 : vector<1x128x128xbf16> to vector<128x128xbf16>
      %cst_84 = arith.constant dense<0.000000e+00> : vector<128x128xf32>
      %75 = tpu.matmul %72, %74, %cst_84 {dimension_numbers = #tpu.dot_dimension_numbers<[1], [0], [0], [1], [0, 0, 1, 1], [], []>} : vector<128x128xbf16>, vector<128x128xbf16>, vector<128x128xf32> -> vector<128x128xf32>
      %76 = arith.addf %68, %75 : vector<128x128xf32>
      %c2_i32_85 = arith.constant 2 : i32
      %77 = arith.addi %19, %c2_i32_85 : i32
      %78 = arith.index_cast %77 : i32 to index
      %c1_86 = arith.constant 1 : index
      %c0_87 = arith.constant 0 : index
      %79 = vector.load %arg13[%78, %c1_86, %c0_87] : memref<18x18x128xbf16, #tpu.memory_space<vmem>>, vector<8x16x128xbf16>
      %80 = vector.shape_cast %79 : vector<8x16x128xbf16> to vector<128x128xbf16>
      %c7 = arith.constant 7 : index
      %c0_88 = arith.constant 0 : index
      %c0_89 = arith.constant 0 : index
      %81 = vector.load %arg2[%c7, %c0_88, %c0_89] : memref<9x128x128xbf16, #tpu.memory_space<vmem>>, vector<1x128x128xbf16>
      %82 = vector.shape_cast %81 : vector<1x128x128xbf16> to vector<128x128xbf16>
      %cst_90 = arith.constant dense<0.000000e+00> : vector<128x128xf32>
      %83 = tpu.matmul %80, %82, %cst_90 {dimension_numbers = #tpu.dot_dimension_numbers<[1], [0], [0], [1], [0, 0, 1, 1], [], []>} : vector<128x128xbf16>, vector<128x128xbf16>, vector<128x128xf32> -> vector<128x128xf32>
      %84 = arith.addf %76, %83 : vector<128x128xf32>
      %c2_i32_91 = arith.constant 2 : i32
      %85 = arith.addi %19, %c2_i32_91 : i32
      %86 = arith.index_cast %85 : i32 to index
      %c2_92 = arith.constant 2 : index
      %c0_93 = arith.constant 0 : index
      %87 = vector.load %arg13[%86, %c2_92, %c0_93] : memref<18x18x128xbf16, #tpu.memory_space<vmem>>, vector<8x16x128xbf16>
      %88 = vector.shape_cast %87 : vector<8x16x128xbf16> to vector<128x128xbf16>
      %c8 = arith.constant 8 : index
      %c0_94 = arith.constant 0 : index
      %c0_95 = arith.constant 0 : index
      %89 = vector.load %arg2[%c8, %c0_94, %c0_95] : memref<9x128x128xbf16, #tpu.memory_space<vmem>>, vector<1x128x128xbf16>
      %90 = vector.shape_cast %89 : vector<1x128x128xbf16> to vector<128x128xbf16>
      %cst_96 = arith.constant dense<0.000000e+00> : vector<128x128xf32>
      %91 = tpu.matmul %88, %90, %cst_96 {dimension_numbers = #tpu.dot_dimension_numbers<[1], [0], [0], [1], [0, 0, 1, 1], [], []>} : vector<128x128xbf16>, vector<128x128xbf16>, vector<128x128xf32> -> vector<128x128xf32>
      %92 = arith.addf %84, %91 : vector<128x128xf32>
      %c0_97 = arith.constant 0 : index
      %c0_98 = arith.constant 0 : index
      %93 = vector.load %arg3[%c0_97, %c0_98] : memref<1x128xf32, #tpu.memory_space<vmem>>, vector<1x128xf32>
      %94 = vector.broadcast %93 : vector<1x128xf32> to vector<128x128xf32>
      %95 = arith.addf %92, %94 : vector<128x128xf32>
      %cst_99 = arith.constant 0.000000e+00 : f32
      %96 = vector.broadcast %cst_99 : f32 to vector<128x128xf32>
      %97 = arith.maximumf %95, %96 : vector<128x128xf32>
      %98 = vector.shape_cast %97 : vector<128x128xf32> to vector<8x16x128xf32>
      %99 = arith.truncf %98 : vector<8x16x128xf32> to vector<8x16x128xbf16>
      %c1_i32_100 = arith.constant 1 : i32
      %100 = arith.addi %19, %c1_i32_100 : i32
      %101 = arith.index_cast %100 : i32 to index
      %c1_101 = arith.constant 1 : index
      %c0_102 = arith.constant 0 : index
      %102 = vector.load %arg14[%101, %c1_101, %c0_102] : memref<18x18x128xbf16, #tpu.memory_space<vmem>>, vector<8x16x128xbf16>
      tpu.vector_store %arg14[%101, %c1_101, %c0_102], %99 {strides = array<i32>} : memref<18x18x128xbf16, #tpu.memory_space<vmem>>, vector<8x16x128xbf16>,
    }
    %c2_i32_31 = arith.constant 2 : i32
    %c0_i32_32 = arith.constant 0 : i32
    %c2_i32_33 = arith.constant 2 : i32
    %16 = arith.addi %c0_i32_32, %c2_i32_33 : i32
    %c1_i32_34 = arith.constant 1 : i32
    scf.for %arg15 = %c0_i32_32 to %16 step %c1_i32_34  : i32 {
      %c8_i32 = arith.constant 8 : i32
      %18 = arith.muli %arg15, %c8_i32 : i32
      %19 = tpu.assume_multiple %18, 8 : i32
      %cst_40 = arith.constant 0.000000e+00 : f32
      %20 = vector.broadcast %cst_40 : f32 to vector<128x128xf32>
      %c0_i32_41 = arith.constant 0 : i32
      %21 = arith.addi %19, %c0_i32_41 : i32
      %22 = arith.index_cast %21 : i32 to index
      %c0_42 = arith.constant 0 : index
      %c0_43 = arith.constant 0 : index
      %23 = vector.load %arg14[%22, %c0_42, %c0_43] : memref<18x18x128xbf16, #tpu.memory_space<vmem>>, vector<8x16x128xbf16>
      %24 = vector.shape_cast %23 : vector<8x16x128xbf16> to vector<128x128xbf16>
      %c0_44 = arith.constant 0 : index
      %c0_45 = arith.constant 0 : index
      %c0_46 = arith.constant 0 : index
      %25 = vector.load %arg4[%c0_44, %c0_45, %c0_46] : memref<9x128x128xbf16, #tpu.memory_space<vmem>>, vector<1x128x128xbf16>
      %26 = vector.shape_cast %25 : vector<1x128x128xbf16> to vector<128x128xbf16>
      %cst_47 = arith.constant dense<0.000000e+00> : vector<128x128xf32>
      %27 = tpu.matmul %24, %26, %cst_47 {dimension_numbers = #tpu.dot_dimension_numbers<[1], [0], [0], [1], [0, 0, 1, 1], [], []>} : vector<128x128xbf16>, vector<128x128xbf16>, vector<128x128xf32> -> vector<128x128xf32>
      %28 = arith.addf %20, %27 : vector<128x128xf32>
      %c0_i32_48 = arith.constant 0 : i32
      %29 = arith.addi %19, %c0_i32_48 : i32
      %30 = arith.index_cast %29 : i32 to index
      %c1_49 = arith.constant 1 : index
      %c0_50 = arith.constant 0 : index
      %31 = vector.load %arg14[%30, %c1_49, %c0_50] : memref<18x18x128xbf16, #tpu.memory_space<vmem>>, vector<8x16x128xbf16>
      %32 = vector.shape_cast %31 : vector<8x16x128xbf16> to vector<128x128xbf16>
      %c1_51 = arith.constant 1 : index
      %c0_52 = arith.constant 0 : index
      %c0_53 = arith.constant 0 : index
      %33 = vector.load %arg4[%c1_51, %c0_52, %c0_53] : memref<9x128x128xbf16, #tpu.memory_space<vmem>>, vector<1x128x128xbf16>
      %34 = vector.shape_cast %33 : vector<1x128x128xbf16> to vector<128x128xbf16>
      %cst_54 = arith.constant dense<0.000000e+00> : vector<128x128xf32>
      %35 = tpu.matmul %32, %34, %cst_54 {dimension_numbers = #tpu.dot_dimension_numbers<[1], [0], [0], [1], [0, 0, 1, 1], [], []>} : vector<128x128xbf16>, vector<128x128xbf16>, vector<128x128xf32> -> vector<128x128xf32>
      %36 = arith.addf %28, %35 : vector<128x128xf32>
      %c0_i32_55 = arith.constant 0 : i32
      %37 = arith.addi %19, %c0_i32_55 : i32
      %38 = arith.index_cast %37 : i32 to index
      %c2 = arith.constant 2 : index
      %c0_56 = arith.constant 0 : index
      %39 = vector.load %arg14[%38, %c2, %c0_56] : memref<18x18x128xbf16, #tpu.memory_space<vmem>>, vector<8x16x128xbf16>
      %40 = vector.shape_cast %39 : vector<8x16x128xbf16> to vector<128x128xbf16>
      %c2_57 = arith.constant 2 : index
      %c0_58 = arith.constant 0 : index
      %c0_59 = arith.constant 0 : index
      %41 = vector.load %arg4[%c2_57, %c0_58, %c0_59] : memref<9x128x128xbf16, #tpu.memory_space<vmem>>, vector<1x128x128xbf16>
      %42 = vector.shape_cast %41 : vector<1x128x128xbf16> to vector<128x128xbf16>
      %cst_60 = arith.constant dense<0.000000e+00> : vector<128x128xf32>
      %43 = tpu.matmul %40, %42, %cst_60 {dimension_numbers = #tpu.dot_dimension_numbers<[1], [0], [0], [1], [0, 0, 1, 1], [], []>} : vector<128x128xbf16>, vector<128x128xbf16>, vector<128x128xf32> -> vector<128x128xf32>
      %44 = arith.addf %36, %43 : vector<128x128xf32>
      %c1_i32_61 = arith.constant 1 : i32
      %45 = arith.addi %19, %c1_i32_61 : i32
      %46 = arith.index_cast %45 : i32 to index
      %c0_62 = arith.constant 0 : index
      %c0_63 = arith.constant 0 : index
      %47 = vector.load %arg14[%46, %c0_62, %c0_63] : memref<18x18x128xbf16, #tpu.memory_space<vmem>>, vector<8x16x128xbf16>
      %48 = vector.shape_cast %47 : vector<8x16x128xbf16> to vector<128x128xbf16>
      %c3 = arith.constant 3 : index
      %c0_64 = arith.constant 0 : index
      %c0_65 = arith.constant 0 : index
      %49 = vector.load %arg4[%c3, %c0_64, %c0_65] : memref<9x128x128xbf16, #tpu.memory_space<vmem>>, vector<1x128x128xbf16>
      %50 = vector.shape_cast %49 : vector<1x128x128xbf16> to vector<128x128xbf16>
      %cst_66 = arith.constant dense<0.000000e+00> : vector<128x128xf32>
      %51 = tpu.matmul %48, %50, %cst_66 {dimension_numbers = #tpu.dot_dimension_numbers<[1], [0], [0], [1], [0, 0, 1, 1], [], []>} : vector<128x128xbf16>, vector<128x128xbf16>, vector<128x128xf32> -> vector<128x128xf32>
      %52 = arith.addf %44, %51 : vector<128x128xf32>
      %c1_i32_67 = arith.constant 1 : i32
      %53 = arith.addi %19, %c1_i32_67 : i32
      %54 = arith.index_cast %53 : i32 to index
      %c1_68 = arith.constant 1 : index
      %c0_69 = arith.constant 0 : index
      %55 = vector.load %arg14[%54, %c1_68, %c0_69] : memref<18x18x128xbf16, #tpu.memory_space<vmem>>, vector<8x16x128xbf16>
      %56 = vector.shape_cast %55 : vector<8x16x128xbf16> to vector<128x128xbf16>
      %c4 = arith.constant 4 : index
      %c0_70 = arith.constant 0 : index
      %c0_71 = arith.constant 0 : index
      %57 = vector.load %arg4[%c4, %c0_70, %c0_71] : memref<9x128x128xbf16, #tpu.memory_space<vmem>>, vector<1x128x128xbf16>
      %58 = vector.shape_cast %57 : vector<1x128x128xbf16> to vector<128x128xbf16>
      %cst_72 = arith.constant dense<0.000000e+00> : vector<128x128xf32>
      %59 = tpu.matmul %56, %58, %cst_72 {dimension_numbers = #tpu.dot_dimension_numbers<[1], [0], [0], [1], [0, 0, 1, 1], [], []>} : vector<128x128xbf16>, vector<128x128xbf16>, vector<128x128xf32> -> vector<128x128xf32>
      %60 = arith.addf %52, %59 : vector<128x128xf32>
      %c1_i32_73 = arith.constant 1 : i32
      %61 = arith.addi %19, %c1_i32_73 : i32
      %62 = arith.index_cast %61 : i32 to index
      %c2_74 = arith.constant 2 : index
      %c0_75 = arith.constant 0 : index
      %63 = vector.load %arg14[%62, %c2_74, %c0_75] : memref<18x18x128xbf16, #tpu.memory_space<vmem>>, vector<8x16x128xbf16>
      %64 = vector.shape_cast %63 : vector<8x16x128xbf16> to vector<128x128xbf16>
      %c5 = arith.constant 5 : index
      %c0_76 = arith.constant 0 : index
      %c0_77 = arith.constant 0 : index
      %65 = vector.load %arg4[%c5, %c0_76, %c0_77] : memref<9x128x128xbf16, #tpu.memory_space<vmem>>, vector<1x128x128xbf16>
      %66 = vector.shape_cast %65 : vector<1x128x128xbf16> to vector<128x128xbf16>
      %cst_78 = arith.constant dense<0.000000e+00> : vector<128x128xf32>
      %67 = tpu.matmul %64, %66, %cst_78 {dimension_numbers = #tpu.dot_dimension_numbers<[1], [0], [0], [1], [0, 0, 1, 1], [], []>} : vector<128x128xbf16>, vector<128x128xbf16>, vector<128x128xf32> -> vector<128x128xf32>
      %68 = arith.addf %60, %67 : vector<128x128xf32>
      %c2_i32_79 = arith.constant 2 : i32
      %69 = arith.addi %19, %c2_i32_79 : i32
      %70 = arith.index_cast %69 : i32 to index
      %c0_80 = arith.constant 0 : index
      %c0_81 = arith.constant 0 : index
      %71 = vector.load %arg14[%70, %c0_80, %c0_81] : memref<18x18x128xbf16, #tpu.memory_space<vmem>>, vector<8x16x128xbf16>
      %72 = vector.shape_cast %71 : vector<8x16x128xbf16> to vector<128x128xbf16>
      %c6 = arith.constant 6 : index
      %c0_82 = arith.constant 0 : index
      %c0_83 = arith.constant 0 : index
      %73 = vector.load %arg4[%c6, %c0_82, %c0_83] : memref<9x128x128xbf16, #tpu.memory_space<vmem>>, vector<1x128x128xbf16>
      %74 = vector.shape_cast %73 : vector<1x128x128xbf16> to vector<128x128xbf16>
      %cst_84 = arith.constant dense<0.000000e+00> : vector<128x128xf32>
      %75 = tpu.matmul %72, %74, %cst_84 {dimension_numbers = #tpu.dot_dimension_numbers<[1], [0], [0], [1], [0, 0, 1, 1], [], []>} : vector<128x128xbf16>, vector<128x128xbf16>, vector<128x128xf32> -> vector<128x128xf32>
      %76 = arith.addf %68, %75 : vector<128x128xf32>
      %c2_i32_85 = arith.constant 2 : i32
      %77 = arith.addi %19, %c2_i32_85 : i32
      %78 = arith.index_cast %77 : i32 to index
      %c1_86 = arith.constant 1 : index
      %c0_87 = arith.constant 0 : index
      %79 = vector.load %arg14[%78, %c1_86, %c0_87] : memref<18x18x128xbf16, #tpu.memory_space<vmem>>, vector<8x16x128xbf16>
      %80 = vector.shape_cast %79 : vector<8x16x128xbf16> to vector<128x128xbf16>
      %c7 = arith.constant 7 : index
      %c0_88 = arith.constant 0 : index
      %c0_89 = arith.constant 0 : index
      %81 = vector.load %arg4[%c7, %c0_88, %c0_89] : memref<9x128x128xbf16, #tpu.memory_space<vmem>>, vector<1x128x128xbf16>
      %82 = vector.shape_cast %81 : vector<1x128x128xbf16> to vector<128x128xbf16>
      %cst_90 = arith.constant dense<0.000000e+00> : vector<128x128xf32>
      %83 = tpu.matmul %80, %82, %cst_90 {dimension_numbers = #tpu.dot_dimension_numbers<[1], [0], [0], [1], [0, 0, 1, 1], [], []>} : vector<128x128xbf16>, vector<128x128xbf16>, vector<128x128xf32> -> vector<128x128xf32>
      %84 = arith.addf %76, %83 : vector<128x128xf32>
      %c2_i32_91 = arith.constant 2 : i32
      %85 = arith.addi %19, %c2_i32_91 : i32
      %86 = arith.index_cast %85 : i32 to index
      %c2_92 = arith.constant 2 : index
      %c0_93 = arith.constant 0 : index
      %87 = vector.load %arg14[%86, %c2_92, %c0_93] : memref<18x18x128xbf16, #tpu.memory_space<vmem>>, vector<8x16x128xbf16>
      %88 = vector.shape_cast %87 : vector<8x16x128xbf16> to vector<128x128xbf16>
      %c8 = arith.constant 8 : index
      %c0_94 = arith.constant 0 : index
      %c0_95 = arith.constant 0 : index
      %89 = vector.load %arg4[%c8, %c0_94, %c0_95] : memref<9x128x128xbf16, #tpu.memory_space<vmem>>, vector<1x128x128xbf16>
      %90 = vector.shape_cast %89 : vector<1x128x128xbf16> to vector<128x128xbf16>
      %cst_96 = arith.constant dense<0.000000e+00> : vector<128x128xf32>
      %91 = tpu.matmul %88, %90, %cst_96 {dimension_numbers = #tpu.dot_dimension_numbers<[1], [0], [0], [1], [0, 0, 1, 1], [], []>} : vector<128x128xbf16>, vector<128x128xbf16>, vector<128x128xf32> -> vector<128x128xf32>
      %92 = arith.addf %84, %91 : vector<128x128xf32>
      %c0_97 = arith.constant 0 : index
      %c0_98 = arith.constant 0 : index
      %93 = vector.load %arg5[%c0_97, %c0_98] : memref<1x128xf32, #tpu.memory_space<vmem>>, vector<1x128xf32>
      %94 = vector.broadcast %93 : vector<1x128xf32> to vector<128x128xf32>
      %95 = arith.addf %92, %94 : vector<128x128xf32>
      %cst_99 = arith.constant 0.000000e+00 : f32
      %96 = vector.broadcast %cst_99 : f32 to vector<128x128xf32>
      %97 = arith.maximumf %95, %96 : vector<128x128xf32>
      %98 = vector.shape_cast %97 : vector<128x128xf32> to vector<8x16x128xf32>
      %99 = arith.truncf %98 : vector<8x16x128xf32> to vector<8x16x128xbf16>
      %c1_i32_100 = arith.constant 1 : i32
      %100 = arith.addi %19, %c1_i32_100 : i32
      %101 = arith.index_cast %100 : i32 to index
      %c1_101 = arith.constant 1 : index
      %c0_102 = arith.constant 0 : index
      %102 = vector.load %arg13[%101, %c1_101, %c0_102] : memref<18x18x128xbf16, #tpu.memory_space<vmem>>, vector<8x16x128xbf16>
      tpu.vector_store %arg13[%101, %c1_101, %c0_102], %99 {strides = array<i32>} : memref<18x18x128xbf16, #tpu.memory_space<vmem>>, vector<8x16x128xbf16>,
    }
    %c2_i32_35 = arith.constant 2 : i32
    %c0_i32_36 = arith.constant 0 : i32
    %c2_i32_37 = arith.constant 2 : i32
    %17 = arith.addi %c0_i32_36, %c2_i32_37 : i32
    %c1_i32_38 = arith.constant 1 : i32
    scf.for %arg15 = %c0_i32_36 to %17 step %c1_i32_38  : i32 {
      %c8_i32 = arith.constant 8 : i32
      %18 = arith.muli %arg15, %c8_i32 : i32
      %19 = tpu.assume_multiple %18, 8 : i32
      %cst_40 = arith.constant 0.000000e+00 : f32
      %20 = vector.broadcast %cst_40 : f32 to vector<128x128xf32>
      %c0_i32_41 = arith.constant 0 : i32
      %21 = arith.addi %19, %c0_i32_41 : i32
      %22 = arith.index_cast %21 : i32 to index
      %c0_42 = arith.constant 0 : index
      %c0_43 = arith.constant 0 : index
      %23 = vector.load %arg13[%22, %c0_42, %c0_43] : memref<18x18x128xbf16, #tpu.memory_space<vmem>>, vector<8x16x128xbf16>
      %24 = vector.shape_cast %23 : vector<8x16x128xbf16> to vector<128x128xbf16>
      %c0_44 = arith.constant 0 : index
      %c0_45 = arith.constant 0 : index
      %c0_46 = arith.constant 0 : index
      %25 = vector.load %arg6[%c0_44, %c0_45, %c0_46] : memref<9x128x128xbf16, #tpu.memory_space<vmem>>, vector<1x128x128xbf16>
      %26 = vector.shape_cast %25 : vector<1x128x128xbf16> to vector<128x128xbf16>
      %cst_47 = arith.constant dense<0.000000e+00> : vector<128x128xf32>
      %27 = tpu.matmul %24, %26, %cst_47 {dimension_numbers = #tpu.dot_dimension_numbers<[1], [0], [0], [1], [0, 0, 1, 1], [], []>} : vector<128x128xbf16>, vector<128x128xbf16>, vector<128x128xf32> -> vector<128x128xf32>
      %28 = arith.addf %20, %27 : vector<128x128xf32>
      %c0_i32_48 = arith.constant 0 : i32
      %29 = arith.addi %19, %c0_i32_48 : i32
      %30 = arith.index_cast %29 : i32 to index
      %c1_49 = arith.constant 1 : index
      %c0_50 = arith.constant 0 : index
      %31 = vector.load %arg13[%30, %c1_49, %c0_50] : memref<18x18x128xbf16, #tpu.memory_space<vmem>>, vector<8x16x128xbf16>
      %32 = vector.shape_cast %31 : vector<8x16x128xbf16> to vector<128x128xbf16>
      %c1_51 = arith.constant 1 : index
      %c0_52 = arith.constant 0 : index
      %c0_53 = arith.constant 0 : index
      %33 = vector.load %arg6[%c1_51, %c0_52, %c0_53] : memref<9x128x128xbf16, #tpu.memory_space<vmem>>, vector<1x128x128xbf16>
      %34 = vector.shape_cast %33 : vector<1x128x128xbf16> to vector<128x128xbf16>
      %cst_54 = arith.constant dense<0.000000e+00> : vector<128x128xf32>
      %35 = tpu.matmul %32, %34, %cst_54 {dimension_numbers = #tpu.dot_dimension_numbers<[1], [0], [0], [1], [0, 0, 1, 1], [], []>} : vector<128x128xbf16>, vector<128x128xbf16>, vector<128x128xf32> -> vector<128x128xf32>
      %36 = arith.addf %28, %35 : vector<128x128xf32>
      %c0_i32_55 = arith.constant 0 : i32
      %37 = arith.addi %19, %c0_i32_55 : i32
      %38 = arith.index_cast %37 : i32 to index
      %c2 = arith.constant 2 : index
      %c0_56 = arith.constant 0 : index
      %39 = vector.load %arg13[%38, %c2, %c0_56] : memref<18x18x128xbf16, #tpu.memory_space<vmem>>, vector<8x16x128xbf16>
      %40 = vector.shape_cast %39 : vector<8x16x128xbf16> to vector<128x128xbf16>
      %c2_57 = arith.constant 2 : index
      %c0_58 = arith.constant 0 : index
      %c0_59 = arith.constant 0 : index
      %41 = vector.load %arg6[%c2_57, %c0_58, %c0_59] : memref<9x128x128xbf16, #tpu.memory_space<vmem>>, vector<1x128x128xbf16>
      %42 = vector.shape_cast %41 : vector<1x128x128xbf16> to vector<128x128xbf16>
      %cst_60 = arith.constant dense<0.000000e+00> : vector<128x128xf32>
      %43 = tpu.matmul %40, %42, %cst_60 {dimension_numbers = #tpu.dot_dimension_numbers<[1], [0], [0], [1], [0, 0, 1, 1], [], []>} : vector<128x128xbf16>, vector<128x128xbf16>, vector<128x128xf32> -> vector<128x128xf32>
      %44 = arith.addf %36, %43 : vector<128x128xf32>
      %c1_i32_61 = arith.constant 1 : i32
      %45 = arith.addi %19, %c1_i32_61 : i32
      %46 = arith.index_cast %45 : i32 to index
      %c0_62 = arith.constant 0 : index
      %c0_63 = arith.constant 0 : index
      %47 = vector.load %arg13[%46, %c0_62, %c0_63] : memref<18x18x128xbf16, #tpu.memory_space<vmem>>, vector<8x16x128xbf16>
      %48 = vector.shape_cast %47 : vector<8x16x128xbf16> to vector<128x128xbf16>
      %c3 = arith.constant 3 : index
      %c0_64 = arith.constant 0 : index
      %c0_65 = arith.constant 0 : index
      %49 = vector.load %arg6[%c3, %c0_64, %c0_65] : memref<9x128x128xbf16, #tpu.memory_space<vmem>>, vector<1x128x128xbf16>
      %50 = vector.shape_cast %49 : vector<1x128x128xbf16> to vector<128x128xbf16>
      %cst_66 = arith.constant dense<0.000000e+00> : vector<128x128xf32>
      %51 = tpu.matmul %48, %50, %cst_66 {dimension_numbers = #tpu.dot_dimension_numbers<[1], [0], [0], [1], [0, 0, 1, 1], [], []>} : vector<128x128xbf16>, vector<128x128xbf16>, vector<128x128xf32> -> vector<128x128xf32>
      %52 = arith.addf %44, %51 : vector<128x128xf32>
      %c1_i32_67 = arith.constant 1 : i32
      %53 = arith.addi %19, %c1_i32_67 : i32
      %54 = arith.index_cast %53 : i32 to index
      %c1_68 = arith.constant 1 : index
      %c0_69 = arith.constant 0 : index
      %55 = vector.load %arg13[%54, %c1_68, %c0_69] : memref<18x18x128xbf16, #tpu.memory_space<vmem>>, vector<8x16x128xbf16>
      %56 = vector.shape_cast %55 : vector<8x16x128xbf16> to vector<128x128xbf16>
      %c4 = arith.constant 4 : index
      %c0_70 = arith.constant 0 : index
      %c0_71 = arith.constant 0 : index
      %57 = vector.load %arg6[%c4, %c0_70, %c0_71] : memref<9x128x128xbf16, #tpu.memory_space<vmem>>, vector<1x128x128xbf16>
      %58 = vector.shape_cast %57 : vector<1x128x128xbf16> to vector<128x128xbf16>
      %cst_72 = arith.constant dense<0.000000e+00> : vector<128x128xf32>
      %59 = tpu.matmul %56, %58, %cst_72 {dimension_numbers = #tpu.dot_dimension_numbers<[1], [0], [0], [1], [0, 0, 1, 1], [], []>} : vector<128x128xbf16>, vector<128x128xbf16>, vector<128x128xf32> -> vector<128x128xf32>
      %60 = arith.addf %52, %59 : vector<128x128xf32>
      %c1_i32_73 = arith.constant 1 : i32
      %61 = arith.addi %19, %c1_i32_73 : i32
      %62 = arith.index_cast %61 : i32 to index
      %c2_74 = arith.constant 2 : index
      %c0_75 = arith.constant 0 : index
      %63 = vector.load %arg13[%62, %c2_74, %c0_75] : memref<18x18x128xbf16, #tpu.memory_space<vmem>>, vector<8x16x128xbf16>
      %64 = vector.shape_cast %63 : vector<8x16x128xbf16> to vector<128x128xbf16>
      %c5 = arith.constant 5 : index
      %c0_76 = arith.constant 0 : index
      %c0_77 = arith.constant 0 : index
      %65 = vector.load %arg6[%c5, %c0_76, %c0_77] : memref<9x128x128xbf16, #tpu.memory_space<vmem>>, vector<1x128x128xbf16>
      %66 = vector.shape_cast %65 : vector<1x128x128xbf16> to vector<128x128xbf16>
      %cst_78 = arith.constant dense<0.000000e+00> : vector<128x128xf32>
      %67 = tpu.matmul %64, %66, %cst_78 {dimension_numbers = #tpu.dot_dimension_numbers<[1], [0], [0], [1], [0, 0, 1, 1], [], []>} : vector<128x128xbf16>, vector<128x128xbf16>, vector<128x128xf32> -> vector<128x128xf32>
      %68 = arith.addf %60, %67 : vector<128x128xf32>
      %c2_i32_79 = arith.constant 2 : i32
      %69 = arith.addi %19, %c2_i32_79 : i32
      %70 = arith.index_cast %69 : i32 to index
      %c0_80 = arith.constant 0 : index
      %c0_81 = arith.constant 0 : index
      %71 = vector.load %arg13[%70, %c0_80, %c0_81] : memref<18x18x128xbf16, #tpu.memory_space<vmem>>, vector<8x16x128xbf16>
      %72 = vector.shape_cast %71 : vector<8x16x128xbf16> to vector<128x128xbf16>
      %c6 = arith.constant 6 : index
      %c0_82 = arith.constant 0 : index
      %c0_83 = arith.constant 0 : index
      %73 = vector.load %arg6[%c6, %c0_82, %c0_83] : memref<9x128x128xbf16, #tpu.memory_space<vmem>>, vector<1x128x128xbf16>
      %74 = vector.shape_cast %73 : vector<1x128x128xbf16> to vector<128x128xbf16>
      %cst_84 = arith.constant dense<0.000000e+00> : vector<128x128xf32>
      %75 = tpu.matmul %72, %74, %cst_84 {dimension_numbers = #tpu.dot_dimension_numbers<[1], [0], [0], [1], [0, 0, 1, 1], [], []>} : vector<128x128xbf16>, vector<128x128xbf16>, vector<128x128xf32> -> vector<128x128xf32>
      %76 = arith.addf %68, %75 : vector<128x128xf32>
      %c2_i32_85 = arith.constant 2 : i32
      %77 = arith.addi %19, %c2_i32_85 : i32
      %78 = arith.index_cast %77 : i32 to index
      %c1_86 = arith.constant 1 : index
      %c0_87 = arith.constant 0 : index
      %79 = vector.load %arg13[%78, %c1_86, %c0_87] : memref<18x18x128xbf16, #tpu.memory_space<vmem>>, vector<8x16x128xbf16>
      %80 = vector.shape_cast %79 : vector<8x16x128xbf16> to vector<128x128xbf16>
      %c7 = arith.constant 7 : index
      %c0_88 = arith.constant 0 : index
      %c0_89 = arith.constant 0 : index
      %81 = vector.load %arg6[%c7, %c0_88, %c0_89] : memref<9x128x128xbf16, #tpu.memory_space<vmem>>, vector<1x128x128xbf16>
      %82 = vector.shape_cast %81 : vector<1x128x128xbf16> to vector<128x128xbf16>
      %cst_90 = arith.constant dense<0.000000e+00> : vector<128x128xf32>
      %83 = tpu.matmul %80, %82, %cst_90 {dimension_numbers = #tpu.dot_dimension_numbers<[1], [0], [0], [1], [0, 0, 1, 1], [], []>} : vector<128x128xbf16>, vector<128x128xbf16>, vector<128x128xf32> -> vector<128x128xf32>
      %84 = arith.addf %76, %83 : vector<128x128xf32>
      %c2_i32_91 = arith.constant 2 : i32
      %85 = arith.addi %19, %c2_i32_91 : i32
      %86 = arith.index_cast %85 : i32 to index
      %c2_92 = arith.constant 2 : index
      %c0_93 = arith.constant 0 : index
      %87 = vector.load %arg13[%86, %c2_92, %c0_93] : memref<18x18x128xbf16, #tpu.memory_space<vmem>>, vector<8x16x128xbf16>
      %88 = vector.shape_cast %87 : vector<8x16x128xbf16> to vector<128x128xbf16>
      %c8 = arith.constant 8 : index
      %c0_94 = arith.constant 0 : index
      %c0_95 = arith.constant 0 : index
      %89 = vector.load %arg6[%c8, %c0_94, %c0_95] : memref<9x128x128xbf16, #tpu.memory_space<vmem>>, vector<1x128x128xbf16>
      %90 = vector.shape_cast %89 : vector<1x128x128xbf16> to vector<128x128xbf16>
      %cst_96 = arith.constant dense<0.000000e+00> : vector<128x128xf32>
      %91 = tpu.matmul %88, %90, %cst_96 {dimension_numbers = #tpu.dot_dimension_numbers<[1], [0], [0], [1], [0, 0, 1, 1], [], []>} : vector<128x128xbf16>, vector<128x128xbf16>, vector<128x128xf32> -> vector<128x128xf32>
      %92 = arith.addf %84, %91 : vector<128x128xf32>
      %c0_97 = arith.constant 0 : index
      %c0_98 = arith.constant 0 : index
      %93 = vector.load %arg7[%c0_97, %c0_98] : memref<1x128xf32, #tpu.memory_space<vmem>>, vector<1x128xf32>
      %94 = vector.broadcast %93 : vector<1x128xf32> to vector<128x128xf32>
      %95 = arith.addf %92, %94 : vector<128x128xf32>
      %cst_99 = arith.constant 0.000000e+00 : f32
      %96 = vector.broadcast %cst_99 : f32 to vector<128x128xf32>
      %97 = arith.maximumf %95, %96 : vector<128x128xf32>
      %98 = arith.truncf %97 : vector<128x128xf32> to vector<128x128xbf16>
      %c0_100 = arith.constant 0 : index
      %c0_101 = arith.constant 0 : index
      %99 = vector.load %arg8[%c0_100, %c0_101] : memref<128x512xbf16, #tpu.memory_space<vmem>>, vector<128x512xbf16>
      %cst_102 = arith.constant dense<0.000000e+00> : vector<128x512xf32>
      %100 = tpu.matmul %98, %99, %cst_102 {dimension_numbers = #tpu.dot_dimension_numbers<[1], [0], [0], [1], [0, 0, 1, 1], [], []>} : vector<128x128xbf16>, vector<128x512xbf16>, vector<128x512xf32> -> vector<128x512xf32>
      %c0_103 = arith.constant 0 : index
      %c0_104 = arith.constant 0 : index
      %101 = vector.load %arg9[%c0_103, %c0_104] : memref<1x512xf32, #tpu.memory_space<vmem>>, vector<1x512xf32>
      %102 = vector.broadcast %101 : vector<1x512xf32> to vector<128x512xf32>
      %103 = arith.addf %100, %102 : vector<128x512xf32>
      %cst_105 = arith.constant 0.000000e+00 : f32
      %104 = vector.broadcast %cst_105 : f32 to vector<128x512xf32>
      %105 = arith.maximumf %103, %104 : vector<128x512xf32>
      %106 = arith.truncf %105 : vector<128x512xf32> to vector<128x512xbf16>
      %c0_106 = arith.constant 0 : index
      %c0_107 = arith.constant 0 : index
      %107 = vector.load %arg10[%c0_106, %c0_107] : memref<512x128xbf16, #tpu.memory_space<vmem>>, vector<512x128xbf16>
      %cst_108 = arith.constant dense<0.000000e+00> : vector<128x128xf32>
      %108 = tpu.matmul %106, %107, %cst_108 {dimension_numbers = #tpu.dot_dimension_numbers<[1], [0], [0], [1], [0, 0, 1, 1], [], []>} : vector<128x512xbf16>, vector<512x128xbf16>, vector<128x128xf32> -> vector<128x128xf32>
      %c0_109 = arith.constant 0 : index
      %c0_110 = arith.constant 0 : index
      %109 = vector.load %arg11[%c0_109, %c0_110] : memref<1x128xf32, #tpu.memory_space<vmem>>, vector<1x128xf32>
      %110 = vector.broadcast %109 : vector<1x128xf32> to vector<128x128xf32>
      %111 = arith.addf %108, %110 : vector<128x128xf32>
      %112 = vector.shape_cast %111 : vector<128x128xf32> to vector<8x16x128xf32>
      %c0_111 = arith.constant 0 : index
      %113 = arith.index_cast %19 : i32 to index
      %c0_112 = arith.constant 0 : index
      %c0_113 = arith.constant 0 : index
      %114 = vector.load %arg12[%c0_111, %113, %c0_112, %c0_113] : memref<1x16x16x128xf32, #tpu.memory_space<vmem>>, vector<1x8x16x128xf32>
      %115 = vector.shape_cast %114 : vector<1x8x16x128xf32> to vector<8x16x128xf32>
      %116 = vector.shape_cast %112 : vector<8x16x128xf32> to vector<1x8x16x128xf32>
      tpu.vector_store %arg12[%c0_111, %113, %c0_112, %c0_113], %116 {strides = array<i32>} : memref<1x16x16x128xf32, #tpu.memory_space<vmem>>, vector<1x8x16x128xf32>,
    }
    %c2_i32_39 = arith.constant 2 : i32
    return
  }
  func.func @transform_0(%arg0: i32) -> (i32, i32, i32, i32) {
    %c0_i32 = arith.constant 0 : i32
    %c0_i32_0 = arith.constant 0 : i32
    %c0_i32_1 = arith.constant 0 : i32
    %c0_i32_2 = arith.constant 0 : i32
    return %arg0, %c0_i32, %c0_i32_0, %c0_i32_1 : i32, i32, i32, i32
  }
  func.func @transform_1(%arg0: i32) -> (i32, i32, i32) {
    %c0_i32 = arith.constant 0 : i32
    %c0_i32_0 = arith.constant 0 : i32
    %c0_i32_1 = arith.constant 0 : i32
    %c0_i32_2 = arith.constant 0 : i32
    return %c0_i32, %c0_i32_0, %c0_i32_1 : i32, i32, i32
  }
  func.func @transform_2(%arg0: i32) -> (i32, i32) {
    %c0_i32 = arith.constant 0 : i32
    %c0_i32_0 = arith.constant 0 : i32
    %c0_i32_1 = arith.constant 0 : i32
    return %c0_i32, %c0_i32_0 : i32, i32
  }
  func.func @transform_3(%arg0: i32) -> (i32, i32, i32) {
    %c0_i32 = arith.constant 0 : i32
    %c0_i32_0 = arith.constant 0 : i32
    %c0_i32_1 = arith.constant 0 : i32
    %c0_i32_2 = arith.constant 0 : i32
    return %c0_i32, %c0_i32_0, %c0_i32_1 : i32, i32, i32
  }
  func.func @transform_4(%arg0: i32) -> (i32, i32) {
    %c0_i32 = arith.constant 0 : i32
    %c0_i32_0 = arith.constant 0 : i32
    %c0_i32_1 = arith.constant 0 : i32
    return %c0_i32, %c0_i32_0 : i32, i32
  }
  func.func @transform_5(%arg0: i32) -> (i32, i32, i32) {
    %c0_i32 = arith.constant 0 : i32
    %c0_i32_0 = arith.constant 0 : i32
    %c0_i32_1 = arith.constant 0 : i32
    %c0_i32_2 = arith.constant 0 : i32
    return %c0_i32, %c0_i32_0, %c0_i32_1 : i32, i32, i32
  }
  func.func @transform_6(%arg0: i32) -> (i32, i32) {
    %c0_i32 = arith.constant 0 : i32
    %c0_i32_0 = arith.constant 0 : i32
    %c0_i32_1 = arith.constant 0 : i32
    return %c0_i32, %c0_i32_0 : i32, i32
  }
  func.func @transform_7(%arg0: i32) -> (i32, i32) {
    %c0_i32 = arith.constant 0 : i32
    %c0_i32_0 = arith.constant 0 : i32
    %c0_i32_1 = arith.constant 0 : i32
    return %c0_i32, %c0_i32_0 : i32, i32
  }
  func.func @transform_8(%arg0: i32) -> (i32, i32) {
    %c0_i32 = arith.constant 0 : i32
    %c0_i32_0 = arith.constant 0 : i32
    %c0_i32_1 = arith.constant 0 : i32
    return %c0_i32, %c0_i32_0 : i32, i32
  }
  func.func @transform_9(%arg0: i32) -> (i32, i32) {
    %c0_i32 = arith.constant 0 : i32
    %c0_i32_0 = arith.constant 0 : i32
    %c0_i32_1 = arith.constant 0 : i32
    return %c0_i32, %c0_i32_0 : i32, i32
  }
  func.func @transform_10(%arg0: i32) -> (i32, i32) {
    %c0_i32 = arith.constant 0 : i32
    %c0_i32_0 = arith.constant 0 : i32
    %c0_i32_1 = arith.constant 0 : i32
    return %c0_i32, %c0_i32_0 : i32, i32
  }
  func.func @transform_11(%arg0: i32) -> (i32, i32, i32, i32) {
    %c0_i32 = arith.constant 0 : i32
    %c0_i32_0 = arith.constant 0 : i32
    %c0_i32_1 = arith.constant 0 : i32
    %c0_i32_2 = arith.constant 0 : i32
    return %arg0, %c0_i32, %c0_i32_0, %c0_i32_1 : i32, i32, i32, i32
  }
}

</mosaic_0001>

<llo_original>
// kernel: tpu_custom_call.1
$region0: #{tpu_custom_call.1}
  #allocation0 [shape = 'u32[]', space=smem, size = 0x4, offset = 0x4, fixed_abs, tag = 'smem constant byte address 0x4 - core index']
  #allocation1 [shape = 'u32[144,128]{1,0:T(1,128)}', space=vmem, size = 0x12000, scoped, tag = 'internal scratch']
  #allocation2 [shape = 'bf16[18,18,128]{2,1,0:T(8,128)(2,1)}', space=vmem, size = 0x1b000, scoped, tag = 'scratch operand']
  #allocation3 [shape = 'bf16[18,18,128]{2,1,0:T(8,128)(2,1)}', space=vmem, size = 0x1b000, scoped, tag = 'scratch operand']
  %s0 = inlined_call_operand.hbm [shape: bf16[2,16,16,128], index: 0, kind: input, shape index: {}]
  %s1 = inlined_call_operand.hbm [shape: bf16[9,128,128], index: 1, kind: input, shape index: {}]
  %s2 = inlined_call_operand.hbm [shape: f32[1,128], index: 2, kind: input, shape index: {}]
  %s3 = inlined_call_operand.hbm [shape: bf16[9,128,128], index: 3, kind: input, shape index: {}]
  %s4 = inlined_call_operand.hbm [shape: f32[1,128], index: 4, kind: input, shape index: {}]
  %s5 = inlined_call_operand.hbm [shape: bf16[9,128,128], index: 5, kind: input, shape index: {}]
  %s6 = inlined_call_operand.hbm [shape: f32[1,128], index: 6, kind: input, shape index: {}]
  %s7 = inlined_call_operand.hbm [shape: bf16[128,512], index: 7, kind: input, shape index: {}]
  %s8 = inlined_call_operand.hbm [shape: f32[1,512], index: 8, kind: input, shape index: {}]
  %s9 = inlined_call_operand.hbm [shape: bf16[512,128], index: 9, kind: input, shape index: {}]
  %s10 = inlined_call_operand.hbm [shape: f32[1,128], index: 10, kind: input, shape index: {}]
  %s11 = inlined_call_operand.hbm [shape: f32[2,16,16,128], index: 11, kind: output, shape index: {}]
  %s12 = sld [smem:[#allocation0]]
  $region142: #{tpu_custom_call.1} parent=0
    _
  %s14 = ssub.s32 1, %s12
  %s15 = scalar_select 0, %s14, %s12
  $region1: #{tpu_custom_call.1} parent=0
    #allocation4 [shape = 'u8[131072]{0}', space=vmem, size = 0x20000, scoped, tag = 'input window, operand 0']
    #allocation5 [shape = 's32[2]{0}', space=sflag, size = 0x8, scoped, tag = 'scoped memory for tpu_custom_call.1']
    #allocation6 [shape = 's32[2]{0}', space=sflag, size = 0x8, scoped, tag = 'scoped memory for tpu_custom_call.1']
    #allocation7 [shape = 'u8[294912]{0}', space=vmem, size = 0x48000, scoped, tag = 'input window, operand 1, single buffered']
    #allocation8 [shape = 's32[1]{0}', space=sflag, size = 0x4, scoped, tag = 'scoped memory for tpu_custom_call.1']
    #allocation9 [shape = 'u8[512]{0}', space=vmem, size = 0x400, scoped, tag = 'input window, operand 2, single buffered']
    #allocation10 [shape = 'u8[294912]{0}', space=vmem, size = 0x48000, scoped, tag = 'input window, operand 3, single buffered']
    #allocation11 [shape = 's32[1]{0}', space=sflag, size = 0x4, scoped, tag = 'scoped memory for tpu_custom_call.1']
    #allocation12 [shape = 'u8[512]{0}', space=vmem, size = 0x400, scoped, tag = 'input window, operand 4, single buffered']
    #allocation13 [shape = 'u8[294912]{0}', space=vmem, size = 0x48000, scoped, tag = 'input window, operand 5, single buffered']
    #allocation14 [shape = 's32[1]{0}', space=sflag, size = 0x4, scoped, tag = 'scoped memory for tpu_custom_call.1']
    #allocation15 [shape = 'u8[512]{0}', space=vmem, size = 0x400, scoped, tag = 'input window, operand 6, single buffered']
    #allocation16 [shape = 'u8[131072]{0}', space=vmem, size = 0x20000, scoped, tag = 'input window, operand 7, single buffered']
    #allocation17 [shape = 's32[1]{0}', space=sflag, size = 0x4, scoped, tag = 'scoped memory for tpu_custom_call.1']
    #allocation18 [shape = 'u8[2048]{0}', space=vmem, size = 0x800, scoped, tag = 'input window, operand 8, single buffered']
    #allocation19 [shape = 'u8[131072]{0}', space=vmem, size = 0x20000, scoped, tag = 'input window, operand 9, single buffered']
    #allocation20 [shape = 's32[1]{0}', space=sflag, size = 0x4, scoped, tag = 'scoped memory for tpu_custom_call.1']
    #allocation21 [shape = 'u8[512]{0}', space=vmem, size = 0x400, scoped, tag = 'input window, operand 10, single buffered']
    #allocation22 [shape = 'u8[262144]{0}', space=vmem, size = 0x40000, scoped, tag = 'output window, operand 0']
    %16 = vsyncpa [#allocation5], 0
    %s17 = scalar_lea.sflag [#allocation5], 1
    %18 = vsyncpa %s17, 0
    %19 = vsyncpa [#allocation8], 0
    %20 = vsyncpa [#allocation11], 0
    %21 = vsyncpa [#allocation14], 0
    %22 = vsyncpa [#allocation17], 0
    %23 = vsyncpa [#allocation20], 0
    %24 = vsyncpa [#allocation6], 0
    %s25 = scalar_lea.sflag [#allocation6], 1
    %26 = vsyncpa %s25, 0
    loop: start=0, step=1, limit=4
    $region2: #{tpu_custom_call.1} parent=1 // loop_pre_header
      _
    $region3: #{tpu_custom_call.1} parent=1 // loop_header
      %s28 = sphi 0, %s32
      %p29 = scmp.ge.s32.totalorder %s28, 4
      %s38 = sphi 0, %s40
      %s41 = sphi 0, %s38
      %s42 = sphi 0, %s41
      %s58 = sphi 0, %s42
      %s62 = sphi 0, %s62
      %s64 = sphi 0, %s62
      %s65 = sphi 0, %s64
      %s79 = sphi 0, %s65
      %s83 = sphi 0, %s83
      %s85 = sphi 0, %s83
      %s86 = sphi 0, %s85
      %s100 = sphi 0, %s86
      %s104 = sphi 0, %s104
      %s106 = sphi 0, %s104
      %s107 = sphi 0, %s106
      %s121 = sphi 0, %s107
      %s125 = sphi 0, %s125
      %s127 = sphi 0, %s125
      %s128 = sphi 0, %s127
      %s142 = sphi 0, %s128
      %s146 = sphi 0, %s146
      %s148 = sphi 0, %s146
      %s149 = sphi 0, %s148
      %s163 = sphi 0, %s149
      %s167 = sphi 0, %s167
      %s169 = sphi 0, %s167
      %s170 = sphi 0, %s169
      %s184 = sphi 0, %s170
      %s188 = sphi 0, %s188
      %s190 = sphi 0, %s188
      %s191 = sphi 0, %s190
      %s205 = sphi 0, %s191
      %s209 = sphi 0, %s209
      %s211 = sphi 0, %s209
      %s212 = sphi 0, %s211
      %s226 = sphi 0, %s212
      %s230 = sphi 0, %s230
      %s232 = sphi 0, %s230
      %s233 = sphi 0, %s232
      %s247 = sphi 0, %s233
      %s251 = sphi 0, %s251
      %s253 = sphi 0, %s251
      %s254 = sphi 0, %s253
      %s268 = sphi 0, %s254
      %s274 = sphi 0, %s276
      %s277 = sphi 0, %s274
      %s278 = sphi 0, %s277
      %s294 = sphi 0, %s278
    $region4: #{tpu_custom_call.1} parent=1 // loop_header_branch
      %31 = sbr.rel (%p29) target = $region8
    $region5: #{tpu_custom_call.1} parent=1 // loop_body
      %s33 = ssub.s32 %s28, 1
      %s34 = ssub.s32 %s28, 2
      %s35 = sadd.s32 %s28, 1
      %s36 = ssub.s32 %s28, %s35
      %p37 = scmp.eq.s32.totalorder %s36, 0
      %s39 = sadd.s32 %s38, 1
      %s40 = scalar_select %p37, %s38, %s39
      %p43 = pneg %p37
      %p44 = scmp.eq.s32.totalorder %s28, 1
      %p45 = por %p43, %p44
      %p46 = scmp.ne.s32.totalorder %s38, %s41
      %p47 = scmp.eq.s32.totalorder %s28, 0
      %p48 = por %p46, %p47
      %p49 = scmp.ne.s32.totalorder %s38, %s41
      %p50 = scmp.eq.s32.totalorder %s33, 1
      %p51 = por %p49, %p50
      %p52 = scmp.ne.s32.totalorder %s41, %s42
      %p53 = scmp.eq.s32.totalorder %s33, 0
      %p54 = por %p52, %p53
      %p55 = scmp.ne.s32.totalorder %s41, %s42
      %p56 = scmp.eq.s32.totalorder %s34, 1
      %p57 = por %p55, %p56
      %p59 = scmp.ne.s32.totalorder %s42, %s58
      %p60 = scmp.eq.s32.totalorder %s34, 0
      %p61 = por %p59, %p60
      %s63 = sadd.s32 %s62, 1
      %p66 = scmp.eq.s32.totalorder %s28, 1
      %p67 = scmp.ne.s32.totalorder %s62, %s64
      %p68 = scmp.eq.s32.totalorder %s28, 0
      %p69 = por %p67, %p68
      %p70 = scmp.ne.s32.totalorder %s62, %s64
      %p71 = scmp.eq.s32.totalorder %s33, 1
      %p72 = por %p70, %p71
      %p73 = scmp.ne.s32.totalorder %s64, %s65
      %p74 = scmp.eq.s32.totalorder %s33, 0
      %p75 = por %p73, %p74
      %p76 = scmp.ne.s32.totalorder %s64, %s65
      %p77 = scmp.eq.s32.totalorder %s34, 1
      %p78 = por %p76, %p77
      %p80 = scmp.ne.s32.totalorder %s65, %s79
      %p81 = scmp.eq.s32.totalorder %s34, 0
      %p82 = por %p80, %p81
      %s84 = sadd.s32 %s83, 1
      %p87 = scmp.eq.s32.totalorder %s28, 1
      %p88 = scmp.ne.s32.totalorder %s83, %s85
      %p89 = scmp.eq.s32.totalorder %s28, 0
      %p90 = por %p88, %p89
      %p91 = scmp.ne.s32.totalorder %s83, %s85
      %p92 = scmp.eq.s32.totalorder %s33, 1
      %p93 = por %p91, %p92
      %p94 = scmp.ne.s32.totalorder %s85, %s86
      %p95 = scmp.eq.s32.totalorder %s33, 0
      %p96 = por %p94, %p95
      %p97 = scmp.ne.s32.totalorder %s85, %s86
      %p98 = scmp.eq.s32.totalorder %s34, 1
      %p99 = por %p97, %p98
      %p101 = scmp.ne.s32.totalorder %s86, %s100
      %p102 = scmp.eq.s32.totalorder %s34, 0
      %p103 = por %p101, %p102
      %s105 = sadd.s32 %s104, 1
      %p108 = scmp.eq.s32.totalorder %s28, 1
      %p109 = scmp.ne.s32.totalorder %s104, %s106
      %p110 = scmp.eq.s32.totalorder %s28, 0
      %p111 = por %p109, %p110
      %p112 = scmp.ne.s32.totalorder %s104, %s106
      %p113 = scmp.eq.s32.totalorder %s33, 1
      %p114 = por %p112, %p113
      %p115 = scmp.ne.s32.totalorder %s106, %s107
      %p116 = scmp.eq.s32.totalorder %s33, 0
      %p117 = por %p115, %p116
      %p118 = scmp.ne.s32.totalorder %s106, %s107
      %p119 = scmp.eq.s32.totalorder %s34, 1
      %p120 = por %p118, %p119
      %p122 = scmp.ne.s32.totalorder %s107, %s121
      %p123 = scmp.eq.s32.totalorder %s34, 0
      %p124 = por %p122, %p123
      %s126 = sadd.s32 %s125, 1
      %p129 = scmp.eq.s32.totalorder %s28, 1
      %p130 = scmp.ne.s32.totalorder %s125, %s127
      %p131 = scmp.eq.s32.totalorder %s28, 0
      %p132 = por %p130, %p131
      %p133 = scmp.ne.s32.totalorder %s125, %s127
      %p134 = scmp.eq.s32.totalorder %s33, 1
      %p135 = por %p133, %p134
      %p136 = scmp.ne.s32.totalorder %s127, %s128
      %p137 = scmp.eq.s32.totalorder %s33, 0
      %p138 = por %p136, %p137
      %p139 = scmp.ne.s32.totalorder %s127, %s128
      %p140 = scmp.eq.s32.totalorder %s34, 1
      %p141 = por %p139, %p140
      %p143 = scmp.ne.s32.totalorder %s128, %s142
      %p144 = scmp.eq.s32.totalorder %s34, 0
      %p145 = por %p143, %p144
      %s147 = sadd.s32 %s146, 1
      %p150 = scmp.eq.s32.totalorder %s28, 1
      %p151 = scmp.ne.s32.totalorder %s146, %s148
      %p152 = scmp.eq.s32.totalorder %s28, 0
      %p153 = por %p151, %p152
      %p154 = scmp.ne.s32.totalorder %s146, %s148
      %p155 = scmp.eq.s32.totalorder %s33, 1
      %p156 = por %p154, %p155
      %p157 = scmp.ne.s32.totalorder %s148, %s149
      %p158 = scmp.eq.s32.totalorder %s33, 0
      %p159 = por %p157, %p158
      %p160 = scmp.ne.s32.totalorder %s148, %s149
      %p161 = scmp.eq.s32.totalorder %s34, 1
      %p162 = por %p160, %p161
      %p164 = scmp.ne.s32.totalorder %s149, %s163
      %p165 = scmp.eq.s32.totalorder %s34, 0
      %p166 = por %p164, %p165
      %s168 = sadd.s32 %s167, 1
      %p171 = scmp.eq.s32.totalorder %s28, 1
      %p172 = scmp.ne.s32.totalorder %s167, %s169
      %p173 = scmp.eq.s32.totalorder %s28, 0
      %p174 = por %p172, %p173
      %p175 = scmp.ne.s32.totalorder %s167, %s169
      %p176 = scmp.eq.s32.totalorder %s33, 1
      %p177 = por %p175, %p176
      %p178 = scmp.ne.s32.totalorder %s169, %s170
      %p179 = scmp.eq.s32.totalorder %s33, 0
      %p180 = por %p178, %p179
      %p181 = scmp.ne.s32.totalorder %s169, %s170
      %p182 = scmp.eq.s32.totalorder %s34, 1
      %p183 = por %p181, %p182
      %p185 = scmp.ne.s32.totalorder %s170, %s184
      %p186 = scmp.eq.s32.totalorder %s34, 0
      %p187 = por %p185, %p186
      %s189 = sadd.s32 %s188, 1
      %p192 = scmp.eq.s32.totalorder %s28, 1
      %p193 = scmp.ne.s32.totalorder %s188, %s190
      %p194 = scmp.eq.s32.totalorder %s28, 0
      %p195 = por %p193, %p194
      %p196 = scmp.ne.s32.totalorder %s188, %s190
      %p197 = scmp.eq.s32.totalorder %s33, 1
      %p198 = por %p196, %p197
      %p199 = scmp.ne.s32.totalorder %s190, %s191
      %p200 = scmp.eq.s32.totalorder %s33, 0
      %p201 = por %p199, %p200
      %p202 = scmp.ne.s32.totalorder %s190, %s191
      %p203 = scmp.eq.s32.totalorder %s34, 1
      %p204 = por %p202, %p203
      %p206 = scmp.ne.s32.totalorder %s191, %s205
      %p207 = scmp.eq.s32.totalorder %s34, 0
      %p208 = por %p206, %p207
      %s210 = sadd.s32 %s209, 1
      %p213 = scmp.eq.s32.totalorder %s28, 1
      %p214 = scmp.ne.s32.totalorder %s209, %s211
      %p215 = scmp.eq.s32.totalorder %s28, 0
      %p216 = por %p214, %p215
      %p217 = scmp.ne.s32.totalorder %s209, %s211
      %p218 = scmp.eq.s32.totalorder %s33, 1
      %p219 = por %p217, %p218
      %p220 = scmp.ne.s32.totalorder %s211, %s212
      %p221 = scmp.eq.s32.totalorder %s33, 0
      %p222 = por %p220, %p221
      %p223 = scmp.ne.s32.totalorder %s211, %s212
      %p224 = scmp.eq.s32.totalorder %s34, 1
      %p225 = por %p223, %p224
      %p227 = scmp.ne.s32.totalorder %s212, %s226
      %p228 = scmp.eq.s32.totalorder %s34, 0
      %p229 = por %p227, %p228
      %s231 = sadd.s32 %s230, 1
      %p234 = scmp.eq.s32.totalorder %s28, 1
      %p235 = scmp.ne.s32.totalorder %s230, %s232
      %p236 = scmp.eq.s32.totalorder %s28, 0
      %p237 = por %p235, %p236
      %p238 = scmp.ne.s32.totalorder %s230, %s232
      %p239 = scmp.eq.s32.totalorder %s33, 1
      %p240 = por %p238, %p239
      %p241 = scmp.ne.s32.totalorder %s232, %s233
      %p242 = scmp.eq.s32.totalorder %s33, 0
      %p243 = por %p241, %p242
      %p244 = scmp.ne.s32.totalorder %s232, %s233
      %p245 = scmp.eq.s32.totalorder %s34, 1
      %p246 = por %p244, %p245
      %p248 = scmp.ne.s32.totalorder %s233, %s247
      %p249 = scmp.eq.s32.totalorder %s34, 0
      %p250 = por %p248, %p249
      %s252 = sadd.s32 %s251, 1
      %p255 = scmp.eq.s32.totalorder %s28, 1
      %p256 = scmp.ne.s32.totalorder %s251, %s253
      %p257 = scmp.eq.s32.totalorder %s28, 0
      %p258 = por %p256, %p257
      %p259 = scmp.ne.s32.totalorder %s251, %s253
      %p260 = scmp.eq.s32.totalorder %s33, 1
      %p261 = por %p259, %p260
      %p262 = scmp.ne.s32.totalorder %s253, %s254
      %p263 = scmp.eq.s32.totalorder %s33, 0
      %p264 = por %p262, %p263
      %p265 = scmp.ne.s32.totalorder %s253, %s254
      %p266 = scmp.eq.s32.totalorder %s34, 1
      %p267 = por %p265, %p266
      %p269 = scmp.ne.s32.totalorder %s254, %s268
      %p270 = scmp.eq.s32.totalorder %s34, 0
      %p271 = por %p269, %p270
      %s272 = ssub.s32 %s28, %s35
      %p273 = scmp.eq.s32.totalorder %s272, 0
      %s275 = sadd.s32 %s274, 1
      %s276 = scalar_select %p273, %s274, %s275
      %p279 = pneg %p273
      %p280 = scmp.eq.s32.totalorder %s28, 1
      %p281 = por %p279, %p280
      %p282 = scmp.ne.s32.totalorder %s274, %s277
      %p283 = scmp.eq.s32.totalorder %s28, 0
      %p284 = por %p282, %p283
      %p285 = scmp.ne.s32.totalorder %s274, %s277
      %p286 = scmp.eq.s32.totalorder %s33, 1
      %p287 = por %p285, %p286
      %p288 = scmp.ne.s32.totalorder %s277, %s278
      %p289 = scmp.eq.s32.totalorder %s33, 0
      %p290 = por %p288, %p289
      %p291 = scmp.ne.s32.totalorder %s277, %s278
      %p292 = scmp.eq.s32.totalorder %s34, 1
      %p293 = por %p291, %p292
      %p295 = scmp.ne.s32.totalorder %s278, %s294
      %p296 = scmp.eq.s32.totalorder %s34, 0
      %p297 = por %p295, %p296
      %p298 = scmp.le.s32.totalorder 1, %s28
      %p299 = scmp.lt.s32.totalorder %s28, 3
      %p300 = pnand %p298, %p299
      %p301 = pneg %p300
      // Predicated region
      $region9: #{tpu_custom_call.1} parent=5 // pred_check
        _
      $region10: #{tpu_custom_call.1} parent=5 // pred_check_branch
        %303 = sbr.rel (%p300) target = $region12
      $region11: #{tpu_custom_call.1} parent=5 // pred_region
        %s304 = ssub.s32 %s28, 1
        // Predicated region
        $region13: #{tpu_custom_call.1} parent=11 // pred_check
          %p305 = pneg %p75
        $region14: #{tpu_custom_call.1} parent=11 // pred_check_branch
          %307 = sbr.rel (%p305) target = $region16
        $region15: #{tpu_custom_call.1} parent=11 // pred_region
          %s309 = ssub.s32 9216, 9216
          %310 = vsyncadd [#allocation8], %s309
          %s311 = sshll.u32 [#allocation7], 4
          %s312 = int_to_ptr.vmem [resolvable:$true] %s311
          %317 = dma.hbm_to_vmem [thread:$0]  %s1, 9216, %s312, [#allocation8], 64, 64, 4
        $region16: #{tpu_custom_call.1} parent=11 // pred_fallthru
          _
        // Predicated region
        $region17: #{tpu_custom_call.1} parent=11 // pred_check
          %p318 = pneg %p96
        $region18: #{tpu_custom_call.1} parent=11 // pred_check_branch
          %320 = sbr.rel (%p318) target = $region20
        $region19: #{tpu_custom_call.1} parent=11 // pred_region
          %s322 = ssub.s32 16, 16
          %323 = vsyncadd [#allocation8], %s322
          %s325 = sshll.u32 [#allocation9], 4
          %s326 = int_to_ptr.vmem [resolvable:$true] %s325
          %328 = dma.hbm_to_vmem [thread:$0]  %s2, 16, %s326, [#allocation8]
        $region20: #{tpu_custom_call.1} parent=11 // pred_fallthru
          _
        // Predicated region
        $region21: #{tpu_custom_call.1} parent=11 // pred_check
          %p329 = pneg %p117
        $region22: #{tpu_custom_call.1} parent=11 // pred_check_branch
          %331 = sbr.rel (%p329) target = $region24
        $region23: #{tpu_custom_call.1} parent=11 // pred_region
          %s333 = ssub.s32 9216, 9216
          %334 = vsyncadd [#allocation11], %s333
          %s335 = sshll.u32 [#allocation10], 4
          %s336 = int_to_ptr.vmem [resolvable:$true] %s335
          %341 = dma.hbm_to_vmem [thread:$0]  %s3, 9216, %s336, [#allocation11], 64, 64, 4
        $region24: #{tpu_custom_call.1} parent=11 // pred_fallthru
          _
        // Predicated region
        $region25: #{tpu_custom_call.1} parent=11 // pred_check
          %p342 = pneg %p138
        $region26: #{tpu_custom_call.1} parent=11 // pred_check_branch
          %344 = sbr.rel (%p342) target = $region28
        $region27: #{tpu_custom_call.1} parent=11 // pred_region
          %s346 = ssub.s32 16, 16
          %347 = vsyncadd [#allocation11], %s346
          %s349 = sshll.u32 [#allocation12], 4
          %s350 = int_to_ptr.vmem [resolvable:$true] %s349
          %352 = dma.hbm_to_vmem [thread:$0]  %s4, 16, %s350, [#allocation11]
        $region28: #{tpu_custom_call.1} parent=11 // pred_fallthru
          _
        // Predicated region
        $region29: #{tpu_custom_call.1} parent=11 // pred_check
          %p353 = pneg %p159
        $region30: #{tpu_custom_call.1} parent=11 // pred_check_branch
          %355 = sbr.rel (%p353) target = $region32
        $region31: #{tpu_custom_call.1} parent=11 // pred_region
          %s357 = ssub.s32 9216, 9216
          %358 = vsyncadd [#allocation14], %s357
          %s359 = sshll.u32 [#allocation13], 4
          %s360 = int_to_ptr.vmem [resolvable:$true] %s359
          %365 = dma.hbm_to_vmem [thread:$0]  %s5, 9216, %s360, [#allocation14], 64, 64, 4
        $region32: #{tpu_custom_call.1} parent=11 // pred_fallthru
          _
        // Predicated region
        $region33: #{tpu_custom_call.1} parent=11 // pred_check
          %p366 = pneg %p180
        $region34: #{tpu_custom_call.1} parent=11 // pred_check_branch
          %368 = sbr.rel (%p366) target = $region36
        $region35: #{tpu_custom_call.1} parent=11 // pred_region
          %s370 = ssub.s32 16, 16
          %371 = vsyncadd [#allocation14], %s370
          %s373 = sshll.u32 [#allocation15], 4
          %s374 = int_to_ptr.vmem [resolvable:$true] %s373
          %376 = dma.hbm_to_vmem [thread:$0]  %s6, 16, %s374, [#allocation14]
        $region36: #{tpu_custom_call.1} parent=11 // pred_fallthru
          _
        // Predicated region
        $region37: #{tpu_custom_call.1} parent=11 // pred_check
          %p377 = pneg %p201
        $region38: #{tpu_custom_call.1} parent=11 // pred_check_branch
          %379 = sbr.rel (%p377) target = $region40
        $region39: #{tpu_custom_call.1} parent=11 // pred_region
          %s381 = ssub.s32 4096, 4096
          %382 = vsyncadd [#allocation17], %s381
          %s383 = sshll.u32 [#allocation16], 4
          %s384 = int_to_ptr.vmem [resolvable:$true] %s383
          %389 = dma.hbm_to_vmem [thread:$0]  %s7, 4096, %s384, [#allocation17], 256, 256, 16
        $region40: #{tpu_custom_call.1} parent=11 // pred_fallthru
          _
        // Predicated region
        $region41: #{tpu_custom_call.1} parent=11 // pred_check
          %p390 = pneg %p222
        $region42: #{tpu_custom_call.1} parent=11 // pred_check_branch
          %392 = sbr.rel (%p390) target = $region44
        $region43: #{tpu_custom_call.1} parent=11 // pred_region
          %s394 = ssub.s32 64, 64
          %395 = vsyncadd [#allocation17], %s394
          %s397 = sshll.u32 [#allocation18], 4
          %s398 = int_to_ptr.vmem [resolvable:$true] %s397
          %400 = dma.hbm_to_vmem [thread:$0]  %s8, 64, %s398, [#allocation17]
        $region44: #{tpu_custom_call.1} parent=11 // pred_fallthru
          _
        // Predicated region
        $region45: #{tpu_custom_call.1} parent=11 // pred_check
          %p401 = pneg %p243
        $region46: #{tpu_custom_call.1} parent=11 // pred_check_branch
          %403 = sbr.rel (%p401) target = $region48
        $region47: #{tpu_custom_call.1} parent=11 // pred_region
          %s405 = ssub.s32 4096, 4096
          %406 = vsyncadd [#allocation20], %s405
          %s407 = sshll.u32 [#allocation19], 4
          %s408 = int_to_ptr.vmem [resolvable:$true] %s407
          %413 = dma.hbm_to_vmem [thread:$0]  %s9, 4096, %s408, [#allocation20], 64, 64, 4
        $region48: #{tpu_custom_call.1} parent=11 // pred_fallthru
          _
        // Predicated region
        $region49: #{tpu_custom_call.1} parent=11 // pred_check
          %p414 = pneg %p264
        $region50: #{tpu_custom_call.1} parent=11 // pred_check_branch
          %416 = sbr.rel (%p414) target = $region52
        $region51: #{tpu_custom_call.1} parent=11 // pred_region
          %s418 = ssub.s32 16, 16
          %419 = vsyncadd [#allocation20], %s418
          %s421 = sshll.u32 [#allocation21], 4
          %s422 = int_to_ptr.vmem [resolvable:$true] %s421
          %424 = dma.hbm_to_vmem [thread:$0]  %s10, 16, %s422, [#allocation20]
        $region52: #{tpu_custom_call.1} parent=11 // pred_fallthru
          _
      $region12: #{tpu_custom_call.1} parent=5 // pred_fallthru
        _
      %p425 = scmp.lt.s32.totalorder %s28, 2
      // Predicated region
      $region53: #{tpu_custom_call.1} parent=5 // pred_check
        %p426 = pneg %p425
      $region54: #{tpu_custom_call.1} parent=5 // pred_check_branch
        %428 = sbr.rel (%p426) target = $region56
      $region55: #{tpu_custom_call.1} parent=5 // pred_region
        // Predicated region
        $region57: #{tpu_custom_call.1} parent=55 // pred_check
          %p429 = pneg %p48
        $region58: #{tpu_custom_call.1} parent=55 // pred_check_branch
          %431 = sbr.rel (%p429) target = $region60
        $region59: #{tpu_custom_call.1} parent=55 // pred_region
          %s432 = sand.u32 %s38, 1
          %s433 = scalar_lea.sflag [#allocation5], %s432
          %s434 = sand.u32 %s38, 1
          %s435 = smul.addr %s434, 128
          %s436 = scalar_lea.vmem [#allocation4], %s435
          %s438 = ssub.s32 2048, 2048
          %439 = vsyncadd %s433, %s438
          %s440 = smul.addr %s28, 32
          %s441 = smul.addr %s440, 64
          %s442 = scalar_lea.hbm %s0, %s441
          %s443 = sshll.u32 %s436, 4
          %s444 = int_to_ptr.vmem [resolvable:$true] %s443
          %449 = dma.hbm_to_vmem [thread:$0]  %s442, 2048, %s444, %s433, 64, 64, 4
        $region60: #{tpu_custom_call.1} parent=55 // pred_fallthru
          _
      $region56: #{tpu_custom_call.1} parent=5 // pred_fallthru
        _
      %p450 = scmp.le.s32.totalorder 1, %s28
      %p451 = scmp.lt.s32.totalorder %s28, 3
      %p452 = pnand %p450, %p451
      %p453 = pneg %p452
      // Predicated region
      $region61: #{tpu_custom_call.1} parent=5 // pred_check
        _
      $region62: #{tpu_custom_call.1} parent=5 // pred_check_branch
        %455 = sbr.rel (%p452) target = $region64
      $region63: #{tpu_custom_call.1} parent=5 // pred_region
        %s456 = ssub.s32 %s28, 1
        %s457 = sand.u32 %s41, 1
        %s458 = scalar_lea.sflag [#allocation5], %s457
        %s459 = sand.u32 %s41, 1
        %s460 = smul.addr %s459, 128
        %s461 = scalar_lea.vmem [#allocation4], %s460
        // Predicated region
        $region65: #{tpu_custom_call.1} parent=63 // pred_check
          %p462 = pneg %p54
        $region66: #{tpu_custom_call.1} parent=63 // pred_check_branch
          %464 = sbr.rel (%p462) target = $region68
        $region67: #{tpu_custom_call.1} parent=63 // pred_region
          %465 = dma.done %s458, 2048
        $region68: #{tpu_custom_call.1} parent=63 // pred_fallthru
          _
        // Predicated region
        $region69: #{tpu_custom_call.1} parent=63 // pred_check
          %p466 = pneg %p75
        $region70: #{tpu_custom_call.1} parent=63 // pred_check_branch
          %468 = sbr.rel (%p466) target = $region72
        $region71: #{tpu_custom_call.1} parent=63 // pred_region
          %469 = dma.done [#allocation8], 9216
        $region72: #{tpu_custom_call.1} parent=63 // pred_fallthru
          _
        // Predicated region
        $region73: #{tpu_custom_call.1} parent=63 // pred_check
          %p470 = pneg %p96
        $region74: #{tpu_custom_call.1} parent=63 // pred_check_branch
          %472 = sbr.rel (%p470) target = $region76
        $region75: #{tpu_custom_call.1} parent=63 // pred_region
          %473 = dma.done [#allocation8], 16
        $region76: #{tpu_custom_call.1} parent=63 // pred_fallthru
          _
        // Predicated region
        $region77: #{tpu_custom_call.1} parent=63 // pred_check
          %p474 = pneg %p117
        $region78: #{tpu_custom_call.1} parent=63 // pred_check_branch
          %476 = sbr.rel (%p474) target = $region80
        $region79: #{tpu_custom_call.1} parent=63 // pred_region
          %477 = dma.done [#allocation11], 9216
        $region80: #{tpu_custom_call.1} parent=63 // pred_fallthru
          _
        // Predicated region
        $region81: #{tpu_custom_call.1} parent=63 // pred_check
          %p478 = pneg %p138
        $region82: #{tpu_custom_call.1} parent=63 // pred_check_branch
          %480 = sbr.rel (%p478) target = $region84
        $region83: #{tpu_custom_call.1} parent=63 // pred_region
          %481 = dma.done [#allocation11], 16
        $region84: #{tpu_custom_call.1} parent=63 // pred_fallthru
          _
        // Predicated region
        $region85: #{tpu_custom_call.1} parent=63 // pred_check
          %p482 = pneg %p159
        $region86: #{tpu_custom_call.1} parent=63 // pred_check_branch
          %484 = sbr.rel (%p482) target = $region88
        $region87: #{tpu_custom_call.1} parent=63 // pred_region
          %485 = dma.done [#allocation14], 9216
        $region88: #{tpu_custom_call.1} parent=63 // pred_fallthru
          _
        // Predicated region
        $region89: #{tpu_custom_call.1} parent=63 // pred_check
          %p486 = pneg %p180
        $region90: #{tpu_custom_call.1} parent=63 // pred_check_branch
          %488 = sbr.rel (%p486) target = $region92
        $region91: #{tpu_custom_call.1} parent=63 // pred_region
          %489 = dma.done [#allocation14], 16
        $region92: #{tpu_custom_call.1} parent=63 // pred_fallthru
          _
        // Predicated region
        $region93: #{tpu_custom_call.1} parent=63 // pred_check
          %p490 = pneg %p201
        $region94: #{tpu_custom_call.1} parent=63 // pred_check_branch
          %492 = sbr.rel (%p490) target = $region96
        $region95: #{tpu_custom_call.1} parent=63 // pred_region
          %493 = dma.done [#allocation17], 4096
        $region96: #{tpu_custom_call.1} parent=63 // pred_fallthru
          _
        // Predicated region
        $region97: #{tpu_custom_call.1} parent=63 // pred_check
          %p494 = pneg %p222
        $region98: #{tpu_custom_call.1} parent=63 // pred_check_branch
          %496 = sbr.rel (%p494) target = $region100
        $region99: #{tpu_custom_call.1} parent=63 // pred_region
          %497 = dma.done [#allocation17], 64
        $region100: #{tpu_custom_call.1} parent=63 // pred_fallthru
          _
        // Predicated region
        $region101: #{tpu_custom_call.1} parent=63 // pred_check
          %p498 = pneg %p243
        $region102: #{tpu_custom_call.1} parent=63 // pred_check_branch
          %500 = sbr.rel (%p498) target = $region104
        $region103: #{tpu_custom_call.1} parent=63 // pred_region
          %501 = dma.done [#allocation20], 4096
        $region104: #{tpu_custom_call.1} parent=63 // pred_fallthru
          _
        // Predicated region
        $region105: #{tpu_custom_call.1} parent=63 // pred_check
          %p502 = pneg %p264
        $region106: #{tpu_custom_call.1} parent=63 // pred_check_branch
          %504 = sbr.rel (%p502) target = $region108
        $region107: #{tpu_custom_call.1} parent=63 // pred_region
          %505 = dma.done [#allocation20], 16
        $region108: #{tpu_custom_call.1} parent=63 // pred_fallthru
          _
        %s506 = sand.u32 %s41, 1
        %s507 = scalar_lea.sflag [#allocation5], %s506
        %s508 = sand.u32 %s41, 1
        %s509 = smul.addr %s508, 128
        %s510 = scalar_lea.vmem [#allocation4], %s509
        %p511 = pneg %p54
        %p512 = pneg %p51
        %p513 = pneg %p75
        %p514 = pneg %p72
        %p515 = pneg %p96
        %p516 = pneg %p93
        %p517 = pneg %p117
        %p518 = pneg %p114
        %p519 = pneg %p138
        %p520 = pneg %p135
        %p521 = pneg %p159
        %p522 = pneg %p156
        %p523 = pneg %p180
        %p524 = pneg %p177
        %p525 = pneg %p201
        %p526 = pneg %p198
        %p527 = pneg %p222
        %p528 = pneg %p219
        %p529 = pneg %p243
        %p530 = pneg %p240
        %p531 = pneg %p264
        %p532 = pneg %p261
        %p533 = pneg %p290
        %p534 = pneg %p287
        %s535 = sand.u32 %s277, 1
        %s536 = scalar_lea.sflag [#allocation6], %s535
        %s537 = sand.u32 %s277, 1
        %s538 = smul.addr %s537, 256
        %s539 = scalar_lea.vmem [#allocation22], %s538
        %541 = vst [vmem:[#allocation2] sm:$0xf] 0
        %542 = vst [vmem:[#allocation2 + $0x4] sm:$0xf] 0
        %543 = vst [vmem:[#allocation2 + $0x8] sm:$0x1] 0
        %s544 = scalar_lea.vmem [#allocation2], 204
        %545 = vst [vmem:[%s544] sm:$0xf] 0
        %546 = vst [vmem:[%s544 + $0x4] sm:$0xf] 0
        %547 = vst [vmem:[%s544 + $0x8] sm:$0x1] 0
        %vm548 = vcmask 1040384
        %vm549 = vsmask.f32 256
        %vm550 = vmand %vm548, %vm549
        %v551 = vld [vmem:[#allocation2] sm:$0x1]
        %v552 = vsel %vm550, 0, %v551
        %553 = vst [vmem:[#allocation2] sm:$0x1] %v552
        %v554 = vld [vmem:[#allocation2 + $0xc] sm:$0x1]
        %v555 = vsel %vm550, 0, %v554
        %556 = vst [vmem:[#allocation2 + $0xc] sm:$0x1] %v555
        %v557 = vld [vmem:[#allocation2 + $0x18] sm:$0x1]
        %v558 = vsel %vm550, 0, %v557
        %559 = vst [vmem:[#allocation2 + $0x18] sm:$0x1] %v558
        %v560 = vld [vmem:[#allocation2 + $0x24] sm:$0x1]
        %v561 = vsel %vm550, 0, %v560
        %562 = vst [vmem:[#allocation2 + $0x24] sm:$0x1] %v561
        %v563 = vld [vmem:[#allocation2 + $0x30] sm:$0x1]
        %v564 = vsel %vm550, 0, %v563
        %565 = vst [vmem:[#allocation2 + $0x30] sm:$0x1] %v564
        %v566 = vld [vmem:[#allocation2 + $0x3c] sm:$0x1]
        %v567 = vsel %vm550, 0, %v566
        %568 = vst [vmem:[#allocation2 + $0x3c] sm:$0x1] %v567
        %v569 = vld [vmem:[#allocation2 + $0x48] sm:$0x1]
        %v570 = vsel %vm550, 0, %v569
        %571 = vst [vmem:[#allocation2 + $0x48] sm:$0x1] %v570
        %v572 = vld [vmem:[#allocation2 + $0x54] sm:$0x1]
        %v573 = vsel %vm550, 0, %v572
        %574 = vst [vmem:[#allocation2 + $0x54] sm:$0x1] %v573
        %v575 = vld [vmem:[#allocation2 + $0x60] sm:$0x1]
        %v576 = vsel %vm550, 0, %v575
        %577 = vst [vmem:[#allocation2 + $0x60] sm:$0x1] %v576
        %v578 = vld [vmem:[#allocation2 + $0x6c] sm:$0x1]
        %v579 = vsel %vm550, 0, %v578
        %580 = vst [vmem:[#allocation2 + $0x6c] sm:$0x1] %v579
        %v581 = vld [vmem:[#allocation2 + $0x78] sm:$0x1]
        %v582 = vsel %vm550, 0, %v581
        %583 = vst [vmem:[#allocation2 + $0x78] sm:$0x1] %v582
        %v584 = vld [vmem:[#allocation2 + $0x84] sm:$0x1]
        %v585 = vsel %vm550, 0, %v584
        %586 = vst [vmem:[#allocation2 + $0x84] sm:$0x1] %v585
        %v587 = vld [vmem:[#allocation2 + $0x90] sm:$0x1]
        %v588 = vsel %vm550, 0, %v587
        %589 = vst [vmem:[#allocation2 + $0x90] sm:$0x1] %v588
        %v590 = vld [vmem:[#allocation2 + $0x9c] sm:$0x1]
        %v591 = vsel %vm550, 0, %v590
        %592 = vst [vmem:[#allocation2 + $0x9c] sm:$0x1] %v591
        %v593 = vld [vmem:[#allocation2 + $0xa8] sm:$0x1]
        %v594 = vsel %vm550, 0, %v593
        %595 = vst [vmem:[#allocation2 + $0xa8] sm:$0x1] %v594
        %v596 = vld [vmem:[#allocation2 + $0xb4] sm:$0x1]
        %v597 = vsel %vm550, 0, %v596
        %598 = vst [vmem:[#allocation2 + $0xb4] sm:$0x1] %v597
        %v599 = vld [vmem:[#allocation2 + $0xc0] sm:$0x1]
        %v600 = vsel %vm550, 0, %v599
        %601 = vst [vmem:[#allocation2 + $0xc0] sm:$0x1] %v600
        %v602 = vld [vmem:[#allocation2 + $0xcc] sm:$0x1]
        %v603 = vsel %vm550, 0, %v602
        %604 = vst [vmem:[#allocation2 + $0xcc] sm:$0x1] %v603
        %vm605 = vsmask.f32 7938
        %vm606 = vmand %vm548, %vm605
        %v607 = vld [vmem:[#allocation2 + $0x8] sm:$0x1]
        %v608 = vsel %vm606, 0, %v607
        %609 = vst [vmem:[#allocation2 + $0x8] sm:$0x1] %v608
        %v610 = vld [vmem:[#allocation2 + $0x14] sm:$0x1]
        %v611 = vsel %vm606, 0, %v610
        %612 = vst [vmem:[#allocation2 + $0x14] sm:$0x1] %v611
        %v613 = vld [vmem:[#allocation2 + $0x20] sm:$0x1]
        %v614 = vsel %vm606, 0, %v613
        %615 = vst [vmem:[#allocation2 + $0x20] sm:$0x1] %v614
        %v616 = vld [vmem:[#allocation2 + $0x2c] sm:$0x1]
        %v617 = vsel %vm606, 0, %v616
        %618 = vst [vmem:[#allocation2 + $0x2c] sm:$0x1] %v617
        %v619 = vld [vmem:[#allocation2 + $0x38] sm:$0x1]
        %v620 = vsel %vm606, 0, %v619
        %621 = vst [vmem:[#allocation2 + $0x38] sm:$0x1] %v620
        %v622 = vld [vmem:[#allocation2 + $0x44] sm:$0x1]
        %v623 = vsel %vm606, 0, %v622
        %624 = vst [vmem:[#allocation2 + $0x44] sm:$0x1] %v623
        %v625 = vld [vmem:[#allocation2 + $0x50] sm:$0x1]
        %v626 = vsel %vm606, 0, %v625
        %627 = vst [vmem:[#allocation2 + $0x50] sm:$0x1] %v626
        %v628 = vld [vmem:[#allocation2 + $0x5c] sm:$0x1]
        %v629 = vsel %vm606, 0, %v628
        %630 = vst [vmem:[#allocation2 + $0x5c] sm:$0x1] %v629
        %v631 = vld [vmem:[#allocation2 + $0x68] sm:$0x1]
        %v632 = vsel %vm606, 0, %v631
        %633 = vst [vmem:[#allocation2 + $0x68] sm:$0x1] %v632
        %v634 = vld [vmem:[#allocation2 + $0x74] sm:$0x1]
        %v635 = vsel %vm606, 0, %v634
        %636 = vst [vmem:[#allocation2 + $0x74] sm:$0x1] %v635
        %v637 = vld [vmem:[#allocation2 + $0x80] sm:$0x1]
        %v638 = vsel %vm606, 0, %v637
        %639 = vst [vmem:[#allocation2 + $0x80] sm:$0x1] %v638
        %v640 = vld [vmem:[#allocation2 + $0x8c] sm:$0x1]
        %v641 = vsel %vm606, 0, %v640
        %642 = vst [vmem:[#allocation2 + $0x8c] sm:$0x1] %v641
        %v643 = vld [vmem:[#allocation2 + $0x98] sm:$0x1]
        %v644 = vsel %vm606, 0, %v643
        %645 = vst [vmem:[#allocation2 + $0x98] sm:$0x1] %v644
        %v646 = vld [vmem:[#allocation2 + $0xa4] sm:$0x1]
        %v647 = vsel %vm606, 0, %v646
        %648 = vst [vmem:[#allocation2 + $0xa4] sm:$0x1] %v647
        %v649 = vld [vmem:[#allocation2 + $0xb0] sm:$0x1]
        %v650 = vsel %vm606, 0, %v649
        %651 = vst [vmem:[#allocation2 + $0xb0] sm:$0x1] %v650
        %v652 = vld [vmem:[#allocation2 + $0xbc] sm:$0x1]
        %v653 = vsel %vm606, 0, %v652
        %654 = vst [vmem:[#allocation2 + $0xbc] sm:$0x1] %v653
        %v655 = vld [vmem:[#allocation2 + $0xc8] sm:$0x1]
        %v656 = vsel %vm606, 0, %v655
        %657 = vst [vmem:[#allocation2 + $0xc8] sm:$0x1] %v656
        %v658 = vld [vmem:[#allocation2 + $0xd4] sm:$0x1]
        %v659 = vsel %vm606, 0, %v658
        %660 = vst [vmem:[#allocation2 + $0xd4] sm:$0x1] %v659
        %661 = vst [vmem:[#allocation3] sm:$0xf] 0
        %662 = vst [vmem:[#allocation3 + $0x4] sm:$0xf] 0
        %663 = vst [vmem:[#allocation3 + $0x8] sm:$0x1] 0
        %s664 = scalar_lea.vmem [#allocation3], 204
        %665 = vst [vmem:[%s664] sm:$0xf] 0
        %666 = vst [vmem:[%s664 + $0x4] sm:$0xf] 0
        %667 = vst [vmem:[%s664 + $0x8] sm:$0x1] 0
        %v668 = vld [vmem:[#allocation3] sm:$0x1]
        %v669 = vsel %vm550, 0, %v668
        %670 = vst [vmem:[#allocation3] sm:$0x1] %v669
        %v671 = vld [vmem:[#allocation3 + $0xc] sm:$0x1]
        %v672 = vsel %vm550, 0, %v671
        %673 = vst [vmem:[#allocation3 + $0xc] sm:$0x1] %v672
        %v674 = vld [vmem:[#allocation3 + $0x18] sm:$0x1]
        %v675 = vsel %vm550, 0, %v674
        %676 = vst [vmem:[#allocation3 + $0x18] sm:$0x1] %v675
        %v677 = vld [vmem:[#allocation3 + $0x24] sm:$0x1]
        %v678 = vsel %vm550, 0, %v677
        %679 = vst [vmem:[#allocation3 + $0x24] sm:$0x1] %v678
        %v680 = vld [vmem:[#allocation3 + $0x30] sm:$0x1]
        %v681 = vsel %vm550, 0, %v680
        %682 = vst [vmem:[#allocation3 + $0x30] sm:$0x1] %v681
        %v683 = vld [vmem:[#allocation3 + $0x3c] sm:$0x1]
        %v684 = vsel %vm550, 0, %v683
        %685 = vst [vmem:[#allocation3 + $0x3c] sm:$0x1] %v684
        %v686 = vld [vmem:[#allocation3 + $0x48] sm:$0x1]
        %v687 = vsel %vm550, 0, %v686
        %688 = vst [vmem:[#allocation3 + $0x48] sm:$0x1] %v687
        %v689 = vld [vmem:[#allocation3 + $0x54] sm:$0x1]
        %v690 = vsel %vm550, 0, %v689
        %691 = vst [vmem:[#allocation3 + $0x54] sm:$0x1] %v690
        %v692 = vld [vmem:[#allocation3 + $0x60] sm:$0x1]
        %v693 = vsel %vm550, 0, %v692
        %694 = vst [vmem:[#allocation3 + $0x60] sm:$0x1] %v693
        %v695 = vld [vmem:[#allocation3 + $0x6c] sm:$0x1]
        %v696 = vsel %vm550, 0, %v695
        %697 = vst [vmem:[#allocation3 + $0x6c] sm:$0x1] %v696
        %v698 = vld [vmem:[#allocation3 + $0x78] sm:$0x1]
        %v699 = vsel %vm550, 0, %v698
        %700 = vst [vmem:[#allocation3 + $0x78] sm:$0x1] %v699
        %v701 = vld [vmem:[#allocation3 + $0x84] sm:$0x1]
        %v702 = vsel %vm550, 0, %v701
        %703 = vst [vmem:[#allocation3 + $0x84] sm:$0x1] %v702
        %v704 = vld [vmem:[#allocation3 + $0x90] sm:$0x1]
        %v705 = vsel %vm550, 0, %v704
        %706 = vst [vmem:[#allocation3 + $0x90] sm:$0x1] %v705
        %v707 = vld [vmem:[#allocation3 + $0x9c] sm:$0x1]
        %v708 = vsel %vm550, 0, %v707
        %709 = vst [vmem:[#allocation3 + $0x9c] sm:$0x1] %v708
        %v710 = vld [vmem:[#allocation3 + $0xa8] sm:$0x1]
        %v711 = vsel %vm550, 0, %v710
        %712 = vst [vmem:[#allocation3 + $0xa8] sm:$0x1] %v711
        %v713 = vld [vmem:[#allocation3 + $0xb4] sm:$0x1]
        %v714 = vsel %vm550, 0, %v713
        %715 = vst [vmem:[#allocation3 + $0xb4] sm:$0x1] %v714
        %v716 = vld [vmem:[#allocation3 + $0xc0] sm:$0x1]
        %v717 = vsel %vm550, 0, %v716
        %718 = vst [vmem:[#allocation3 + $0xc0] sm:$0x1] %v717
        %v719 = vld [vmem:[#allocation3 + $0xcc] sm:$0x1]
        %v720 = vsel %vm550, 0, %v719
        %721 = vst [vmem:[#allocation3 + $0xcc] sm:$0x1] %v720
        %v722 = vld [vmem:[#allocation3 + $0x8] sm:$0x1]
        %v723 = vsel %vm606, 0, %v722
        %724 = vst [vmem:[#allocation3 + $0x8] sm:$0x1] %v723
        %v725 = vld [vmem:[#allocation3 + $0x14] sm:$0x1]
        %v726 = vsel %vm606, 0, %v725
        %727 = vst [vmem:[#allocation3 + $0x14] sm:$0x1] %v726
        %v728 = vld [vmem:[#allocation3 + $0x20] sm:$0x1]
        %v729 = vsel %vm606, 0, %v728
        %730 = vst [vmem:[#allocation3 + $0x20] sm:$0x1] %v729
        %v731 = vld [vmem:[#allocation3 + $0x2c] sm:$0x1]
        %v732 = vsel %vm606, 0, %v731
        %733 = vst [vmem:[#allocation3 + $0x2c] sm:$0x1] %v732
        %v734 = vld [vmem:[#allocation3 + $0x38] sm:$0x1]
        %v735 = vsel %vm606, 0, %v734
        %736 = vst [vmem:[#allocation3 + $0x38] sm:$0x1] %v735
        %v737 = vld [vmem:[#allocation3 + $0x44] sm:$0x1]
        %v738 = vsel %vm606, 0, %v737
        %739 = vst [vmem:[#allocation3 + $0x44] sm:$0x1] %v738
        %v740 = vld [vmem:[#allocation3 + $0x50] sm:$0x1]
        %v741 = vsel %vm606, 0, %v740
        %742 = vst [vmem:[#allocation3 + $0x50] sm:$0x1] %v741
        %v743 = vld [vmem:[#allocation3 + $0x5c] sm:$0x1]
        %v744 = vsel %vm606, 0, %v743
        %745 = vst [vmem:[#allocation3 + $0x5c] sm:$0x1] %v744
        %v746 = vld [vmem:[#allocation3 + $0x68] sm:$0x1]
        %v747 = vsel %vm606, 0, %v746
        %748 = vst [vmem:[#allocation3 + $0x68] sm:$0x1] %v747
        %v749 = vld [vmem:[#allocation3 + $0x74] sm:$0x1]
        %v750 = vsel %vm606, 0, %v749
        %751 = vst [vmem:[#allocation3 + $0x74] sm:$0x1] %v750
        %v752 = vld [vmem:[#allocation3 + $0x80] sm:$0x1]
        %v753 = vsel %vm606, 0, %v752
        %754 = vst [vmem:[#allocation3 + $0x80] sm:$0x1] %v753
        %v755 = vld [vmem:[#allocation3 + $0x8c] sm:$0x1]
        %v756 = vsel %vm606, 0, %v755
        %757 = vst [vmem:[#allocation3 + $0x8c] sm:$0x1] %v756
        %v758 = vld [vmem:[#allocation3 + $0x98] sm:$0x1]
        %v759 = vsel %vm606, 0, %v758
        %760 = vst [vmem:[#allocation3 + $0x98] sm:$0x1] %v759
        %v761 = vld [vmem:[#allocation3 + $0xa4] sm:$0x1]
        %v762 = vsel %vm606, 0, %v761
        %763 = vst [vmem:[#allocation3 + $0xa4] sm:$0x1] %v762
        %v764 = vld [vmem:[#allocation3 + $0xb0] sm:$0x1]
        %v765 = vsel %vm606, 0, %v764
        %766 = vst [vmem:[#allocation3 + $0xb0] sm:$0x1] %v765
        %v767 = vld [vmem:[#allocation3 + $0xbc] sm:$0x1]
        %v768 = vsel %vm606, 0, %v767
        %769 = vst [vmem:[#allocation3 + $0xbc] sm:$0x1] %v768
        %v770 = vld [vmem:[#allocation3 + $0xc8] sm:$0x1]
        %v771 = vsel %vm606, 0, %v770
        %772 = vst [vmem:[#allocation3 + $0xc8] sm:$0x1] %v771
        %v773 = vld [vmem:[#allocation3 + $0xd4] sm:$0x1]
        %v774 = vsel %vm606, 0, %v773
        %775 = vst [vmem:[#allocation3 + $0xd4] sm:$0x1] %v774
        %v776 = vld [vmem:[%s461] sm:$0xf]
        %v777 = vld [vmem:[%s461 + $0x4] sm:$0xf]
        %v778 = vld [vmem:[%s461 + $0x8] sm:$0xf]
        %v779 = vld [vmem:[%s461 + $0xc] sm:$0xf]
        %v780 = vld [vmem:[%s461 + $0x10] sm:$0xf]
        %v781 = vld [vmem:[%s461 + $0x14] sm:$0xf]
        %v782 = vld [vmem:[%s461 + $0x18] sm:$0xf]
        %v783 = vld [vmem:[%s461 + $0x1c] sm:$0xf]
        %v784 = vld [vmem:[%s461 + $0x20] sm:$0xf]
        %v785 = vld [vmem:[%s461 + $0x24] sm:$0xf]
        %v786 = vld [vmem:[%s461 + $0x28] sm:$0xf]
        %v787 = vld [vmem:[%s461 + $0x2c] sm:$0xf]
        %v788 = vld [vmem:[%s461 + $0x30] sm:$0xf]
        %v789 = vld [vmem:[%s461 + $0x34] sm:$0xf]
        %v790 = vld [vmem:[%s461 + $0x38] sm:$0xf]
        %v791 = vld [vmem:[%s461 + $0x3c] sm:$0xf]
        %v792 = vld [vmem:[%s461 + $0x40] sm:$0xf]
        %v793 = vld [vmem:[%s461 + $0x44] sm:$0xf]
        %v794 = vld [vmem:[%s461 + $0x48] sm:$0xf]
        %v795 = vld [vmem:[%s461 + $0x4c] sm:$0xf]
        %v796 = vld [vmem:[%s461 + $0x50] sm:$0xf]
        %v797 = vld [vmem:[%s461 + $0x54] sm:$0xf]
        %v798 = vld [vmem:[%s461 + $0x58] sm:$0xf]
        %v799 = vld [vmem:[%s461 + $0x5c] sm:$0xf]
        %v800 = vld [vmem:[%s461 + $0x60] sm:$0xf]
        %v801 = vld [vmem:[%s461 + $0x64] sm:$0xf]
        %v802 = vld [vmem:[%s461 + $0x68] sm:$0xf]
        %v803 = vld [vmem:[%s461 + $0x6c] sm:$0xf]
        %v804 = vld [vmem:[%s461 + $0x70] sm:$0xf]
        %v805 = vld [vmem:[%s461 + $0x74] sm:$0xf]
        %v806 = vld [vmem:[%s461 + $0x78] sm:$0xf]
        %v807 = vld [vmem:[%s461 + $0x7c] sm:$0xf]
        %vm808 = vsmask.f32 4368
        %vm809 = vmor %vm549, %vm808
        %v811 = vshrl.u32 %v776, 16
        %v813 = vrot.slane %v811, 7
        %v814 = vshll.u32 %v776, 16
        %v816 = vor.u32 %v813, %v814
        %v817 = vrot.slane %v813, 4
        %v819 = vshrl.u32 %v777, 16
        %v821 = vrot.slane %v819, 7
        %v822 = vshll.u32 %v777, 16
        %v824 = vor.u32 %v821, %v822
        %v825 = vsel %vm809, %v817, %v824
        %v826 = vrot.slane %v821, 4
        %v828 = vshrl.u32 %v778, 16
        %v830 = vrot.slane %v828, 7
        %v831 = vshll.u32 %v778, 16
        %v833 = vor.u32 %v830, %v831
        %v834 = vrot.slane %v830, 4
        %v836 = vshrl.u32 %v779, 16
        %v838 = vrot.slane %v836, 7
        %v839 = vshll.u32 %v779, 16
        %v841 = vor.u32 %v838, %v839
        %v842 = vsel %vm809, %v834, %v841
        %v843 = vrot.slane %v838, 4
        %v845 = vshrl.u32 %v780, 16
        %v847 = vrot.slane %v845, 7
        %v848 = vshll.u32 %v780, 16
        %v850 = vor.u32 %v847, %v848
        %v851 = vrot.slane %v847, 4
        %v853 = vshrl.u32 %v781, 16
        %v855 = vrot.slane %v853, 7
        %v856 = vshll.u32 %v781, 16
        %v858 = vor.u32 %v855, %v856
        %v859 = vsel %vm809, %v851, %v858
        %v860 = vrot.slane %v855, 4
        %v862 = vshrl.u32 %v782, 16
        %v864 = vrot.slane %v862, 7
        %v865 = vshll.u32 %v782, 16
        %v867 = vor.u32 %v864, %v865
        %v868 = vrot.slane %v864, 4
        %v870 = vshrl.u32 %v783, 16
        %v872 = vrot.slane %v870, 7
        %v873 = vshll.u32 %v783, 16
        %v875 = vor.u32 %v872, %v873
        %v876 = vsel %vm809, %v868, %v875
        %v877 = vrot.slane %v872, 4
        %v879 = vshrl.u32 %v784, 16
        %v881 = vrot.slane %v879, 7
        %v882 = vshll.u32 %v784, 16
        %v884 = vor.u32 %v881, %v882
        %v885 = vrot.slane %v881, 4
        %v887 = vshrl.u32 %v785, 16
        %v889 = vrot.slane %v887, 7
        %v890 = vshll.u32 %v785, 16
        %v892 = vor.u32 %v889, %v890
        %v893 = vsel %vm809, %v885, %v892
        %v894 = vrot.slane %v889, 4
        %v896 = vshrl.u32 %v786, 16
        %v898 = vrot.slane %v896, 7
        %v899 = vshll.u32 %v786, 16
        %v901 = vor.u32 %v898, %v899
        %v902 = vrot.slane %v898, 4
        %v904 = vshrl.u32 %v787, 16
        %v906 = vrot.slane %v904, 7
        %v907 = vshll.u32 %v787, 16
        %v909 = vor.u32 %v906, %v907
        %v910 = vsel %vm809, %v902, %v909
        %v911 = vrot.slane %v906, 4
        %v913 = vshrl.u32 %v788, 16
        %v915 = vrot.slane %v913, 7
        %v916 = vshll.u32 %v788, 16
        %v918 = vor.u32 %v915, %v916
        %v919 = vrot.slane %v915, 4
        %v921 = vshrl.u32 %v789, 16
        %v923 = vrot.slane %v921, 7
        %v924 = vshll.u32 %v789, 16
        %v926 = vor.u32 %v923, %v924
        %v927 = vsel %vm809, %v919, %v926
        %v928 = vrot.slane %v923, 4
        %v930 = vshrl.u32 %v790, 16
        %v932 = vrot.slane %v930, 7
        %v933 = vshll.u32 %v790, 16
        %v935 = vor.u32 %v932, %v933
        %v936 = vrot.slane %v932, 4
        %v938 = vshrl.u32 %v791, 16
        %v940 = vrot.slane %v938, 7
        %v941 = vshll.u32 %v791, 16
        %v943 = vor.u32 %v940, %v941
        %v944 = vsel %vm809, %v936, %v943
        %v945 = vrot.slane %v940, 4
        %v947 = vshrl.u32 %v792, 16
        %v949 = vrot.slane %v947, 7
        %v950 = vshll.u32 %v792, 16
        %v952 = vor.u32 %v949, %v950
        %v953 = vrot.slane %v949, 4
        %v955 = vshrl.u32 %v793, 16
        %v957 = vrot.slane %v955, 7
        %v958 = vshll.u32 %v793, 16
        %v960 = vor.u32 %v957, %v958
        %v961 = vsel %vm809, %v953, %v960
        %v962 = vrot.slane %v957, 4
        %v964 = vshrl.u32 %v794, 16
        %v966 = vrot.slane %v964, 7
        %v967 = vshll.u32 %v794, 16
        %v969 = vor.u32 %v966, %v967
        %v970 = vrot.slane %v966, 4
        %v972 = vshrl.u32 %v795, 16
        %v974 = vrot.slane %v972, 7
        %v975 = vshll.u32 %v795, 16
        %v977 = vor.u32 %v974, %v975
        %v978 = vsel %vm809, %v970, %v977
        %v979 = vrot.slane %v974, 4
        %v981 = vshrl.u32 %v796, 16
        %v983 = vrot.slane %v981, 7
        %v984 = vshll.u32 %v796, 16
        %v986 = vor.u32 %v983, %v984
        %v987 = vrot.slane %v983, 4
        %v989 = vshrl.u32 %v797, 16
        %v991 = vrot.slane %v989, 7
        %v992 = vshll.u32 %v797, 16
        %v994 = vor.u32 %v991, %v992
        %v995 = vsel %vm809, %v987, %v994
        %v996 = vrot.slane %v991, 4
        %v998 = vshrl.u32 %v798, 16
        %v1000 = vrot.slane %v998, 7
        %v1001 = vshll.u32 %v798, 16
        %v1003 = vor.u32 %v1000, %v1001
        %v1004 = vrot.slane %v1000, 4
        %v1006 = vshrl.u32 %v799, 16
        %v1008 = vrot.slane %v1006, 7
        %v1009 = vshll.u32 %v799, 16
        %v1011 = vor.u32 %v1008, %v1009
        %v1012 = vsel %vm809, %v1004, %v1011
        %v1013 = vrot.slane %v1008, 4
        %v1015 = vshrl.u32 %v800, 16
        %v1017 = vrot.slane %v1015, 7
        %v1018 = vshll.u32 %v800, 16
        %v1020 = vor.u32 %v1017, %v1018
        %v1021 = vrot.slane %v1017, 4
        %v1023 = vshrl.u32 %v801, 16
        %v1025 = vrot.slane %v1023, 7
        %v1026 = vshll.u32 %v801, 16
        %v1028 = vor.u32 %v1025, %v1026
        %v1029 = vsel %vm809, %v1021, %v1028
        %v1030 = vrot.slane %v1025, 4
        %v1032 = vshrl.u32 %v802, 16
        %v1034 = vrot.slane %v1032, 7
        %v1035 = vshll.u32 %v802, 16
        %v1037 = vor.u32 %v1034, %v1035
        %v1038 = vrot.slane %v1034, 4
        %v1040 = vshrl.u32 %v803, 16
        %v1042 = vrot.slane %v1040, 7
        %v1043 = vshll.u32 %v803, 16
        %v1045 = vor.u32 %v1042, %v1043
        %v1046 = vsel %vm809, %v1038, %v1045
        %v1047 = vrot.slane %v1042, 4
        %v1049 = vshrl.u32 %v804, 16
        %v1051 = vrot.slane %v1049, 7
        %v1052 = vshll.u32 %v804, 16
        %v1054 = vor.u32 %v1051, %v1052
        %v1055 = vrot.slane %v1051, 4
        %v1057 = vshrl.u32 %v805, 16
        %v1059 = vrot.slane %v1057, 7
        %v1060 = vshll.u32 %v805, 16
        %v1062 = vor.u32 %v1059, %v1060
        %v1063 = vsel %vm809, %v1055, %v1062
        %v1064 = vrot.slane %v1059, 4
        %v1066 = vshrl.u32 %v806, 16
        %v1068 = vrot.slane %v1066, 7
        %v1069 = vshll.u32 %v806, 16
        %v1071 = vor.u32 %v1068, %v1069
        %v1072 = vrot.slane %v1068, 4
        %v1074 = vshrl.u32 %v807, 16
        %v1076 = vrot.slane %v1074, 7
        %v1077 = vshll.u32 %v807, 16
        %v1079 = vor.u32 %v1076, %v1077
        %v1080 = vsel %vm809, %v1072, %v1079
        %v1081 = vrot.slane %v1076, 4
        %s1130 = scalar_lea.vmem [#allocation2], 12
        %vm1131 = vcmask 1043456
        %vm1132 = vmand %vm1131, %vm605
        %v1133 = vld [vmem:[%s1130] sm:$0xf]
        %v1134 = vsel %vm1132, %v816, %v1133
        %1135 = vst [vmem:[%s1130] sm:$0xf] %v1134
        %1136 = vst [vmem:[%s1130 + $0x4] sm:$0xf] %v825
        %v1137 = vld [vmem:[%s1130 + $0x8] sm:$0x1]
        %v1138 = vsel %vm550, %v826, %v1137
        %1139 = vst [vmem:[%s1130 + $0x8] sm:$0x1] %v1138
        %v1140 = vld [vmem:[%s1130 + $0xc] sm:$0xf]
        %v1141 = vsel %vm1132, %v833, %v1140
        %1142 = vst [vmem:[%s1130 + $0xc] sm:$0xf] %v1141
        %1143 = vst [vmem:[%s1130 + $0x10] sm:$0xf] %v842
        %v1144 = vld [vmem:[%s1130 + $0x14] sm:$0x1]
        %v1145 = vsel %vm550, %v843, %v1144
        %1146 = vst [vmem:[%s1130 + $0x14] sm:$0x1] %v1145
        %v1147 = vld [vmem:[%s1130 + $0x18] sm:$0xf]
        %v1148 = vsel %vm1132, %v850, %v1147
        %1149 = vst [vmem:[%s1130 + $0x18] sm:$0xf] %v1148
        %1150 = vst [vmem:[%s1130 + $0x1c] sm:$0xf] %v859
        %v1151 = vld [vmem:[%s1130 + $0x20] sm:$0x1]
        %v1152 = vsel %vm550, %v860, %v1151
        %1153 = vst [vmem:[%s1130 + $0x20] sm:$0x1] %v1152
        %v1154 = vld [vmem:[%s1130 + $0x24] sm:$0xf]
        %v1155 = vsel %vm1132, %v867, %v1154
        %1156 = vst [vmem:[%s1130 + $0x24] sm:$0xf] %v1155
        %1157 = vst [vmem:[%s1130 + $0x28] sm:$0xf] %v876
        %v1158 = vld [vmem:[%s1130 + $0x2c] sm:$0x1]
        %v1159 = vsel %vm550, %v877, %v1158
        %1160 = vst [vmem:[%s1130 + $0x2c] sm:$0x1] %v1159
        %v1161 = vld [vmem:[%s1130 + $0x30] sm:$0xf]
        %v1162 = vsel %vm1132, %v884, %v1161
        %1163 = vst [vmem:[%s1130 + $0x30] sm:$0xf] %v1162
        %1164 = vst [vmem:[%s1130 + $0x34] sm:$0xf] %v893
        %v1165 = vld [vmem:[%s1130 + $0x38] sm:$0x1]
        %v1166 = vsel %vm550, %v894, %v1165
        %1167 = vst [vmem:[%s1130 + $0x38] sm:$0x1] %v1166
        %v1168 = vld [vmem:[%s1130 + $0x3c] sm:$0xf]
        %v1169 = vsel %vm1132, %v901, %v1168
        %1170 = vst [vmem:[%s1130 + $0x3c] sm:$0xf] %v1169
        %1171 = vst [vmem:[%s1130 + $0x40] sm:$0xf] %v910
        %v1172 = vld [vmem:[%s1130 + $0x44] sm:$0x1]
        %v1173 = vsel %vm550, %v911, %v1172
        %1174 = vst [vmem:[%s1130 + $0x44] sm:$0x1] %v1173
        %v1175 = vld [vmem:[%s1130 + $0x48] sm:$0xf]
        %v1176 = vsel %vm1132, %v918, %v1175
        %1177 = vst [vmem:[%s1130 + $0x48] sm:$0xf] %v1176
        %1178 = vst [vmem:[%s1130 + $0x4c] sm:$0xf] %v927
        %v1179 = vld [vmem:[%s1130 + $0x50] sm:$0x1]
        %v1180 = vsel %vm550, %v928, %v1179
        %1181 = vst [vmem:[%s1130 + $0x50] sm:$0x1] %v1180
        %v1182 = vld [vmem:[%s1130 + $0x54] sm:$0xf]
        %v1183 = vsel %vm1132, %v935, %v1182
        %1184 = vst [vmem:[%s1130 + $0x54] sm:$0xf] %v1183
        %1185 = vst [vmem:[%s1130 + $0x58] sm:$0xf] %v944
        %v1186 = vld [vmem:[%s1130 + $0x5c] sm:$0x1]
        %v1187 = vsel %vm550, %v945, %v1186
        %1188 = vst [vmem:[%s1130 + $0x5c] sm:$0x1] %v1187
        %v1189 = vld [vmem:[%s1130 + $0x60] sm:$0xf]
        %v1190 = vsel %vm1132, %v952, %v1189
        %1191 = vst [vmem:[%s1130 + $0x60] sm:$0xf] %v1190
        %1192 = vst [vmem:[%s1130 + $0x64] sm:$0xf] %v961
        %v1193 = vld [vmem:[%s1130 + $0x68] sm:$0x1]
        %v1194 = vsel %vm550, %v962, %v1193
        %1195 = vst [vmem:[%s1130 + $0x68] sm:$0x1] %v1194
        %v1196 = vld [vmem:[%s1130 + $0x6c] sm:$0xf]
        %v1197 = vsel %vm1132, %v969, %v1196
        %1198 = vst [vmem:[%s1130 + $0x6c] sm:$0xf] %v1197
        %1199 = vst [vmem:[%s1130 + $0x70] sm:$0xf] %v978
        %v1200 = vld [vmem:[%s1130 + $0x74] sm:$0x1]
        %v1201 = vsel %vm550, %v979, %v1200
        %1202 = vst [vmem:[%s1130 + $0x74] sm:$0x1] %v1201
        %v1203 = vld [vmem:[%s1130 + $0x78] sm:$0xf]
        %v1204 = vsel %vm1132, %v986, %v1203
        %1205 = vst [vmem:[%s1130 + $0x78] sm:$0xf] %v1204
        %1206 = vst [vmem:[%s1130 + $0x7c] sm:$0xf] %v995
        %v1207 = vld [vmem:[%s1130 + $0x80] sm:$0x1]
        %v1208 = vsel %vm550, %v996, %v1207
        %1209 = vst [vmem:[%s1130 + $0x80] sm:$0x1] %v1208
        %v1210 = vld [vmem:[%s1130 + $0x84] sm:$0xf]
        %v1211 = vsel %vm1132, %v1003, %v1210
        %1212 = vst [vmem:[%s1130 + $0x84] sm:$0xf] %v1211
        %1213 = vst [vmem:[%s1130 + $0x88] sm:$0xf] %v1012
        %v1214 = vld [vmem:[%s1130 + $0x8c] sm:$0x1]
        %v1215 = vsel %vm550, %v1013, %v1214
        %1216 = vst [vmem:[%s1130 + $0x8c] sm:$0x1] %v1215
        %v1217 = vld [vmem:[%s1130 + $0x90] sm:$0xf]
        %v1218 = vsel %vm1132, %v1020, %v1217
        %1219 = vst [vmem:[%s1130 + $0x90] sm:$0xf] %v1218
        %1220 = vst [vmem:[%s1130 + $0x94] sm:$0xf] %v1029
        %v1221 = vld [vmem:[%s1130 + $0x98] sm:$0x1]
        %v1222 = vsel %vm550, %v1030, %v1221
        %1223 = vst [vmem:[%s1130 + $0x98] sm:$0x1] %v1222
        %v1224 = vld [vmem:[%s1130 + $0x9c] sm:$0xf]
        %v1225 = vsel %vm1132, %v1037, %v1224
        %1226 = vst [vmem:[%s1130 + $0x9c] sm:$0xf] %v1225
        %1227 = vst [vmem:[%s1130 + $0xa0] sm:$0xf] %v1046
        %v1228 = vld [vmem:[%s1130 + $0xa4] sm:$0x1]
        %v1229 = vsel %vm550, %v1047, %v1228
        %1230 = vst [vmem:[%s1130 + $0xa4] sm:$0x1] %v1229
        %v1231 = vld [vmem:[%s1130 + $0xa8] sm:$0xf]
        %v1232 = vsel %vm1132, %v1054, %v1231
        %1233 = vst [vmem:[%s1130 + $0xa8] sm:$0xf] %v1232
        %1234 = vst [vmem:[%s1130 + $0xac] sm:$0xf] %v1063
        %v1235 = vld [vmem:[%s1130 + $0xb0] sm:$0x1]
        %v1236 = vsel %vm550, %v1064, %v1235
        %1237 = vst [vmem:[%s1130 + $0xb0] sm:$0x1] %v1236
        %v1238 = vld [vmem:[%s1130 + $0xb4] sm:$0xf]
        %v1239 = vsel %vm1132, %v1071, %v1238
        %1240 = vst [vmem:[%s1130 + $0xb4] sm:$0xf] %v1239
        %1241 = vst [vmem:[%s1130 + $0xb8] sm:$0xf] %v1080
        %v1242 = vld [vmem:[%s1130 + $0xbc] sm:$0x1]
        %v1243 = vsel %vm550, %v1081, %v1242
        %1244 = vst [vmem:[%s1130 + $0xbc] sm:$0x1] %v1243
        loop: start=0, step=1, limit=2
        $region109: #{tpu_custom_call.1} parent=63 // loop_pre_header
          _
        $region110: #{tpu_custom_call.1} parent=63 // loop_header
          %s1246 = sphi 0, %s1250
          %p1247 = scmp.ge.s32.totalorder %s1246, 2
        $region111: #{tpu_custom_call.1} parent=63 // loop_header_branch
          %1249 = sbr.rel (%p1247) target = $region115
        $region112: #{tpu_custom_call.1} parent=63 // loop_body
          %s1251 = smul.u32 %s1246, 8
          %s1252 = smul.u32 %s1251, 3
          %s1253 = smul.addr %s1252, 4
          %s1254 = scalar_lea.vmem [#allocation2], %s1253
          %v1255 = vld [vmem:[%s1254] sm:$0xf]
          %v1256 = vld [vmem:[%s1254 + $0x4] sm:$0xf]
          %v1257 = vld [vmem:[%s1254 + $0xc] sm:$0xf]
          %v1258 = vld [vmem:[%s1254 + $0x10] sm:$0xf]
          %v1259 = vld [vmem:[%s1254 + $0x18] sm:$0xf]
          %v1260 = vld [vmem:[%s1254 + $0x1c] sm:$0xf]
          %v1261 = vld [vmem:[%s1254 + $0x24] sm:$0xf]
          %v1262 = vld [vmem:[%s1254 + $0x28] sm:$0xf]
          %v1263 = vld [vmem:[%s1254 + $0x30] sm:$0xf]
          %v1264 = vld [vmem:[%s1254 + $0x34] sm:$0xf]
          %v1265 = vld [vmem:[%s1254 + $0x3c] sm:$0xf]
          %v1266 = vld [vmem:[%s1254 + $0x40] sm:$0xf]
          %v1267 = vld [vmem:[%s1254 + $0x48] sm:$0xf]
          %v1268 = vld [vmem:[%s1254 + $0x4c] sm:$0xf]
          %v1269 = vld [vmem:[%s1254 + $0x54] sm:$0xf]
          %v1270 = vld [vmem:[%s1254 + $0x58] sm:$0xf]
          %v1271 = vld [vmem:[#allocation7] sm:$0xf]
          %v1272 = vld [vmem:[#allocation7 + $0x4] sm:$0xf]
          %v1273 = vld [vmem:[#allocation7 + $0x8] sm:$0xf]
          %v1274 = vld [vmem:[#allocation7 + $0xc] sm:$0xf]
          %v1275 = vld [vmem:[#allocation7 + $0x10] sm:$0xf]
          %v1276 = vld [vmem:[#allocation7 + $0x14] sm:$0xf]
          %v1277 = vld [vmem:[#allocation7 + $0x18] sm:$0xf]
          %v1278 = vld [vmem:[#allocation7 + $0x1c] sm:$0xf]
          %v1279 = vld [vmem:[#allocation7 + $0x20] sm:$0xf]
          %v1280 = vld [vmem:[#allocation7 + $0x24] sm:$0xf]
          %v1281 = vld [vmem:[#allocation7 + $0x28] sm:$0xf]
          %v1282 = vld [vmem:[#allocation7 + $0x2c] sm:$0xf]
          %v1283 = vld [vmem:[#allocation7 + $0x30] sm:$0xf]
          %v1284 = vld [vmem:[#allocation7 + $0x34] sm:$0xf]
          %v1285 = vld [vmem:[#allocation7 + $0x38] sm:$0xf]
          %v1286 = vld [vmem:[#allocation7 + $0x3c] sm:$0xf]
          %v1287 = vld [vmem:[%s1254 + $0x8] sm:$0x1]
          %v1288 = vld [vmem:[%s1254 + $0x14] sm:$0x1]
          %v1289 = vld [vmem:[%s1254 + $0x20] sm:$0x1]
          %v1290 = vld [vmem:[%s1254 + $0x2c] sm:$0x1]
          %v1291 = vld [vmem:[%s1254 + $0x38] sm:$0x1]
          %v1292 = vld [vmem:[%s1254 + $0x44] sm:$0x1]
          %v1293 = vld [vmem:[%s1254 + $0x50] sm:$0x1]
          %v1294 = vld [vmem:[%s1254 + $0x5c] sm:$0x1]
          %vm1295 = vsmask.f32 3328
          %vm1296 = vsmask.f32 7440
          %vm1297 = vmor %vm1295, %vm1296
          %v1299 = vshrl.u32 %v1255, 16
          %v1301 = vrot.slane %v1299, 4
          %v1302 = vshll.u32 %v1255, 16
          %v1304 = vrot.slane %v1302, 5
          %v1305 = vor.u32 %v1301, %v1304
          %v1306 = vrot.slane %v1305, 4
          %v1308 = vshll.u32 %v1256, 16
          %v1310 = vrot.slane %v1308, 5
          %v1311 = vsel %vm1297, %v1306, %v1310
          %v1312 = vshrl.u32 %v1256, 16
          %v1314 = vrot.slane %v1312, 4
          %v1315 = vor.u32 %v1314, %v1310
          %v1316 = vrot.slane %v1315, 4
          %v1318 = vshll.u32 %v1287, 16
          %v1320 = vrot.slane %v1318, 5
          %v1321 = vsel %vm1297, %v1316, %v1320
          %v1323 = vshrl.u32 %v1257, 16
          %v1325 = vrot.slane %v1323, 4
          %v1326 = vshll.u32 %v1257, 16
          %v1328 = vrot.slane %v1326, 5
          %v1329 = vor.u32 %v1325, %v1328
          %v1330 = vrot.slane %v1329, 4
          %v1332 = vshll.u32 %v1258, 16
          %v1334 = vrot.slane %v1332, 5
          %v1335 = vsel %vm1297, %v1330, %v1334
          %v1336 = vshrl.u32 %v1258, 16
          %v1338 = vrot.slane %v1336, 4
          %v1339 = vor.u32 %v1338, %v1334
          %v1340 = vrot.slane %v1339, 4
          %v1342 = vshll.u32 %v1288, 16
          %v1344 = vrot.slane %v1342, 5
          %v1345 = vsel %vm1297, %v1340, %v1344
          %v1347 = vshrl.u32 %v1259, 16
          %v1349 = vrot.slane %v1347, 4
          %v1350 = vshll.u32 %v1259, 16
          %v1352 = vrot.slane %v1350, 5
          %v1353 = vor.u32 %v1349, %v1352
          %v1354 = vrot.slane %v1353, 4
          %v1356 = vshll.u32 %v1260, 16
          %v1358 = vrot.slane %v1356, 5
          %v1359 = vsel %vm1297, %v1354, %v1358
          %v1360 = vshrl.u32 %v1260, 16
          %v1362 = vrot.slane %v1360, 4
          %v1363 = vor.u32 %v1362, %v1358
          %v1364 = vrot.slane %v1363, 4
          %v1366 = vshll.u32 %v1289, 16
          %v1368 = vrot.slane %v1366, 5
          %v1369 = vsel %vm1297, %v1364, %v1368
          %v1371 = vshrl.u32 %v1261, 16
          %v1373 = vrot.slane %v1371, 4
          %v1374 = vshll.u32 %v1261, 16
          %v1376 = vrot.slane %v1374, 5
          %v1377 = vor.u32 %v1373, %v1376
          %v1378 = vrot.slane %v1377, 4
          %v1380 = vshll.u32 %v1262, 16
          %v1382 = vrot.slane %v1380, 5
          %v1383 = vsel %vm1297, %v1378, %v1382
          %v1384 = vshrl.u32 %v1262, 16
          %v1386 = vrot.slane %v1384, 4
          %v1387 = vor.u32 %v1386, %v1382
          %v1388 = vrot.slane %v1387, 4
          %v1390 = vshll.u32 %v1290, 16
          %v1392 = vrot.slane %v1390, 5
          %v1393 = vsel %vm1297, %v1388, %v1392
          %v1395 = vshrl.u32 %v1263, 16
          %v1397 = vrot.slane %v1395, 4
          %v1398 = vshll.u32 %v1263, 16
          %v1400 = vrot.slane %v1398, 5
          %v1401 = vor.u32 %v1397, %v1400
          %v1402 = vrot.slane %v1401, 4
          %v1404 = vshll.u32 %v1264, 16
          %v1406 = vrot.slane %v1404, 5
          %v1407 = vsel %vm1297, %v1402, %v1406
          %v1408 = vshrl.u32 %v1264, 16
          %v1410 = vrot.slane %v1408, 4
          %v1411 = vor.u32 %v1410, %v1406
          %v1412 = vrot.slane %v1411, 4
          %v1414 = vshll.u32 %v1291, 16
          %v1416 = vrot.slane %v1414, 5
          %v1417 = vsel %vm1297, %v1412, %v1416
          %v1419 = vshrl.u32 %v1265, 16
          %v1421 = vrot.slane %v1419, 4
          %v1422 = vshll.u32 %v1265, 16
          %v1424 = vrot.slane %v1422, 5
          %v1425 = vor.u32 %v1421, %v1424
          %v1426 = vrot.slane %v1425, 4
          %v1428 = vshll.u32 %v1266, 16
          %v1430 = vrot.slane %v1428, 5
          %v1431 = vsel %vm1297, %v1426, %v1430
          %v1432 = vshrl.u32 %v1266, 16
          %v1434 = vrot.slane %v1432, 4
          %v1435 = vor.u32 %v1434, %v1430
          %v1436 = vrot.slane %v1435, 4
          %v1438 = vshll.u32 %v1292, 16
          %v1440 = vrot.slane %v1438, 5
          %v1441 = vsel %vm1297, %v1436, %v1440
          %v1443 = vshrl.u32 %v1267, 16
          %v1445 = vrot.slane %v1443, 4
          %v1446 = vshll.u32 %v1267, 16
          %v1448 = vrot.slane %v1446, 5
          %v1449 = vor.u32 %v1445, %v1448
          %v1450 = vrot.slane %v1449, 4
          %v1452 = vshll.u32 %v1268, 16
          %v1454 = vrot.slane %v1452, 5
          %v1455 = vsel %vm1297, %v1450, %v1454
          %v1456 = vshrl.u32 %v1268, 16
          %v1458 = vrot.slane %v1456, 4
          %v1459 = vor.u32 %v1458, %v1454
          %v1460 = vrot.slane %v1459, 4
          %v1462 = vshll.u32 %v1293, 16
          %v1464 = vrot.slane %v1462, 5
          %v1465 = vsel %vm1297, %v1460, %v1464
          %v1467 = vshrl.u32 %v1269, 16
          %v1469 = vrot.slane %v1467, 4
          %v1470 = vshll.u32 %v1269, 16
          %v1472 = vrot.slane %v1470, 5
          %v1473 = vor.u32 %v1469, %v1472
          %v1474 = vrot.slane %v1473, 4
          %v1476 = vshll.u32 %v1270, 16
          %v1478 = vrot.slane %v1476, 5
          %v1479 = vsel %vm1297, %v1474, %v1478
          %v1480 = vshrl.u32 %v1270, 16
          %v1482 = vrot.slane %v1480, 4
          %v1483 = vor.u32 %v1482, %v1478
          %v1484 = vrot.slane %v1483, 4
          %v1486 = vshll.u32 %v1294, 16
          %v1488 = vrot.slane %v1486, 5
          %v1489 = vsel %vm1297, %v1484, %v1488
          %s1490 = scalar_lea.vmem [#allocation7], 64
          %v1491 = vld [vmem:[%s1490] sm:$0xf]
          %v1492 = vld [vmem:[%s1490 + $0x4] sm:$0xf]
          %v1493 = vld [vmem:[%s1490 + $0x8] sm:$0xf]
          %v1494 = vld [vmem:[%s1490 + $0xc] sm:$0xf]
          %v1495 = vld [vmem:[%s1490 + $0x10] sm:$0xf]
          %v1496 = vld [vmem:[%s1490 + $0x14] sm:$0xf]
          %v1497 = vld [vmem:[%s1490 + $0x18] sm:$0xf]
          %v1498 = vld [vmem:[%s1490 + $0x1c] sm:$0xf]
          %v1499 = vld [vmem:[%s1490 + $0x20] sm:$0xf]
          %v1500 = vld [vmem:[%s1490 + $0x24] sm:$0xf]
          %v1501 = vld [vmem:[%s1490 + $0x28] sm:$0xf]
          %v1502 = vld [vmem:[%s1490 + $0x2c] sm:$0xf]
          %v1503 = vld [vmem:[%s1490 + $0x30] sm:$0xf]
          %v1504 = vld [vmem:[%s1490 + $0x34] sm:$0xf]
          %v1505 = vld [vmem:[%s1490 + $0x38] sm:$0xf]
          %v1506 = vld [vmem:[%s1490 + $0x3c] sm:$0xf]
          %v1507 = vunpack.c.l.b16 %v1311
          %v1508 = vunpack.c.l.b16 %v1321
          %v1509 = vunpack.c.l.b16 %v1335
          %v1510 = vunpack.c.l.b16 %v1345
          %v1511 = vunpack.c.l.b16 %v1359
          %v1512 = vunpack.c.l.b16 %v1369
          %v1513 = vunpack.c.l.b16 %v1383
          %v1514 = vunpack.c.l.b16 %v1393
          %v1515 = vunpack.c.l.b16 %v1407
          %v1516 = vunpack.c.l.b16 %v1417
          %v1517 = vunpack.c.l.b16 %v1431
          %v1518 = vunpack.c.l.b16 %v1441
          %v1519 = vunpack.c.l.b16 %v1455
          %v1520 = vunpack.c.l.b16 %v1465
          %v1521 = vunpack.c.l.b16 %v1479
          %v1522 = vunpack.c.l.b16 %v1489
          %v1523 = vpack.c.b16 %v1508, %v1507
          %v1524 = vpack.c.b16 %v1510, %v1509
          %v1525 = vpack.c.b16 %v1512, %v1511
          %v1526 = vpack.c.b16 %v1514, %v1513
          %v1527 = vpack.c.b16 %v1516, %v1515
          %v1528 = vpack.c.b16 %v1518, %v1517
          %v1529 = vpack.c.b16 %v1520, %v1519
          %v1530 = vpack.c.b16 %v1522, %v1521
          %v1555 = vunpack.c.l.b16 %v1491
          %v1556 = vunpack.c.l.b16 %v1492
          %v1557 = vunpack.c.l.b16 %v1493
          %v1558 = vunpack.c.l.b16 %v1494
          %v1559 = vunpack.c.l.b16 %v1495
          %v1560 = vunpack.c.l.b16 %v1496
          %v1561 = vunpack.c.l.b16 %v1497
          %v1562 = vunpack.c.l.b16 %v1498
          %v1563 = vunpack.c.l.b16 %v1499
          %v1564 = vunpack.c.l.b16 %v1500
          %v1565 = vunpack.c.l.b16 %v1501
          %v1566 = vunpack.c.l.b16 %v1502
          %v1567 = vunpack.c.l.b16 %v1503
          %v1568 = vunpack.c.l.b16 %v1504
          %v1569 = vunpack.c.l.b16 %v1505
          %v1570 = vunpack.c.l.b16 %v1506
          %v1571 = vpack.c.b16 %v1556, %v1555
          %v1572 = vpack.c.b16 %v1558, %v1557
          %v1573 = vpack.c.b16 %v1560, %v1559
          %v1574 = vpack.c.b16 %v1562, %v1561
          %v1575 = vpack.c.b16 %v1564, %v1563
          %v1576 = vpack.c.b16 %v1566, %v1565
          %v1577 = vpack.c.b16 %v1568, %v1567
          %v1578 = vpack.c.b16 %v1570, %v1569
          %1587 = vmatprep.subr.bf16.mxu0 0
          %1588 = vmatpush1.bf16.msra.mxu0 %v1571
          %1589 = vmatprep.subr.bf16.mxu0 0
          %1590 = vmatpush1.bf16.msra.mxu0 %v1572
          %1591 = vmatprep.subr.bf16.mxu0 0
          %1592 = vmatpush1.bf16.msra.mxu0 %v1573
          %1593 = vmatprep.subr.bf16.mxu0 0
          %1594 = vmatpush1.bf16.msra.mxu0 %v1574
          %1595 = vmatprep.subr.bf16.mxu0 0
          %1596 = vmatpush1.bf16.msra.mxu0 %v1575
          %1597 = vmatprep.subr.bf16.mxu0 0
          %1598 = vmatpush1.bf16.msra.mxu0 %v1576
          %1599 = vmatprep.subr.bf16.mxu0 0
          %1600 = vmatpush1.bf16.msra.mxu0 %v1577
          %1601 = vmatprep.subr.bf16.mxu0 0
          %1602 = vmatpush1.bf16.msra.mxu0 %v1578
          %1603 = vmatprep.subr.bf16.mxu0 0
          %1604 = vmatpush1.bf16.msra.mxu0 0
          %1605 = vmatprep.subr.bf16.mxu0 0
          %1606 = vmatpush1.bf16.msra.mxu0 0
          %1607 = vmatprep.subr.bf16.mxu0 0
          %1608 = vmatpush1.bf16.msra.mxu0 0
          %1609 = vmatprep.subr.bf16.mxu0 0
          %1610 = vmatpush1.bf16.msra.mxu0 0
          %1611 = vmatprep.subr.bf16.mxu0 0
          %1612 = vmatpush1.bf16.msra.mxu0 0
          %1613 = vmatprep.subr.bf16.mxu0 0
          %1614 = vmatpush1.bf16.msra.mxu0 0
          %1615 = vmatprep.subr.bf16.mxu0 0
          %1616 = vmatpush1.bf16.msra.mxu0 0
          %1617 = vmatprep.subr.bf16.mxu0 0
          %1618 = vmatpush1.bf16.msra.mxu0 0
          %1619 = vmatprep.mubr.bf16.mxu0 0
          %1620 = vmatmul.mubr.bf16.gmra.mrb[0].mxu0 %v1523
          %v1621 = vpop.f32.mrb[0].mxu0
          %v1622 = vadd.f32 0.0, %v1621
          %v1623 = vpop.f32.mrb[0].mxu0
          %v1624 = vpop.f32.mrb[0].mxu0
          %v1625 = vadd.f32 0.0, %v1624
          %v1626 = vpop.f32.mrb[0].mxu0
          %1627 = vmatprep.mubr.bf16.mxu0 0
          %1628 = vmatmul.mubr.bf16.gmra.mrb[0].mxu0 %v1524
          %v1629 = vpop.f32.mrb[0].mxu0
          %v1630 = vadd.f32 0.0, %v1629
          %v1631 = vpop.f32.mrb[0].mxu0
          %v1632 = vpop.f32.mrb[0].mxu0
          %v1633 = vadd.f32 0.0, %v1632
          %v1634 = vpop.f32.mrb[0].mxu0
          %1635 = vmatprep.mubr.bf16.mxu0 0
          %1636 = vmatmul.mubr.bf16.gmra.mrb[0].mxu0 %v1525
          %v1637 = vpop.f32.mrb[0].mxu0
          %v1638 = vadd.f32 0.0, %v1637
          %v1639 = vpop.f32.mrb[0].mxu0
          %v1640 = vpop.f32.mrb[0].mxu0
          %v1641 = vadd.f32 0.0, %v1640
          %v1642 = vpop.f32.mrb[0].mxu0
          %1643 = vmatprep.mubr.bf16.mxu0 0
          %1644 = vmatmul.mubr.bf16.gmra.mrb[0].mxu0 %v1526
          %v1645 = vpop.f32.mrb[0].mxu0
          %v1646 = vadd.f32 0.0, %v1645
          %v1647 = vpop.f32.mrb[0].mxu0
          %v1648 = vpop.f32.mrb[0].mxu0
          %v1649 = vadd.f32 0.0, %v1648
          %v1650 = vpop.f32.mrb[0].mxu0
          %1651 = vmatprep.mubr.bf16.mxu0 0
          %1652 = vmatmul.mubr.bf16.gmra.mrb[0].mxu0 %v1527
          %v1653 = vpop.f32.mrb[0].mxu0
          %v1654 = vadd.f32 0.0, %v1653
          %v1655 = vpop.f32.mrb[0].mxu0
          %v1656 = vpop.f32.mrb[0].mxu0
          %v1657 = vadd.f32 0.0, %v1656
          %v1658 = vpop.f32.mrb[0].mxu0
          %1659 = vmatprep.mubr.bf16.mxu0 0
          %1660 = vmatmul.mubr.bf16.gmra.mrb[0].mxu0 %v1528
          %v1661 = vpop.f32.mrb[0].mxu0
          %v1662 = vadd.f32 0.0, %v1661
          %v1663 = vpop.f32.mrb[0].mxu0
          %v1664 = vpop.f32.mrb[0].mxu0
          %v1665 = vadd.f32 0.0, %v1664
          %v1666 = vpop.f32.mrb[0].mxu0
          %1667 = vmatprep.mubr.bf16.mxu0 0
          %1668 = vmatmul.mubr.bf16.gmra.mrb[0].mxu0 %v1529
          %v1669 = vpop.f32.mrb[0].mxu0
          %v1670 = vadd.f32 0.0, %v1669
          %v1671 = vpop.f32.mrb[0].mxu0
          %v1672 = vpop.f32.mrb[0].mxu0
          %v1673 = vadd.f32 0.0, %v1672
          %v1674 = vpop.f32.mrb[0].mxu0
          %1675 = vmatprep.mubr.bf16.mxu0 0
          %1676 = vmatmul.mubr.bf16.gmra.mrb[0].mxu0 %v1530
          %v1677 = vpop.f32.mrb[0].mxu0
          %v1678 = vadd.f32 0.0, %v1677
          %v1679 = vpop.f32.mrb[0].mxu0
          %v1680 = vpop.f32.mrb[0].mxu0
          %v1681 = vadd.f32 0.0, %v1680
          %v1682 = vpop.f32.mrb[0].mxu0
          %1683 = vdwg.mxu0
          %v1700 = vunpack.c.l.b16 %v1255
          %v1701 = vunpack.c.l.b16 %v1256
          %v1702 = vunpack.c.l.b16 %v1257
          %v1703 = vunpack.c.l.b16 %v1258
          %v1704 = vunpack.c.l.b16 %v1259
          %v1705 = vunpack.c.l.b16 %v1260
          %v1706 = vunpack.c.l.b16 %v1261
          %v1707 = vunpack.c.l.b16 %v1262
          %v1708 = vunpack.c.l.b16 %v1263
          %v1709 = vunpack.c.l.b16 %v1264
          %v1710 = vunpack.c.l.b16 %v1265
          %v1711 = vunpack.c.l.b16 %v1266
          %v1712 = vunpack.c.l.b16 %v1267
          %v1713 = vunpack.c.l.b16 %v1268
          %v1714 = vunpack.c.l.b16 %v1269
          %v1715 = vunpack.c.l.b16 %v1270
          %v1716 = vpack.c.b16 %v1701, %v1700
          %v1717 = vpack.c.b16 %v1703, %v1702
          %v1718 = vpack.c.b16 %v1705, %v1704
          %v1719 = vpack.c.b16 %v1707, %v1706
          %v1720 = vpack.c.b16 %v1709, %v1708
          %v1721 = vpack.c.b16 %v1711, %v1710
          %v1722 = vpack.c.b16 %v1713, %v1712
          %v1723 = vpack.c.b16 %v1715, %v1714
          %v1748 = vunpack.c.l.b16 %v1271
          %v1749 = vunpack.c.l.b16 %v1272
          %v1750 = vunpack.c.l.b16 %v1273
          %v1751 = vunpack.c.l.b16 %v1274
          %v1752 = vunpack.c.l.b16 %v1275
          %v1753 = vunpack.c.l.b16 %v1276
          %v1754 = vunpack.c.l.b16 %v1277
          %v1755 = vunpack.c.l.b16 %v1278
          %v1756 = vunpack.c.l.b16 %v1279
          %v1757 = vunpack.c.l.b16 %v1280
          %v1758 = vunpack.c.l.b16 %v1281
          %v1759 = vunpack.c.l.b16 %v1282
          %v1760 = vunpack.c.l.b16 %v1283
          %v1761 = vunpack.c.l.b16 %v1284
          %v1762 = vunpack.c.l.b16 %v1285
          %v1763 = vunpack.c.l.b16 %v1286
          %v1764 = vpack.c.b16 %v1749, %v1748
          %v1765 = vpack.c.b16 %v1751, %v1750
          %v1766 = vpack.c.b16 %v1753, %v1752
          %v1767 = vpack.c.b16 %v1755, %v1754
          %v1768 = vpack.c.b16 %v1757, %v1756
          %v1769 = vpack.c.b16 %v1759, %v1758
          %v1770 = vpack.c.b16 %v1761, %v1760
          %v1771 = vpack.c.b16 %v1763, %v1762
          %1780 = vmatprep.subr.bf16.mxu0 0
          %1781 = vmatpush1.bf16.msra.mxu0 %v1764
          %1782 = vmatprep.subr.bf16.mxu0 0
          %1783 = vmatpush1.bf16.msra.mxu0 %v1765
          %1784 = vmatprep.subr.bf16.mxu0 0
          %1785 = vmatpush1.bf16.msra.mxu0 %v1766
          %1786 = vmatprep.subr.bf16.mxu0 0
          %1787 = vmatpush1.bf16.msra.mxu0 %v1767
          %1788 = vmatprep.subr.bf16.mxu0 0
          %1789 = vmatpush1.bf16.msra.mxu0 %v1768
          %1790 = vmatprep.subr.bf16.mxu0 0
          %1791 = vmatpush1.bf16.msra.mxu0 %v1769
          %1792 = vmatprep.subr.bf16.mxu0 0
          %1793 = vmatpush1.bf16.msra.mxu0 %v1770
          %1794 = vmatprep.subr.bf16.mxu0 0
          %1795 = vmatpush1.bf16.msra.mxu0 %v1771
          %1796 = vmatprep.subr.bf16.mxu0 0
          %1797 = vmatpush1.bf16.msra.mxu0 0
          %1798 = vmatprep.subr.bf16.mxu0 0
          %1799 = vmatpush1.bf16.msra.mxu0 0
          %1800 = vmatprep.subr.bf16.mxu0 0
          %1801 = vmatpush1.bf16.msra.mxu0 0
          %1802 = vmatprep.subr.bf16.mxu0 0
          %1803 = vmatpush1.bf16.msra.mxu0 0
          %1804 = vmatprep.subr.bf16.mxu0 0
          %1805 = vmatpush1.bf16.msra.mxu0 0
          %1806 = vmatprep.subr.bf16.mxu0 0
          %1807 = vmatpush1.bf16.msra.mxu0 0
          %1808 = vmatprep.subr.bf16.mxu0 0
          %1809 = vmatpush1.bf16.msra.mxu0 0
          %1810 = vmatprep.subr.bf16.mxu0 0
          %1811 = vmatpush1.bf16.msra.mxu0 0
          %1812 = vmatprep.mubr.bf16.mxu0 0
          %1813 = vmatmul.mubr.bf16.gmra.mrb[0].mxu0 %v1716
          %v1814 = vpop.f32.mrb[0].mxu0
          %v1815 = vadd.f32 %v1622, %v1814
          %v1816 = vpop.f32.mrb[0].mxu0
          %v1817 = vpop.f32.mrb[0].mxu0
          %v1818 = vadd.f32 %v1625, %v1817
          %v1819 = vpop.f32.mrb[0].mxu0
          %1820 = vmatprep.mubr.bf16.mxu0 0
          %1821 = vmatmul.mubr.bf16.gmra.mrb[0].mxu0 %v1717
          %v1822 = vpop.f32.mrb[0].mxu0
          %v1823 = vadd.f32 %v1630, %v1822
          %v1824 = vpop.f32.mrb[0].mxu0
          %v1825 = vpop.f32.mrb[0].mxu0
          %v1826 = vadd.f32 %v1633, %v1825
          %v1827 = vpop.f32.mrb[0].mxu0
          %1828 = vmatprep.mubr.bf16.mxu0 0
          %1829 = vmatmul.mubr.bf16.gmra.mrb[0].mxu0 %v1718
          %v1830 = vpop.f32.mrb[0].mxu0
          %v1831 = vadd.f32 %v1638, %v1830
          %v1832 = vpop.f32.mrb[0].mxu0
          %v1833 = vpop.f32.mrb[0].mxu0
          %v1834 = vadd.f32 %v1641, %v1833
          %v1835 = vpop.f32.mrb[0].mxu0
          %1836 = vmatprep.mubr.bf16.mxu0 0
          %1837 = vmatmul.mubr.bf16.gmra.mrb[0].mxu0 %v1719
          %v1838 = vpop.f32.mrb[0].mxu0
          %v1839 = vadd.f32 %v1646, %v1838
          %v1840 = vpop.f32.mrb[0].mxu0
          %v1841 = vpop.f32.mrb[0].mxu0
          %v1842 = vadd.f32 %v1649, %v1841
          %v1843 = vpop.f32.mrb[0].mxu0
          %1844 = vmatprep.mubr.bf16.mxu0 0
          %1845 = vmatmul.mubr.bf16.gmra.mrb[0].mxu0 %v1720
          %v1846 = vpop.f32.mrb[0].mxu0
          %v1847 = vadd.f32 %v1654, %v1846
          %v1848 = vpop.f32.mrb[0].mxu0
          %v1849 = vpop.f32.mrb[0].mxu0
          %v1850 = vadd.f32 %v1657, %v1849
          %v1851 = vpop.f32.mrb[0].mxu0
          %1852 = vmatprep.mubr.bf16.mxu0 0
          %1853 = vmatmul.mubr.bf16.gmra.mrb[0].mxu0 %v1721
          %v1854 = vpop.f32.mrb[0].mxu0
          %v1855 = vadd.f32 %v1662, %v1854
          %v1856 = vpop.f32.mrb[0].mxu0
          %v1857 = vpop.f32.mrb[0].mxu0
          %v1858 = vadd.f32 %v1665, %v1857
          %v1859 = vpop.f32.mrb[0].mxu0
          %1860 = vmatprep.mubr.bf16.mxu0 0
          %1861 = vmatmul.mubr.bf16.gmra.mrb[0].mxu0 %v1722
          %v1862 = vpop.f32.mrb[0].mxu0
          %v1863 = vadd.f32 %v1670, %v1862
          %v1864 = vpop.f32.mrb[0].mxu0
          %v1865 = vpop.f32.mrb[0].mxu0
          %v1866 = vadd.f32 %v1673, %v1865
          %v1867 = vpop.f32.mrb[0].mxu0
          %1868 = vmatprep.mubr.bf16.mxu0 0
          %1869 = vmatmul.mubr.bf16.gmra.mrb[0].mxu0 %v1723
          %v1870 = vpop.f32.mrb[0].mxu0
          %v1871 = vadd.f32 %v1678, %v1870
          %v1872 = vpop.f32.mrb[0].mxu0
          %v1873 = vpop.f32.mrb[0].mxu0
          %v1874 = vadd.f32 %v1681, %v1873
          %v1875 = vpop.f32.mrb[0].mxu0
          %1876 = vdwg.mxu0
          %v1877 = vld [vmem:[%s1254] sm:$0xe]
          %v1878 = vld [vmem:[%s1254 + $0xc] sm:$0xe]
          %v1879 = vld [vmem:[%s1254 + $0x18] sm:$0xe]
          %v1880 = vld [vmem:[%s1254 + $0x24] sm:$0xe]
          %v1881 = vld [vmem:[%s1254 + $0x30] sm:$0xe]
          %v1882 = vld [vmem:[%s1254 + $0x3c] sm:$0xe]
          %v1883 = vld [vmem:[%s1254 + $0x48] sm:$0xe]
          %v1884 = vld [vmem:[%s1254 + $0x54] sm:$0xe]
          %vm1901 = vcmask 1042432
          %vm1902 = vcmask 1046532
          %vm1903 = vmor %vm1901, %vm1902
          %v1904 = vrot.slane %v1877, 5
          %v1905 = vrot.slane %v1904, 4
          %v1906 = vrot.slane %v1256, 5
          %v1907 = vsel %vm1903, %v1905, %v1906
          %v1908 = vrot.slane %v1906, 4
          %v1909 = vrot.slane %v1287, 5
          %v1910 = vsel %vm1903, %v1908, %v1909
          %v1911 = vrot.slane %v1878, 5
          %v1912 = vrot.slane %v1911, 4
          %v1913 = vrot.slane %v1258, 5
          %v1914 = vsel %vm1903, %v1912, %v1913
          %v1915 = vrot.slane %v1913, 4
          %v1916 = vrot.slane %v1288, 5
          %v1917 = vsel %vm1903, %v1915, %v1916
          %v1918 = vrot.slane %v1879, 5
          %v1919 = vrot.slane %v1918, 4
          %v1920 = vrot.slane %v1260, 5
          %v1921 = vsel %vm1903, %v1919, %v1920
          %v1922 = vrot.slane %v1920, 4
          %v1923 = vrot.slane %v1289, 5
          %v1924 = vsel %vm1903, %v1922, %v1923
          %v1925 = vrot.slane %v1880, 5
          %v1926 = vrot.slane %v1925, 4
          %v1927 = vrot.slane %v1262, 5
          %v1928 = vsel %vm1903, %v1926, %v1927
          %v1929 = vrot.slane %v1927, 4
          %v1930 = vrot.slane %v1290, 5
          %v1931 = vsel %vm1903, %v1929, %v1930
          %v1932 = vrot.slane %v1881, 5
          %v1933 = vrot.slane %v1932, 4
          %v1934 = vrot.slane %v1264, 5
          %v1935 = vsel %vm1903, %v1933, %v1934
          %v1936 = vrot.slane %v1934, 4
          %v1937 = vrot.slane %v1291, 5
          %v1938 = vsel %vm1903, %v1936, %v1937
          %v1939 = vrot.slane %v1882, 5
          %v1940 = vrot.slane %v1939, 4
          %v1941 = vrot.slane %v1266, 5
          %v1942 = vsel %vm1903, %v1940, %v1941
          %v1943 = vrot.slane %v1941, 4
          %v1944 = vrot.slane %v1292, 5
          %v1945 = vsel %vm1903, %v1943, %v1944
          %v1946 = vrot.slane %v1883, 5
          %v1947 = vrot.slane %v1946, 4
          %v1948 = vrot.slane %v1268, 5
          %v1949 = vsel %vm1903, %v1947, %v1948
          %v1950 = vrot.slane %v1948, 4
          %v1951 = vrot.slane %v1293, 5
          %v1952 = vsel %vm1903, %v1950, %v1951
          %v1953 = vrot.slane %v1884, 5
          %v1954 = vrot.slane %v1953, 4
          %v1955 = vrot.slane %v1270, 5
          %v1956 = vsel %vm1903, %v1954, %v1955
          %v1957 = vrot.slane %v1955, 4
          %v1958 = vrot.slane %v1294, 5
          %v1959 = vsel %vm1903, %v1957, %v1958
          %s1960 = scalar_lea.vmem [#allocation7], 128
          %v1961 = vld [vmem:[%s1960] sm:$0xf]
          %v1962 = vld [vmem:[%s1960 + $0x4] sm:$0xf]
          %v1963 = vld [vmem:[%s1960 + $0x8] sm:$0xf]
          %v1964 = vld [vmem:[%s1960 + $0xc] sm:$0xf]
          %v1965 = vld [vmem:[%s1960 + $0x10] sm:$0xf]
          %v1966 = vld [vmem:[%s1960 + $0x14] sm:$0xf]
          %v1967 = vld [vmem:[%s1960 + $0x18] sm:$0xf]
          %v1968 = vld [vmem:[%s1960 + $0x1c] sm:$0xf]
          %v1969 = vld [vmem:[%s1960 + $0x20] sm:$0xf]
          %v1970 = vld [vmem:[%s1960 + $0x24] sm:$0xf]
          %v1971 = vld [vmem:[%s1960 + $0x28] sm:$0xf]
          %v1972 = vld [vmem:[%s1960 + $0x2c] sm:$0xf]
          %v1973 = vld [vmem:[%s1960 + $0x30] sm:$0xf]
          %v1974 = vld [vmem:[%s1960 + $0x34] sm:$0xf]
          %v1975 = vld [vmem:[%s1960 + $0x38] sm:$0xf]
          %v1976 = vld [vmem:[%s1960 + $0x3c] sm:$0xf]
          %v1977 = vunpack.c.l.b16 %v1907
          %v1978 = vunpack.c.l.b16 %v1910
          %v1979 = vunpack.c.l.b16 %v1914
          %v1980 = vunpack.c.l.b16 %v1917
          %v1981 = vunpack.c.l.b16 %v1921
          %v1982 = vunpack.c.l.b16 %v1924
          %v1983 = vunpack.c.l.b16 %v1928
          %v1984 = vunpack.c.l.b16 %v1931
          %v1985 = vunpack.c.l.b16 %v1935
          %v1986 = vunpack.c.l.b16 %v1938
          %v1987 = vunpack.c.l.b16 %v1942
          %v1988 = vunpack.c.l.b16 %v1945
          %v1989 = vunpack.c.l.b16 %v1949
          %v1990 = vunpack.c.l.b16 %v1952
          %v1991 = vunpack.c.l.b16 %v1956
          %v1992 = vunpack.c.l.b16 %v1959
          %v1993 = vpack.c.b16 %v1978, %v1977
          %v1994 = vpack.c.b16 %v1980, %v1979
          %v1995 = vpack.c.b16 %v1982, %v1981
          %v1996 = vpack.c.b16 %v1984, %v1983
          %v1997 = vpack.c.b16 %v1986, %v1985
          %v1998 = vpack.c.b16 %v1988, %v1987
          %v1999 = vpack.c.b16 %v1990, %v1989
          %v2000 = vpack.c.b16 %v1992, %v1991
          %v2025 = vunpack.c.l.b16 %v1961
          %v2026 = vunpack.c.l.b16 %v1962
          %v2027 = vunpack.c.l.b16 %v1963
          %v2028 = vunpack.c.l.b16 %v1964
          %v2029 = vunpack.c.l.b16 %v1965
          %v2030 = vunpack.c.l.b16 %v1966
          %v2031 = vunpack.c.l.b16 %v1967
          %v2032 = vunpack.c.l.b16 %v1968
          %v2033 = vunpack.c.l.b16 %v1969
          %v2034 = vunpack.c.l.b16 %v1970
          %v2035 = vunpack.c.l.b16 %v1971
          %v2036 = vunpack.c.l.b16 %v1972
          %v2037 = vunpack.c.l.b16 %v1973
          %v2038 = vunpack.c.l.b16 %v1974
          %v2039 = vunpack.c.l.b16 %v1975
          %v2040 = vunpack.c.l.b16 %v1976
          %v2041 = vpack.c.b16 %v2026, %v2025
          %v2042 = vpack.c.b16 %v2028, %v2027
          %v2043 = vpack.c.b16 %v2030, %v2029
          %v2044 = vpack.c.b16 %v2032, %v2031
          %v2045 = vpack.c.b16 %v2034, %v2033
          %v2046 = vpack.c.b16 %v2036, %v2035
          %v2047 = vpack.c.b16 %v2038, %v2037
          %v2048 = vpack.c.b16 %v2040, %v2039
          %2057 = vmatprep.subr.bf16.mxu0 0
          %2058 = vmatpush1.bf16.msra.mxu0 %v2041
          %2059 = vmatprep.subr.bf16.mxu0 0
          %2060 = vmatpush1.bf16.msra.mxu0 %v2042
          %2061 = vmatprep.subr.bf16.mxu0 0
          %2062 = vmatpush1.bf16.msra.mxu0 %v2043
          %2063 = vmatprep.subr.bf16.mxu0 0
          %2064 = vmatpush1.bf16.msra.mxu0 %v2044
          %2065 = vmatprep.subr.bf16.mxu0 0
          %2066 = vmatpush1.bf16.msra.mxu0 %v2045
          %2067 = vmatprep.subr.bf16.mxu0 0
          %2068 = vmatpush1.bf16.msra.mxu0 %v2046
          %2069 = vmatprep.subr.bf16.mxu0 0
          %2070 = vmatpush1.bf16.msra.mxu0 %v2047
          %2071 = vmatprep.subr.bf16.mxu0 0
          %2072 = vmatpush1.bf16.msra.mxu0 %v2048
          %2073 = vmatprep.subr.bf16.mxu0 0
          %2074 = vmatpush1.bf16.msra.mxu0 0
          %2075 = vmatprep.subr.bf16.mxu0 0
          %2076 = vmatpush1.bf16.msra.mxu0 0
          %2077 = vmatprep.subr.bf16.mxu0 0
          %2078 = vmatpush1.bf16.msra.mxu0 0
          %2079 = vmatprep.subr.bf16.mxu0 0
          %2080 = vmatpush1.bf16.msra.mxu0 0
          %2081 = vmatprep.subr.bf16.mxu0 0
          %2082 = vmatpush1.bf16.msra.mxu0 0
          %2083 = vmatprep.subr.bf16.mxu0 0
          %2084 = vmatpush1.bf16.msra.mxu0 0
          %2085 = vmatprep.subr.bf16.mxu0 0
          %2086 = vmatpush1.bf16.msra.mxu0 0
          %2087 = vmatprep.subr.bf16.mxu0 0
          %2088 = vmatpush1.bf16.msra.mxu0 0
          %2089 = vmatprep.mubr.bf16.mxu0 0
          %2090 = vmatmul.mubr.bf16.gmra.mrb[0].mxu0 %v1993
          %v2091 = vpop.f32.mrb[0].mxu0
          %v2092 = vadd.f32 0.0, %v2091
          %v2093 = vpop.f32.mrb[0].mxu0
          %v2094 = vpop.f32.mrb[0].mxu0
          %v2095 = vadd.f32 0.0, %v2094
          %v2096 = vpop.f32.mrb[0].mxu0
          %2097 = vmatprep.mubr.bf16.mxu0 0
          %2098 = vmatmul.mubr.bf16.gmra.mrb[0].mxu0 %v1994
          %v2099 = vpop.f32.mrb[0].mxu0
          %v2100 = vadd.f32 0.0, %v2099
          %v2101 = vpop.f32.mrb[0].mxu0
          %v2102 = vpop.f32.mrb[0].mxu0
          %v2103 = vadd.f32 0.0, %v2102
          %v2104 = vpop.f32.mrb[0].mxu0
          %2105 = vmatprep.mubr.bf16.mxu0 0
          %2106 = vmatmul.mubr.bf16.gmra.mrb[0].mxu0 %v1995
          %v2107 = vpop.f32.mrb[0].mxu0
          %v2108 = vadd.f32 0.0, %v2107
          %v2109 = vpop.f32.mrb[0].mxu0
          %v2110 = vpop.f32.mrb[0].mxu0
          %v2111 = vadd.f32 0.0, %v2110
          %v2112 = vpop.f32.mrb[0].mxu0
          %2113 = vmatprep.mubr.bf16.mxu0 0
          %2114 = vmatmul.mubr.bf16.gmra.mrb[0].mxu0 %v1996
          %v2115 = vpop.f32.mrb[0].mxu0
          %v2116 = vadd.f32 0.0, %v2115
          %v2117 = vpop.f32.mrb[0].mxu0
          %v2118 = vpop.f32.mrb[0].mxu0
          %v2119 = vadd.f32 0.0, %v2118
          %v2120 = vpop.f32.mrb[0].mxu0
          %2121 = vmatprep.mubr.bf16.mxu0 0
          %2122 = vmatmul.mubr.bf16.gmra.mrb[0].mxu0 %v1997
          %v2123 = vpop.f32.mrb[0].mxu0
          %v2124 = vadd.f32 0.0, %v2123
          %v2125 = vpop.f32.mrb[0].mxu0
          %v2126 = vpop.f32.mrb[0].mxu0
          %v2127 = vadd.f32 0.0, %v2126
          %v2128 = vpop.f32.mrb[0].mxu0
          %2129 = vmatprep.mubr.bf16.mxu0 0
          %2130 = vmatmul.mubr.bf16.gmra.mrb[0].mxu0 %v1998
          %v2131 = vpop.f32.mrb[0].mxu0
          %v2132 = vadd.f32 0.0, %v2131
          %v2133 = vpop.f32.mrb[0].mxu0
          %v2134 = vpop.f32.mrb[0].mxu0
          %v2135 = vadd.f32 0.0, %v2134
          %v2136 = vpop.f32.mrb[0].mxu0
          %2137 = vmatprep.mubr.bf16.mxu0 0
          %2138 = vmatmul.mubr.bf16.gmra.mrb[0].mxu0 %v1999
          %v2139 = vpop.f32.mrb[0].mxu0
          %v2140 = vadd.f32 0.0, %v2139
          %v2141 = vpop.f32.mrb[0].mxu0
          %v2142 = vpop.f32.mrb[0].mxu0
          %v2143 = vadd.f32 0.0, %v2142
          %v2144 = vpop.f32.mrb[0].mxu0
          %2145 = vmatprep.mubr.bf16.mxu0 0
          %2146 = vmatmul.mubr.bf16.gmra.mrb[0].mxu0 %v2000
          %v2147 = vpop.f32.mrb[0].mxu0
          %v2148 = vadd.f32 0.0, %v2147
          %v2149 = vpop.f32.mrb[0].mxu0
          %v2150 = vpop.f32.mrb[0].mxu0
          %v2151 = vadd.f32 0.0, %v2150
          %v2152 = vpop.f32.mrb[0].mxu0
          %2153 = vdwg.mxu0
          %v2154 = vadd.f32 %v1815, %v2092
          %v2155 = vadd.f32 %v1818, %v2095
          %v2156 = vadd.f32 %v1823, %v2100
          %v2157 = vadd.f32 %v1826, %v2103
          %v2158 = vadd.f32 %v1831, %v2108
          %v2159 = vadd.f32 %v1834, %v2111
          %v2160 = vadd.f32 %v1839, %v2116
          %v2161 = vadd.f32 %v1842, %v2119
          %v2162 = vadd.f32 %v1847, %v2124
          %v2163 = vadd.f32 %v1850, %v2127
          %v2164 = vadd.f32 %v1855, %v2132
          %v2165 = vadd.f32 %v1858, %v2135
          %v2166 = vadd.f32 %v1863, %v2140
          %v2167 = vadd.f32 %v1866, %v2143
          %v2168 = vadd.f32 %v1871, %v2148
          %v2169 = vadd.f32 %v1874, %v2151
          %s2170 = sadd.s32 %s1251, 1
          %s2171 = smul.u32 %s2170, 3
          %s2172 = smul.addr %s2171, 4
          %s2173 = scalar_lea.vmem [#allocation2], %s2172
          %v2174 = vld [vmem:[%s2173] sm:$0xf]
          %v2175 = vld [vmem:[%s2173 + $0x4] sm:$0xf]
          %v2176 = vld [vmem:[%s2173 + $0xc] sm:$0xf]
          %v2177 = vld [vmem:[%s2173 + $0x10] sm:$0xf]
          %v2178 = vld [vmem:[%s2173 + $0x18] sm:$0xf]
          %v2179 = vld [vmem:[%s2173 + $0x1c] sm:$0xf]
          %v2180 = vld [vmem:[%s2173 + $0x24] sm:$0xf]
          %v2181 = vld [vmem:[%s2173 + $0x28] sm:$0xf]
          %v2182 = vld [vmem:[%s2173 + $0x30] sm:$0xf]
          %v2183 = vld [vmem:[%s2173 + $0x34] sm:$0xf]
          %v2184 = vld [vmem:[%s2173 + $0x3c] sm:$0xf]
          %v2185 = vld [vmem:[%s2173 + $0x40] sm:$0xf]
          %v2186 = vld [vmem:[%s2173 + $0x48] sm:$0xf]
          %v2187 = vld [vmem:[%s2173 + $0x4c] sm:$0xf]
          %v2188 = vld [vmem:[%s2173 + $0x54] sm:$0xf]
          %v2189 = vld [vmem:[%s2173 + $0x58] sm:$0xf]
          %s2190 = scalar_lea.vmem [#allocation7], 192
          %v2191 = vld [vmem:[%s2190] sm:$0xf]
          %v2192 = vld [vmem:[%s2190 + $0x4] sm:$0xf]
          %v2193 = vld [vmem:[%s2190 + $0x8] sm:$0xf]
          %v2194 = vld [vmem:[%s2190 + $0xc] sm:$0xf]
          %v2195 = vld [vmem:[%s2190 + $0x10] sm:$0xf]
          %v2196 = vld [vmem:[%s2190 + $0x14] sm:$0xf]
          %v2197 = vld [vmem:[%s2190 + $0x18] sm:$0xf]
          %v2198 = vld [vmem:[%s2190 + $0x1c] sm:$0xf]
          %v2199 = vld [vmem:[%s2190 + $0x20] sm:$0xf]
          %v2200 = vld [vmem:[%s2190 + $0x24] sm:$0xf]
          %v2201 = vld [vmem:[%s2190 + $0x28] sm:$0xf]
          %v2202 = vld [vmem:[%s2190 + $0x2c] sm:$0xf]
          %v2203 = vld [vmem:[%s2190 + $0x30] sm:$0xf]
          %v2204 = vld [vmem:[%s2190 + $0x34] sm:$0xf]
          %v2205 = vld [vmem:[%s2190 + $0x38] sm:$0xf]
          %v2206 = vld [vmem:[%s2190 + $0x3c] sm:$0xf]
          %v2223 = vunpack.c.l.b16 %v2174
          %v2224 = vunpack.c.l.b16 %v2175
          %v2225 = vunpack.c.l.b16 %v2176
          %v2226 = vunpack.c.l.b16 %v2177
          %v2227 = vunpack.c.l.b16 %v2178
          %v2228 = vunpack.c.l.b16 %v2179
          %v2229 = vunpack.c.l.b16 %v2180
          %v2230 = vunpack.c.l.b16 %v2181
          %v2231 = vunpack.c.l.b16 %v2182
          %v2232 = vunpack.c.l.b16 %v2183
          %v2233 = vunpack.c.l.b16 %v2184
          %v2234 = vunpack.c.l.b16 %v2185
          %v2235 = vunpack.c.l.b16 %v2186
          %v2236 = vunpack.c.l.b16 %v2187
          %v2237 = vunpack.c.l.b16 %v2188
          %v2238 = vunpack.c.l.b16 %v2189
          %v2239 = vpack.c.b16 %v2224, %v2223
          %v2240 = vpack.c.b16 %v2226, %v2225
          %v2241 = vpack.c.b16 %v2228, %v2227
          %v2242 = vpack.c.b16 %v2230, %v2229
          %v2243 = vpack.c.b16 %v2232, %v2231
          %v2244 = vpack.c.b16 %v2234, %v2233
          %v2245 = vpack.c.b16 %v2236, %v2235
          %v2246 = vpack.c.b16 %v2238, %v2237
          %v2271 = vunpack.c.l.b16 %v2191
          %v2272 = vunpack.c.l.b16 %v2192
          %v2273 = vunpack.c.l.b16 %v2193
          %v2274 = vunpack.c.l.b16 %v2194
          %v2275 = vunpack.c.l.b16 %v2195
          %v2276 = vunpack.c.l.b16 %v2196
          %v2277 = vunpack.c.l.b16 %v2197
          %v2278 = vunpack.c.l.b16 %v2198
          %v2279 = vunpack.c.l.b16 %v2199
          %v2280 = vunpack.c.l.b16 %v2200
          %v2281 = vunpack.c.l.b16 %v2201
          %v2282 = vunpack.c.l.b16 %v2202
          %v2283 = vunpack.c.l.b16 %v2203
          %v2284 = vunpack.c.l.b16 %v2204
          %v2285 = vunpack.c.l.b16 %v2205
          %v2286 = vunpack.c.l.b16 %v2206
          %v2287 = vpack.c.b16 %v2272, %v2271
          %v2288 = vpack.c.b16 %v2274, %v2273
          %v2289 = vpack.c.b16 %v2276, %v2275
          %v2290 = vpack.c.b16 %v2278, %v2277
          %v2291 = vpack.c.b16 %v2280, %v2279
          %v2292 = vpack.c.b16 %v2282, %v2281
          %v2293 = vpack.c.b16 %v2284, %v2283
          %v2294 = vpack.c.b16 %v2286, %v2285
          %2303 = vmatprep.subr.bf16.mxu0 0
          %2304 = vmatpush1.bf16.msra.mxu0 %v2287
          %2305 = vmatprep.subr.bf16.mxu0 0
          %2306 = vmatpush1.bf16.msra.mxu0 %v2288
          %2307 = vmatprep.subr.bf16.mxu0 0
          %2308 = vmatpush1.bf16.msra.mxu0 %v2289
          %2309 = vmatprep.subr.bf16.mxu0 0
          %2310 = vmatpush1.bf16.msra.mxu0 %v2290
          %2311 = vmatprep.subr.bf16.mxu0 0
          %2312 = vmatpush1.bf16.msra.mxu0 %v2291
          %2313 = vmatprep.subr.bf16.mxu0 0
          %2314 = vmatpush1.bf16.msra.mxu0 %v2292
          %2315 = vmatprep.subr.bf16.mxu0 0
          %2316 = vmatpush1.bf16.msra.mxu0 %v2293
          %2317 = vmatprep.subr.bf16.mxu0 0
          %2318 = vmatpush1.bf16.msra.mxu0 %v2294
          %2319 = vmatprep.subr.bf16.mxu0 0
          %2320 = vmatpush1.bf16.msra.mxu0 0
          %2321 = vmatprep.subr.bf16.mxu0 0
          %2322 = vmatpush1.bf16.msra.mxu0 0
          %2323 = vmatprep.subr.bf16.mxu0 0
          %2324 = vmatpush1.bf16.msra.mxu0 0
          %2325 = vmatprep.subr.bf16.mxu0 0
          %2326 = vmatpush1.bf16.msra.mxu0 0
          %2327 = vmatprep.subr.bf16.mxu0 0
          %2328 = vmatpush1.bf16.msra.mxu0 0
          %2329 = vmatprep.subr.bf16.mxu0 0
          %2330 = vmatpush1.bf16.msra.mxu0 0
          %2331 = vmatprep.subr.bf16.mxu0 0
          %2332 = vmatpush1.bf16.msra.mxu0 0
          %2333 = vmatprep.subr.bf16.mxu0 0
          %2334 = vmatpush1.bf16.msra.mxu0 0
          %2335 = vmatprep.mubr.bf16.mxu0 0
          %2336 = vmatmul.mubr.bf16.gmra.mrb[0].mxu0 %v2239
          %v2337 = vpop.f32.mrb[0].mxu0
          %v2338 = vadd.f32 0.0, %v2337
          %v2339 = vpop.f32.mrb[0].mxu0
          %v2340 = vpop.f32.mrb[0].mxu0
          %v2341 = vadd.f32 0.0, %v2340
          %v2342 = vpop.f32.mrb[0].mxu0
          %2343 = vmatprep.mubr.bf16.mxu0 0
          %2344 = vmatmul.mubr.bf16.gmra.mrb[0].mxu0 %v2240
          %v2345 = vpop.f32.mrb[0].mxu0
          %v2346 = vadd.f32 0.0, %v2345
          %v2347 = vpop.f32.mrb[0].mxu0
          %v2348 = vpop.f32.mrb[0].mxu0
          %v2349 = vadd.f32 0.0, %v2348
          %v2350 = vpop.f32.mrb[0].mxu0
          %2351 = vmatprep.mubr.bf16.mxu0 0
          %2352 = vmatmul.mubr.bf16.gmra.mrb[0].mxu0 %v2241
          %v2353 = vpop.f32.mrb[0].mxu0
          %v2354 = vadd.f32 0.0, %v2353
          %v2355 = vpop.f32.mrb[0].mxu0
          %v2356 = vpop.f32.mrb[0].mxu0
          %v2357 = vadd.f32 0.0, %v2356
          %v2358 = vpop.f32.mrb[0].mxu0
          %2359 = vmatprep.mubr.bf16.mxu0 0
          %2360 = vmatmul.mubr.bf16.gmra.mrb[0].mxu0 %v2242
          %v2361 = vpop.f32.mrb[0].mxu0
          %v2362 = vadd.f32 0.0, %v2361
          %v2363 = vpop.f32.mrb[0].mxu0
          %v2364 = vpop.f32.mrb[0].mxu0
          %v2365 = vadd.f32 0.0, %v2364
          %v2366 = vpop.f32.mrb[0].mxu0
          %2367 = vmatprep.mubr.bf16.mxu0 0
          %2368 = vmatmul.mubr.bf16.gmra.mrb[0].mxu0 %v2243
          %v2369 = vpop.f32.mrb[0].mxu0
          %v2370 = vadd.f32 0.0, %v2369
          %v2371 = vpop.f32.mrb[0].mxu0
          %v2372 = vpop.f32.mrb[0].mxu0
          %v2373 = vadd.f32 0.0, %v2372
          %v2374 = vpop.f32.mrb[0].mxu0
          %2375 = vmatprep.mubr.bf16.mxu0 0
          %2376 = vmatmul.mubr.bf16.gmra.mrb[0].mxu0 %v2244
          %v2377 = vpop.f32.mrb[0].mxu0
          %v2378 = vadd.f32 0.0, %v2377
          %v2379 = vpop.f32.mrb[0].mxu0
          %v2380 = vpop.f32.mrb[0].mxu0
          %v2381 = vadd.f32 0.0, %v2380
          %v2382 = vpop.f32.mrb[0].mxu0
          %2383 = vmatprep.mubr.bf16.mxu0 0
          %2384 = vmatmul.mubr.bf16.gmra.mrb[0].mxu0 %v2245
          %v2385 = vpop.f32.mrb[0].mxu0
          %v2386 = vadd.f32 0.0, %v2385
          %v2387 = vpop.f32.mrb[0].mxu0
          %v2388 = vpop.f32.mrb[0].mxu0
          %v2389 = vadd.f32 0.0, %v2388
          %v2390 = vpop.f32.mrb[0].mxu0
          %2391 = vmatprep.mubr.bf16.mxu0 0
          %2392 = vmatmul.mubr.bf16.gmra.mrb[0].mxu0 %v2246
          %v2393 = vpop.f32.mrb[0].mxu0
          %v2394 = vadd.f32 0.0, %v2393
          %v2395 = vpop.f32.mrb[0].mxu0
          %v2396 = vpop.f32.mrb[0].mxu0
          %v2397 = vadd.f32 0.0, %v2396
          %v2398 = vpop.f32.mrb[0].mxu0
          %2399 = vdwg.mxu0
          %v2400 = vadd.f32 %v2154, %v2338
          %v2401 = vadd.f32 %v2155, %v2341
          %v2402 = vadd.f32 %v2156, %v2346
          %v2403 = vadd.f32 %v2157, %v2349
          %v2404 = vadd.f32 %v2158, %v2354
          %v2405 = vadd.f32 %v2159, %v2357
          %v2406 = vadd.f32 %v2160, %v2362
          %v2407 = vadd.f32 %v2161, %v2365
          %v2408 = vadd.f32 %v2162, %v2370
          %v2409 = vadd.f32 %v2163, %v2373
          %v2410 = vadd.f32 %v2164, %v2378
          %v2411 = vadd.f32 %v2165, %v2381
          %v2412 = vadd.f32 %v2166, %v2386
          %v2413 = vadd.f32 %v2167, %v2389
          %v2414 = vadd.f32 %v2168, %v2394
          %v2415 = vadd.f32 %v2169, %v2397
          %v2416 = vld [vmem:[%s2173] sm:$0xf]
          %v2417 = vld [vmem:[%s2173 + $0x4] sm:$0xf]
          %v2418 = vld [vmem:[%s2173 + $0x8] sm:$0x1]
          %v2419 = vld [vmem:[%s2173 + $0xc] sm:$0xf]
          %v2420 = vld [vmem:[%s2173 + $0x10] sm:$0xf]
          %v2421 = vld [vmem:[%s2173 + $0x14] sm:$0x1]
          %v2422 = vld [vmem:[%s2173 + $0x18] sm:$0xf]
          %v2423 = vld [vmem:[%s2173 + $0x1c] sm:$0xf]
          %v2424 = vld [vmem:[%s2173 + $0x20] sm:$0x1]
          %v2425 = vld [vmem:[%s2173 + $0x24] sm:$0xf]
          %v2426 = vld [vmem:[%s2173 + $0x28] sm:$0xf]
          %v2427 = vld [vmem:[%s2173 + $0x2c] sm:$0x1]
          %v2428 = vld [vmem:[%s2173 + $0x30] sm:$0xf]
          %v2429 = vld [vmem:[%s2173 + $0x34] sm:$0xf]
          %v2430 = vld [vmem:[%s2173 + $0x38] sm:$0x1]
          %v2431 = vld [vmem:[%s2173 + $0x3c] sm:$0xf]
          %v2432 = vld [vmem:[%s2173 + $0x40] sm:$0xf]
          %v2433 = vld [vmem:[%s2173 + $0x44] sm:$0x1]
          %v2434 = vld [vmem:[%s2173 + $0x48] sm:$0xf]
          %v2435 = vld [vmem:[%s2173 + $0x4c] sm:$0xf]
          %v2436 = vld [vmem:[%s2173 + $0x50] sm:$0x1]
          %v2437 = vld [vmem:[%s2173 + $0x54] sm:$0xf]
          %v2438 = vld [vmem:[%s2173 + $0x58] sm:$0xf]
          %v2439 = vld [vmem:[%s2173 + $0x5c] sm:$0x1]
          %v2441 = vshrl.u32 %v2416, 16
          %v2443 = vrot.slane %v2441, 4
          %v2444 = vshll.u32 %v2416, 16
          %v2446 = vrot.slane %v2444, 5
          %v2447 = vor.u32 %v2443, %v2446
          %v2448 = vrot.slane %v2447, 4
          %v2450 = vshll.u32 %v2417, 16
          %v2452 = vrot.slane %v2450, 5
          %v2453 = vsel %vm1297, %v2448, %v2452
          %v2454 = vshrl.u32 %v2417, 16
          %v2456 = vrot.slane %v2454, 4
          %v2457 = vor.u32 %v2456, %v2452
          %v2458 = vrot.slane %v2457, 4
          %v2460 = vshll.u32 %v2418, 16
          %v2462 = vrot.slane %v2460, 5
          %v2463 = vsel %vm1297, %v2458, %v2462
          %v2465 = vshrl.u32 %v2419, 16
          %v2467 = vrot.slane %v2465, 4
          %v2468 = vshll.u32 %v2419, 16
          %v2470 = vrot.slane %v2468, 5
          %v2471 = vor.u32 %v2467, %v2470
          %v2472 = vrot.slane %v2471, 4
          %v2474 = vshll.u32 %v2420, 16
          %v2476 = vrot.slane %v2474, 5
          %v2477 = vsel %vm1297, %v2472, %v2476
          %v2478 = vshrl.u32 %v2420, 16
          %v2480 = vrot.slane %v2478, 4
          %v2481 = vor.u32 %v2480, %v2476
          %v2482 = vrot.slane %v2481, 4
          %v2484 = vshll.u32 %v2421, 16
          %v2486 = vrot.slane %v2484, 5
          %v2487 = vsel %vm1297, %v2482, %v2486
          %v2489 = vshrl.u32 %v2422, 16
          %v2491 = vrot.slane %v2489, 4
          %v2492 = vshll.u32 %v2422, 16
          %v2494 = vrot.slane %v2492, 5
          %v2495 = vor.u32 %v2491, %v2494
          %v2496 = vrot.slane %v2495, 4
          %v2498 = vshll.u32 %v2423, 16
          %v2500 = vrot.slane %v2498, 5
          %v2501 = vsel %vm1297, %v2496, %v2500
          %v2502 = vshrl.u32 %v2423, 16
          %v2504 = vrot.slane %v2502, 4
          %v2505 = vor.u32 %v2504, %v2500
          %v2506 = vrot.slane %v2505, 4
          %v2508 = vshll.u32 %v2424, 16
          %v2510 = vrot.slane %v2508, 5
          %v2511 = vsel %vm1297, %v2506, %v2510
          %v2513 = vshrl.u32 %v2425, 16
          %v2515 = vrot.slane %v2513, 4
          %v2516 = vshll.u32 %v2425, 16
          %v2518 = vrot.slane %v2516, 5
          %v2519 = vor.u32 %v2515, %v2518
          %v2520 = vrot.slane %v2519, 4
          %v2522 = vshll.u32 %v2426, 16
          %v2524 = vrot.slane %v2522, 5
          %v2525 = vsel %vm1297, %v2520, %v2524
          %v2526 = vshrl.u32 %v2426, 16
          %v2528 = vrot.slane %v2526, 4
          %v2529 = vor.u32 %v2528, %v2524
          %v2530 = vrot.slane %v2529, 4
          %v2532 = vshll.u32 %v2427, 16
          %v2534 = vrot.slane %v2532, 5
          %v2535 = vsel %vm1297, %v2530, %v2534
          %v2537 = vshrl.u32 %v2428, 16
          %v2539 = vrot.slane %v2537, 4
          %v2540 = vshll.u32 %v2428, 16
          %v2542 = vrot.slane %v2540, 5
          %v2543 = vor.u32 %v2539, %v2542
          %v2544 = vrot.slane %v2543, 4
          %v2546 = vshll.u32 %v2429, 16
          %v2548 = vrot.slane %v2546, 5
          %v2549 = vsel %vm1297, %v2544, %v2548
          %v2550 = vshrl.u32 %v2429, 16
          %v2552 = vrot.slane %v2550, 4
          %v2553 = vor.u32 %v2552, %v2548
          %v2554 = vrot.slane %v2553, 4
          %v2556 = vshll.u32 %v2430, 16
          %v2558 = vrot.slane %v2556, 5
          %v2559 = vsel %vm1297, %v2554, %v2558
          %v2561 = vshrl.u32 %v2431, 16
          %v2563 = vrot.slane %v2561, 4
          %v2564 = vshll.u32 %v2431, 16
          %v2566 = vrot.slane %v2564, 5
          %v2567 = vor.u32 %v2563, %v2566
          %v2568 = vrot.slane %v2567, 4
          %v2570 = vshll.u32 %v2432, 16
          %v2572 = vrot.slane %v2570, 5
          %v2573 = vsel %vm1297, %v2568, %v2572
          %v2574 = vshrl.u32 %v2432, 16
          %v2576 = vrot.slane %v2574, 4
          %v2577 = vor.u32 %v2576, %v2572
          %v2578 = vrot.slane %v2577, 4
          %v2580 = vshll.u32 %v2433, 16
          %v2582 = vrot.slane %v2580, 5
          %v2583 = vsel %vm1297, %v2578, %v2582
          %v2585 = vshrl.u32 %v2434, 16
          %v2587 = vrot.slane %v2585, 4
          %v2588 = vshll.u32 %v2434, 16
          %v2590 = vrot.slane %v2588, 5
          %v2591 = vor.u32 %v2587, %v2590
          %v2592 = vrot.slane %v2591, 4
          %v2594 = vshll.u32 %v2435, 16
          %v2596 = vrot.slane %v2594, 5
          %v2597 = vsel %vm1297, %v2592, %v2596
          %v2598 = vshrl.u32 %v2435, 16
          %v2600 = vrot.slane %v2598, 4
          %v2601 = vor.u32 %v2600, %v2596
          %v2602 = vrot.slane %v2601, 4
          %v2604 = vshll.u32 %v2436, 16
          %v2606 = vrot.slane %v2604, 5
          %v2607 = vsel %vm1297, %v2602, %v2606
          %v2609 = vshrl.u32 %v2437, 16
          %v2611 = vrot.slane %v2609, 4
          %v2612 = vshll.u32 %v2437, 16
          %v2614 = vrot.slane %v2612, 5
          %v2615 = vor.u32 %v2611, %v2614
          %v2616 = vrot.slane %v2615, 4
          %v2618 = vshll.u32 %v2438, 16
          %v2620 = vrot.slane %v2618, 5
          %v2621 = vsel %vm1297, %v2616, %v2620
          %v2622 = vshrl.u32 %v2438, 16
          %v2624 = vrot.slane %v2622, 4
          %v2625 = vor.u32 %v2624, %v2620
          %v2626 = vrot.slane %v2625, 4
          %v2628 = vshll.u32 %v2439, 16
          %v2630 = vrot.slane %v2628, 5
          %v2631 = vsel %vm1297, %v2626, %v2630
          %s2632 = scalar_lea.vmem [#allocation7], 256
          %v2633 = vld [vmem:[%s2632] sm:$0xf]
          %v2634 = vld [vmem:[%s2632 + $0x4] sm:$0xf]
          %v2635 = vld [vmem:[%s2632 + $0x8] sm:$0xf]
          %v2636 = vld [vmem:[%s2632 + $0xc] sm:$0xf]
          %v2637 = vld [vmem:[%s2632 + $0x10] sm:$0xf]
          %v2638 = vld [vmem:[%s2632 + $0x14] sm:$0xf]
          %v2639 = vld [vmem:[%s2632 + $0x18] sm:$0xf]
          %v2640 = vld [vmem:[%s2632 + $0x1c] sm:$0xf]
          %v2641 = vld [vmem:[%s2632 + $0x20] sm:$0xf]
          %v2642 = vld [vmem:[%s2632 + $0x24] sm:$0xf]
          %v2643 = vld [vmem:[%s2632 + $0x28] sm:$0xf]
          %v2644 = vld [vmem:[%s2632 + $0x2c] sm:$0xf]
          %v2645 = vld [vmem:[%s2632 + $0x30] sm:$0xf]
          %v2646 = vld [vmem:[%s2632 + $0x34] sm:$0xf]
          %v2647 = vld [vmem:[%s2632 + $0x38] sm:$0xf]
          %v2648 = vld [vmem:[%s2632 + $0x3c] sm:$0xf]
          %v2649 = vunpack.c.l.b16 %v2453
          %v2650 = vunpack.c.l.b16 %v2463
          %v2651 = vunpack.c.l.b16 %v2477
          %v2652 = vunpack.c.l.b16 %v2487
          %v2653 = vunpack.c.l.b16 %v2501
          %v2654 = vunpack.c.l.b16 %v2511
          %v2655 = vunpack.c.l.b16 %v2525
          %v2656 = vunpack.c.l.b16 %v2535
          %v2657 = vunpack.c.l.b16 %v2549
          %v2658 = vunpack.c.l.b16 %v2559
          %v2659 = vunpack.c.l.b16 %v2573
          %v2660 = vunpack.c.l.b16 %v2583
          %v2661 = vunpack.c.l.b16 %v2597
          %v2662 = vunpack.c.l.b16 %v2607
          %v2663 = vunpack.c.l.b16 %v2621
          %v2664 = vunpack.c.l.b16 %v2631
          %v2665 = vpack.c.b16 %v2650, %v2649
          %v2666 = vpack.c.b16 %v2652, %v2651
          %v2667 = vpack.c.b16 %v2654, %v2653
          %v2668 = vpack.c.b16 %v2656, %v2655
          %v2669 = vpack.c.b16 %v2658, %v2657
          %v2670 = vpack.c.b16 %v2660, %v2659
          %v2671 = vpack.c.b16 %v2662, %v2661
          %v2672 = vpack.c.b16 %v2664, %v2663
          %v2697 = vunpack.c.l.b16 %v2633
          %v2698 = vunpack.c.l.b16 %v2634
          %v2699 = vunpack.c.l.b16 %v2635
          %v2700 = vunpack.c.l.b16 %v2636
          %v2701 = vunpack.c.l.b16 %v2637
          %v2702 = vunpack.c.l.b16 %v2638
          %v2703 = vunpack.c.l.b16 %v2639
          %v2704 = vunpack.c.l.b16 %v2640
          %v2705 = vunpack.c.l.b16 %v2641
          %v2706 = vunpack.c.l.b16 %v2642
          %v2707 = vunpack.c.l.b16 %v2643
          %v2708 = vunpack.c.l.b16 %v2644
          %v2709 = vunpack.c.l.b16 %v2645
          %v2710 = vunpack.c.l.b16 %v2646
          %v2711 = vunpack.c.l.b16 %v2647
          %v2712 = vunpack.c.l.b16 %v2648
          %v2713 = vpack.c.b16 %v2698, %v2697
          %v2714 = vpack.c.b16 %v2700, %v2699
          %v2715 = vpack.c.b16 %v2702, %v2701
          %v2716 = vpack.c.b16 %v2704, %v2703
          %v2717 = vpack.c.b16 %v2706, %v2705
          %v2718 = vpack.c.b16 %v2708, %v2707
          %v2719 = vpack.c.b16 %v2710, %v2709
          %v2720 = vpack.c.b16 %v2712, %v2711
          %2729 = vmatprep.subr.bf16.mxu0 0
          %2730 = vmatpush1.bf16.msra.mxu0 %v2713
          %2731 = vmatprep.subr.bf16.mxu0 0
          %2732 = vmatpush1.bf16.msra.mxu0 %v2714
          %2733 = vmatprep.subr.bf16.mxu0 0
          %2734 = vmatpush1.bf16.msra.mxu0 %v2715
          %2735 = vmatprep.subr.bf16.mxu0 0
          %2736 = vmatpush1.bf16.msra.mxu0 %v2716
          %2737 = vmatprep.subr.bf16.mxu0 0
          %2738 = vmatpush1.bf16.msra.mxu0 %v2717
          %2739 = vmatprep.subr.bf16.mxu0 0
          %2740 = vmatpush1.bf16.msra.mxu0 %v2718
          %2741 = vmatprep.subr.bf16.mxu0 0
          %2742 = vmatpush1.bf16.msra.mxu0 %v2719
          %2743 = vmatprep.subr.bf16.mxu0 0
          %2744 = vmatpush1.bf16.msra.mxu0 %v2720
          %2745 = vmatprep.subr.bf16.mxu0 0
          %2746 = vmatpush1.bf16.msra.mxu0 0
          %2747 = vmatprep.subr.bf16.mxu0 0
          %2748 = vmatpush1.bf16.msra.mxu0 0
          %2749 = vmatprep.subr.bf16.mxu0 0
          %2750 = vmatpush1.bf16.msra.mxu0 0
          %2751 = vmatprep.subr.bf16.mxu0 0
          %2752 = vmatpush1.bf16.msra.mxu0 0
          %2753 = vmatprep.subr.bf16.mxu0 0
          %2754 = vmatpush1.bf16.msra.mxu0 0
          %2755 = vmatprep.subr.bf16.mxu0 0
          %2756 = vmatpush1.bf16.msra.mxu0 0
          %2757 = vmatprep.subr.bf16.mxu0 0
          %2758 = vmatpush1.bf16.msra.mxu0 0
          %2759 = vmatprep.subr.bf16.mxu0 0
          %2760 = vmatpush1.bf16.msra.mxu0 0
          %2761 = vmatprep.mubr.bf16.mxu0 0
          %2762 = vmatmul.mubr.bf16.gmra.mrb[0].mxu0 %v2665
          %v2763 = vpop.f32.mrb[0].mxu0
          %v2764 = vadd.f32 0.0, %v2763
          %v2765 = vpop.f32.mrb[0].mxu0
          %v2766 = vpop.f32.mrb[0].mxu0
          %v2767 = vadd.f32 0.0, %v2766
          %v2768 = vpop.f32.mrb[0].mxu0
          %2769 = vmatprep.mubr.bf16.mxu0 0
          %2770 = vmatmul.mubr.bf16.gmra.mrb[0].mxu0 %v2666
          %v2771 = vpop.f32.mrb[0].mxu0
          %v2772 = vadd.f32 0.0, %v2771
          %v2773 = vpop.f32.mrb[0].mxu0
          %v2774 = vpop.f32.mrb[0].mxu0
          %v2775 = vadd.f32 0.0, %v2774
          %v2776 = vpop.f32.mrb[0].mxu0
          %2777 = vmatprep.mubr.bf16.mxu0 0
          %2778 = vmatmul.mubr.bf16.gmra.mrb[0].mxu0 %v2667
          %v2779 = vpop.f32.mrb[0].mxu0
          %v2780 = vadd.f32 0.0, %v2779
          %v2781 = vpop.f32.mrb[0].mxu0
          %v2782 = vpop.f32.mrb[0].mxu0
          %v2783 = vadd.f32 0.0, %v2782
          %v2784 = vpop.f32.mrb[0].mxu0
          %2785 = vmatprep.mubr.bf16.mxu0 0
          %2786 = vmatmul.mubr.bf16.gmra.mrb[0].mxu0 %v2668
          %v2787 = vpop.f32.mrb[0].mxu0
          %v2788 = vadd.f32 0.0, %v2787
          %v2789 = vpop.f32.mrb[0].mxu0
          %v2790 = vpop.f32.mrb[0].mxu0
          %v2791 = vadd.f32 0.0, %v2790
          %v2792 = vpop.f32.mrb[0].mxu0
          %2793 = vmatprep.mubr.bf16.mxu0 0
          %2794 = vmatmul.mubr.bf16.gmra.mrb[0].mxu0 %v2669
          %v2795 = vpop.f32.mrb[0].mxu0
          %v2796 = vadd.f32 0.0, %v2795
          %v2797 = vpop.f32.mrb[0].mxu0
          %v2798 = vpop.f32.mrb[0].mxu0
          %v2799 = vadd.f32 0.0, %v2798
          %v2800 = vpop.f32.mrb[0].mxu0
          %2801 = vmatprep.mubr.bf16.mxu0 0
          %2802 = vmatmul.mubr.bf16.gmra.mrb[0].mxu0 %v2670
          %v2803 = vpop.f32.mrb[0].mxu0
          %v2804 = vadd.f32 0.0, %v2803
          %v2805 = vpop.f32.mrb[0].mxu0
          %v2806 = vpop.f32.mrb[0].mxu0
          %v2807 = vadd.f32 0.0, %v2806
          %v2808 = vpop.f32.mrb[0].mxu0
          %2809 = vmatprep.mubr.bf16.mxu0 0
          %2810 = vmatmul.mubr.bf16.gmra.mrb[0].mxu0 %v2671
          %v2811 = vpop.f32.mrb[0].mxu0
          %v2812 = vadd.f32 0.0, %v2811
          %v2813 = vpop.f32.mrb[0].mxu0
          %v2814 = vpop.f32.mrb[0].mxu0
          %v2815 = vadd.f32 0.0, %v2814
          %v2816 = vpop.f32.mrb[0].mxu0
          %2817 = vmatprep.mubr.bf16.mxu0 0
          %2818 = vmatmul.mubr.bf16.gmra.mrb[0].mxu0 %v2672
          %v2819 = vpop.f32.mrb[0].mxu0
          %v2820 = vadd.f32 0.0, %v2819
          %v2821 = vpop.f32.mrb[0].mxu0
          %v2822 = vpop.f32.mrb[0].mxu0
          %v2823 = vadd.f32 0.0, %v2822
          %v2824 = vpop.f32.mrb[0].mxu0
          %2825 = vdwg.mxu0
          %v2826 = vadd.f32 %v2400, %v2764
          %v2827 = vadd.f32 %v2401, %v2767
          %v2828 = vadd.f32 %v2402, %v2772
          %v2829 = vadd.f32 %v2403, %v2775
          %v2830 = vadd.f32 %v2404, %v2780
          %v2831 = vadd.f32 %v2405, %v2783
          %v2832 = vadd.f32 %v2406, %v2788
          %v2833 = vadd.f32 %v2407, %v2791
          %v2834 = vadd.f32 %v2408, %v2796
          %v2835 = vadd.f32 %v2409, %v2799
          %v2836 = vadd.f32 %v2410, %v2804
          %v2837 = vadd.f32 %v2411, %v2807
          %v2838 = vadd.f32 %v2412, %v2812
          %v2839 = vadd.f32 %v2413, %v2815
          %v2840 = vadd.f32 %v2414, %v2820
          %v2841 = vadd.f32 %v2415, %v2823
          %v2842 = vld [vmem:[%s2173] sm:$0xe]
          %v2843 = vld [vmem:[%s2173 + $0xc] sm:$0xe]
          %v2844 = vld [vmem:[%s2173 + $0x18] sm:$0xe]
          %v2845 = vld [vmem:[%s2173 + $0x24] sm:$0xe]
          %v2846 = vld [vmem:[%s2173 + $0x30] sm:$0xe]
          %v2847 = vld [vmem:[%s2173 + $0x3c] sm:$0xe]
          %v2848 = vld [vmem:[%s2173 + $0x48] sm:$0xe]
          %v2849 = vld [vmem:[%s2173 + $0x54] sm:$0xe]
          %v2874 = vrot.slane %v2842, 5
          %v2875 = vrot.slane %v2874, 4
          %v2876 = vrot.slane %v2417, 5
          %v2877 = vsel %vm1903, %v2875, %v2876
          %v2878 = vrot.slane %v2876, 4
          %v2879 = vrot.slane %v2418, 5
          %v2880 = vsel %vm1903, %v2878, %v2879
          %v2881 = vrot.slane %v2843, 5
          %v2882 = vrot.slane %v2881, 4
          %v2883 = vrot.slane %v2420, 5
          %v2884 = vsel %vm1903, %v2882, %v2883
          %v2885 = vrot.slane %v2883, 4
          %v2886 = vrot.slane %v2421, 5
          %v2887 = vsel %vm1903, %v2885, %v2886
          %v2888 = vrot.slane %v2844, 5
          %v2889 = vrot.slane %v2888, 4
          %v2890 = vrot.slane %v2423, 5
          %v2891 = vsel %vm1903, %v2889, %v2890
          %v2892 = vrot.slane %v2890, 4
          %v2893 = vrot.slane %v2424, 5
          %v2894 = vsel %vm1903, %v2892, %v2893
          %v2895 = vrot.slane %v2845, 5
          %v2896 = vrot.slane %v2895, 4
          %v2897 = vrot.slane %v2426, 5
          %v2898 = vsel %vm1903, %v2896, %v2897
          %v2899 = vrot.slane %v2897, 4
          %v2900 = vrot.slane %v2427, 5
          %v2901 = vsel %vm1903, %v2899, %v2900
          %v2902 = vrot.slane %v2846, 5
          %v2903 = vrot.slane %v2902, 4
          %v2904 = vrot.slane %v2429, 5
          %v2905 = vsel %vm1903, %v2903, %v2904
          %v2906 = vrot.slane %v2904, 4
          %v2907 = vrot.slane %v2430, 5
          %v2908 = vsel %vm1903, %v2906, %v2907
          %v2909 = vrot.slane %v2847, 5
          %v2910 = vrot.slane %v2909, 4
          %v2911 = vrot.slane %v2432, 5
          %v2912 = vsel %vm1903, %v2910, %v2911
          %v2913 = vrot.slane %v2911, 4
          %v2914 = vrot.slane %v2433, 5
          %v2915 = vsel %vm1903, %v2913, %v2914
          %v2916 = vrot.slane %v2848, 5
          %v2917 = vrot.slane %v2916, 4
          %v2918 = vrot.slane %v2435, 5
          %v2919 = vsel %vm1903, %v2917, %v2918
          %v2920 = vrot.slane %v2918, 4
          %v2921 = vrot.slane %v2436, 5
          %v2922 = vsel %vm1903, %v2920, %v2921
          %v2923 = vrot.slane %v2849, 5
          %v2924 = vrot.slane %v2923, 4
          %v2925 = vrot.slane %v2438, 5
          %v2926 = vsel %vm1903, %v2924, %v2925
          %v2927 = vrot.slane %v2925, 4
          %v2928 = vrot.slane %v2439, 5
          %v2929 = vsel %vm1903, %v2927, %v2928
          %s2930 = scalar_lea.vmem [#allocation7], 320
          %v2931 = vld [vmem:[%s2930] sm:$0xf]
          %v2932 = vld [vmem:[%s2930 + $0x4] sm:$0xf]
          %v2933 = vld [vmem:[%s2930 + $0x8] sm:$0xf]
          %v2934 = vld [vmem:[%s2930 + $0xc] sm:$0xf]
          %v2935 = vld [vmem:[%s2930 + $0x10] sm:$0xf]
          %v2936 = vld [vmem:[%s2930 + $0x14] sm:$0xf]
          %v2937 = vld [vmem:[%s2930 + $0x18] sm:$0xf]
          %v2938 = vld [vmem:[%s2930 + $0x1c] sm:$0xf]
          %v2939 = vld [vmem:[%s2930 + $0x20] sm:$0xf]
          %v2940 = vld [vmem:[%s2930 + $0x24] sm:$0xf]
          %v2941 = vld [vmem:[%s2930 + $0x28] sm:$0xf]
          %v2942 = vld [vmem:[%s2930 + $0x2c] sm:$0xf]
          %v2943 = vld [vmem:[%s2930 + $0x30] sm:$0xf]
          %v2944 = vld [vmem:[%s2930 + $0x34] sm:$0xf]
          %v2945 = vld [vmem:[%s2930 + $0x38] sm:$0xf]
          %v2946 = vld [vmem:[%s2930 + $0x3c] sm:$0xf]
          %v2947 = vunpack.c.l.b16 %v2877
          %v2948 = vunpack.c.l.b16 %v2880
          %v2949 = vunpack.c.l.b16 %v2884
          %v2950 = vunpack.c.l.b16 %v2887
          %v2951 = vunpack.c.l.b16 %v2891
          %v2952 = vunpack.c.l.b16 %v2894
          %v2953 = vunpack.c.l.b16 %v2898
          %v2954 = vunpack.c.l.b16 %v2901
          %v2955 = vunpack.c.l.b16 %v2905
          %v2956 = vunpack.c.l.b16 %v2908
          %v2957 = vunpack.c.l.b16 %v2912
          %v2958 = vunpack.c.l.b16 %v2915
          %v2959 = vunpack.c.l.b16 %v2919
          %v2960 = vunpack.c.l.b16 %v2922
          %v2961 = vunpack.c.l.b16 %v2926
          %v2962 = vunpack.c.l.b16 %v2929
          %v2963 = vpack.c.b16 %v2948, %v2947
          %v2964 = vpack.c.b16 %v2950, %v2949
          %v2965 = vpack.c.b16 %v2952, %v2951
          %v2966 = vpack.c.b16 %v2954, %v2953
          %v2967 = vpack.c.b16 %v2956, %v2955
          %v2968 = vpack.c.b16 %v2958, %v2957
          %v2969 = vpack.c.b16 %v2960, %v2959
          %v2970 = vpack.c.b16 %v2962, %v2961
          %v2995 = vunpack.c.l.b16 %v2931
          %v2996 = vunpack.c.l.b16 %v2932
          %v2997 = vunpack.c.l.b16 %v2933
          %v2998 = vunpack.c.l.b16 %v2934
          %v2999 = vunpack.c.l.b16 %v2935
          %v3000 = vunpack.c.l.b16 %v2936
          %v3001 = vunpack.c.l.b16 %v2937
          %v3002 = vunpack.c.l.b16 %v2938
          %v3003 = vunpack.c.l.b16 %v2939
          %v3004 = vunpack.c.l.b16 %v2940
          %v3005 = vunpack.c.l.b16 %v2941
          %v3006 = vunpack.c.l.b16 %v2942
          %v3007 = vunpack.c.l.b16 %v2943
          %v3008 = vunpack.c.l.b16 %v2944
          %v3009 = vunpack.c.l.b16 %v2945
          %v3010 = vunpack.c.l.b16 %v2946
          %v3011 = vpack.c.b16 %v2996, %v2995
          %v3012 = vpack.c.b16 %v2998, %v2997
          %v3013 = vpack.c.b16 %v3000, %v2999
          %v3014 = vpack.c.b16 %v3002, %v3001
          %v3015 = vpack.c.b16 %v3004, %v3003
          %v3016 = vpack.c.b16 %v3006, %v3005
          %v3017 = vpack.c.b16 %v3008, %v3007
          %v3018 = vpack.c.b16 %v3010, %v3009
          %3027 = vmatprep.subr.bf16.mxu0 0
          %3028 = vmatpush1.bf16.msra.mxu0 %v3011
          %3029 = vmatprep.subr.bf16.mxu0 0
          %3030 = vmatpush1.bf16.msra.mxu0 %v3012
          %3031 = vmatprep.subr.bf16.mxu0 0
          %3032 = vmatpush1.bf16.msra.mxu0 %v3013
          %3033 = vmatprep.subr.bf16.mxu0 0
          %3034 = vmatpush1.bf16.msra.mxu0 %v3014
          %3035 = vmatprep.subr.bf16.mxu0 0
          %3036 = vmatpush1.bf16.msra.mxu0 %v3015
          %3037 = vmatprep.subr.bf16.mxu0 0
          %3038 = vmatpush1.bf16.msra.mxu0 %v3016
          %3039 = vmatprep.subr.bf16.mxu0 0
          %3040 = vmatpush1.bf16.msra.mxu0 %v3017
          %3041 = vmatprep.subr.bf16.mxu0 0
          %3042 = vmatpush1.bf16.msra.mxu0 %v3018
          %3043 = vmatprep.subr.bf16.mxu0 0
          %3044 = vmatpush1.bf16.msra.mxu0 0
          %3045 = vmatprep.subr.bf16.mxu0 0
          %3046 = vmatpush1.bf16.msra.mxu0 0
          %3047 = vmatprep.subr.bf16.mxu0 0
          %3048 = vmatpush1.bf16.msra.mxu0 0
          %3049 = vmatprep.subr.bf16.mxu0 0
          %3050 = vmatpush1.bf16.msra.mxu0 0
          %3051 = vmatprep.subr.bf16.mxu0 0
          %3052 = vmatpush1.bf16.msra.mxu0 0
          %3053 = vmatprep.subr.bf16.mxu0 0
          %3054 = vmatpush1.bf16.msra.mxu0 0
          %3055 = vmatprep.subr.bf16.mxu0 0
          %3056 = vmatpush1.bf16.msra.mxu0 0
          %3057 = vmatprep.subr.bf16.mxu0 0
          %3058 = vmatpush1.bf16.msra.mxu0 0
          %3059 = vmatprep.mubr.bf16.mxu0 0
          %3060 = vmatmul.mubr.bf16.gmra.mrb[0].mxu0 %v2963
          %v3061 = vpop.f32.mrb[0].mxu0
          %v3062 = vadd.f32 0.0, %v3061
          %v3063 = vpop.f32.mrb[0].mxu0
          %v3064 = vpop.f32.mrb[0].mxu0
          %v3065 = vadd.f32 0.0, %v3064
          %v3066 = vpop.f32.mrb[0].mxu0
          %3067 = vmatprep.mubr.bf16.mxu0 0
          %3068 = vmatmul.mubr.bf16.gmra.mrb[0].mxu0 %v2964
          %v3069 = vpop.f32.mrb[0].mxu0
          %v3070 = vadd.f32 0.0, %v3069
          %v3071 = vpop.f32.mrb[0].mxu0
          %v3072 = vpop.f32.mrb[0].mxu0
          %v3073 = vadd.f32 0.0, %v3072
          %v3074 = vpop.f32.mrb[0].mxu0
          %3075 = vmatprep.mubr.bf16.mxu0 0
          %3076 = vmatmul.mubr.bf16.gmra.mrb[0].mxu0 %v2965
          %v3077 = vpop.f32.mrb[0].mxu0
          %v3078 = vadd.f32 0.0, %v3077
          %v3079 = vpop.f32.mrb[0].mxu0
          %v3080 = vpop.f32.mrb[0].mxu0
          %v3081 = vadd.f32 0.0, %v3080
          %v3082 = vpop.f32.mrb[0].mxu0
          %3083 = vmatprep.mubr.bf16.mxu0 0
          %3084 = vmatmul.mubr.bf16.gmra.mrb[0].mxu0 %v2966
          %v3085 = vpop.f32.mrb[0].mxu0
          %v3086 = vadd.f32 0.0, %v3085
          %v3087 = vpop.f32.mrb[0].mxu0
          %v3088 = vpop.f32.mrb[0].mxu0
          %v3089 = vadd.f32 0.0, %v3088
          %v3090 = vpop.f32.mrb[0].mxu0
          %3091 = vmatprep.mubr.bf16.mxu0 0
          %3092 = vmatmul.mubr.bf16.gmra.mrb[0].mxu0 %v2967
          %v3093 = vpop.f32.mrb[0].mxu0
          %v3094 = vadd.f32 0.0, %v3093
          %v3095 = vpop.f32.mrb[0].mxu0
          %v3096 = vpop.f32.mrb[0].mxu0
          %v3097 = vadd.f32 0.0, %v3096
          %v3098 = vpop.f32.mrb[0].mxu0
          %3099 = vmatprep.mubr.bf16.mxu0 0
          %3100 = vmatmul.mubr.bf16.gmra.mrb[0].mxu0 %v2968
          %v3101 = vpop.f32.mrb[0].mxu0
          %v3102 = vadd.f32 0.0, %v3101
          %v3103 = vpop.f32.mrb[0].mxu0
          %v3104 = vpop.f32.mrb[0].mxu0
          %v3105 = vadd.f32 0.0, %v3104
          %v3106 = vpop.f32.mrb[0].mxu0
          %3107 = vmatprep.mubr.bf16.mxu0 0
          %3108 = vmatmul.mubr.bf16.gmra.mrb[0].mxu0 %v2969
          %v3109 = vpop.f32.mrb[0].mxu0
          %v3110 = vadd.f32 0.0, %v3109
          %v3111 = vpop.f32.mrb[0].mxu0
          %v3112 = vpop.f32.mrb[0].mxu0
          %v3113 = vadd.f32 0.0, %v3112
          %v3114 = vpop.f32.mrb[0].mxu0
          %3115 = vmatprep.mubr.bf16.mxu0 0
          %3116 = vmatmul.mubr.bf16.gmra.mrb[0].mxu0 %v2970
          %v3117 = vpop.f32.mrb[0].mxu0
          %v3118 = vadd.f32 0.0, %v3117
          %v3119 = vpop.f32.mrb[0].mxu0
          %v3120 = vpop.f32.mrb[0].mxu0
          %v3121 = vadd.f32 0.0, %v3120
          %v3122 = vpop.f32.mrb[0].mxu0
          %3123 = vdwg.mxu0
          %v3124 = vadd.f32 %v2826, %v3062
          %v3125 = vadd.f32 %v2827, %v3065
          %v3126 = vadd.f32 %v2828, %v3070
          %v3127 = vadd.f32 %v2829, %v3073
          %v3128 = vadd.f32 %v2830, %v3078
          %v3129 = vadd.f32 %v2831, %v3081
          %v3130 = vadd.f32 %v2832, %v3086
          %v3131 = vadd.f32 %v2833, %v3089
          %v3132 = vadd.f32 %v2834, %v3094
          %v3133 = vadd.f32 %v2835, %v3097
          %v3134 = vadd.f32 %v2836, %v3102
          %v3135 = vadd.f32 %v2837, %v3105
          %v3136 = vadd.f32 %v2838, %v3110
          %v3137 = vadd.f32 %v2839, %v3113
          %v3138 = vadd.f32 %v2840, %v3118
          %v3139 = vadd.f32 %v2841, %v3121
          %s3140 = sadd.s32 %s1251, 2
          %s3141 = smul.u32 %s3140, 3
          %s3142 = smul.addr %s3141, 4
          %s3143 = scalar_lea.vmem [#allocation2], %s3142
          %v3144 = vld [vmem:[%s3143] sm:$0xf]
          %v3145 = vld [vmem:[%s3143 + $0x4] sm:$0xf]
          %v3146 = vld [vmem:[%s3143 + $0xc] sm:$0xf]
          %v3147 = vld [vmem:[%s3143 + $0x10] sm:$0xf]
          %v3148 = vld [vmem:[%s3143 + $0x18] sm:$0xf]
          %v3149 = vld [vmem:[%s3143 + $0x1c] sm:$0xf]
          %v3150 = vld [vmem:[%s3143 + $0x24] sm:$0xf]
          %v3151 = vld [vmem:[%s3143 + $0x28] sm:$0xf]
          %v3152 = vld [vmem:[%s3143 + $0x30] sm:$0xf]
          %v3153 = vld [vmem:[%s3143 + $0x34] sm:$0xf]
          %v3154 = vld [vmem:[%s3143 + $0x3c] sm:$0xf]
          %v3155 = vld [vmem:[%s3143 + $0x40] sm:$0xf]
          %v3156 = vld [vmem:[%s3143 + $0x48] sm:$0xf]
          %v3157 = vld [vmem:[%s3143 + $0x4c] sm:$0xf]
          %v3158 = vld [vmem:[%s3143 + $0x54] sm:$0xf]
          %v3159 = vld [vmem:[%s3143 + $0x58] sm:$0xf]
          %s3160 = scalar_lea.vmem [#allocation7], 384
          %v3161 = vld [vmem:[%s3160] sm:$0xf]
          %v3162 = vld [vmem:[%s3160 + $0x4] sm:$0xf]
          %v3163 = vld [vmem:[%s3160 + $0x8] sm:$0xf]
          %v3164 = vld [vmem:[%s3160 + $0xc] sm:$0xf]
          %v3165 = vld [vmem:[%s3160 + $0x10] sm:$0xf]
          %v3166 = vld [vmem:[%s3160 + $0x14] sm:$0xf]
          %v3167 = vld [vmem:[%s3160 + $0x18] sm:$0xf]
          %v3168 = vld [vmem:[%s3160 + $0x1c] sm:$0xf]
          %v3169 = vld [vmem:[%s3160 + $0x20] sm:$0xf]
          %v3170 = vld [vmem:[%s3160 + $0x24] sm:$0xf]
          %v3171 = vld [vmem:[%s3160 + $0x28] sm:$0xf]
          %v3172 = vld [vmem:[%s3160 + $0x2c] sm:$0xf]
          %v3173 = vld [vmem:[%s3160 + $0x30] sm:$0xf]
          %v3174 = vld [vmem:[%s3160 + $0x34] sm:$0xf]
          %v3175 = vld [vmem:[%s3160 + $0x38] sm:$0xf]
          %v3176 = vld [vmem:[%s3160 + $0x3c] sm:$0xf]
          %v3193 = vunpack.c.l.b16 %v3144
          %v3194 = vunpack.c.l.b16 %v3145
          %v3195 = vunpack.c.l.b16 %v3146
          %v3196 = vunpack.c.l.b16 %v3147
          %v3197 = vunpack.c.l.b16 %v3148
          %v3198 = vunpack.c.l.b16 %v3149
          %v3199 = vunpack.c.l.b16 %v3150
          %v3200 = vunpack.c.l.b16 %v3151
          %v3201 = vunpack.c.l.b16 %v3152
          %v3202 = vunpack.c.l.b16 %v3153
          %v3203 = vunpack.c.l.b16 %v3154
          %v3204 = vunpack.c.l.b16 %v3155
          %v3205 = vunpack.c.l.b16 %v3156
          %v3206 = vunpack.c.l.b16 %v3157
          %v3207 = vunpack.c.l.b16 %v3158
          %v3208 = vunpack.c.l.b16 %v3159
          %v3209 = vpack.c.b16 %v3194, %v3193
          %v3210 = vpack.c.b16 %v3196, %v3195
          %v3211 = vpack.c.b16 %v3198, %v3197
          %v3212 = vpack.c.b16 %v3200, %v3199
          %v3213 = vpack.c.b16 %v3202, %v3201
          %v3214 = vpack.c.b16 %v3204, %v3203
          %v3215 = vpack.c.b16 %v3206, %v3205
          %v3216 = vpack.c.b16 %v3208, %v3207
          %v3241 = vunpack.c.l.b16 %v3161
          %v3242 = vunpack.c.l.b16 %v3162
          %v3243 = vunpack.c.l.b16 %v3163
          %v3244 = vunpack.c.l.b16 %v3164
          %v3245 = vunpack.c.l.b16 %v3165
          %v3246 = vunpack.c.l.b16 %v3166
          %v3247 = vunpack.c.l.b16 %v3167
          %v3248 = vunpack.c.l.b16 %v3168
          %v3249 = vunpack.c.l.b16 %v3169
          %v3250 = vunpack.c.l.b16 %v3170
          %v3251 = vunpack.c.l.b16 %v3171
          %v3252 = vunpack.c.l.b16 %v3172
          %v3253 = vunpack.c.l.b16 %v3173
          %v3254 = vunpack.c.l.b16 %v3174
          %v3255 = vunpack.c.l.b16 %v3175
          %v3256 = vunpack.c.l.b16 %v3176
          %v3257 = vpack.c.b16 %v3242, %v3241
          %v3258 = vpack.c.b16 %v3244, %v3243
          %v3259 = vpack.c.b16 %v3246, %v3245
          %v3260 = vpack.c.b16 %v3248, %v3247
          %v3261 = vpack.c.b16 %v3250, %v3249
          %v3262 = vpack.c.b16 %v3252, %v3251
          %v3263 = vpack.c.b16 %v3254, %v3253
          %v3264 = vpack.c.b16 %v3256, %v3255
          %3273 = vmatprep.subr.bf16.mxu0 0
          %3274 = vmatpush1.bf16.msra.mxu0 %v3257
          %3275 = vmatprep.subr.bf16.mxu0 0
          %3276 = vmatpush1.bf16.msra.mxu0 %v3258
          %3277 = vmatprep.subr.bf16.mxu0 0
          %3278 = vmatpush1.bf16.msra.mxu0 %v3259
          %3279 = vmatprep.subr.bf16.mxu0 0
          %3280 = vmatpush1.bf16.msra.mxu0 %v3260
          %3281 = vmatprep.subr.bf16.mxu0 0
          %3282 = vmatpush1.bf16.msra.mxu0 %v3261
          %3283 = vmatprep.subr.bf16.mxu0 0
          %3284 = vmatpush1.bf16.msra.mxu0 %v3262
          %3285 = vmatprep.subr.bf16.mxu0 0
          %3286 = vmatpush1.bf16.msra.mxu0 %v3263
          %3287 = vmatprep.subr.bf16.mxu0 0
          %3288 = vmatpush1.bf16.msra.mxu0 %v3264
          %3289 = vmatprep.subr.bf16.mxu0 0
          %3290 = vmatpush1.bf16.msra.mxu0 0
          %3291 = vmatprep.subr.bf16.mxu0 0
          %3292 = vmatpush1.bf16.msra.mxu0 0
          %3293 = vmatprep.subr.bf16.mxu0 0
          %3294 = vmatpush1.bf16.msra.mxu0 0
          %3295 = vmatprep.subr.bf16.mxu0 0
          %3296 = vmatpush1.bf16.msra.mxu0 0
          %3297 = vmatprep.subr.bf16.mxu0 0
          %3298 = vmatpush1.bf16.msra.mxu0 0
          %3299 = vmatprep.subr.bf16.mxu0 0
          %3300 = vmatpush1.bf16.msra.mxu0 0
          %3301 = vmatprep.subr.bf16.mxu0 0
          %3302 = vmatpush1.bf16.msra.mxu0 0
          %3303 = vmatprep.subr.bf16.mxu0 0
          %3304 = vmatpush1.bf16.msra.mxu0 0
          %3305 = vmatprep.mubr.bf16.mxu0 0
          %3306 = vmatmul.mubr.bf16.gmra.mrb[0].mxu0 %v3209
          %v3307 = vpop.f32.mrb[0].mxu0
          %v3308 = vadd.f32 0.0, %v3307
          %v3309 = vpop.f32.mrb[0].mxu0
          %v3310 = vpop.f32.mrb[0].mxu0
          %v3311 = vadd.f32 0.0, %v3310
          %v3312 = vpop.f32.mrb[0].mxu0
          %3313 = vmatprep.mubr.bf16.mxu0 0
          %3314 = vmatmul.mubr.bf16.gmra.mrb[0].mxu0 %v3210
          %v3315 = vpop.f32.mrb[0].mxu0
          %v3316 = vadd.f32 0.0, %v3315
          %v3317 = vpop.f32.mrb[0].mxu0
          %v3318 = vpop.f32.mrb[0].mxu0
          %v3319 = vadd.f32 0.0, %v3318
          %v3320 = vpop.f32.mrb[0].mxu0
          %3321 = vmatprep.mubr.bf16.mxu0 0
          %3322 = vmatmul.mubr.bf16.gmra.mrb[0].mxu0 %v3211
          %v3323 = vpop.f32.mrb[0].mxu0
          %v3324 = vadd.f32 0.0, %v3323
          %v3325 = vpop.f32.mrb[0].mxu0
          %v3326 = vpop.f32.mrb[0].mxu0
          %v3327 = vadd.f32 0.0, %v3326
          %v3328 = vpop.f32.mrb[0].mxu0
          %3329 = vmatprep.mubr.bf16.mxu0 0
          %3330 = vmatmul.mubr.bf16.gmra.mrb[0].mxu0 %v3212
          %v3331 = vpop.f32.mrb[0].mxu0
          %v3332 = vadd.f32 0.0, %v3331
          %v3333 = vpop.f32.mrb[0].mxu0
          %v3334 = vpop.f32.mrb[0].mxu0
          %v3335 = vadd.f32 0.0, %v3334
          %v3336 = vpop.f32.mrb[0].mxu0
          %3337 = vmatprep.mubr.bf16.mxu0 0
          %3338 = vmatmul.mubr.bf16.gmra.mrb[0].mxu0 %v3213
          %v3339 = vpop.f32.mrb[0].mxu0
          %v3340 = vadd.f32 0.0, %v3339
          %v3341 = vpop.f32.mrb[0].mxu0
          %v3342 = vpop.f32.mrb[0].mxu0
          %v3343 = vadd.f32 0.0, %v3342
          %v3344 = vpop.f32.mrb[0].mxu0
          %3345 = vmatprep.mubr.bf16.mxu0 0
          %3346 = vmatmul.mubr.bf16.gmra.mrb[0].mxu0 %v3214
          %v3347 = vpop.f32.mrb[0].mxu0
          %v3348 = vadd.f32 0.0, %v3347
          %v3349 = vpop.f32.mrb[0].mxu0
          %v3350 = vpop.f32.mrb[0].mxu0
          %v3351 = vadd.f32 0.0, %v3350
          %v3352 = vpop.f32.mrb[0].mxu0
          %3353 = vmatprep.mubr.bf16.mxu0 0
          %3354 = vmatmul.mubr.bf16.gmra.mrb[0].mxu0 %v3215
          %v3355 = vpop.f32.mrb[0].mxu0
          %v3356 = vadd.f32 0.0, %v3355
          %v3357 = vpop.f32.mrb[0].mxu0
          %v3358 = vpop.f32.mrb[0].mxu0
          %v3359 = vadd.f32 0.0, %v3358
          %v3360 = vpop.f32.mrb[0].mxu0
          %3361 = vmatprep.mubr.bf16.mxu0 0
          %3362 = vmatmul.mubr.bf16.gmra.mrb[0].mxu0 %v3216
          %v3363 = vpop.f32.mrb[0].mxu0
          %v3364 = vadd.f32 0.0, %v3363
          %v3365 = vpop.f32.mrb[0].mxu0
          %v3366 = vpop.f32.mrb[0].mxu0
          %v3367 = vadd.f32 0.0, %v3366
          %v3368 = vpop.f32.mrb[0].mxu0
          %3369 = vdwg.mxu0
          %v3370 = vadd.f32 %v3124, %v3308
          %v3371 = vadd.f32 %v3125, %v3311
          %v3372 = vadd.f32 %v3126, %v3316
          %v3373 = vadd.f32 %v3127, %v3319
          %v3374 = vadd.f32 %v3128, %v3324
          %v3375 = vadd.f32 %v3129, %v3327
          %v3376 = vadd.f32 %v3130, %v3332
          %v3377 = vadd.f32 %v3131, %v3335
          %v3378 = vadd.f32 %v3132, %v3340
          %v3379 = vadd.f32 %v3133, %v3343
          %v3380 = vadd.f32 %v3134, %v3348
          %v3381 = vadd.f32 %v3135, %v3351
          %v3382 = vadd.f32 %v3136, %v3356
          %v3383 = vadd.f32 %v3137, %v3359
          %v3384 = vadd.f32 %v3138, %v3364
          %v3385 = vadd.f32 %v3139, %v3367
          %v3386 = vld [vmem:[%s3143] sm:$0xf]
          %v3387 = vld [vmem:[%s3143 + $0x4] sm:$0xf]
          %v3388 = vld [vmem:[%s3143 + $0x8] sm:$0x1]
          %v3389 = vld [vmem:[%s3143 + $0xc] sm:$0xf]
          %v3390 = vld [vmem:[%s3143 + $0x10] sm:$0xf]
          %v3391 = vld [vmem:[%s3143 + $0x14] sm:$0x1]
          %v3392 = vld [vmem:[%s3143 + $0x18] sm:$0xf]
          %v3393 = vld [vmem:[%s3143 + $0x1c] sm:$0xf]
          %v3394 = vld [vmem:[%s3143 + $0x20] sm:$0x1]
          %v3395 = vld [vmem:[%s3143 + $0x24] sm:$0xf]
          %v3396 = vld [vmem:[%s3143 + $0x28] sm:$0xf]
          %v3397 = vld [vmem:[%s3143 + $0x2c] sm:$0x1]
          %v3398 = vld [vmem:[%s3143 + $0x30] sm:$0xf]
          %v3399 = vld [vmem:[%s3143 + $0x34] sm:$0xf]
          %v3400 = vld [vmem:[%s3143 + $0x38] sm:$0x1]
          %v3401 = vld [vmem:[%s3143 + $0x3c] sm:$0xf]
          %v3402 = vld [vmem:[%s3143 + $0x40] sm:$0xf]
          %v3403 = vld [vmem:[%s3143 + $0x44] sm:$0x1]
          %v3404 = vld [vmem:[%s3143 + $0x48] sm:$0xf]
          %v3405 = vld [vmem:[%s3143 + $0x4c] sm:$0xf]
          %v3406 = vld [vmem:[%s3143 + $0x50] sm:$0x1]
          %v3407 = vld [vmem:[%s3143 + $0x54] sm:$0xf]
          %v3408 = vld [vmem:[%s3143 + $0x58] sm:$0xf]
          %v3409 = vld [vmem:[%s3143 + $0x5c] sm:$0x1]
          %v3411 = vshrl.u32 %v3386, 16
          %v3413 = vrot.slane %v3411, 4
          %v3414 = vshll.u32 %v3386, 16
          %v3416 = vrot.slane %v3414, 5
          %v3417 = vor.u32 %v3413, %v3416
          %v3418 = vrot.slane %v3417, 4
          %v3420 = vshll.u32 %v3387, 16
          %v3422 = vrot.slane %v3420, 5
          %v3423 = vsel %vm1297, %v3418, %v3422
          %v3424 = vshrl.u32 %v3387, 16
          %v3426 = vrot.slane %v3424, 4
          %v3427 = vor.u32 %v3426, %v3422
          %v3428 = vrot.slane %v3427, 4
          %v3430 = vshll.u32 %v3388, 16
          %v3432 = vrot.slane %v3430, 5
          %v3433 = vsel %vm1297, %v3428, %v3432
          %v3435 = vshrl.u32 %v3389, 16
          %v3437 = vrot.slane %v3435, 4
          %v3438 = vshll.u32 %v3389, 16
          %v3440 = vrot.slane %v3438, 5
          %v3441 = vor.u32 %v3437, %v3440
          %v3442 = vrot.slane %v3441, 4
          %v3444 = vshll.u32 %v3390, 16
          %v3446 = vrot.slane %v3444, 5
          %v3447 = vsel %vm1297, %v3442, %v3446
          %v3448 = vshrl.u32 %v3390, 16
          %v3450 = vrot.slane %v3448, 4
          %v3451 = vor.u32 %v3450, %v3446
          %v3452 = vrot.slane %v3451, 4
          %v3454 = vshll.u32 %v3391, 16
          %v3456 = vrot.slane %v3454, 5
          %v3457 = vsel %vm1297, %v3452, %v3456
          %v3459 = vshrl.u32 %v3392, 16
          %v3461 = vrot.slane %v3459, 4
          %v3462 = vshll.u32 %v3392, 16
          %v3464 = vrot.slane %v3462, 5
          %v3465 = vor.u32 %v3461, %v3464
          %v3466 = vrot.slane %v3465, 4
          %v3468 = vshll.u32 %v3393, 16
          %v3470 = vrot.slane %v3468, 5
          %v3471 = vsel %vm1297, %v3466, %v3470
          %v3472 = vshrl.u32 %v3393, 16
          %v3474 = vrot.slane %v3472, 4
          %v3475 = vor.u32 %v3474, %v3470
          %v3476 = vrot.slane %v3475, 4
          %v3478 = vshll.u32 %v3394, 16
          %v3480 = vrot.slane %v3478, 5
          %v3481 = vsel %vm1297, %v3476, %v3480
          %v3483 = vshrl.u32 %v3395, 16
          %v3485 = vrot.slane %v3483, 4
          %v3486 = vshll.u32 %v3395, 16
          %v3488 = vrot.slane %v3486, 5
          %v3489 = vor.u32 %v3485, %v3488
          %v3490 = vrot.slane %v3489, 4
          %v3492 = vshll.u32 %v3396, 16
          %v3494 = vrot.slane %v3492, 5
          %v3495 = vsel %vm1297, %v3490, %v3494
          %v3496 = vshrl.u32 %v3396, 16
          %v3498 = vrot.slane %v3496, 4
          %v3499 = vor.u32 %v3498, %v3494
          %v3500 = vrot.slane %v3499, 4
          %v3502 = vshll.u32 %v3397, 16
          %v3504 = vrot.slane %v3502, 5
          %v3505 = vsel %vm1297, %v3500, %v3504
          %v3507 = vshrl.u32 %v3398, 16
          %v3509 = vrot.slane %v3507, 4
          %v3510 = vshll.u32 %v3398, 16
          %v3512 = vrot.slane %v3510, 5
          %v3513 = vor.u32 %v3509, %v3512
          %v3514 = vrot.slane %v3513, 4
          %v3516 = vshll.u32 %v3399, 16
          %v3518 = vrot.slane %v3516, 5
          %v3519 = vsel %vm1297, %v3514, %v3518
          %v3520 = vshrl.u32 %v3399, 16
          %v3522 = vrot.slane %v3520, 4
          %v3523 = vor.u32 %v3522, %v3518
          %v3524 = vrot.slane %v3523, 4
          %v3526 = vshll.u32 %v3400, 16
          %v3528 = vrot.slane %v3526, 5
          %v3529 = vsel %vm1297, %v3524, %v3528
          %v3531 = vshrl.u32 %v3401, 16
          %v3533 = vrot.slane %v3531, 4
          %v3534 = vshll.u32 %v3401, 16
          %v3536 = vrot.slane %v3534, 5
          %v3537 = vor.u32 %v3533, %v3536
          %v3538 = vrot.slane %v3537, 4
          %v3540 = vshll.u32 %v3402, 16
          %v3542 = vrot.slane %v3540, 5
          %v3543 = vsel %vm1297, %v3538, %v3542
          %v3544 = vshrl.u32 %v3402, 16
          %v3546 = vrot.slane %v3544, 4
          %v3547 = vor.u32 %v3546, %v3542
          %v3548 = vrot.slane %v3547, 4
          %v3550 = vshll.u32 %v3403, 16
          %v3552 = vrot.slane %v3550, 5
          %v3553 = vsel %vm1297, %v3548, %v3552
          %v3555 = vshrl.u32 %v3404, 16
          %v3557 = vrot.slane %v3555, 4
          %v3558 = vshll.u32 %v3404, 16
          %v3560 = vrot.slane %v3558, 5
          %v3561 = vor.u32 %v3557, %v3560
          %v3562 = vrot.slane %v3561, 4
          %v3564 = vshll.u32 %v3405, 16
          %v3566 = vrot.slane %v3564, 5
          %v3567 = vsel %vm1297, %v3562, %v3566
          %v3568 = vshrl.u32 %v3405, 16
          %v3570 = vrot.slane %v3568, 4
          %v3571 = vor.u32 %v3570, %v3566
          %v3572 = vrot.slane %v3571, 4
          %v3574 = vshll.u32 %v3406, 16
          %v3576 = vrot.slane %v3574, 5
          %v3577 = vsel %vm1297, %v3572, %v3576
          %v3579 = vshrl.u32 %v3407, 16
          %v3581 = vrot.slane %v3579, 4
          %v3582 = vshll.u32 %v3407, 16
          %v3584 = vrot.slane %v3582, 5
          %v3585 = vor.u32 %v3581, %v3584
          %v3586 = vrot.slane %v3585, 4
          %v3588 = vshll.u32 %v3408, 16
          %v3590 = vrot.slane %v3588, 5
          %v3591 = vsel %vm1297, %v3586, %v3590
          %v3592 = vshrl.u32 %v3408, 16
          %v3594 = vrot.slane %v3592, 4
          %v3595 = vor.u32 %v3594, %v3590
          %v3596 = vrot.slane %v3595, 4
          %v3598 = vshll.u32 %v3409, 16
          %v3600 = vrot.slane %v3598, 5
          %v3601 = vsel %vm1297, %v3596, %v3600
          %s3602 = scalar_lea.vmem [#allocation7], 448
          %v3603 = vld [vmem:[%s3602] sm:$0xf]
          %v3604 = vld [vmem:[%s3602 + $0x4] sm:$0xf]
          %v3605 = vld [vmem:[%s3602 + $0x8] sm:$0xf]
          %v3606 = vld [vmem:[%s3602 + $0xc] sm:$0xf]
          %v3607 = vld [vmem:[%s3602 + $0x10] sm:$0xf]
          %v3608 = vld [vmem:[%s3602 + $0x14] sm:$0xf]
          %v3609 = vld [vmem:[%s3602 + $0x18] sm:$0xf]
          %v3610 = vld [vmem:[%s3602 + $0x1c] sm:$0xf]
          %v3611 = vld [vmem:[%s3602 + $0x20] sm:$0xf]
          %v3612 = vld [vmem:[%s3602 + $0x24] sm:$0xf]
          %v3613 = vld [vmem:[%s3602 + $0x28] sm:$0xf]
          %v3614 = vld [vmem:[%s3602 + $0x2c] sm:$0xf]
          %v3615 = vld [vmem:[%s3602 + $0x30] sm:$0xf]
          %v3616 = vld [vmem:[%s3602 + $0x34] sm:$0xf]
          %v3617 = vld [vmem:[%s3602 + $0x38] sm:$0xf]
          %v3618 = vld [vmem:[%s3602 + $0x3c] sm:$0xf]
          %v3619 = vunpack.c.l.b16 %v3423
          %v3620 = vunpack.c.l.b16 %v3433
          %v3621 = vunpack.c.l.b16 %v3447
          %v3622 = vunpack.c.l.b16 %v3457
          %v3623 = vunpack.c.l.b16 %v3471
          %v3624 = vunpack.c.l.b16 %v3481
          %v3625 = vunpack.c.l.b16 %v3495
          %v3626 = vunpack.c.l.b16 %v3505
          %v3627 = vunpack.c.l.b16 %v3519
          %v3628 = vunpack.c.l.b16 %v3529
          %v3629 = vunpack.c.l.b16 %v3543
          %v3630 = vunpack.c.l.b16 %v3553
          %v3631 = vunpack.c.l.b16 %v3567
          %v3632 = vunpack.c.l.b16 %v3577
          %v3633 = vunpack.c.l.b16 %v3591
          %v3634 = vunpack.c.l.b16 %v3601
          %v3635 = vpack.c.b16 %v3620, %v3619
          %v3636 = vpack.c.b16 %v3622, %v3621
          %v3637 = vpack.c.b16 %v3624, %v3623
          %v3638 = vpack.c.b16 %v3626, %v3625
          %v3639 = vpack.c.b16 %v3628, %v3627
          %v3640 = vpack.c.b16 %v3630, %v3629
          %v3641 = vpack.c.b16 %v3632, %v3631
          %v3642 = vpack.c.b16 %v3634, %v3633
          %v3667 = vunpack.c.l.b16 %v3603
          %v3668 = vunpack.c.l.b16 %v3604
          %v3669 = vunpack.c.l.b16 %v3605
          %v3670 = vunpack.c.l.b16 %v3606
          %v3671 = vunpack.c.l.b16 %v3607
          %v3672 = vunpack.c.l.b16 %v3608
          %v3673 = vunpack.c.l.b16 %v3609
          %v3674 = vunpack.c.l.b16 %v3610
          %v3675 = vunpack.c.l.b16 %v3611
          %v3676 = vunpack.c.l.b16 %v3612
          %v3677 = vunpack.c.l.b16 %v3613
          %v3678 = vunpack.c.l.b16 %v3614
          %v3679 = vunpack.c.l.b16 %v3615
          %v3680 = vunpack.c.l.b16 %v3616
          %v3681 = vunpack.c.l.b16 %v3617
          %v3682 = vunpack.c.l.b16 %v3618
          %v3683 = vpack.c.b16 %v3668, %v3667
          %v3684 = vpack.c.b16 %v3670, %v3669
          %v3685 = vpack.c.b16 %v3672, %v3671
          %v3686 = vpack.c.b16 %v3674, %v3673
          %v3687 = vpack.c.b16 %v3676, %v3675
          %v3688 = vpack.c.b16 %v3678, %v3677
          %v3689 = vpack.c.b16 %v3680, %v3679
          %v3690 = vpack.c.b16 %v3682, %v3681
          %3699 = vmatprep.subr.bf16.mxu0 0
          %3700 = vmatpush1.bf16.msra.mxu0 %v3683
          %3701 = vmatprep.subr.bf16.mxu0 0
          %3702 = vmatpush1.bf16.msra.mxu0 %v3684
          %3703 = vmatprep.subr.bf16.mxu0 0
          %3704 = vmatpush1.bf16.msra.mxu0 %v3685
          %3705 = vmatprep.subr.bf16.mxu0 0
          %3706 = vmatpush1.bf16.msra.mxu0 %v3686
          %3707 = vmatprep.subr.bf16.mxu0 0
          %3708 = vmatpush1.bf16.msra.mxu0 %v3687
          %3709 = vmatprep.subr.bf16.mxu0 0
          %3710 = vmatpush1.bf16.msra.mxu0 %v3688
          %3711 = vmatprep.subr.bf16.mxu0 0
          %3712 = vmatpush1.bf16.msra.mxu0 %v3689
          %3713 = vmatprep.subr.bf16.mxu0 0
          %3714 = vmatpush1.bf16.msra.mxu0 %v3690
          %3715 = vmatprep.subr.bf16.mxu0 0
          %3716 = vmatpush1.bf16.msra.mxu0 0
          %3717 = vmatprep.subr.bf16.mxu0 0
          %3718 = vmatpush1.bf16.msra.mxu0 0
          %3719 = vmatprep.subr.bf16.mxu0 0
          %3720 = vmatpush1.bf16.msra.mxu0 0
          %3721 = vmatprep.subr.bf16.mxu0 0
          %3722 = vmatpush1.bf16.msra.mxu0 0
          %3723 = vmatprep.subr.bf16.mxu0 0
          %3724 = vmatpush1.bf16.msra.mxu0 0
          %3725 = vmatprep.subr.bf16.mxu0 0
          %3726 = vmatpush1.bf16.msra.mxu0 0
          %3727 = vmatprep.subr.bf16.mxu0 0
          %3728 = vmatpush1.bf16.msra.mxu0 0
          %3729 = vmatprep.subr.bf16.mxu0 0
          %3730 = vmatpush1.bf16.msra.mxu0 0
          %3731 = vmatprep.mubr.bf16.mxu0 0
          %3732 = vmatmul.mubr.bf16.gmra.mrb[0].mxu0 %v3635
          %v3733 = vpop.f32.mrb[0].mxu0
          %v3734 = vadd.f32 0.0, %v3733
          %v3735 = vpop.f32.mrb[0].mxu0
          %v3736 = vpop.f32.mrb[0].mxu0
          %v3737 = vadd.f32 0.0, %v3736
          %v3738 = vpop.f32.mrb[0].mxu0
          %3739 = vmatprep.mubr.bf16.mxu0 0
          %3740 = vmatmul.mubr.bf16.gmra.mrb[0].mxu0 %v3636
          %v3741 = vpop.f32.mrb[0].mxu0
          %v3742 = vadd.f32 0.0, %v3741
          %v3743 = vpop.f32.mrb[0].mxu0
          %v3744 = vpop.f32.mrb[0].mxu0
          %v3745 = vadd.f32 0.0, %v3744
          %v3746 = vpop.f32.mrb[0].mxu0
          %3747 = vmatprep.mubr.bf16.mxu0 0
          %3748 = vmatmul.mubr.bf16.gmra.mrb[0].mxu0 %v3637
          %v3749 = vpop.f32.mrb[0].mxu0
          %v3750 = vadd.f32 0.0, %v3749
          %v3751 = vpop.f32.mrb[0].mxu0
          %v3752 = vpop.f32.mrb[0].mxu0
          %v3753 = vadd.f32 0.0, %v3752
          %v3754 = vpop.f32.mrb[0].mxu0
          %3755 = vmatprep.mubr.bf16.mxu0 0
          %3756 = vmatmul.mubr.bf16.gmra.mrb[0].mxu0 %v3638
          %v3757 = vpop.f32.mrb[0].mxu0
          %v3758 = vadd.f32 0.0, %v3757
          %v3759 = vpop.f32.mrb[0].mxu0
          %v3760 = vpop.f32.mrb[0].mxu0
          %v3761 = vadd.f32 0.0, %v3760
          %v3762 = vpop.f32.mrb[0].mxu0
          %3763 = vmatprep.mubr.bf16.mxu0 0
          %3764 = vmatmul.mubr.bf16.gmra.mrb[0].mxu0 %v3639
          %v3765 = vpop.f32.mrb[0].mxu0
          %v3766 = vadd.f32 0.0, %v3765
          %v3767 = vpop.f32.mrb[0].mxu0
          %v3768 = vpop.f32.mrb[0].mxu0
          %v3769 = vadd.f32 0.0, %v3768
          %v3770 = vpop.f32.mrb[0].mxu0
          %3771 = vmatprep.mubr.bf16.mxu0 0
          %3772 = vmatmul.mubr.bf16.gmra.mrb[0].mxu0 %v3640
          %v3773 = vpop.f32.mrb[0].mxu0
          %v3774 = vadd.f32 0.0, %v3773
          %v3775 = vpop.f32.mrb[0].mxu0
          %v3776 = vpop.f32.mrb[0].mxu0
          %v3777 = vadd.f32 0.0, %v3776
          %v3778 = vpop.f32.mrb[0].mxu0
          %3779 = vmatprep.mubr.bf16.mxu0 0
          %3780 = vmatmul.mubr.bf16.gmra.mrb[0].mxu0 %v3641
          %v3781 = vpop.f32.mrb[0].mxu0
          %v3782 = vadd.f32 0.0, %v3781
          %v3783 = vpop.f32.mrb[0].mxu0
          %v3784 = vpop.f32.mrb[0].mxu0
          %v3785 = vadd.f32 0.0, %v3784
          %v3786 = vpop.f32.mrb[0].mxu0
          %3787 = vmatprep.mubr.bf16.mxu0 0
          %3788 = vmatmul.mubr.bf16.gmra.mrb[0].mxu0 %v3642
          %v3789 = vpop.f32.mrb[0].mxu0
          %v3790 = vadd.f32 0.0, %v3789
          %v3791 = vpop.f32.mrb[0].mxu0
          %v3792 = vpop.f32.mrb[0].mxu0
          %v3793 = vadd.f32 0.0, %v3792
          %v3794 = vpop.f32.mrb[0].mxu0
          %3795 = vdwg.mxu0
          %v3796 = vadd.f32 %v3370, %v3734
          %v3797 = vadd.f32 %v3371, %v3737
          %v3798 = vadd.f32 %v3372, %v3742
          %v3799 = vadd.f32 %v3373, %v3745
          %v3800 = vadd.f32 %v3374, %v3750
          %v3801 = vadd.f32 %v3375, %v3753
          %v3802 = vadd.f32 %v3376, %v3758
          %v3803 = vadd.f32 %v3377, %v3761
          %v3804 = vadd.f32 %v3378, %v3766
          %v3805 = vadd.f32 %v3379, %v3769
          %v3806 = vadd.f32 %v3380, %v3774
          %v3807 = vadd.f32 %v3381, %v3777
          %v3808 = vadd.f32 %v3382, %v3782
          %v3809 = vadd.f32 %v3383, %v3785
          %v3810 = vadd.f32 %v3384, %v3790
          %v3811 = vadd.f32 %v3385, %v3793
          %v3812 = vld [vmem:[%s3143] sm:$0xe]
          %v3813 = vld [vmem:[%s3143 + $0xc] sm:$0xe]
          %v3814 = vld [vmem:[%s3143 + $0x18] sm:$0xe]
          %v3815 = vld [vmem:[%s3143 + $0x24] sm:$0xe]
          %v3816 = vld [vmem:[%s3143 + $0x30] sm:$0xe]
          %v3817 = vld [vmem:[%s3143 + $0x3c] sm:$0xe]
          %v3818 = vld [vmem:[%s3143 + $0x48] sm:$0xe]
          %v3819 = vld [vmem:[%s3143 + $0x54] sm:$0xe]
          %v3844 = vrot.slane %v3812, 5
          %v3845 = vrot.slane %v3844, 4
          %v3846 = vrot.slane %v3387, 5
          %v3847 = vsel %vm1903, %v3845, %v3846
          %v3848 = vrot.slane %v3846, 4
          %v3849 = vrot.slane %v3388, 5
          %v3850 = vsel %vm1903, %v3848, %v3849
          %v3851 = vrot.slane %v3813, 5
          %v3852 = vrot.slane %v3851, 4
          %v3853 = vrot.slane %v3390, 5
          %v3854 = vsel %vm1903, %v3852, %v3853
          %v3855 = vrot.slane %v3853, 4
          %v3856 = vrot.slane %v3391, 5
          %v3857 = vsel %vm1903, %v3855, %v3856
          %v3858 = vrot.slane %v3814, 5
          %v3859 = vrot.slane %v3858, 4
          %v3860 = vrot.slane %v3393, 5
          %v3861 = vsel %vm1903, %v3859, %v3860
          %v3862 = vrot.slane %v3860, 4
          %v3863 = vrot.slane %v3394, 5
          %v3864 = vsel %vm1903, %v3862, %v3863
          %v3865 = vrot.slane %v3815, 5
          %v3866 = vrot.slane %v3865, 4
          %v3867 = vrot.slane %v3396, 5
          %v3868 = vsel %vm1903, %v3866, %v3867
          %v3869 = vrot.slane %v3867, 4
          %v3870 = vrot.slane %v3397, 5
          %v3871 = vsel %vm1903, %v3869, %v3870
          %v3872 = vrot.slane %v3816, 5
          %v3873 = vrot.slane %v3872, 4
          %v3874 = vrot.slane %v3399, 5
          %v3875 = vsel %vm1903, %v3873, %v3874
          %v3876 = vrot.slane %v3874, 4
          %v3877 = vrot.slane %v3400, 5
          %v3878 = vsel %vm1903, %v3876, %v3877
          %v3879 = vrot.slane %v3817, 5
          %v3880 = vrot.slane %v3879, 4
          %v3881 = vrot.slane %v3402, 5
          %v3882 = vsel %vm1903, %v3880, %v3881
          %v3883 = vrot.slane %v3881, 4
          %v3884 = vrot.slane %v3403, 5
          %v3885 = vsel %vm1903, %v3883, %v3884
          %v3886 = vrot.slane %v3818, 5
          %v3887 = vrot.slane %v3886, 4
          %v3888 = vrot.slane %v3405, 5
          %v3889 = vsel %vm1903, %v3887, %v3888
          %v3890 = vrot.slane %v3888, 4
          %v3891 = vrot.slane %v3406, 5
          %v3892 = vsel %vm1903, %v3890, %v3891
          %v3893 = vrot.slane %v3819, 5
          %v3894 = vrot.slane %v3893, 4
          %v3895 = vrot.slane %v3408, 5
          %v3896 = vsel %vm1903, %v3894, %v3895
          %v3897 = vrot.slane %v3895, 4
          %v3898 = vrot.slane %v3409, 5
          %v3899 = vsel %vm1903, %v3897, %v3898
          %s3900 = scalar_lea.vmem [#allocation7], 512
          %v3901 = vld [vmem:[%s3900] sm:$0xf]
          %v3902 = vld [vmem:[%s3900 + $0x4] sm:$0xf]
          %v3903 = vld [vmem:[%s3900 + $0x8] sm:$0xf]
          %v3904 = vld [vmem:[%s3900 + $0xc] sm:$0xf]
          %v3905 = vld [vmem:[%s3900 + $0x10] sm:$0xf]
          %v3906 = vld [vmem:[%s3900 + $0x14] sm:$0xf]
          %v3907 = vld [vmem:[%s3900 + $0x18] sm:$0xf]
          %v3908 = vld [vmem:[%s3900 + $0x1c] sm:$0xf]
          %v3909 = vld [vmem:[%s3900 + $0x20] sm:$0xf]
          %v3910 = vld [vmem:[%s3900 + $0x24] sm:$0xf]
          %v3911 = vld [vmem:[%s3900 + $0x28] sm:$0xf]
          %v3912 = vld [vmem:[%s3900 + $0x2c] sm:$0xf]
          %v3913 = vld [vmem:[%s3900 + $0x30] sm:$0xf]
          %v3914 = vld [vmem:[%s3900 + $0x34] sm:$0xf]
          %v3915 = vld [vmem:[%s3900 + $0x38] sm:$0xf]
          %v3916 = vld [vmem:[%s3900 + $0x3c] sm:$0xf]
          %v3917 = vunpack.c.l.b16 %v3847
          %v3918 = vunpack.c.l.b16 %v3850
          %v3919 = vunpack.c.l.b16 %v3854
          %v3920 = vunpack.c.l.b16 %v3857
          %v3921 = vunpack.c.l.b16 %v3861
          %v3922 = vunpack.c.l.b16 %v3864
          %v3923 = vunpack.c.l.b16 %v3868
          %v3924 = vunpack.c.l.b16 %v3871
          %v3925 = vunpack.c.l.b16 %v3875
          %v3926 = vunpack.c.l.b16 %v3878
          %v3927 = vunpack.c.l.b16 %v3882
          %v3928 = vunpack.c.l.b16 %v3885
          %v3929 = vunpack.c.l.b16 %v3889
          %v3930 = vunpack.c.l.b16 %v3892
          %v3931 = vunpack.c.l.b16 %v3896
          %v3932 = vunpack.c.l.b16 %v3899
          %v3933 = vpack.c.b16 %v3918, %v3917
          %v3934 = vpack.c.b16 %v3920, %v3919
          %v3935 = vpack.c.b16 %v3922, %v3921
          %v3936 = vpack.c.b16 %v3924, %v3923
          %v3937 = vpack.c.b16 %v3926, %v3925
          %v3938 = vpack.c.b16 %v3928, %v3927
          %v3939 = vpack.c.b16 %v3930, %v3929
          %v3940 = vpack.c.b16 %v3932, %v3931
          %v3965 = vunpack.c.l.b16 %v3901
          %v3966 = vunpack.c.l.b16 %v3902
          %v3967 = vunpack.c.l.b16 %v3903
          %v3968 = vunpack.c.l.b16 %v3904
          %v3969 = vunpack.c.l.b16 %v3905
          %v3970 = vunpack.c.l.b16 %v3906
          %v3971 = vunpack.c.l.b16 %v3907
          %v3972 = vunpack.c.l.b16 %v3908
          %v3973 = vunpack.c.l.b16 %v3909
          %v3974 = vunpack.c.l.b16 %v3910
          %v3975 = vunpack.c.l.b16 %v3911
          %v3976 = vunpack.c.l.b16 %v3912
          %v3977 = vunpack.c.l.b16 %v3913
          %v3978 = vunpack.c.l.b16 %v3914
          %v3979 = vunpack.c.l.b16 %v3915
          %v3980 = vunpack.c.l.b16 %v3916
          %v3981 = vpack.c.b16 %v3966, %v3965
          %v3982 = vpack.c.b16 %v3968, %v3967
          %v3983 = vpack.c.b16 %v3970, %v3969
          %v3984 = vpack.c.b16 %v3972, %v3971
          %v3985 = vpack.c.b16 %v3974, %v3973
          %v3986 = vpack.c.b16 %v3976, %v3975
          %v3987 = vpack.c.b16 %v3978, %v3977
          %v3988 = vpack.c.b16 %v3980, %v3979
          %3997 = vmatprep.subr.bf16.mxu0 0
          %3998 = vmatpush1.bf16.msra.mxu0 %v3981
          %3999 = vmatprep.subr.bf16.mxu0 0
          %4000 = vmatpush1.bf16.msra.mxu0 %v3982
          %4001 = vmatprep.subr.bf16.mxu0 0
          %4002 = vmatpush1.bf16.msra.mxu0 %v3983
          %4003 = vmatprep.subr.bf16.mxu0 0
          %4004 = vmatpush1.bf16.msra.mxu0 %v3984
          %4005 = vmatprep.subr.bf16.mxu0 0
          %4006 = vmatpush1.bf16.msra.mxu0 %v3985
          %4007 = vmatprep.subr.bf16.mxu0 0
          %4008 = vmatpush1.bf16.msra.mxu0 %v3986
          %4009 = vmatprep.subr.bf16.mxu0 0
          %4010 = vmatpush1.bf16.msra.mxu0 %v3987
          %4011 = vmatprep.subr.bf16.mxu0 0
          %4012 = vmatpush1.bf16.msra.mxu0 %v3988
          %4013 = vmatprep.subr.bf16.mxu0 0
          %4014 = vmatpush1.bf16.msra.mxu0 0
          %4015 = vmatprep.subr.bf16.mxu0 0
          %4016 = vmatpush1.bf16.msra.mxu0 0
          %4017 = vmatprep.subr.bf16.mxu0 0
          %4018 = vmatpush1.bf16.msra.mxu0 0
          %4019 = vmatprep.subr.bf16.mxu0 0
          %4020 = vmatpush1.bf16.msra.mxu0 0
          %4021 = vmatprep.subr.bf16.mxu0 0
          %4022 = vmatpush1.bf16.msra.mxu0 0
          %4023 = vmatprep.subr.bf16.mxu0 0
          %4024 = vmatpush1.bf16.msra.mxu0 0
          %4025 = vmatprep.subr.bf16.mxu0 0
          %4026 = vmatpush1.bf16.msra.mxu0 0
          %4027 = vmatprep.subr.bf16.mxu0 0
          %4028 = vmatpush1.bf16.msra.mxu0 0
          %4029 = vmatprep.mubr.bf16.mxu0 0
          %4030 = vmatmul.mubr.bf16.gmra.mrb[0].mxu0 %v3933
          %v4031 = vpop.f32.mrb[0].mxu0
          %v4032 = vadd.f32 0.0, %v4031
          %v4033 = vpop.f32.mrb[0].mxu0
          %v4034 = vpop.f32.mrb[0].mxu0
          %v4035 = vadd.f32 0.0, %v4034
          %v4036 = vpop.f32.mrb[0].mxu0
          %4037 = vmatprep.mubr.bf16.mxu0 0
          %4038 = vmatmul.mubr.bf16.gmra.mrb[0].mxu0 %v3934
          %v4039 = vpop.f32.mrb[0].mxu0
          %v4040 = vadd.f32 0.0, %v4039
          %v4041 = vpop.f32.mrb[0].mxu0
          %v4042 = vpop.f32.mrb[0].mxu0
          %v4043 = vadd.f32 0.0, %v4042
          %v4044 = vpop.f32.mrb[0].mxu0
          %4045 = vmatprep.mubr.bf16.mxu0 0
          %4046 = vmatmul.mubr.bf16.gmra.mrb[0].mxu0 %v3935
          %v4047 = vpop.f32.mrb[0].mxu0
          %v4048 = vadd.f32 0.0, %v4047
          %v4049 = vpop.f32.mrb[0].mxu0
          %v4050 = vpop.f32.mrb[0].mxu0
          %v4051 = vadd.f32 0.0, %v4050
          %v4052 = vpop.f32.mrb[0].mxu0
          %4053 = vmatprep.mubr.bf16.mxu0 0
          %4054 = vmatmul.mubr.bf16.gmra.mrb[0].mxu0 %v3936
          %v4055 = vpop.f32.mrb[0].mxu0
          %v4056 = vadd.f32 0.0, %v4055
          %v4057 = vpop.f32.mrb[0].mxu0
          %v4058 = vpop.f32.mrb[0].mxu0
          %v4059 = vadd.f32 0.0, %v4058
          %v4060 = vpop.f32.mrb[0].mxu0
          %4061 = vmatprep.mubr.bf16.mxu0 0
          %4062 = vmatmul.mubr.bf16.gmra.mrb[0].mxu0 %v3937
          %v4063 = vpop.f32.mrb[0].mxu0
          %v4064 = vadd.f32 0.0, %v4063
          %v4065 = vpop.f32.mrb[0].mxu0
          %v4066 = vpop.f32.mrb[0].mxu0
          %v4067 = vadd.f32 0.0, %v4066
          %v4068 = vpop.f32.mrb[0].mxu0
          %4069 = vmatprep.mubr.bf16.mxu0 0
          %4070 = vmatmul.mubr.bf16.gmra.mrb[0].mxu0 %v3938
          %v4071 = vpop.f32.mrb[0].mxu0
          %v4072 = vadd.f32 0.0, %v4071
          %v4073 = vpop.f32.mrb[0].mxu0
          %v4074 = vpop.f32.mrb[0].mxu0
          %v4075 = vadd.f32 0.0, %v4074
          %v4076 = vpop.f32.mrb[0].mxu0
          %4077 = vmatprep.mubr.bf16.mxu0 0
          %4078 = vmatmul.mubr.bf16.gmra.mrb[0].mxu0 %v3939
          %v4079 = vpop.f32.mrb[0].mxu0
          %v4080 = vadd.f32 0.0, %v4079
          %v4081 = vpop.f32.mrb[0].mxu0
          %v4082 = vpop.f32.mrb[0].mxu0
          %v4083 = vadd.f32 0.0, %v4082
          %v4084 = vpop.f32.mrb[0].mxu0
          %4085 = vmatprep.mubr.bf16.mxu0 0
          %4086 = vmatmul.mubr.bf16.gmra.mrb[0].mxu0 %v3940
          %v4087 = vpop.f32.mrb[0].mxu0
          %v4088 = vadd.f32 0.0, %v4087
          %v4089 = vpop.f32.mrb[0].mxu0
          %v4090 = vpop.f32.mrb[0].mxu0
          %v4091 = vadd.f32 0.0, %v4090
          %v4092 = vpop.f32.mrb[0].mxu0
          %4093 = vdwg.mxu0
          %v4094 = vadd.f32 %v3796, %v4032
          %v4095 = vadd.f32 %v3797, %v4035
          %v4096 = vadd.f32 %v3798, %v4040
          %v4097 = vadd.f32 %v3799, %v4043
          %v4098 = vadd.f32 %v3800, %v4048
          %v4099 = vadd.f32 %v3801, %v4051
          %v4100 = vadd.f32 %v3802, %v4056
          %v4101 = vadd.f32 %v3803, %v4059
          %v4102 = vadd.f32 %v3804, %v4064
          %v4103 = vadd.f32 %v3805, %v4067
          %v4104 = vadd.f32 %v3806, %v4072
          %v4105 = vadd.f32 %v3807, %v4075
          %v4106 = vadd.f32 %v3808, %v4080
          %v4107 = vadd.f32 %v3809, %v4083
          %v4108 = vadd.f32 %v3810, %v4088
          %v4109 = vadd.f32 %v3811, %v4091
          %v4110 = vld [vmem:[#allocation9] sm:$0x1]
          %v4112 = vlaneseq
          %v4113 = vshrl.u32 %v4112, 7
          %v4114 = vsub.s32 0, %v4113
          %v4115 = vrot.slane %v4110, %v4114
          %v4117 = vadd.f32 %v4094, %v4115
          %v4118 = vadd.f32 %v4095, %v4115
          %v4119 = vadd.f32 %v4096, %v4115
          %v4120 = vadd.f32 %v4097, %v4115
          %v4121 = vadd.f32 %v4098, %v4115
          %v4122 = vadd.f32 %v4099, %v4115
          %v4123 = vadd.f32 %v4100, %v4115
          %v4124 = vadd.f32 %v4101, %v4115
          %v4125 = vadd.f32 %v4102, %v4115
          %v4126 = vadd.f32 %v4103, %v4115
          %v4127 = vadd.f32 %v4104, %v4115
          %v4128 = vadd.f32 %v4105, %v4115
          %v4129 = vadd.f32 %v4106, %v4115
          %v4130 = vadd.f32 %v4107, %v4115
          %v4131 = vadd.f32 %v4108, %v4115
          %v4132 = vadd.f32 %v4109, %v4115
          %v4133 = vmax.f32 %v4117, 0.0
          %v4134 = vmax.f32 %v4118, 0.0
          %v4135 = vmax.f32 %v4119, 0.0
          %v4136 = vmax.f32 %v4120, 0.0
          %v4137 = vmax.f32 %v4121, 0.0
          %v4138 = vmax.f32 %v4122, 0.0
          %v4139 = vmax.f32 %v4123, 0.0
          %v4140 = vmax.f32 %v4124, 0.0
          %v4141 = vmax.f32 %v4125, 0.0
          %v4142 = vmax.f32 %v4126, 0.0
          %v4143 = vmax.f32 %v4127, 0.0
          %v4144 = vmax.f32 %v4128, 0.0
          %v4145 = vmax.f32 %v4129, 0.0
          %v4146 = vmax.f32 %v4130, 0.0
          %v4147 = vmax.f32 %v4131, 0.0
          %v4148 = vmax.f32 %v4132, 0.0
          %v4149 = vpack.c.bf16 %v4134, %v4133
          %v4150 = vpack.c.bf16 %v4136, %v4135
          %v4151 = vpack.c.bf16 %v4138, %v4137
          %v4152 = vpack.c.bf16 %v4140, %v4139
          %v4153 = vpack.c.bf16 %v4142, %v4141
          %v4154 = vpack.c.bf16 %v4144, %v4143
          %v4155 = vpack.c.bf16 %v4146, %v4145
          %v4156 = vpack.c.bf16 %v4148, %v4147
          %v4165 = vunpack.c.l.b16 %v4149
          %v4166 = vunpack.c.h.b16 %v4149
          %v4167 = vunpack.c.l.b16 %v4150
          %v4168 = vunpack.c.h.b16 %v4150
          %v4169 = vunpack.c.l.b16 %v4151
          %v4170 = vunpack.c.h.b16 %v4151
          %v4171 = vunpack.c.l.b16 %v4152
          %v4172 = vunpack.c.h.b16 %v4152
          %v4173 = vunpack.c.l.b16 %v4153
          %v4174 = vunpack.c.h.b16 %v4153
          %v4175 = vunpack.c.l.b16 %v4154
          %v4176 = vunpack.c.h.b16 %v4154
          %v4177 = vunpack.c.l.b16 %v4155
          %v4178 = vunpack.c.h.b16 %v4155
          %v4179 = vunpack.c.l.b16 %v4156
          %v4180 = vunpack.c.h.b16 %v4156
          %v4181 = vpack.c.b16 %v4165, %v4165
          %v4182 = vpack.c.b16 %v4166, %v4166
          %v4183 = vpack.c.b16 %v4167, %v4167
          %v4184 = vpack.c.b16 %v4168, %v4168
          %v4185 = vpack.c.b16 %v4169, %v4169
          %v4186 = vpack.c.b16 %v4170, %v4170
          %v4187 = vpack.c.b16 %v4171, %v4171
          %v4188 = vpack.c.b16 %v4172, %v4172
          %v4189 = vpack.c.b16 %v4173, %v4173
          %v4190 = vpack.c.b16 %v4174, %v4174
          %v4191 = vpack.c.b16 %v4175, %v4175
          %v4192 = vpack.c.b16 %v4176, %v4176
          %v4193 = vpack.c.b16 %v4177, %v4177
          %v4194 = vpack.c.b16 %v4178, %v4178
          %v4195 = vpack.c.b16 %v4179, %v4179
          %v4196 = vpack.c.b16 %v4180, %v4180
          %v4198 = vshrl.u32 %v4181, 16
          %v4200 = vrot.slane %v4198, 7
          %v4201 = vshll.u32 %v4181, 16
          %v4203 = vor.u32 %v4200, %v4201
          %v4204 = vrot.slane %v4200, 4
          %v4206 = vshrl.u32 %v4182, 16
          %v4208 = vrot.slane %v4206, 7
          %v4209 = vshll.u32 %v4182, 16
          %v4211 = vor.u32 %v4208, %v4209
          %v4212 = vsel %vm809, %v4204, %v4211
          %v4213 = vrot.slane %v4208, 4
          %v4215 = vshrl.u32 %v4183, 16
          %v4217 = vrot.slane %v4215, 7
          %v4218 = vshll.u32 %v4183, 16
          %v4220 = vor.u32 %v4217, %v4218
          %v4221 = vrot.slane %v4217, 4
          %v4223 = vshrl.u32 %v4184, 16
          %v4225 = vrot.slane %v4223, 7
          %v4226 = vshll.u32 %v4184, 16
          %v4228 = vor.u32 %v4225, %v4226
          %v4229 = vsel %vm809, %v4221, %v4228
          %v4230 = vrot.slane %v4225, 4
          %v4232 = vshrl.u32 %v4185, 16
          %v4234 = vrot.slane %v4232, 7
          %v4235 = vshll.u32 %v4185, 16
          %v4237 = vor.u32 %v4234, %v4235
          %v4238 = vrot.slane %v4234, 4
          %v4240 = vshrl.u32 %v4186, 16
          %v4242 = vrot.slane %v4240, 7
          %v4243 = vshll.u32 %v4186, 16
          %v4245 = vor.u32 %v4242, %v4243
          %v4246 = vsel %vm809, %v4238, %v4245
          %v4247 = vrot.slane %v4242, 4
          %v4249 = vshrl.u32 %v4187, 16
          %v4251 = vrot.slane %v4249, 7
          %v4252 = vshll.u32 %v4187, 16
          %v4254 = vor.u32 %v4251, %v4252
          %v4255 = vrot.slane %v4251, 4
          %v4257 = vshrl.u32 %v4188, 16
          %v4259 = vrot.slane %v4257, 7
          %v4260 = vshll.u32 %v4188, 16
          %v4262 = vor.u32 %v4259, %v4260
          %v4263 = vsel %vm809, %v4255, %v4262
          %v4264 = vrot.slane %v4259, 4
          %v4266 = vshrl.u32 %v4189, 16
          %v4268 = vrot.slane %v4266, 7
          %v4269 = vshll.u32 %v4189, 16
          %v4271 = vor.u32 %v4268, %v4269
          %v4272 = vrot.slane %v4268, 4
          %v4274 = vshrl.u32 %v4190, 16
          %v4276 = vrot.slane %v4274, 7
          %v4277 = vshll.u32 %v4190, 16
          %v4279 = vor.u32 %v4276, %v4277
          %v4280 = vsel %vm809, %v4272, %v4279
          %v4281 = vrot.slane %v4276, 4
          %v4283 = vshrl.u32 %v4191, 16
          %v4285 = vrot.slane %v4283, 7
          %v4286 = vshll.u32 %v4191, 16
          %v4288 = vor.u32 %v4285, %v4286
          %v4289 = vrot.slane %v4285, 4
          %v4291 = vshrl.u32 %v4192, 16
          %v4293 = vrot.slane %v4291, 7
          %v4294 = vshll.u32 %v4192, 16
          %v4296 = vor.u32 %v4293, %v4294
          %v4297 = vsel %vm809, %v4289, %v4296
          %v4298 = vrot.slane %v4293, 4
          %v4300 = vshrl.u32 %v4193, 16
          %v4302 = vrot.slane %v4300, 7
          %v4303 = vshll.u32 %v4193, 16
          %v4305 = vor.u32 %v4302, %v4303
          %v4306 = vrot.slane %v4302, 4
          %v4308 = vshrl.u32 %v4194, 16
          %v4310 = vrot.slane %v4308, 7
          %v4311 = vshll.u32 %v4194, 16
          %v4313 = vor.u32 %v4310, %v4311
          %v4314 = vsel %vm809, %v4306, %v4313
          %v4315 = vrot.slane %v4310, 4
          %v4317 = vshrl.u32 %v4195, 16
          %v4319 = vrot.slane %v4317, 7
          %v4320 = vshll.u32 %v4195, 16
          %v4322 = vor.u32 %v4319, %v4320
          %v4323 = vrot.slane %v4319, 4
          %v4325 = vshrl.u32 %v4196, 16
          %v4327 = vrot.slane %v4325, 7
          %v4328 = vshll.u32 %v4196, 16
          %v4330 = vor.u32 %v4327, %v4328
          %v4331 = vsel %vm809, %v4323, %v4330
          %v4332 = vrot.slane %v4327, 4
          %s4357 = smul.addr %s2171, 4
          %s4358 = scalar_lea.vmem [#allocation3], %s4357
          %v4359 = vld [vmem:[%s4358] sm:$0xf]
          %v4360 = vsel %vm1132, %v4203, %v4359
          %4361 = vst [vmem:[%s4358] sm:$0xf] %v4360
          %4362 = vst [vmem:[%s4358 + $0x4] sm:$0xf] %v4212
          %v4363 = vld [vmem:[%s4358 + $0x8] sm:$0x1]
          %v4364 = vsel %vm550, %v4213, %v4363
          %4365 = vst [vmem:[%s4358 + $0x8] sm:$0x1] %v4364
          %v4366 = vld [vmem:[%s4358 + $0xc] sm:$0xf]
          %v4367 = vsel %vm1132, %v4220, %v4366
          %4368 = vst [vmem:[%s4358 + $0xc] sm:$0xf] %v4367
          %4369 = vst [vmem:[%s4358 + $0x10] sm:$0xf] %v4229
          %v4370 = vld [vmem:[%s4358 + $0x14] sm:$0x1]
          %v4371 = vsel %vm550, %v4230, %v4370
          %4372 = vst [vmem:[%s4358 + $0x14] sm:$0x1] %v4371
          %v4373 = vld [vmem:[%s4358 + $0x18] sm:$0xf]
          %v4374 = vsel %vm1132, %v4237, %v4373
          %4375 = vst [vmem:[%s4358 + $0x18] sm:$0xf] %v4374
          %4376 = vst [vmem:[%s4358 + $0x1c] sm:$0xf] %v4246
          %v4377 = vld [vmem:[%s4358 + $0x20] sm:$0x1]
          %v4378 = vsel %vm550, %v4247, %v4377
          %4379 = vst [vmem:[%s4358 + $0x20] sm:$0x1] %v4378
          %v4380 = vld [vmem:[%s4358 + $0x24] sm:$0xf]
          %v4381 = vsel %vm1132, %v4254, %v4380
          %4382 = vst [vmem:[%s4358 + $0x24] sm:$0xf] %v4381
          %4383 = vst [vmem:[%s4358 + $0x28] sm:$0xf] %v4263
          %v4384 = vld [vmem:[%s4358 + $0x2c] sm:$0x1]
          %v4385 = vsel %vm550, %v4264, %v4384
          %4386 = vst [vmem:[%s4358 + $0x2c] sm:$0x1] %v4385
          %v4387 = vld [vmem:[%s4358 + $0x30] sm:$0xf]
          %v4388 = vsel %vm1132, %v4271, %v4387
          %4389 = vst [vmem:[%s4358 + $0x30] sm:$0xf] %v4388
          %4390 = vst [vmem:[%s4358 + $0x34] sm:$0xf] %v4280
          %v4391 = vld [vmem:[%s4358 + $0x38] sm:$0x1]
          %v4392 = vsel %vm550, %v4281, %v4391
          %4393 = vst [vmem:[%s4358 + $0x38] sm:$0x1] %v4392
          %v4394 = vld [vmem:[%s4358 + $0x3c] sm:$0xf]
          %v4395 = vsel %vm1132, %v4288, %v4394
          %4396 = vst [vmem:[%s4358 + $0x3c] sm:$0xf] %v4395
          %4397 = vst [vmem:[%s4358 + $0x40] sm:$0xf] %v4297
          %v4398 = vld [vmem:[%s4358 + $0x44] sm:$0x1]
          %v4399 = vsel %vm550, %v4298, %v4398
          %4400 = vst [vmem:[%s4358 + $0x44] sm:$0x1] %v4399
          %v4401 = vld [vmem:[%s4358 + $0x48] sm:$0xf]
          %v4402 = vsel %vm1132, %v4305, %v4401
          %4403 = vst [vmem:[%s4358 + $0x48] sm:$0xf] %v4402
          %4404 = vst [vmem:[%s4358 + $0x4c] sm:$0xf] %v4314
          %v4405 = vld [vmem:[%s4358 + $0x50] sm:$0x1]
          %v4406 = vsel %vm550, %v4315, %v4405
          %4407 = vst [vmem:[%s4358 + $0x50] sm:$0x1] %v4406
          %v4408 = vld [vmem:[%s4358 + $0x54] sm:$0xf]
          %v4409 = vsel %vm1132, %v4322, %v4408
          %4410 = vst [vmem:[%s4358 + $0x54] sm:$0xf] %v4409
          %4411 = vst [vmem:[%s4358 + $0x58] sm:$0xf] %v4331
          %v4412 = vld [vmem:[%s4358 + $0x5c] sm:$0x1]
          %v4413 = vsel %vm550, %v4332, %v4412
          %4414 = vst [vmem:[%s4358 + $0x5c] sm:$0x1] %v4413
        $region113: #{tpu_custom_call.1} parent=63 // loop_footer
          %s1250 = sadd.s32 1, %s1246
        $region114: #{tpu_custom_call.1} parent=63 // loop_footer_branch
          %1245 = sbr.rel target = $region110
        $region115: #{tpu_custom_call.1} parent=63 // loop_exit
          _
        loop: start=0, step=1, limit=2
        $region116: #{tpu_custom_call.1} parent=63 // loop_pre_header
          _
        $region117: #{tpu_custom_call.1} parent=63 // loop_header
          %s4416 = sphi 0, %s4420
          %p4417 = scmp.ge.s32.totalorder %s4416, 2
        $region118: #{tpu_custom_call.1} parent=63 // loop_header_branch
          %4419 = sbr.rel (%p4417) target = $region122
        $region119: #{tpu_custom_call.1} parent=63 // loop_body
          %s4421 = smul.u32 %s4416, 8
          %s4422 = smul.u32 %s4421, 3
          %s4423 = smul.addr %s4422, 4
          %s4424 = scalar_lea.vmem [#allocation3], %s4423
          %v4425 = vld [vmem:[%s4424] sm:$0xf]
          %v4426 = vld [vmem:[%s4424 + $0x4] sm:$0xf]
          %v4427 = vld [vmem:[%s4424 + $0xc] sm:$0xf]
          %v4428 = vld [vmem:[%s4424 + $0x10] sm:$0xf]
          %v4429 = vld [vmem:[%s4424 + $0x18] sm:$0xf]
          %v4430 = vld [vmem:[%s4424 + $0x1c] sm:$0xf]
          %v4431 = vld [vmem:[%s4424 + $0x24] sm:$0xf]
          %v4432 = vld [vmem:[%s4424 + $0x28] sm:$0xf]
          %v4433 = vld [vmem:[%s4424 + $0x30] sm:$0xf]
          %v4434 = vld [vmem:[%s4424 + $0x34] sm:$0xf]
          %v4435 = vld [vmem:[%s4424 + $0x3c] sm:$0xf]
          %v4436 = vld [vmem:[%s4424 + $0x40] sm:$0xf]
          %v4437 = vld [vmem:[%s4424 + $0x48] sm:$0xf]
          %v4438 = vld [vmem:[%s4424 + $0x4c] sm:$0xf]
          %v4439 = vld [vmem:[%s4424 + $0x54] sm:$0xf]
          %v4440 = vld [vmem:[%s4424 + $0x58] sm:$0xf]
          %v4441 = vld [vmem:[#allocation10] sm:$0xf]
          %v4442 = vld [vmem:[#allocation10 + $0x4] sm:$0xf]
          %v4443 = vld [vmem:[#allocation10 + $0x8] sm:$0xf]
          %v4444 = vld [vmem:[#allocation10 + $0xc] sm:$0xf]
          %v4445 = vld [vmem:[#allocation10 + $0x10] sm:$0xf]
          %v4446 = vld [vmem:[#allocation10 + $0x14] sm:$0xf]
          %v4447 = vld [vmem:[#allocation10 + $0x18] sm:$0xf]
          %v4448 = vld [vmem:[#allocation10 + $0x1c] sm:$0xf]
          %v4449 = vld [vmem:[#allocation10 + $0x20] sm:$0xf]
          %v4450 = vld [vmem:[#allocation10 + $0x24] sm:$0xf]
          %v4451 = vld [vmem:[#allocation10 + $0x28] sm:$0xf]
          %v4452 = vld [vmem:[#allocation10 + $0x2c] sm:$0xf]
          %v4453 = vld [vmem:[#allocation10 + $0x30] sm:$0xf]
          %v4454 = vld [vmem:[#allocation10 + $0x34] sm:$0xf]
          %v4455 = vld [vmem:[#allocation10 + $0x38] sm:$0xf]
          %v4456 = vld [vmem:[#allocation10 + $0x3c] sm:$0xf]
          %v4457 = vld [vmem:[%s4424 + $0x8] sm:$0x1]
          %v4458 = vld [vmem:[%s4424 + $0x14] sm:$0x1]
          %v4459 = vld [vmem:[%s4424 + $0x20] sm:$0x1]
          %v4460 = vld [vmem:[%s4424 + $0x2c] sm:$0x1]
          %v4461 = vld [vmem:[%s4424 + $0x38] sm:$0x1]
          %v4462 = vld [vmem:[%s4424 + $0x44] sm:$0x1]
          %v4463 = vld [vmem:[%s4424 + $0x50] sm:$0x1]
          %v4464 = vld [vmem:[%s4424 + $0x5c] sm:$0x1]
          %vm4465 = vsmask.f32 3328
          %vm4466 = vsmask.f32 7440
          %vm4467 = vmor %vm4465, %vm4466
          %v4469 = vshrl.u32 %v4425, 16
          %v4471 = vrot.slane %v4469, 4
          %v4472 = vshll.u32 %v4425, 16
          %v4474 = vrot.slane %v4472, 5
          %v4475 = vor.u32 %v4471, %v4474
          %v4476 = vrot.slane %v4475, 4
          %v4478 = vshll.u32 %v4426, 16
          %v4480 = vrot.slane %v4478, 5
          %v4481 = vsel %vm4467, %v4476, %v4480
          %v4482 = vshrl.u32 %v4426, 16
          %v4484 = vrot.slane %v4482, 4
          %v4485 = vor.u32 %v4484, %v4480
          %v4486 = vrot.slane %v4485, 4
          %v4488 = vshll.u32 %v4457, 16
          %v4490 = vrot.slane %v4488, 5
          %v4491 = vsel %vm4467, %v4486, %v4490
          %v4493 = vshrl.u32 %v4427, 16
          %v4495 = vrot.slane %v4493, 4
          %v4496 = vshll.u32 %v4427, 16
          %v4498 = vrot.slane %v4496, 5
          %v4499 = vor.u32 %v4495, %v4498
          %v4500 = vrot.slane %v4499, 4
          %v4502 = vshll.u32 %v4428, 16
          %v4504 = vrot.slane %v4502, 5
          %v4505 = vsel %vm4467, %v4500, %v4504
          %v4506 = vshrl.u32 %v4428, 16
          %v4508 = vrot.slane %v4506, 4
          %v4509 = vor.u32 %v4508, %v4504
          %v4510 = vrot.slane %v4509, 4
          %v4512 = vshll.u32 %v4458, 16
          %v4514 = vrot.slane %v4512, 5
          %v4515 = vsel %vm4467, %v4510, %v4514
          %v4517 = vshrl.u32 %v4429, 16
          %v4519 = vrot.slane %v4517, 4
          %v4520 = vshll.u32 %v4429, 16
          %v4522 = vrot.slane %v4520, 5
          %v4523 = vor.u32 %v4519, %v4522
          %v4524 = vrot.slane %v4523, 4
          %v4526 = vshll.u32 %v4430, 16
          %v4528 = vrot.slane %v4526, 5
          %v4529 = vsel %vm4467, %v4524, %v4528
          %v4530 = vshrl.u32 %v4430, 16
          %v4532 = vrot.slane %v4530, 4
          %v4533 = vor.u32 %v4532, %v4528
          %v4534 = vrot.slane %v4533, 4
          %v4536 = vshll.u32 %v4459, 16
          %v4538 = vrot.slane %v4536, 5
          %v4539 = vsel %vm4467, %v4534, %v4538
          %v4541 = vshrl.u32 %v4431, 16
          %v4543 = vrot.slane %v4541, 4
          %v4544 = vshll.u32 %v4431, 16
          %v4546 = vrot.slane %v4544, 5
          %v4547 = vor.u32 %v4543, %v4546
          %v4548 = vrot.slane %v4547, 4
          %v4550 = vshll.u32 %v4432, 16
          %v4552 = vrot.slane %v4550, 5
          %v4553 = vsel %vm4467, %v4548, %v4552
          %v4554 = vshrl.u32 %v4432, 16
          %v4556 = vrot.slane %v4554, 4
          %v4557 = vor.u32 %v4556, %v4552
          %v4558 = vrot.slane %v4557, 4
          %v4560 = vshll.u32 %v4460, 16
          %v4562 = vrot.slane %v4560, 5
          %v4563 = vsel %vm4467, %v4558, %v4562
          %v4565 = vshrl.u32 %v4433, 16
          %v4567 = vrot.slane %v4565, 4
          %v4568 = vshll.u32 %v4433, 16
          %v4570 = vrot.slane %v4568, 5
          %v4571 = vor.u32 %v4567, %v4570
          %v4572 = vrot.slane %v4571, 4
          %v4574 = vshll.u32 %v4434, 16
          %v4576 = vrot.slane %v4574, 5
          %v4577 = vsel %vm4467, %v4572, %v4576
          %v4578 = vshrl.u32 %v4434, 16
          %v4580 = vrot.slane %v4578, 4
          %v4581 = vor.u32 %v4580, %v4576
          %v4582 = vrot.slane %v4581, 4
          %v4584 = vshll.u32 %v4461, 16
          %v4586 = vrot.slane %v4584, 5
          %v4587 = vsel %vm4467, %v4582, %v4586
          %v4589 = vshrl.u32 %v4435, 16
          %v4591 = vrot.slane %v4589, 4
          %v4592 = vshll.u32 %v4435, 16
          %v4594 = vrot.slane %v4592, 5
          %v4595 = vor.u32 %v4591, %v4594
          %v4596 = vrot.slane %v4595, 4
          %v4598 = vshll.u32 %v4436, 16
          %v4600 = vrot.slane %v4598, 5
          %v4601 = vsel %vm4467, %v4596, %v4600
          %v4602 = vshrl.u32 %v4436, 16
          %v4604 = vrot.slane %v4602, 4
          %v4605 = vor.u32 %v4604, %v4600
          %v4606 = vrot.slane %v4605, 4
          %v4608 = vshll.u32 %v4462, 16
          %v4610 = vrot.slane %v4608, 5
          %v4611 = vsel %vm4467, %v4606, %v4610
          %v4613 = vshrl.u32 %v4437, 16
          %v4615 = vrot.slane %v4613, 4
          %v4616 = vshll.u32 %v4437, 16
          %v4618 = vrot.slane %v4616, 5
          %v4619 = vor.u32 %v4615, %v4618
          %v4620 = vrot.slane %v4619, 4
          %v4622 = vshll.u32 %v4438, 16
          %v4624 = vrot.slane %v4622, 5
          %v4625 = vsel %vm4467, %v4620, %v4624
          %v4626 = vshrl.u32 %v4438, 16
          %v4628 = vrot.slane %v4626, 4
          %v4629 = vor.u32 %v4628, %v4624
          %v4630 = vrot.slane %v4629, 4
          %v4632 = vshll.u32 %v4463, 16
          %v4634 = vrot.slane %v4632, 5
          %v4635 = vsel %vm4467, %v4630, %v4634
          %v4637 = vshrl.u32 %v4439, 16
          %v4639 = vrot.slane %v4637, 4
          %v4640 = vshll.u32 %v4439, 16
          %v4642 = vrot.slane %v4640, 5
          %v4643 = vor.u32 %v4639, %v4642
          %v4644 = vrot.slane %v4643, 4
          %v4646 = vshll.u32 %v4440, 16
          %v4648 = vrot.slane %v4646, 5
          %v4649 = vsel %vm4467, %v4644, %v4648
          %v4650 = vshrl.u32 %v4440, 16
          %v4652 = vrot.slane %v4650, 4
          %v4653 = vor.u32 %v4652, %v4648
          %v4654 = vrot.slane %v4653, 4
          %v4656 = vshll.u32 %v4464, 16
          %v4658 = vrot.slane %v4656, 5
          %v4659 = vsel %vm4467, %v4654, %v4658
          %s4660 = scalar_lea.vmem [#allocation10], 64
          %v4661 = vld [vmem:[%s4660] sm:$0xf]
          %v4662 = vld [vmem:[%s4660 + $0x4] sm:$0xf]
          %v4663 = vld [vmem:[%s4660 + $0x8] sm:$0xf]
          %v4664 = vld [vmem:[%s4660 + $0xc] sm:$0xf]
          %v4665 = vld [vmem:[%s4660 + $0x10] sm:$0xf]
          %v4666 = vld [vmem:[%s4660 + $0x14] sm:$0xf]
          %v4667 = vld [vmem:[%s4660 + $0x18] sm:$0xf]
          %v4668 = vld [vmem:[%s4660 + $0x1c] sm:$0xf]
          %v4669 = vld [vmem:[%s4660 + $0x20] sm:$0xf]
          %v4670 = vld [vmem:[%s4660 + $0x24] sm:$0xf]
          %v4671 = vld [vmem:[%s4660 + $0x28] sm:$0xf]
          %v4672 = vld [vmem:[%s4660 + $0x2c] sm:$0xf]
          %v4673 = vld [vmem:[%s4660 + $0x30] sm:$0xf]
          %v4674 = vld [vmem:[%s4660 + $0x34] sm:$0xf]
          %v4675 = vld [vmem:[%s4660 + $0x38] sm:$0xf]
          %v4676 = vld [vmem:[%s4660 + $0x3c] sm:$0xf]
          %v4677 = vunpack.c.l.b16 %v4481
          %v4678 = vunpack.c.l.b16 %v4491
          %v4679 = vunpack.c.l.b16 %v4505
          %v4680 = vunpack.c.l.b16 %v4515
          %v4681 = vunpack.c.l.b16 %v4529
          %v4682 = vunpack.c.l.b16 %v4539
          %v4683 = vunpack.c.l.b16 %v4553
          %v4684 = vunpack.c.l.b16 %v4563
          %v4685 = vunpack.c.l.b16 %v4577
          %v4686 = vunpack.c.l.b16 %v4587
          %v4687 = vunpack.c.l.b16 %v4601
          %v4688 = vunpack.c.l.b16 %v4611
          %v4689 = vunpack.c.l.b16 %v4625
          %v4690 = vunpack.c.l.b16 %v4635
          %v4691 = vunpack.c.l.b16 %v4649
          %v4692 = vunpack.c.l.b16 %v4659
          %v4693 = vpack.c.b16 %v4678, %v4677
          %v4694 = vpack.c.b16 %v4680, %v4679
          %v4695 = vpack.c.b16 %v4682, %v4681
          %v4696 = vpack.c.b16 %v4684, %v4683
          %v4697 = vpack.c.b16 %v4686, %v4685
          %v4698 = vpack.c.b16 %v4688, %v4687
          %v4699 = vpack.c.b16 %v4690, %v4689
          %v4700 = vpack.c.b16 %v4692, %v4691
          %v4725 = vunpack.c.l.b16 %v4661
          %v4726 = vunpack.c.l.b16 %v4662
          %v4727 = vunpack.c.l.b16 %v4663
          %v4728 = vunpack.c.l.b16 %v4664
          %v4729 = vunpack.c.l.b16 %v4665
          %v4730 = vunpack.c.l.b16 %v4666
          %v4731 = vunpack.c.l.b16 %v4667
          %v4732 = vunpack.c.l.b16 %v4668
          %v4733 = vunpack.c.l.b16 %v4669
          %v4734 = vunpack.c.l.b16 %v4670
          %v4735 = vunpack.c.l.b16 %v4671
          %v4736 = vunpack.c.l.b16 %v4672
          %v4737 = vunpack.c.l.b16 %v4673
          %v4738 = vunpack.c.l.b16 %v4674
          %v4739 = vunpack.c.l.b16 %v4675
          %v4740 = vunpack.c.l.b16 %v4676
          %v4741 = vpack.c.b16 %v4726, %v4725
          %v4742 = vpack.c.b16 %v4728, %v4727
          %v4743 = vpack.c.b16 %v4730, %v4729
          %v4744 = vpack.c.b16 %v4732, %v4731
          %v4745 = vpack.c.b16 %v4734, %v4733
          %v4746 = vpack.c.b16 %v4736, %v4735
          %v4747 = vpack.c.b16 %v4738, %v4737
          %v4748 = vpack.c.b16 %v4740, %v4739
          %4757 = vmatprep.subr.bf16.mxu0 0
          %4758 = vmatpush1.bf16.msra.mxu0 %v4741
          %4759 = vmatprep.subr.bf16.mxu0 0
          %4760 = vmatpush1.bf16.msra.mxu0 %v4742
          %4761 = vmatprep.subr.bf16.mxu0 0
          %4762 = vmatpush1.bf16.msra.mxu0 %v4743
          %4763 = vmatprep.subr.bf16.mxu0 0
          %4764 = vmatpush1.bf16.msra.mxu0 %v4744
          %4765 = vmatprep.subr.bf16.mxu0 0
          %4766 = vmatpush1.bf16.msra.mxu0 %v4745
          %4767 = vmatprep.subr.bf16.mxu0 0
          %4768 = vmatpush1.bf16.msra.mxu0 %v4746
          %4769 = vmatprep.subr.bf16.mxu0 0
          %4770 = vmatpush1.bf16.msra.mxu0 %v4747
          %4771 = vmatprep.subr.bf16.mxu0 0
          %4772 = vmatpush1.bf16.msra.mxu0 %v4748
          %4773 = vmatprep.subr.bf16.mxu0 0
          %4774 = vmatpush1.bf16.msra.mxu0 0
          %4775 = vmatprep.subr.bf16.mxu0 0
          %4776 = vmatpush1.bf16.msra.mxu0 0
          %4777 = vmatprep.subr.bf16.mxu0 0
          %4778 = vmatpush1.bf16.msra.mxu0 0
          %4779 = vmatprep.subr.bf16.mxu0 0
          %4780 = vmatpush1.bf16.msra.mxu0 0
          %4781 = vmatprep.subr.bf16.mxu0 0
          %4782 = vmatpush1.bf16.msra.mxu0 0
          %4783 = vmatprep.subr.bf16.mxu0 0
          %4784 = vmatpush1.bf16.msra.mxu0 0
          %4785 = vmatprep.subr.bf16.mxu0 0
          %4786 = vmatpush1.bf16.msra.mxu0 0
          %4787 = vmatprep.subr.bf16.mxu0 0
          %4788 = vmatpush1.bf16.msra.mxu0 0
          %4789 = vmatprep.mubr.bf16.mxu0 0
          %4790 = vmatmul.mubr.bf16.gmra.mrb[0].mxu0 %v4693
          %v4791 = vpop.f32.mrb[0].mxu0
          %v4792 = vadd.f32 0.0, %v4791
          %v4793 = vpop.f32.mrb[0].mxu0
          %v4794 = vpop.f32.mrb[0].mxu0
          %v4795 = vadd.f32 0.0, %v4794
          %v4796 = vpop.f32.mrb[0].mxu0
          %4797 = vmatprep.mubr.bf16.mxu0 0
          %4798 = vmatmul.mubr.bf16.gmra.mrb[0].mxu0 %v4694
          %v4799 = vpop.f32.mrb[0].mxu0
          %v4800 = vadd.f32 0.0, %v4799
          %v4801 = vpop.f32.mrb[0].mxu0
          %v4802 = vpop.f32.mrb[0].mxu0
          %v4803 = vadd.f32 0.0, %v4802
          %v4804 = vpop.f32.mrb[0].mxu0
          %4805 = vmatprep.mubr.bf16.mxu0 0
          %4806 = vmatmul.mubr.bf16.gmra.mrb[0].mxu0 %v4695
          %v4807 = vpop.f32.mrb[0].mxu0
          %v4808 = vadd.f32 0.0, %v4807
          %v4809 = vpop.f32.mrb[0].mxu0
          %v4810 = vpop.f32.mrb[0].mxu0
          %v4811 = vadd.f32 0.0, %v4810
          %v4812 = vpop.f32.mrb[0].mxu0
          %4813 = vmatprep.mubr.bf16.mxu0 0
          %4814 = vmatmul.mubr.bf16.gmra.mrb[0].mxu0 %v4696
          %v4815 = vpop.f32.mrb[0].mxu0
          %v4816 = vadd.f32 0.0, %v4815
          %v4817 = vpop.f32.mrb[0].mxu0
          %v4818 = vpop.f32.mrb[0].mxu0
          %v4819 = vadd.f32 0.0, %v4818
          %v4820 = vpop.f32.mrb[0].mxu0
          %4821 = vmatprep.mubr.bf16.mxu0 0
          %4822 = vmatmul.mubr.bf16.gmra.mrb[0].mxu0 %v4697
          %v4823 = vpop.f32.mrb[0].mxu0
          %v4824 = vadd.f32 0.0, %v4823
          %v4825 = vpop.f32.mrb[0].mxu0
          %v4826 = vpop.f32.mrb[0].mxu0
          %v4827 = vadd.f32 0.0, %v4826
          %v4828 = vpop.f32.mrb[0].mxu0
          %4829 = vmatprep.mubr.bf16.mxu0 0
          %4830 = vmatmul.mubr.bf16.gmra.mrb[0].mxu0 %v4698
          %v4831 = vpop.f32.mrb[0].mxu0
          %v4832 = vadd.f32 0.0, %v4831
          %v4833 = vpop.f32.mrb[0].mxu0
          %v4834 = vpop.f32.mrb[0].mxu0
          %v4835 = vadd.f32 0.0, %v4834
          %v4836 = vpop.f32.mrb[0].mxu0
          %4837 = vmatprep.mubr.bf16.mxu0 0
          %4838 = vmatmul.mubr.bf16.gmra.mrb[0].mxu0 %v4699
          %v4839 = vpop.f32.mrb[0].mxu0
          %v4840 = vadd.f32 0.0, %v4839
          %v4841 = vpop.f32.mrb[0].mxu0
          %v4842 = vpop.f32.mrb[0].mxu0
          %v4843 = vadd.f32 0.0, %v4842
          %v4844 = vpop.f32.mrb[0].mxu0
          %4845 = vmatprep.mubr.bf16.mxu0 0
          %4846 = vmatmul.mubr.bf16.gmra.mrb[0].mxu0 %v4700
          %v4847 = vpop.f32.mrb[0].mxu0
          %v4848 = vadd.f32 0.0, %v4847
          %v4849 = vpop.f32.mrb[0].mxu0
          %v4850 = vpop.f32.mrb[0].mxu0
          %v4851 = vadd.f32 0.0, %v4850
          %v4852 = vpop.f32.mrb[0].mxu0
          %4853 = vdwg.mxu0
          %v4870 = vunpack.c.l.b16 %v4425
          %v4871 = vunpack.c.l.b16 %v4426
          %v4872 = vunpack.c.l.b16 %v4427
          %v4873 = vunpack.c.l.b16 %v4428
          %v4874 = vunpack.c.l.b16 %v4429
          %v4875 = vunpack.c.l.b16 %v4430
          %v4876 = vunpack.c.l.b16 %v4431
          %v4877 = vunpack.c.l.b16 %v4432
          %v4878 = vunpack.c.l.b16 %v4433
          %v4879 = vunpack.c.l.b16 %v4434
          %v4880 = vunpack.c.l.b16 %v4435
          %v4881 = vunpack.c.l.b16 %v4436
          %v4882 = vunpack.c.l.b16 %v4437
          %v4883 = vunpack.c.l.b16 %v4438
          %v4884 = vunpack.c.l.b16 %v4439
          %v4885 = vunpack.c.l.b16 %v4440
          %v4886 = vpack.c.b16 %v4871, %v4870
          %v4887 = vpack.c.b16 %v4873, %v4872
          %v4888 = vpack.c.b16 %v4875, %v4874
          %v4889 = vpack.c.b16 %v4877, %v4876
          %v4890 = vpack.c.b16 %v4879, %v4878
          %v4891 = vpack.c.b16 %v4881, %v4880
          %v4892 = vpack.c.b16 %v4883, %v4882
          %v4893 = vpack.c.b16 %v4885, %v4884
          %v4918 = vunpack.c.l.b16 %v4441
          %v4919 = vunpack.c.l.b16 %v4442
          %v4920 = vunpack.c.l.b16 %v4443
          %v4921 = vunpack.c.l.b16 %v4444
          %v4922 = vunpack.c.l.b16 %v4445
          %v4923 = vunpack.c.l.b16 %v4446
          %v4924 = vunpack.c.l.b16 %v4447
          %v4925 = vunpack.c.l.b16 %v4448
          %v4926 = vunpack.c.l.b16 %v4449
          %v4927 = vunpack.c.l.b16 %v4450
          %v4928 = vunpack.c.l.b16 %v4451
          %v4929 = vunpack.c.l.b16 %v4452
          %v4930 = vunpack.c.l.b16 %v4453
          %v4931 = vunpack.c.l.b16 %v4454
          %v4932 = vunpack.c.l.b16 %v4455
          %v4933 = vunpack.c.l.b16 %v4456
          %v4934 = vpack.c.b16 %v4919, %v4918
          %v4935 = vpack.c.b16 %v4921, %v4920
          %v4936 = vpack.c.b16 %v4923, %v4922
          %v4937 = vpack.c.b16 %v4925, %v4924
          %v4938 = vpack.c.b16 %v4927, %v4926
          %v4939 = vpack.c.b16 %v4929, %v4928
          %v4940 = vpack.c.b16 %v4931, %v4930
          %v4941 = vpack.c.b16 %v4933, %v4932
          %4950 = vmatprep.subr.bf16.mxu0 0
          %4951 = vmatpush1.bf16.msra.mxu0 %v4934
          %4952 = vmatprep.subr.bf16.mxu0 0
          %4953 = vmatpush1.bf16.msra.mxu0 %v4935
          %4954 = vmatprep.subr.bf16.mxu0 0
          %4955 = vmatpush1.bf16.msra.mxu0 %v4936
          %4956 = vmatprep.subr.bf16.mxu0 0
          %4957 = vmatpush1.bf16.msra.mxu0 %v4937
          %4958 = vmatprep.subr.bf16.mxu0 0
          %4959 = vmatpush1.bf16.msra.mxu0 %v4938
          %4960 = vmatprep.subr.bf16.mxu0 0
          %4961 = vmatpush1.bf16.msra.mxu0 %v4939
          %4962 = vmatprep.subr.bf16.mxu0 0
          %4963 = vmatpush1.bf16.msra.mxu0 %v4940
          %4964 = vmatprep.subr.bf16.mxu0 0
          %4965 = vmatpush1.bf16.msra.mxu0 %v4941
          %4966 = vmatprep.subr.bf16.mxu0 0
          %4967 = vmatpush1.bf16.msra.mxu0 0
          %4968 = vmatprep.subr.bf16.mxu0 0
          %4969 = vmatpush1.bf16.msra.mxu0 0
          %4970 = vmatprep.subr.bf16.mxu0 0
          %4971 = vmatpush1.bf16.msra.mxu0 0
          %4972 = vmatprep.subr.bf16.mxu0 0
          %4973 = vmatpush1.bf16.msra.mxu0 0
          %4974 = vmatprep.subr.bf16.mxu0 0
          %4975 = vmatpush1.bf16.msra.mxu0 0
          %4976 = vmatprep.subr.bf16.mxu0 0
          %4977 = vmatpush1.bf16.msra.mxu0 0
          %4978 = vmatprep.subr.bf16.mxu0 0
          %4979 = vmatpush1.bf16.msra.mxu0 0
          %4980 = vmatprep.subr.bf16.mxu0 0
          %4981 = vmatpush1.bf16.msra.mxu0 0
          %4982 = vmatprep.mubr.bf16.mxu0 0
          %4983 = vmatmul.mubr.bf16.gmra.mrb[0].mxu0 %v4886
          %v4984 = vpop.f32.mrb[0].mxu0
          %v4985 = vadd.f32 %v4792, %v4984
          %v4986 = vpop.f32.mrb[0].mxu0
          %v4987 = vpop.f32.mrb[0].mxu0
          %v4988 = vadd.f32 %v4795, %v4987
          %v4989 = vpop.f32.mrb[0].mxu0
          %4990 = vmatprep.mubr.bf16.mxu0 0
          %4991 = vmatmul.mubr.bf16.gmra.mrb[0].mxu0 %v4887
          %v4992 = vpop.f32.mrb[0].mxu0
          %v4993 = vadd.f32 %v4800, %v4992
          %v4994 = vpop.f32.mrb[0].mxu0
          %v4995 = vpop.f32.mrb[0].mxu0
          %v4996 = vadd.f32 %v4803, %v4995
          %v4997 = vpop.f32.mrb[0].mxu0
          %4998 = vmatprep.mubr.bf16.mxu0 0
          %4999 = vmatmul.mubr.bf16.gmra.mrb[0].mxu0 %v4888
          %v5000 = vpop.f32.mrb[0].mxu0
          %v5001 = vadd.f32 %v4808, %v5000
          %v5002 = vpop.f32.mrb[0].mxu0
          %v5003 = vpop.f32.mrb[0].mxu0
          %v5004 = vadd.f32 %v4811, %v5003
          %v5005 = vpop.f32.mrb[0].mxu0
          %5006 = vmatprep.mubr.bf16.mxu0 0
          %5007 = vmatmul.mubr.bf16.gmra.mrb[0].mxu0 %v4889
          %v5008 = vpop.f32.mrb[0].mxu0
          %v5009 = vadd.f32 %v4816, %v5008
          %v5010 = vpop.f32.mrb[0].mxu0
          %v5011 = vpop.f32.mrb[0].mxu0
          %v5012 = vadd.f32 %v4819, %v5011
          %v5013 = vpop.f32.mrb[0].mxu0
          %5014 = vmatprep.mubr.bf16.mxu0 0
          %5015 = vmatmul.mubr.bf16.gmra.mrb[0].mxu0 %v4890
          %v5016 = vpop.f32.mrb[0].mxu0
          %v5017 = vadd.f32 %v4824, %v5016
          %v5018 = vpop.f32.mrb[0].mxu0
          %v5019 = vpop.f32.mrb[0].mxu0
          %v5020 = vadd.f32 %v4827, %v5019
          %v5021 = vpop.f32.mrb[0].mxu0
          %5022 = vmatprep.mubr.bf16.mxu0 0
          %5023 = vmatmul.mubr.bf16.gmra.mrb[0].mxu0 %v4891
          %v5024 = vpop.f32.mrb[0].mxu0
          %v5025 = vadd.f32 %v4832, %v5024
          %v5026 = vpop.f32.mrb[0].mxu0
          %v5027 = vpop.f32.mrb[0].mxu0
          %v5028 = vadd.f32 %v4835, %v5027
          %v5029 = vpop.f32.mrb[0].mxu0
          %5030 = vmatprep.mubr.bf16.mxu0 0
          %5031 = vmatmul.mubr.bf16.gmra.mrb[0].mxu0 %v4892
          %v5032 = vpop.f32.mrb[0].mxu0
          %v5033 = vadd.f32 %v4840, %v5032
          %v5034 = vpop.f32.mrb[0].mxu0
          %v5035 = vpop.f32.mrb[0].mxu0
          %v5036 = vadd.f32 %v4843, %v5035
          %v5037 = vpop.f32.mrb[0].mxu0
          %5038 = vmatprep.mubr.bf16.mxu0 0
          %5039 = vmatmul.mubr.bf16.gmra.mrb[0].mxu0 %v4893
          %v5040 = vpop.f32.mrb[0].mxu0
          %v5041 = vadd.f32 %v4848, %v5040
          %v5042 = vpop.f32.mrb[0].mxu0
          %v5043 = vpop.f32.mrb[0].mxu0
          %v5044 = vadd.f32 %v4851, %v5043
          %v5045 = vpop.f32.mrb[0].mxu0
          %5046 = vdwg.mxu0
          %v5047 = vld [vmem:[%s4424] sm:$0xe]
          %v5048 = vld [vmem:[%s4424 + $0xc] sm:$0xe]
          %v5049 = vld [vmem:[%s4424 + $0x18] sm:$0xe]
          %v5050 = vld [vmem:[%s4424 + $0x24] sm:$0xe]
          %v5051 = vld [vmem:[%s4424 + $0x30] sm:$0xe]
          %v5052 = vld [vmem:[%s4424 + $0x3c] sm:$0xe]
          %v5053 = vld [vmem:[%s4424 + $0x48] sm:$0xe]
          %v5054 = vld [vmem:[%s4424 + $0x54] sm:$0xe]
          %vm5071 = vcmask 1042432
          %vm5072 = vcmask 1046532
          %vm5073 = vmor %vm5071, %vm5072
          %v5074 = vrot.slane %v5047, 5
          %v5075 = vrot.slane %v5074, 4
          %v5076 = vrot.slane %v4426, 5
          %v5077 = vsel %vm5073, %v5075, %v5076
          %v5078 = vrot.slane %v5076, 4
          %v5079 = vrot.slane %v4457, 5
          %v5080 = vsel %vm5073, %v5078, %v5079
          %v5081 = vrot.slane %v5048, 5
          %v5082 = vrot.slane %v5081, 4
          %v5083 = vrot.slane %v4428, 5
          %v5084 = vsel %vm5073, %v5082, %v5083
          %v5085 = vrot.slane %v5083, 4
          %v5086 = vrot.slane %v4458, 5
          %v5087 = vsel %vm5073, %v5085, %v5086
          %v5088 = vrot.slane %v5049, 5
          %v5089 = vrot.slane %v5088, 4
          %v5090 = vrot.slane %v4430, 5
          %v5091 = vsel %vm5073, %v5089, %v5090
          %v5092 = vrot.slane %v5090, 4
          %v5093 = vrot.slane %v4459, 5
          %v5094 = vsel %vm5073, %v5092, %v5093
          %v5095 = vrot.slane %v5050, 5
          %v5096 = vrot.slane %v5095, 4
          %v5097 = vrot.slane %v4432, 5
          %v5098 = vsel %vm5073, %v5096, %v5097
          %v5099 = vrot.slane %v5097, 4
          %v5100 = vrot.slane %v4460, 5
          %v5101 = vsel %vm5073, %v5099, %v5100
          %v5102 = vrot.slane %v5051, 5
          %v5103 = vrot.slane %v5102, 4
          %v5104 = vrot.slane %v4434, 5
          %v5105 = vsel %vm5073, %v5103, %v5104
          %v5106 = vrot.slane %v5104, 4
          %v5107 = vrot.slane %v4461, 5
          %v5108 = vsel %vm5073, %v5106, %v5107
          %v5109 = vrot.slane %v5052, 5
          %v5110 = vrot.slane %v5109, 4
          %v5111 = vrot.slane %v4436, 5
          %v5112 = vsel %vm5073, %v5110, %v5111
          %v5113 = vrot.slane %v5111, 4
          %v5114 = vrot.slane %v4462, 5
          %v5115 = vsel %vm5073, %v5113, %v5114
          %v5116 = vrot.slane %v5053, 5
          %v5117 = vrot.slane %v5116, 4
          %v5118 = vrot.slane %v4438, 5
          %v5119 = vsel %vm5073, %v5117, %v5118
          %v5120 = vrot.slane %v5118, 4
          %v5121 = vrot.slane %v4463, 5
          %v5122 = vsel %vm5073, %v5120, %v5121
          %v5123 = vrot.slane %v5054, 5
          %v5124 = vrot.slane %v5123, 4
          %v5125 = vrot.slane %v4440, 5
          %v5126 = vsel %vm5073, %v5124, %v5125
          %v5127 = vrot.slane %v5125, 4
          %v5128 = vrot.slane %v4464, 5
          %v5129 = vsel %vm5073, %v5127, %v5128
          %s5130 = scalar_lea.vmem [#allocation10], 128
          %v5131 = vld [vmem:[%s5130] sm:$0xf]
          %v5132 = vld [vmem:[%s5130 + $0x4] sm:$0xf]
          %v5133 = vld [vmem:[%s5130 + $0x8] sm:$0xf]
          %v5134 = vld [vmem:[%s5130 + $0xc] sm:$0xf]
          %v5135 = vld [vmem:[%s5130 + $0x10] sm:$0xf]
          %v5136 = vld [vmem:[%s5130 + $0x14] sm:$0xf]
          %v5137 = vld [vmem:[%s5130 + $0x18] sm:$0xf]
          %v5138 = vld [vmem:[%s5130 + $0x1c] sm:$0xf]
          %v5139 = vld [vmem:[%s5130 + $0x20] sm:$0xf]
          %v5140 = vld [vmem:[%s5130 + $0x24] sm:$0xf]
          %v5141 = vld [vmem:[%s5130 + $0x28] sm:$0xf]
          %v5142 = vld [vmem:[%s5130 + $0x2c] sm:$0xf]
          %v5143 = vld [vmem:[%s5130 + $0x30] sm:$0xf]
          %v5144 = vld [vmem:[%s5130 + $0x34] sm:$0xf]
          %v5145 = vld [vmem:[%s5130 + $0x38] sm:$0xf]
          %v5146 = vld [vmem:[%s5130 + $0x3c] sm:$0xf]
          %v5147 = vunpack.c.l.b16 %v5077
          %v5148 = vunpack.c.l.b16 %v5080
          %v5149 = vunpack.c.l.b16 %v5084
          %v5150 = vunpack.c.l.b16 %v5087
          %v5151 = vunpack.c.l.b16 %v5091
          %v5152 = vunpack.c.l.b16 %v5094
          %v5153 = vunpack.c.l.b16 %v5098
          %v5154 = vunpack.c.l.b16 %v5101
          %v5155 = vunpack.c.l.b16 %v5105
          %v5156 = vunpack.c.l.b16 %v5108
          %v5157 = vunpack.c.l.b16 %v5112
          %v5158 = vunpack.c.l.b16 %v5115
          %v5159 = vunpack.c.l.b16 %v5119
          %v5160 = vunpack.c.l.b16 %v5122
          %v5161 = vunpack.c.l.b16 %v5126
          %v5162 = vunpack.c.l.b16 %v5129
          %v5163 = vpack.c.b16 %v5148, %v5147
          %v5164 = vpack.c.b16 %v5150, %v5149
          %v5165 = vpack.c.b16 %v5152, %v5151
          %v5166 = vpack.c.b16 %v5154, %v5153
          %v5167 = vpack.c.b16 %v5156, %v5155
          %v5168 = vpack.c.b16 %v5158, %v5157
          %v5169 = vpack.c.b16 %v5160, %v5159
          %v5170 = vpack.c.b16 %v5162, %v5161
          %v5195 = vunpack.c.l.b16 %v5131
          %v5196 = vunpack.c.l.b16 %v5132
          %v5197 = vunpack.c.l.b16 %v5133
          %v5198 = vunpack.c.l.b16 %v5134
          %v5199 = vunpack.c.l.b16 %v5135
          %v5200 = vunpack.c.l.b16 %v5136
          %v5201 = vunpack.c.l.b16 %v5137
          %v5202 = vunpack.c.l.b16 %v5138
          %v5203 = vunpack.c.l.b16 %v5139
          %v5204 = vunpack.c.l.b16 %v5140
          %v5205 = vunpack.c.l.b16 %v5141
          %v5206 = vunpack.c.l.b16 %v5142
          %v5207 = vunpack.c.l.b16 %v5143
          %v5208 = vunpack.c.l.b16 %v5144
          %v5209 = vunpack.c.l.b16 %v5145
          %v5210 = vunpack.c.l.b16 %v5146
          %v5211 = vpack.c.b16 %v5196, %v5195
          %v5212 = vpack.c.b16 %v5198, %v5197
          %v5213 = vpack.c.b16 %v5200, %v5199
          %v5214 = vpack.c.b16 %v5202, %v5201
          %v5215 = vpack.c.b16 %v5204, %v5203
          %v5216 = vpack.c.b16 %v5206, %v5205
          %v5217 = vpack.c.b16 %v5208, %v5207
          %v5218 = vpack.c.b16 %v5210, %v5209
          %5227 = vmatprep.subr.bf16.mxu0 0
          %5228 = vmatpush1.bf16.msra.mxu0 %v5211
          %5229 = vmatprep.subr.bf16.mxu0 0
          %5230 = vmatpush1.bf16.msra.mxu0 %v5212
          %5231 = vmatprep.subr.bf16.mxu0 0
          %5232 = vmatpush1.bf16.msra.mxu0 %v5213
          %5233 = vmatprep.subr.bf16.mxu0 0
          %5234 = vmatpush1.bf16.msra.mxu0 %v5214
          %5235 = vmatprep.subr.bf16.mxu0 0
          %5236 = vmatpush1.bf16.msra.mxu0 %v5215
          %5237 = vmatprep.subr.bf16.mxu0 0
          %5238 = vmatpush1.bf16.msra.mxu0 %v5216
          %5239 = vmatprep.subr.bf16.mxu0 0
          %5240 = vmatpush1.bf16.msra.mxu0 %v5217
          %5241 = vmatprep.subr.bf16.mxu0 0
          %5242 = vmatpush1.bf16.msra.mxu0 %v5218
          %5243 = vmatprep.subr.bf16.mxu0 0
          %5244 = vmatpush1.bf16.msra.mxu0 0
          %5245 = vmatprep.subr.bf16.mxu0 0
          %5246 = vmatpush1.bf16.msra.mxu0 0
          %5247 = vmatprep.subr.bf16.mxu0 0
          %5248 = vmatpush1.bf16.msra.mxu0 0
          %5249 = vmatprep.subr.bf16.mxu0 0
          %5250 = vmatpush1.bf16.msra.mxu0 0
          %5251 = vmatprep.subr.bf16.mxu0 0
          %5252 = vmatpush1.bf16.msra.mxu0 0
          %5253 = vmatprep.subr.bf16.mxu0 0
          %5254 = vmatpush1.bf16.msra.mxu0 0
          %5255 = vmatprep.subr.bf16.mxu0 0
          %5256 = vmatpush1.bf16.msra.mxu0 0
          %5257 = vmatprep.subr.bf16.mxu0 0
          %5258 = vmatpush1.bf16.msra.mxu0 0
          %5259 = vmatprep.mubr.bf16.mxu0 0
          %5260 = vmatmul.mubr.bf16.gmra.mrb[0].mxu0 %v5163
          %v5261 = vpop.f32.mrb[0].mxu0
          %v5262 = vadd.f32 0.0, %v5261
          %v5263 = vpop.f32.mrb[0].mxu0
          %v5264 = vpop.f32.mrb[0].mxu0
          %v5265 = vadd.f32 0.0, %v5264
          %v5266 = vpop.f32.mrb[0].mxu0
          %5267 = vmatprep.mubr.bf16.mxu0 0
          %5268 = vmatmul.mubr.bf16.gmra.mrb[0].mxu0 %v5164
          %v5269 = vpop.f32.mrb[0].mxu0
          %v5270 = vadd.f32 0.0, %v5269
          %v5271 = vpop.f32.mrb[0].mxu0
          %v5272 = vpop.f32.mrb[0].mxu0
          %v5273 = vadd.f32 0.0, %v5272
          %v5274 = vpop.f32.mrb[0].mxu0
          %5275 = vmatprep.mubr.bf16.mxu0 0
          %5276 = vmatmul.mubr.bf16.gmra.mrb[0].mxu0 %v5165
          %v5277 = vpop.f32.mrb[0].mxu0
          %v5278 = vadd.f32 0.0, %v5277
          %v5279 = vpop.f32.mrb[0].mxu0
          %v5280 = vpop.f32.mrb[0].mxu0
          %v5281 = vadd.f32 0.0, %v5280
          %v5282 = vpop.f32.mrb[0].mxu0
          %5283 = vmatprep.mubr.bf16.mxu0 0
          %5284 = vmatmul.mubr.bf16.gmra.mrb[0].mxu0 %v5166
          %v5285 = vpop.f32.mrb[0].mxu0
          %v5286 = vadd.f32 0.0, %v5285
          %v5287 = vpop.f32.mrb[0].mxu0
          %v5288 = vpop.f32.mrb[0].mxu0
          %v5289 = vadd.f32 0.0, %v5288
          %v5290 = vpop.f32.mrb[0].mxu0
          %5291 = vmatprep.mubr.bf16.mxu0 0
          %5292 = vmatmul.mubr.bf16.gmra.mrb[0].mxu0 %v5167
          %v5293 = vpop.f32.mrb[0].mxu0
          %v5294 = vadd.f32 0.0, %v5293
          %v5295 = vpop.f32.mrb[0].mxu0
          %v5296 = vpop.f32.mrb[0].mxu0
          %v5297 = vadd.f32 0.0, %v5296
          %v5298 = vpop.f32.mrb[0].mxu0
          %5299 = vmatprep.mubr.bf16.mxu0 0
          %5300 = vmatmul.mubr.bf16.gmra.mrb[0].mxu0 %v5168
          %v5301 = vpop.f32.mrb[0].mxu0
          %v5302 = vadd.f32 0.0, %v5301
          %v5303 = vpop.f32.mrb[0].mxu0
          %v5304 = vpop.f32.mrb[0].mxu0
          %v5305 = vadd.f32 0.0, %v5304
          %v5306 = vpop.f32.mrb[0].mxu0
          %5307 = vmatprep.mubr.bf16.mxu0 0
          %5308 = vmatmul.mubr.bf16.gmra.mrb[0].mxu0 %v5169
          %v5309 = vpop.f32.mrb[0].mxu0
          %v5310 = vadd.f32 0.0, %v5309
          %v5311 = vpop.f32.mrb[0].mxu0
          %v5312 = vpop.f32.mrb[0].mxu0
          %v5313 = vadd.f32 0.0, %v5312
          %v5314 = vpop.f32.mrb[0].mxu0
          %5315 = vmatprep.mubr.bf16.mxu0 0
          %5316 = vmatmul.mubr.bf16.gmra.mrb[0].mxu0 %v5170
          %v5317 = vpop.f32.mrb[0].mxu0
          %v5318 = vadd.f32 0.0, %v5317
          %v5319 = vpop.f32.mrb[0].mxu0
          %v5320 = vpop.f32.mrb[0].mxu0
          %v5321 = vadd.f32 0.0, %v5320
          %v5322 = vpop.f32.mrb[0].mxu0
          %5323 = vdwg.mxu0
          %v5324 = vadd.f32 %v4985, %v5262
          %v5325 = vadd.f32 %v4988, %v5265
          %v5326 = vadd.f32 %v4993, %v5270
          %v5327 = vadd.f32 %v4996, %v5273
          %v5328 = vadd.f32 %v5001, %v5278
          %v5329 = vadd.f32 %v5004, %v5281
          %v5330 = vadd.f32 %v5009, %v5286
          %v5331 = vadd.f32 %v5012, %v5289
          %v5332 = vadd.f32 %v5017, %v5294
          %v5333 = vadd.f32 %v5020, %v5297
          %v5334 = vadd.f32 %v5025, %v5302
          %v5335 = vadd.f32 %v5028, %v5305
          %v5336 = vadd.f32 %v5033, %v5310
          %v5337 = vadd.f32 %v5036, %v5313
          %v5338 = vadd.f32 %v5041, %v5318
          %v5339 = vadd.f32 %v5044, %v5321
          %s5340 = sadd.s32 %s4421, 1
          %s5341 = smul.u32 %s5340, 3
          %s5342 = smul.addr %s5341, 4
          %s5343 = scalar_lea.vmem [#allocation3], %s5342
          %v5344 = vld [vmem:[%s5343] sm:$0xf]
          %v5345 = vld [vmem:[%s5343 + $0x4] sm:$0xf]
          %v5346 = vld [vmem:[%s5343 + $0xc] sm:$0xf]
          %v5347 = vld [vmem:[%s5343 + $0x10] sm:$0xf]
          %v5348 = vld [vmem:[%s5343 + $0x18] sm:$0xf]
          %v5349 = vld [vmem:[%s5343 + $0x1c] sm:$0xf]
          %v5350 = vld [vmem:[%s5343 + $0x24] sm:$0xf]
          %v5351 = vld [vmem:[%s5343 + $0x28] sm:$0xf]
          %v5352 = vld [vmem:[%s5343 + $0x30] sm:$0xf]
          %v5353 = vld [vmem:[%s5343 + $0x34] sm:$0xf]
          %v5354 = vld [vmem:[%s5343 + $0x3c] sm:$0xf]
          %v5355 = vld [vmem:[%s5343 + $0x40] sm:$0xf]
          %v5356 = vld [vmem:[%s5343 + $0x48] sm:$0xf]
          %v5357 = vld [vmem:[%s5343 + $0x4c] sm:$0xf]
          %v5358 = vld [vmem:[%s5343 + $0x54] sm:$0xf]
          %v5359 = vld [vmem:[%s5343 + $0x58] sm:$0xf]
          %s5360 = scalar_lea.vmem [#allocation10], 192
          %v5361 = vld [vmem:[%s5360] sm:$0xf]
          %v5362 = vld [vmem:[%s5360 + $0x4] sm:$0xf]
          %v5363 = vld [vmem:[%s5360 + $0x8] sm:$0xf]
          %v5364 = vld [vmem:[%s5360 + $0xc] sm:$0xf]
          %v5365 = vld [vmem:[%s5360 + $0x10] sm:$0xf]
          %v5366 = vld [vmem:[%s5360 + $0x14] sm:$0xf]
          %v5367 = vld [vmem:[%s5360 + $0x18] sm:$0xf]
          %v5368 = vld [vmem:[%s5360 + $0x1c] sm:$0xf]
          %v5369 = vld [vmem:[%s5360 + $0x20] sm:$0xf]
          %v5370 = vld [vmem:[%s5360 + $0x24] sm:$0xf]
          %v5371 = vld [vmem:[%s5360 + $0x28] sm:$0xf]
          %v5372 = vld [vmem:[%s5360 + $0x2c] sm:$0xf]
          %v5373 = vld [vmem:[%s5360 + $0x30] sm:$0xf]
          %v5374 = vld [vmem:[%s5360 + $0x34] sm:$0xf]
          %v5375 = vld [vmem:[%s5360 + $0x38] sm:$0xf]
          %v5376 = vld [vmem:[%s5360 + $0x3c] sm:$0xf]
          %v5393 = vunpack.c.l.b16 %v5344
          %v5394 = vunpack.c.l.b16 %v5345
          %v5395 = vunpack.c.l.b16 %v5346
          %v5396 = vunpack.c.l.b16 %v5347
          %v5397 = vunpack.c.l.b16 %v5348
          %v5398 = vunpack.c.l.b16 %v5349
          %v5399 = vunpack.c.l.b16 %v5350
          %v5400 = vunpack.c.l.b16 %v5351
          %v5401 = vunpack.c.l.b16 %v5352
          %v5402 = vunpack.c.l.b16 %v5353
          %v5403 = vunpack.c.l.b16 %v5354
          %v5404 = vunpack.c.l.b16 %v5355
          %v5405 = vunpack.c.l.b16 %v5356
          %v5406 = vunpack.c.l.b16 %v5357
          %v5407 = vunpack.c.l.b16 %v5358
          %v5408 = vunpack.c.l.b16 %v5359
          %v5409 = vpack.c.b16 %v5394, %v5393
          %v5410 = vpack.c.b16 %v5396, %v5395
          %v5411 = vpack.c.b16 %v5398, %v5397
          %v5412 = vpack.c.b16 %v5400, %v5399
          %v5413 = vpack.c.b16 %v5402, %v5401
          %v5414 = vpack.c.b16 %v5404, %v5403
          %v5415 = vpack.c.b16 %v5406, %v5405
          %v5416 = vpack.c.b16 %v5408, %v5407
          %v5441 = vunpack.c.l.b16 %v5361
          %v5442 = vunpack.c.l.b16 %v5362
          %v5443 = vunpack.c.l.b16 %v5363
          %v5444 = vunpack.c.l.b16 %v5364
          %v5445 = vunpack.c.l.b16 %v5365
          %v5446 = vunpack.c.l.b16 %v5366
          %v5447 = vunpack.c.l.b16 %v5367
          %v5448 = vunpack.c.l.b16 %v5368
          %v5449 = vunpack.c.l.b16 %v5369
          %v5450 = vunpack.c.l.b16 %v5370
          %v5451 = vunpack.c.l.b16 %v5371
          %v5452 = vunpack.c.l.b16 %v5372
          %v5453 = vunpack.c.l.b16 %v5373
          %v5454 = vunpack.c.l.b16 %v5374
          %v5455 = vunpack.c.l.b16 %v5375
          %v5456 = vunpack.c.l.b16 %v5376
          %v5457 = vpack.c.b16 %v5442, %v5441
          %v5458 = vpack.c.b16 %v5444, %v5443
          %v5459 = vpack.c.b16 %v5446, %v5445
          %v5460 = vpack.c.b16 %v5448, %v5447
          %v5461 = vpack.c.b16 %v5450, %v5449
          %v5462 = vpack.c.b16 %v5452, %v5451
          %v5463 = vpack.c.b16 %v5454, %v5453
          %v5464 = vpack.c.b16 %v5456, %v5455
          %5473 = vmatprep.subr.bf16.mxu0 0
          %5474 = vmatpush1.bf16.msra.mxu0 %v5457
          %5475 = vmatprep.subr.bf16.mxu0 0
          %5476 = vmatpush1.bf16.msra.mxu0 %v5458
          %5477 = vmatprep.subr.bf16.mxu0 0
          %5478 = vmatpush1.bf16.msra.mxu0 %v5459
          %5479 = vmatprep.subr.bf16.mxu0 0
          %5480 = vmatpush1.bf16.msra.mxu0 %v5460
          %5481 = vmatprep.subr.bf16.mxu0 0
          %5482 = vmatpush1.bf16.msra.mxu0 %v5461
          %5483 = vmatprep.subr.bf16.mxu0 0
          %5484 = vmatpush1.bf16.msra.mxu0 %v5462
          %5485 = vmatprep.subr.bf16.mxu0 0
          %5486 = vmatpush1.bf16.msra.mxu0 %v5463
          %5487 = vmatprep.subr.bf16.mxu0 0
          %5488 = vmatpush1.bf16.msra.mxu0 %v5464
          %5489 = vmatprep.subr.bf16.mxu0 0
          %5490 = vmatpush1.bf16.msra.mxu0 0
          %5491 = vmatprep.subr.bf16.mxu0 0
          %5492 = vmatpush1.bf16.msra.mxu0 0
          %5493 = vmatprep.subr.bf16.mxu0 0
          %5494 = vmatpush1.bf16.msra.mxu0 0
          %5495 = vmatprep.subr.bf16.mxu0 0
          %5496 = vmatpush1.bf16.msra.mxu0 0
          %5497 = vmatprep.subr.bf16.mxu0 0
          %5498 = vmatpush1.bf16.msra.mxu0 0
          %5499 = vmatprep.subr.bf16.mxu0 0
          %5500 = vmatpush1.bf16.msra.mxu0 0
          %5501 = vmatprep.subr.bf16.mxu0 0
          %5502 = vmatpush1.bf16.msra.mxu0 0
          %5503 = vmatprep.subr.bf16.mxu0 0
          %5504 = vmatpush1.bf16.msra.mxu0 0
          %5505 = vmatprep.mubr.bf16.mxu0 0
          %5506 = vmatmul.mubr.bf16.gmra.mrb[0].mxu0 %v5409
          %v5507 = vpop.f32.mrb[0].mxu0
          %v5508 = vadd.f32 0.0, %v5507
          %v5509 = vpop.f32.mrb[0].mxu0
          %v5510 = vpop.f32.mrb[0].mxu0
          %v5511 = vadd.f32 0.0, %v5510
          %v5512 = vpop.f32.mrb[0].mxu0
          %5513 = vmatprep.mubr.bf16.mxu0 0
          %5514 = vmatmul.mubr.bf16.gmra.mrb[0].mxu0 %v5410
          %v5515 = vpop.f32.mrb[0].mxu0
          %v5516 = vadd.f32 0.0, %v5515
          %v5517 = vpop.f32.mrb[0].mxu0
          %v5518 = vpop.f32.mrb[0].mxu0
          %v5519 = vadd.f32 0.0, %v5518
          %v5520 = vpop.f32.mrb[0].mxu0
          %5521 = vmatprep.mubr.bf16.mxu0 0
          %5522 = vmatmul.mubr.bf16.gmra.mrb[0].mxu0 %v5411
          %v5523 = vpop.f32.mrb[0].mxu0
          %v5524 = vadd.f32 0.0, %v5523
          %v5525 = vpop.f32.mrb[0].mxu0
          %v5526 = vpop.f32.mrb[0].mxu0
          %v5527 = vadd.f32 0.0, %v5526
          %v5528 = vpop.f32.mrb[0].mxu0
          %5529 = vmatprep.mubr.bf16.mxu0 0
          %5530 = vmatmul.mubr.bf16.gmra.mrb[0].mxu0 %v5412
          %v5531 = vpop.f32.mrb[0].mxu0
          %v5532 = vadd.f32 0.0, %v5531
          %v5533 = vpop.f32.mrb[0].mxu0
          %v5534 = vpop.f32.mrb[0].mxu0
          %v5535 = vadd.f32 0.0, %v5534
          %v5536 = vpop.f32.mrb[0].mxu0
          %5537 = vmatprep.mubr.bf16.mxu0 0
          %5538 = vmatmul.mubr.bf16.gmra.mrb[0].mxu0 %v5413
          %v5539 = vpop.f32.mrb[0].mxu0
          %v5540 = vadd.f32 0.0, %v5539
          %v5541 = vpop.f32.mrb[0].mxu0
          %v5542 = vpop.f32.mrb[0].mxu0
          %v5543 = vadd.f32 0.0, %v5542
          %v5544 = vpop.f32.mrb[0].mxu0
          %5545 = vmatprep.mubr.bf16.mxu0 0
          %5546 = vmatmul.mubr.bf16.gmra.mrb[0].mxu0 %v5414
          %v5547 = vpop.f32.mrb[0].mxu0
          %v5548 = vadd.f32 0.0, %v5547
          %v5549 = vpop.f32.mrb[0].mxu0
          %v5550 = vpop.f32.mrb[0].mxu0
          %v5551 = vadd.f32 0.0, %v5550
          %v5552 = vpop.f32.mrb[0].mxu0
          %5553 = vmatprep.mubr.bf16.mxu0 0
          %5554 = vmatmul.mubr.bf16.gmra.mrb[0].mxu0 %v5415
          %v5555 = vpop.f32.mrb[0].mxu0
          %v5556 = vadd.f32 0.0, %v5555
          %v5557 = vpop.f32.mrb[0].mxu0
          %v5558 = vpop.f32.mrb[0].mxu0
          %v5559 = vadd.f32 0.0, %v5558
          %v5560 = vpop.f32.mrb[0].mxu0
          %5561 = vmatprep.mubr.bf16.mxu0 0
          %5562 = vmatmul.mubr.bf16.gmra.mrb[0].mxu0 %v5416
          %v5563 = vpop.f32.mrb[0].mxu0
          %v5564 = vadd.f32 0.0, %v5563
          %v5565 = vpop.f32.mrb[0].mxu0
          %v5566 = vpop.f32.mrb[0].mxu0
          %v5567 = vadd.f32 0.0, %v5566
          %v5568 = vpop.f32.mrb[0].mxu0
          %5569 = vdwg.mxu0
          %v5570 = vadd.f32 %v5324, %v5508
          %v5571 = vadd.f32 %v5325, %v5511
          %v5572 = vadd.f32 %v5326, %v5516
          %v5573 = vadd.f32 %v5327, %v5519
          %v5574 = vadd.f32 %v5328, %v5524
          %v5575 = vadd.f32 %v5329, %v5527
          %v5576 = vadd.f32 %v5330, %v5532
          %v5577 = vadd.f32 %v5331, %v5535
          %v5578 = vadd.f32 %v5332, %v5540
          %v5579 = vadd.f32 %v5333, %v5543
          %v5580 = vadd.f32 %v5334, %v5548
          %v5581 = vadd.f32 %v5335, %v5551
          %v5582 = vadd.f32 %v5336, %v5556
          %v5583 = vadd.f32 %v5337, %v5559
          %v5584 = vadd.f32 %v5338, %v5564
          %v5585 = vadd.f32 %v5339, %v5567
          %v5586 = vld [vmem:[%s5343] sm:$0xf]
          %v5587 = vld [vmem:[%s5343 + $0x4] sm:$0xf]
          %v5588 = vld [vmem:[%s5343 + $0x8] sm:$0x1]
          %v5589 = vld [vmem:[%s5343 + $0xc] sm:$0xf]
          %v5590 = vld [vmem:[%s5343 + $0x10] sm:$0xf]
          %v5591 = vld [vmem:[%s5343 + $0x14] sm:$0x1]
          %v5592 = vld [vmem:[%s5343 + $0x18] sm:$0xf]
          %v5593 = vld [vmem:[%s5343 + $0x1c] sm:$0xf]
          %v5594 = vld [vmem:[%s5343 + $0x20] sm:$0x1]
          %v5595 = vld [vmem:[%s5343 + $0x24] sm:$0xf]
          %v5596 = vld [vmem:[%s5343 + $0x28] sm:$0xf]
          %v5597 = vld [vmem:[%s5343 + $0x2c] sm:$0x1]
          %v5598 = vld [vmem:[%s5343 + $0x30] sm:$0xf]
          %v5599 = vld [vmem:[%s5343 + $0x34] sm:$0xf]
          %v5600 = vld [vmem:[%s5343 + $0x38] sm:$0x1]
          %v5601 = vld [vmem:[%s5343 + $0x3c] sm:$0xf]
          %v5602 = vld [vmem:[%s5343 + $0x40] sm:$0xf]
          %v5603 = vld [vmem:[%s5343 + $0x44] sm:$0x1]
          %v5604 = vld [vmem:[%s5343 + $0x48] sm:$0xf]
          %v5605 = vld [vmem:[%s5343 + $0x4c] sm:$0xf]
          %v5606 = vld [vmem:[%s5343 + $0x50] sm:$0x1]
          %v5607 = vld [vmem:[%s5343 + $0x54] sm:$0xf]
          %v5608 = vld [vmem:[%s5343 + $0x58] sm:$0xf]
          %v5609 = vld [vmem:[%s5343 + $0x5c] sm:$0x1]
          %v5611 = vshrl.u32 %v5586, 16
          %v5613 = vrot.slane %v5611, 4
          %v5614 = vshll.u32 %v5586, 16
          %v5616 = vrot.slane %v5614, 5
          %v5617 = vor.u32 %v5613, %v5616
          %v5618 = vrot.slane %v5617, 4
          %v5620 = vshll.u32 %v5587, 16
          %v5622 = vrot.slane %v5620, 5
          %v5623 = vsel %vm4467, %v5618, %v5622
          %v5624 = vshrl.u32 %v5587, 16
          %v5626 = vrot.slane %v5624, 4
          %v5627 = vor.u32 %v5626, %v5622
          %v5628 = vrot.slane %v5627, 4
          %v5630 = vshll.u32 %v5588, 16
          %v5632 = vrot.slane %v5630, 5
          %v5633 = vsel %vm4467, %v5628, %v5632
          %v5635 = vshrl.u32 %v5589, 16
          %v5637 = vrot.slane %v5635, 4
          %v5638 = vshll.u32 %v5589, 16
          %v5640 = vrot.slane %v5638, 5
          %v5641 = vor.u32 %v5637, %v5640
          %v5642 = vrot.slane %v5641, 4
          %v5644 = vshll.u32 %v5590, 16
          %v5646 = vrot.slane %v5644, 5
          %v5647 = vsel %vm4467, %v5642, %v5646
          %v5648 = vshrl.u32 %v5590, 16
          %v5650 = vrot.slane %v5648, 4
          %v5651 = vor.u32 %v5650, %v5646
          %v5652 = vrot.slane %v5651, 4
          %v5654 = vshll.u32 %v5591, 16
          %v5656 = vrot.slane %v5654, 5
          %v5657 = vsel %vm4467, %v5652, %v5656
          %v5659 = vshrl.u32 %v5592, 16
          %v5661 = vrot.slane %v5659, 4
          %v5662 = vshll.u32 %v5592, 16
          %v5664 = vrot.slane %v5662, 5
          %v5665 = vor.u32 %v5661, %v5664
          %v5666 = vrot.slane %v5665, 4
          %v5668 = vshll.u32 %v5593, 16
          %v5670 = vrot.slane %v5668, 5
          %v5671 = vsel %vm4467, %v5666, %v5670
          %v5672 = vshrl.u32 %v5593, 16
          %v5674 = vrot.slane %v5672, 4
          %v5675 = vor.u32 %v5674, %v5670
          %v5676 = vrot.slane %v5675, 4
          %v5678 = vshll.u32 %v5594, 16
          %v5680 = vrot.slane %v5678, 5
          %v5681 = vsel %vm4467, %v5676, %v5680
          %v5683 = vshrl.u32 %v5595, 16
          %v5685 = vrot.slane %v5683, 4
          %v5686 = vshll.u32 %v5595, 16
          %v5688 = vrot.slane %v5686, 5
          %v5689 = vor.u32 %v5685, %v5688
          %v5690 = vrot.slane %v5689, 4
          %v5692 = vshll.u32 %v5596, 16
          %v5694 = vrot.slane %v5692, 5
          %v5695 = vsel %vm4467, %v5690, %v5694
          %v5696 = vshrl.u32 %v5596, 16
          %v5698 = vrot.slane %v5696, 4
          %v5699 = vor.u32 %v5698, %v5694
          %v5700 = vrot.slane %v5699, 4
          %v5702 = vshll.u32 %v5597, 16
          %v5704 = vrot.slane %v5702, 5
          %v5705 = vsel %vm4467, %v5700, %v5704
          %v5707 = vshrl.u32 %v5598, 16
          %v5709 = vrot.slane %v5707, 4
          %v5710 = vshll.u32 %v5598, 16
          %v5712 = vrot.slane %v5710, 5
          %v5713 = vor.u32 %v5709, %v5712
          %v5714 = vrot.slane %v5713, 4
          %v5716 = vshll.u32 %v5599, 16
          %v5718 = vrot.slane %v5716, 5
          %v5719 = vsel %vm4467, %v5714, %v5718
          %v5720 = vshrl.u32 %v5599, 16
          %v5722 = vrot.slane %v5720, 4
          %v5723 = vor.u32 %v5722, %v5718
          %v5724 = vrot.slane %v5723, 4
          %v5726 = vshll.u32 %v5600, 16
          %v5728 = vrot.slane %v5726, 5
          %v5729 = vsel %vm4467, %v5724, %v5728
          %v5731 = vshrl.u32 %v5601, 16
          %v5733 = vrot.slane %v5731, 4
          %v5734 = vshll.u32 %v5601, 16
          %v5736 = vrot.slane %v5734, 5
          %v5737 = vor.u32 %v5733, %v5736
          %v5738 = vrot.slane %v5737, 4
          %v5740 = vshll.u32 %v5602, 16
          %v5742 = vrot.slane %v5740, 5
          %v5743 = vsel %vm4467, %v5738, %v5742
          %v5744 = vshrl.u32 %v5602, 16
          %v5746 = vrot.slane %v5744, 4
          %v5747 = vor.u32 %v5746, %v5742
          %v5748 = vrot.slane %v5747, 4
          %v5750 = vshll.u32 %v5603, 16
          %v5752 = vrot.slane %v5750, 5
          %v5753 = vsel %vm4467, %v5748, %v5752
          %v5755 = vshrl.u32 %v5604, 16
          %v5757 = vrot.slane %v5755, 4
          %v5758 = vshll.u32 %v5604, 16
          %v5760 = vrot.slane %v5758, 5
          %v5761 = vor.u32 %v5757, %v5760
          %v5762 = vrot.slane %v5761, 4
          %v5764 = vshll.u32 %v5605, 16
          %v5766 = vrot.slane %v5764, 5
          %v5767 = vsel %vm4467, %v5762, %v5766
          %v5768 = vshrl.u32 %v5605, 16
          %v5770 = vrot.slane %v5768, 4
          %v5771 = vor.u32 %v5770, %v5766
          %v5772 = vrot.slane %v5771, 4
          %v5774 = vshll.u32 %v5606, 16
          %v5776 = vrot.slane %v5774, 5
          %v5777 = vsel %vm4467, %v5772, %v5776
          %v5779 = vshrl.u32 %v5607, 16
          %v5781 = vrot.slane %v5779, 4
          %v5782 = vshll.u32 %v5607, 16
          %v5784 = vrot.slane %v5782, 5
          %v5785 = vor.u32 %v5781, %v5784
          %v5786 = vrot.slane %v5785, 4
          %v5788 = vshll.u32 %v5608, 16
          %v5790 = vrot.slane %v5788, 5
          %v5791 = vsel %vm4467, %v5786, %v5790
          %v5792 = vshrl.u32 %v5608, 16
          %v5794 = vrot.slane %v5792, 4
          %v5795 = vor.u32 %v5794, %v5790
          %v5796 = vrot.slane %v5795, 4
          %v5798 = vshll.u32 %v5609, 16
          %v5800 = vrot.slane %v5798, 5
          %v5801 = vsel %vm4467, %v5796, %v5800
          %s5802 = scalar_lea.vmem [#allocation10], 256
          %v5803 = vld [vmem:[%s5802] sm:$0xf]
          %v5804 = vld [vmem:[%s5802 + $0x4] sm:$0xf]
          %v5805 = vld [vmem:[%s5802 + $0x8] sm:$0xf]
          %v5806 = vld [vmem:[%s5802 + $0xc] sm:$0xf]
          %v5807 = vld [vmem:[%s5802 + $0x10] sm:$0xf]
          %v5808 = vld [vmem:[%s5802 + $0x14] sm:$0xf]
          %v5809 = vld [vmem:[%s5802 + $0x18] sm:$0xf]
          %v5810 = vld [vmem:[%s5802 + $0x1c] sm:$0xf]
          %v5811 = vld [vmem:[%s5802 + $0x20] sm:$0xf]
          %v5812 = vld [vmem:[%s5802 + $0x24] sm:$0xf]
          %v5813 = vld [vmem:[%s5802 + $0x28] sm:$0xf]
          %v5814 = vld [vmem:[%s5802 + $0x2c] sm:$0xf]
          %v5815 = vld [vmem:[%s5802 + $0x30] sm:$0xf]
          %v5816 = vld [vmem:[%s5802 + $0x34] sm:$0xf]
          %v5817 = vld [vmem:[%s5802 + $0x38] sm:$0xf]
          %v5818 = vld [vmem:[%s5802 + $0x3c] sm:$0xf]
          %v5819 = vunpack.c.l.b16 %v5623
          %v5820 = vunpack.c.l.b16 %v5633
          %v5821 = vunpack.c.l.b16 %v5647
          %v5822 = vunpack.c.l.b16 %v5657
          %v5823 = vunpack.c.l.b16 %v5671
          %v5824 = vunpack.c.l.b16 %v5681
          %v5825 = vunpack.c.l.b16 %v5695
          %v5826 = vunpack.c.l.b16 %v5705
          %v5827 = vunpack.c.l.b16 %v5719
          %v5828 = vunpack.c.l.b16 %v5729
          %v5829 = vunpack.c.l.b16 %v5743
          %v5830 = vunpack.c.l.b16 %v5753
          %v5831 = vunpack.c.l.b16 %v5767
          %v5832 = vunpack.c.l.b16 %v5777
          %v5833 = vunpack.c.l.b16 %v5791
          %v5834 = vunpack.c.l.b16 %v5801
          %v5835 = vpack.c.b16 %v5820, %v5819
          %v5836 = vpack.c.b16 %v5822, %v5821
          %v5837 = vpack.c.b16 %v5824, %v5823
          %v5838 = vpack.c.b16 %v5826, %v5825
          %v5839 = vpack.c.b16 %v5828, %v5827
          %v5840 = vpack.c.b16 %v5830, %v5829
          %v5841 = vpack.c.b16 %v5832, %v5831
          %v5842 = vpack.c.b16 %v5834, %v5833
          %v5867 = vunpack.c.l.b16 %v5803
          %v5868 = vunpack.c.l.b16 %v5804
          %v5869 = vunpack.c.l.b16 %v5805
          %v5870 = vunpack.c.l.b16 %v5806
          %v5871 = vunpack.c.l.b16 %v5807
          %v5872 = vunpack.c.l.b16 %v5808
          %v5873 = vunpack.c.l.b16 %v5809
          %v5874 = vunpack.c.l.b16 %v5810
          %v5875 = vunpack.c.l.b16 %v5811
          %v5876 = vunpack.c.l.b16 %v5812
          %v5877 = vunpack.c.l.b16 %v5813
          %v5878 = vunpack.c.l.b16 %v5814
          %v5879 = vunpack.c.l.b16 %v5815
          %v5880 = vunpack.c.l.b16 %v5816
          %v5881 = vunpack.c.l.b16 %v5817
          %v5882 = vunpack.c.l.b16 %v5818
          %v5883 = vpack.c.b16 %v5868, %v5867
          %v5884 = vpack.c.b16 %v5870, %v5869
          %v5885 = vpack.c.b16 %v5872, %v5871
          %v5886 = vpack.c.b16 %v5874, %v5873
          %v5887 = vpack.c.b16 %v5876, %v5875
          %v5888 = vpack.c.b16 %v5878, %v5877
          %v5889 = vpack.c.b16 %v5880, %v5879
          %v5890 = vpack.c.b16 %v5882, %v5881
          %5899 = vmatprep.subr.bf16.mxu0 0
          %5900 = vmatpush1.bf16.msra.mxu0 %v5883
          %5901 = vmatprep.subr.bf16.mxu0 0
          %5902 = vmatpush1.bf16.msra.mxu0 %v5884
          %5903 = vmatprep.subr.bf16.mxu0 0
          %5904 = vmatpush1.bf16.msra.mxu0 %v5885
          %5905 = vmatprep.subr.bf16.mxu0 0
          %5906 = vmatpush1.bf16.msra.mxu0 %v5886
          %5907 = vmatprep.subr.bf16.mxu0 0
          %5908 = vmatpush1.bf16.msra.mxu0 %v5887
          %5909 = vmatprep.subr.bf16.mxu0 0
          %5910 = vmatpush1.bf16.msra.mxu0 %v5888
          %5911 = vmatprep.subr.bf16.mxu0 0
          %5912 = vmatpush1.bf16.msra.mxu0 %v5889
          %5913 = vmatprep.subr.bf16.mxu0 0
          %5914 = vmatpush1.bf16.msra.mxu0 %v5890
          %5915 = vmatprep.subr.bf16.mxu0 0
          %5916 = vmatpush1.bf16.msra.mxu0 0
          %5917 = vmatprep.subr.bf16.mxu0 0
          %5918 = vmatpush1.bf16.msra.mxu0 0
          %5919 = vmatprep.subr.bf16.mxu0 0
          %5920 = vmatpush1.bf16.msra.mxu0 0
          %5921 = vmatprep.subr.bf16.mxu0 0
          %5922 = vmatpush1.bf16.msra.mxu0 0
          %5923 = vmatprep.subr.bf16.mxu0 0
          %5924 = vmatpush1.bf16.msra.mxu0 0
          %5925 = vmatprep.subr.bf16.mxu0 0
          %5926 = vmatpush1.bf16.msra.mxu0 0
          %5927 = vmatprep.subr.bf16.mxu0 0
          %5928 = vmatpush1.bf16.msra.mxu0 0
          %5929 = vmatprep.subr.bf16.mxu0 0
          %5930 = vmatpush1.bf16.msra.mxu0 0
          %5931 = vmatprep.mubr.bf16.mxu0 0
          %5932 = vmatmul.mubr.bf16.gmra.mrb[0].mxu0 %v5835
          %v5933 = vpop.f32.mrb[0].mxu0
          %v5934 = vadd.f32 0.0, %v5933
          %v5935 = vpop.f32.mrb[0].mxu0
          %v5936 = vpop.f32.mrb[0].mxu0
          %v5937 = vadd.f32 0.0, %v5936
          %v5938 = vpop.f32.mrb[0].mxu0
          %5939 = vmatprep.mubr.bf16.mxu0 0
          %5940 = vmatmul.mubr.bf16.gmra.mrb[0].mxu0 %v5836
          %v5941 = vpop.f32.mrb[0].mxu0
          %v5942 = vadd.f32 0.0, %v5941
          %v5943 = vpop.f32.mrb[0].mxu0
          %v5944 = vpop.f32.mrb[0].mxu0
          %v5945 = vadd.f32 0.0, %v5944
          %v5946 = vpop.f32.mrb[0].mxu0
          %5947 = vmatprep.mubr.bf16.mxu0 0
          %5948 = vmatmul.mubr.bf16.gmra.mrb[0].mxu0 %v5837
          %v5949 = vpop.f32.mrb[0].mxu0
          %v5950 = vadd.f32 0.0, %v5949
          %v5951 = vpop.f32.mrb[0].mxu0
          %v5952 = vpop.f32.mrb[0].mxu0
          %v5953 = vadd.f32 0.0, %v5952
          %v5954 = vpop.f32.mrb[0].mxu0
          %5955 = vmatprep.mubr.bf16.mxu0 0
          %5956 = vmatmul.mubr.bf16.gmra.mrb[0].mxu0 %v5838
          %v5957 = vpop.f32.mrb[0].mxu0
          %v5958 = vadd.f32 0.0, %v5957
          %v5959 = vpop.f32.mrb[0].mxu0
          %v5960 = vpop.f32.mrb[0].mxu0
          %v5961 = vadd.f32 0.0, %v5960
          %v5962 = vpop.f32.mrb[0].mxu0
          %5963 = vmatprep.mubr.bf16.mxu0 0
          %5964 = vmatmul.mubr.bf16.gmra.mrb[0].mxu0 %v5839
          %v5965 = vpop.f32.mrb[0].mxu0
          %v5966 = vadd.f32 0.0, %v5965
          %v5967 = vpop.f32.mrb[0].mxu0
          %v5968 = vpop.f32.mrb[0].mxu0
          %v5969 = vadd.f32 0.0, %v5968
          %v5970 = vpop.f32.mrb[0].mxu0
          %5971 = vmatprep.mubr.bf16.mxu0 0
          %5972 = vmatmul.mubr.bf16.gmra.mrb[0].mxu0 %v5840
          %v5973 = vpop.f32.mrb[0].mxu0
          %v5974 = vadd.f32 0.0, %v5973
          %v5975 = vpop.f32.mrb[0].mxu0
          %v5976 = vpop.f32.mrb[0].mxu0
          %v5977 = vadd.f32 0.0, %v5976
          %v5978 = vpop.f32.mrb[0].mxu0
          %5979 = vmatprep.mubr.bf16.mxu0 0
          %5980 = vmatmul.mubr.bf16.gmra.mrb[0].mxu0 %v5841
          %v5981 = vpop.f32.mrb[0].mxu0
          %v5982 = vadd.f32 0.0, %v5981
          %v5983 = vpop.f32.mrb[0].mxu0
          %v5984 = vpop.f32.mrb[0].mxu0
          %v5985 = vadd.f32 0.0, %v5984
          %v5986 = vpop.f32.mrb[0].mxu0
          %5987 = vmatprep.mubr.bf16.mxu0 0
          %5988 = vmatmul.mubr.bf16.gmra.mrb[0].mxu0 %v5842
          %v5989 = vpop.f32.mrb[0].mxu0
          %v5990 = vadd.f32 0.0, %v5989
          %v5991 = vpop.f32.mrb[0].mxu0
          %v5992 = vpop.f32.mrb[0].mxu0
          %v5993 = vadd.f32 0.0, %v5992
          %v5994 = vpop.f32.mrb[0].mxu0
          %5995 = vdwg.mxu0
          %v5996 = vadd.f32 %v5570, %v5934
          %v5997 = vadd.f32 %v5571, %v5937
          %v5998 = vadd.f32 %v5572, %v5942
          %v5999 = vadd.f32 %v5573, %v5945
          %v6000 = vadd.f32 %v5574, %v5950
          %v6001 = vadd.f32 %v5575, %v5953
          %v6002 = vadd.f32 %v5576, %v5958
          %v6003 = vadd.f32 %v5577, %v5961
          %v6004 = vadd.f32 %v5578, %v5966
          %v6005 = vadd.f32 %v5579, %v5969
          %v6006 = vadd.f32 %v5580, %v5974
          %v6007 = vadd.f32 %v5581, %v5977
          %v6008 = vadd.f32 %v5582, %v5982
          %v6009 = vadd.f32 %v5583, %v5985
          %v6010 = vadd.f32 %v5584, %v5990
          %v6011 = vadd.f32 %v5585, %v5993
          %v6012 = vld [vmem:[%s5343] sm:$0xe]
          %v6013 = vld [vmem:[%s5343 + $0xc] sm:$0xe]
          %v6014 = vld [vmem:[%s5343 + $0x18] sm:$0xe]
          %v6015 = vld [vmem:[%s5343 + $0x24] sm:$0xe]
          %v6016 = vld [vmem:[%s5343 + $0x30] sm:$0xe]
          %v6017 = vld [vmem:[%s5343 + $0x3c] sm:$0xe]
          %v6018 = vld [vmem:[%s5343 + $0x48] sm:$0xe]
          %v6019 = vld [vmem:[%s5343 + $0x54] sm:$0xe]
          %v6044 = vrot.slane %v6012, 5
          %v6045 = vrot.slane %v6044, 4
          %v6046 = vrot.slane %v5587, 5
          %v6047 = vsel %vm5073, %v6045, %v6046
          %v6048 = vrot.slane %v6046, 4
          %v6049 = vrot.slane %v5588, 5
          %v6050 = vsel %vm5073, %v6048, %v6049
          %v6051 = vrot.slane %v6013, 5
          %v6052 = vrot.slane %v6051, 4
          %v6053 = vrot.slane %v5590, 5
          %v6054 = vsel %vm5073, %v6052, %v6053
          %v6055 = vrot.slane %v6053, 4
          %v6056 = vrot.slane %v5591, 5
          %v6057 = vsel %vm5073, %v6055, %v6056
          %v6058 = vrot.slane %v6014, 5
          %v6059 = vrot.slane %v6058, 4
          %v6060 = vrot.slane %v5593, 5
          %v6061 = vsel %vm5073, %v6059, %v6060
          %v6062 = vrot.slane %v6060, 4
          %v6063 = vrot.slane %v5594, 5
          %v6064 = vsel %vm5073, %v6062, %v6063
          %v6065 = vrot.slane %v6015, 5
          %v6066 = vrot.slane %v6065, 4
          %v6067 = vrot.slane %v5596, 5
          %v6068 = vsel %vm5073, %v6066, %v6067
          %v6069 = vrot.slane %v6067, 4
          %v6070 = vrot.slane %v5597, 5
          %v6071 = vsel %vm5073, %v6069, %v6070
          %v6072 = vrot.slane %v6016, 5
          %v6073 = vrot.slane %v6072, 4
          %v6074 = vrot.slane %v5599, 5
          %v6075 = vsel %vm5073, %v6073, %v6074
          %v6076 = vrot.slane %v6074, 4
          %v6077 = vrot.slane %v5600, 5
          %v6078 = vsel %vm5073, %v6076, %v6077
          %v6079 = vrot.slane %v6017, 5
          %v6080 = vrot.slane %v6079, 4
          %v6081 = vrot.slane %v5602, 5
          %v6082 = vsel %vm5073, %v6080, %v6081
          %v6083 = vrot.slane %v6081, 4
          %v6084 = vrot.slane %v5603, 5
          %v6085 = vsel %vm5073, %v6083, %v6084
          %v6086 = vrot.slane %v6018, 5
          %v6087 = vrot.slane %v6086, 4
          %v6088 = vrot.slane %v5605, 5
          %v6089 = vsel %vm5073, %v6087, %v6088
          %v6090 = vrot.slane %v6088, 4
          %v6091 = vrot.slane %v5606, 5
          %v6092 = vsel %vm5073, %v6090, %v6091
          %v6093 = vrot.slane %v6019, 5
          %v6094 = vrot.slane %v6093, 4
          %v6095 = vrot.slane %v5608, 5
          %v6096 = vsel %vm5073, %v6094, %v6095
          %v6097 = vrot.slane %v6095, 4
          %v6098 = vrot.slane %v5609, 5
          %v6099 = vsel %vm5073, %v6097, %v6098
          %s6100 = scalar_lea.vmem [#allocation10], 320
          %v6101 = vld [vmem:[%s6100] sm:$0xf]
          %v6102 = vld [vmem:[%s6100 + $0x4] sm:$0xf]
          %v6103 = vld [vmem:[%s6100 + $0x8] sm:$0xf]
          %v6104 = vld [vmem:[%s6100 + $0xc] sm:$0xf]
          %v6105 = vld [vmem:[%s6100 + $0x10] sm:$0xf]
          %v6106 = vld [vmem:[%s6100 + $0x14] sm:$0xf]
          %v6107 = vld [vmem:[%s6100 + $0x18] sm:$0xf]
          %v6108 = vld [vmem:[%s6100 + $0x1c] sm:$0xf]
          %v6109 = vld [vmem:[%s6100 + $0x20] sm:$0xf]
          %v6110 = vld [vmem:[%s6100 + $0x24] sm:$0xf]
          %v6111 = vld [vmem:[%s6100 + $0x28] sm:$0xf]
          %v6112 = vld [vmem:[%s6100 + $0x2c] sm:$0xf]
          %v6113 = vld [vmem:[%s6100 + $0x30] sm:$0xf]
          %v6114 = vld [vmem:[%s6100 + $0x34] sm:$0xf]
          %v6115 = vld [vmem:[%s6100 + $0x38] sm:$0xf]
          %v6116 = vld [vmem:[%s6100 + $0x3c] sm:$0xf]
          %v6117 = vunpack.c.l.b16 %v6047
          %v6118 = vunpack.c.l.b16 %v6050
          %v6119 = vunpack.c.l.b16 %v6054
          %v6120 = vunpack.c.l.b16 %v6057
          %v6121 = vunpack.c.l.b16 %v6061
          %v6122 = vunpack.c.l.b16 %v6064
          %v6123 = vunpack.c.l.b16 %v6068
          %v6124 = vunpack.c.l.b16 %v6071
          %v6125 = vunpack.c.l.b16 %v6075
          %v6126 = vunpack.c.l.b16 %v6078
          %v6127 = vunpack.c.l.b16 %v6082
          %v6128 = vunpack.c.l.b16 %v6085
          %v6129 = vunpack.c.l.b16 %v6089
          %v6130 = vunpack.c.l.b16 %v6092
          %v6131 = vunpack.c.l.b16 %v6096
          %v6132 = vunpack.c.l.b16 %v6099
          %v6133 = vpack.c.b16 %v6118, %v6117
          %v6134 = vpack.c.b16 %v6120, %v6119
          %v6135 = vpack.c.b16 %v6122, %v6121
          %v6136 = vpack.c.b16 %v6124, %v6123
          %v6137 = vpack.c.b16 %v6126, %v6125
          %v6138 = vpack.c.b16 %v6128, %v6127
          %v6139 = vpack.c.b16 %v6130, %v6129
          %v6140 = vpack.c.b16 %v6132, %v6131
          %v6165 = vunpack.c.l.b16 %v6101
          %v6166 = vunpack.c.l.b16 %v6102
          %v6167 = vunpack.c.l.b16 %v6103
          %v6168 = vunpack.c.l.b16 %v6104
          %v6169 = vunpack.c.l.b16 %v6105
          %v6170 = vunpack.c.l.b16 %v6106
          %v6171 = vunpack.c.l.b16 %v6107
          %v6172 = vunpack.c.l.b16 %v6108
          %v6173 = vunpack.c.l.b16 %v6109
          %v6174 = vunpack.c.l.b16 %v6110
          %v6175 = vunpack.c.l.b16 %v6111
          %v6176 = vunpack.c.l.b16 %v6112
          %v6177 = vunpack.c.l.b16 %v6113
          %v6178 = vunpack.c.l.b16 %v6114
          %v6179 = vunpack.c.l.b16 %v6115
          %v6180 = vunpack.c.l.b16 %v6116
          %v6181 = vpack.c.b16 %v6166, %v6165
          %v6182 = vpack.c.b16 %v6168, %v6167
          %v6183 = vpack.c.b16 %v6170, %v6169
          %v6184 = vpack.c.b16 %v6172, %v6171
          %v6185 = vpack.c.b16 %v6174, %v6173
          %v6186 = vpack.c.b16 %v6176, %v6175
          %v6187 = vpack.c.b16 %v6178, %v6177
          %v6188 = vpack.c.b16 %v6180, %v6179
          %6197 = vmatprep.subr.bf16.mxu0 0
          %6198 = vmatpush1.bf16.msra.mxu0 %v6181
          %6199 = vmatprep.subr.bf16.mxu0 0
          %6200 = vmatpush1.bf16.msra.mxu0 %v6182
          %6201 = vmatprep.subr.bf16.mxu0 0
          %6202 = vmatpush1.bf16.msra.mxu0 %v6183
          %6203 = vmatprep.subr.bf16.mxu0 0
          %6204 = vmatpush1.bf16.msra.mxu0 %v6184
          %6205 = vmatprep.subr.bf16.mxu0 0
          %6206 = vmatpush1.bf16.msra.mxu0 %v6185
          %6207 = vmatprep.subr.bf16.mxu0 0
          %6208 = vmatpush1.bf16.msra.mxu0 %v6186
          %6209 = vmatprep.subr.bf16.mxu0 0
          %6210 = vmatpush1.bf16.msra.mxu0 %v6187
          %6211 = vmatprep.subr.bf16.mxu0 0
          %6212 = vmatpush1.bf16.msra.mxu0 %v6188
          %6213 = vmatprep.subr.bf16.mxu0 0
          %6214 = vmatpush1.bf16.msra.mxu0 0
          %6215 = vmatprep.subr.bf16.mxu0 0
          %6216 = vmatpush1.bf16.msra.mxu0 0
          %6217 = vmatprep.subr.bf16.mxu0 0
          %6218 = vmatpush1.bf16.msra.mxu0 0
          %6219 = vmatprep.subr.bf16.mxu0 0
          %6220 = vmatpush1.bf16.msra.mxu0 0
          %6221 = vmatprep.subr.bf16.mxu0 0
          %6222 = vmatpush1.bf16.msra.mxu0 0
          %6223 = vmatprep.subr.bf16.mxu0 0
          %6224 = vmatpush1.bf16.msra.mxu0 0
          %6225 = vmatprep.subr.bf16.mxu0 0
          %6226 = vmatpush1.bf16.msra.mxu0 0
          %6227 = vmatprep.subr.bf16.mxu0 0
          %6228 = vmatpush1.bf16.msra.mxu0 0
          %6229 = vmatprep.mubr.bf16.mxu0 0
          %6230 = vmatmul.mubr.bf16.gmra.mrb[0].mxu0 %v6133
          %v6231 = vpop.f32.mrb[0].mxu0
          %v6232 = vadd.f32 0.0, %v6231
          %v6233 = vpop.f32.mrb[0].mxu0
          %v6234 = vpop.f32.mrb[0].mxu0
          %v6235 = vadd.f32 0.0, %v6234
          %v6236 = vpop.f32.mrb[0].mxu0
          %6237 = vmatprep.mubr.bf16.mxu0 0
          %6238 = vmatmul.mubr.bf16.gmra.mrb[0].mxu0 %v6134
          %v6239 = vpop.f32.mrb[0].mxu0
          %v6240 = vadd.f32 0.0, %v6239
          %v6241 = vpop.f32.mrb[0].mxu0
          %v6242 = vpop.f32.mrb[0].mxu0
          %v6243 = vadd.f32 0.0, %v6242
          %v6244 = vpop.f32.mrb[0].mxu0
          %6245 = vmatprep.mubr.bf16.mxu0 0
          %6246 = vmatmul.mubr.bf16.gmra.mrb[0].mxu0 %v6135
          %v6247 = vpop.f32.mrb[0].mxu0
          %v6248 = vadd.f32 0.0, %v6247
          %v6249 = vpop.f32.mrb[0].mxu0
          %v6250 = vpop.f32.mrb[0].mxu0
          %v6251 = vadd.f32 0.0, %v6250
          %v6252 = vpop.f32.mrb[0].mxu0
          %6253 = vmatprep.mubr.bf16.mxu0 0
          %6254 = vmatmul.mubr.bf16.gmra.mrb[0].mxu0 %v6136
          %v6255 = vpop.f32.mrb[0].mxu0
          %v6256 = vadd.f32 0.0, %v6255
          %v6257 = vpop.f32.mrb[0].mxu0
          %v6258 = vpop.f32.mrb[0].mxu0
          %v6259 = vadd.f32 0.0, %v6258
          %v6260 = vpop.f32.mrb[0].mxu0
          %6261 = vmatprep.mubr.bf16.mxu0 0
          %6262 = vmatmul.mubr.bf16.gmra.mrb[0].mxu0 %v6137
          %v6263 = vpop.f32.mrb[0].mxu0
          %v6264 = vadd.f32 0.0, %v6263
          %v6265 = vpop.f32.mrb[0].mxu0
          %v6266 = vpop.f32.mrb[0].mxu0
          %v6267 = vadd.f32 0.0, %v6266
          %v6268 = vpop.f32.mrb[0].mxu0
          %6269 = vmatprep.mubr.bf16.mxu0 0
          %6270 = vmatmul.mubr.bf16.gmra.mrb[0].mxu0 %v6138
          %v6271 = vpop.f32.mrb[0].mxu0
          %v6272 = vadd.f32 0.0, %v6271
          %v6273 = vpop.f32.mrb[0].mxu0
          %v6274 = vpop.f32.mrb[0].mxu0
          %v6275 = vadd.f32 0.0, %v6274
          %v6276 = vpop.f32.mrb[0].mxu0
          %6277 = vmatprep.mubr.bf16.mxu0 0
          %6278 = vmatmul.mubr.bf16.gmra.mrb[0].mxu0 %v6139
          %v6279 = vpop.f32.mrb[0].mxu0
          %v6280 = vadd.f32 0.0, %v6279
          %v6281 = vpop.f32.mrb[0].mxu0
          %v6282 = vpop.f32.mrb[0].mxu0
          %v6283 = vadd.f32 0.0, %v6282
          %v6284 = vpop.f32.mrb[0].mxu0
          %6285 = vmatprep.mubr.bf16.mxu0 0
          %6286 = vmatmul.mubr.bf16.gmra.mrb[0].mxu0 %v6140
          %v6287 = vpop.f32.mrb[0].mxu0
          %v6288 = vadd.f32 0.0, %v6287
          %v6289 = vpop.f32.mrb[0].mxu0
          %v6290 = vpop.f32.mrb[0].mxu0
          %v6291 = vadd.f32 0.0, %v6290
          %v6292 = vpop.f32.mrb[0].mxu0
          %6293 = vdwg.mxu0
          %v6294 = vadd.f32 %v5996, %v6232
          %v6295 = vadd.f32 %v5997, %v6235
          %v6296 = vadd.f32 %v5998, %v6240
          %v6297 = vadd.f32 %v5999, %v6243
          %v6298 = vadd.f32 %v6000, %v6248
          %v6299 = vadd.f32 %v6001, %v6251
          %v6300 = vadd.f32 %v6002, %v6256
          %v6301 = vadd.f32 %v6003, %v6259
          %v6302 = vadd.f32 %v6004, %v6264
          %v6303 = vadd.f32 %v6005, %v6267
          %v6304 = vadd.f32 %v6006, %v6272
          %v6305 = vadd.f32 %v6007, %v6275
          %v6306 = vadd.f32 %v6008, %v6280
          %v6307 = vadd.f32 %v6009, %v6283
          %v6308 = vadd.f32 %v6010, %v6288
          %v6309 = vadd.f32 %v6011, %v6291
          %s6310 = sadd.s32 %s4421, 2
          %s6311 = smul.u32 %s6310, 3
          %s6312 = smul.addr %s6311, 4
          %s6313 = scalar_lea.vmem [#allocation3], %s6312
          %v6314 = vld [vmem:[%s6313] sm:$0xf]
          %v6315 = vld [vmem:[%s6313 + $0x4] sm:$0xf]
          %v6316 = vld [vmem:[%s6313 + $0xc] sm:$0xf]
          %v6317 = vld [vmem:[%s6313 + $0x10] sm:$0xf]
          %v6318 = vld [vmem:[%s6313 + $0x18] sm:$0xf]
          %v6319 = vld [vmem:[%s6313 + $0x1c] sm:$0xf]
          %v6320 = vld [vmem:[%s6313 + $0x24] sm:$0xf]
          %v6321 = vld [vmem:[%s6313 + $0x28] sm:$0xf]
          %v6322 = vld [vmem:[%s6313 + $0x30] sm:$0xf]
          %v6323 = vld [vmem:[%s6313 + $0x34] sm:$0xf]
          %v6324 = vld [vmem:[%s6313 + $0x3c] sm:$0xf]
          %v6325 = vld [vmem:[%s6313 + $0x40] sm:$0xf]
          %v6326 = vld [vmem:[%s6313 + $0x48] sm:$0xf]
          %v6327 = vld [vmem:[%s6313 + $0x4c] sm:$0xf]
          %v6328 = vld [vmem:[%s6313 + $0x54] sm:$0xf]
          %v6329 = vld [vmem:[%s6313 + $0x58] sm:$0xf]
          %s6330 = scalar_lea.vmem [#allocation10], 384
          %v6331 = vld [vmem:[%s6330] sm:$0xf]
          %v6332 = vld [vmem:[%s6330 + $0x4] sm:$0xf]
          %v6333 = vld [vmem:[%s6330 + $0x8] sm:$0xf]
          %v6334 = vld [vmem:[%s6330 + $0xc] sm:$0xf]
          %v6335 = vld [vmem:[%s6330 + $0x10] sm:$0xf]
          %v6336 = vld [vmem:[%s6330 + $0x14] sm:$0xf]
          %v6337 = vld [vmem:[%s6330 + $0x18] sm:$0xf]
          %v6338 = vld [vmem:[%s6330 + $0x1c] sm:$0xf]
          %v6339 = vld [vmem:[%s6330 + $0x20] sm:$0xf]
          %v6340 = vld [vmem:[%s6330 + $0x24] sm:$0xf]
          %v6341 = vld [vmem:[%s6330 + $0x28] sm:$0xf]
          %v6342 = vld [vmem:[%s6330 + $0x2c] sm:$0xf]
          %v6343 = vld [vmem:[%s6330 + $0x30] sm:$0xf]
          %v6344 = vld [vmem:[%s6330 + $0x34] sm:$0xf]
          %v6345 = vld [vmem:[%s6330 + $0x38] sm:$0xf]
          %v6346 = vld [vmem:[%s6330 + $0x3c] sm:$0xf]
          %v6363 = vunpack.c.l.b16 %v6314
          %v6364 = vunpack.c.l.b16 %v6315
          %v6365 = vunpack.c.l.b16 %v6316
          %v6366 = vunpack.c.l.b16 %v6317
          %v6367 = vunpack.c.l.b16 %v6318
          %v6368 = vunpack.c.l.b16 %v6319
          %v6369 = vunpack.c.l.b16 %v6320
          %v6370 = vunpack.c.l.b16 %v6321
          %v6371 = vunpack.c.l.b16 %v6322
          %v6372 = vunpack.c.l.b16 %v6323
          %v6373 = vunpack.c.l.b16 %v6324
          %v6374 = vunpack.c.l.b16 %v6325
          %v6375 = vunpack.c.l.b16 %v6326
          %v6376 = vunpack.c.l.b16 %v6327
          %v6377 = vunpack.c.l.b16 %v6328
          %v6378 = vunpack.c.l.b16 %v6329
          %v6379 = vpack.c.b16 %v6364, %v6363
          %v6380 = vpack.c.b16 %v6366, %v6365
          %v6381 = vpack.c.b16 %v6368, %v6367
          %v6382 = vpack.c.b16 %v6370, %v6369
          %v6383 = vpack.c.b16 %v6372, %v6371
          %v6384 = vpack.c.b16 %v6374, %v6373
          %v6385 = vpack.c.b16 %v6376, %v6375
          %v6386 = vpack.c.b16 %v6378, %v6377
          %v6411 = vunpack.c.l.b16 %v6331
          %v6412 = vunpack.c.l.b16 %v6332
          %v6413 = vunpack.c.l.b16 %v6333
          %v6414 = vunpack.c.l.b16 %v6334
          %v6415 = vunpack.c.l.b16 %v6335
          %v6416 = vunpack.c.l.b16 %v6336
          %v6417 = vunpack.c.l.b16 %v6337
          %v6418 = vunpack.c.l.b16 %v6338
          %v6419 = vunpack.c.l.b16 %v6339
          %v6420 = vunpack.c.l.b16 %v6340
          %v6421 = vunpack.c.l.b16 %v6341
          %v6422 = vunpack.c.l.b16 %v6342
          %v6423 = vunpack.c.l.b16 %v6343
          %v6424 = vunpack.c.l.b16 %v6344
          %v6425 = vunpack.c.l.b16 %v6345
          %v6426 = vunpack.c.l.b16 %v6346
          %v6427 = vpack.c.b16 %v6412, %v6411
          %v6428 = vpack.c.b16 %v6414, %v6413
          %v6429 = vpack.c.b16 %v6416, %v6415
          %v6430 = vpack.c.b16 %v6418, %v6417
          %v6431 = vpack.c.b16 %v6420, %v6419
          %v6432 = vpack.c.b16 %v6422, %v6421
          %v6433 = vpack.c.b16 %v6424, %v6423
          %v6434 = vpack.c.b16 %v6426, %v6425
          %6443 = vmatprep.subr.bf16.mxu0 0
          %6444 = vmatpush1.bf16.msra.mxu0 %v6427
          %6445 = vmatprep.subr.bf16.mxu0 0
          %6446 = vmatpush1.bf16.msra.mxu0 %v6428
          %6447 = vmatprep.subr.bf16.mxu0 0
          %6448 = vmatpush1.bf16.msra.mxu0 %v6429
          %6449 = vmatprep.subr.bf16.mxu0 0
          %6450 = vmatpush1.bf16.msra.mxu0 %v6430
          %6451 = vmatprep.subr.bf16.mxu0 0
          %6452 = vmatpush1.bf16.msra.mxu0 %v6431
          %6453 = vmatprep.subr.bf16.mxu0 0
          %6454 = vmatpush1.bf16.msra.mxu0 %v6432
          %6455 = vmatprep.subr.bf16.mxu0 0
          %6456 = vmatpush1.bf16.msra.mxu0 %v6433
          %6457 = vmatprep.subr.bf16.mxu0 0
          %6458 = vmatpush1.bf16.msra.mxu0 %v6434
          %6459 = vmatprep.subr.bf16.mxu0 0
          %6460 = vmatpush1.bf16.msra.mxu0 0
          %6461 = vmatprep.subr.bf16.mxu0 0
          %6462 = vmatpush1.bf16.msra.mxu0 0
          %6463 = vmatprep.subr.bf16.mxu0 0
          %6464 = vmatpush1.bf16.msra.mxu0 0
          %6465 = vmatprep.subr.bf16.mxu0 0
          %6466 = vmatpush1.bf16.msra.mxu0 0
          %6467 = vmatprep.subr.bf16.mxu0 0
          %6468 = vmatpush1.bf16.msra.mxu0 0
          %6469 = vmatprep.subr.bf16.mxu0 0
          %6470 = vmatpush1.bf16.msra.mxu0 0
          %6471 = vmatprep.subr.bf16.mxu0 0
          %6472 = vmatpush1.bf16.msra.mxu0 0
          %6473 = vmatprep.subr.bf16.mxu0 0
          %6474 = vmatpush1.bf16.msra.mxu0 0
          %6475 = vmatprep.mubr.bf16.mxu0 0
          %6476 = vmatmul.mubr.bf16.gmra.mrb[0].mxu0 %v6379
          %v6477 = vpop.f32.mrb[0].mxu0
          %v6478 = vadd.f32 0.0, %v6477
          %v6479 = vpop.f32.mrb[0].mxu0
          %v6480 = vpop.f32.mrb[0].mxu0
          %v6481 = vadd.f32 0.0, %v6480
          %v6482 = vpop.f32.mrb[0].mxu0
          %6483 = vmatprep.mubr.bf16.mxu0 0
          %6484 = vmatmul.mubr.bf16.gmra.mrb[0].mxu0 %v6380
          %v6485 = vpop.f32.mrb[0].mxu0
          %v6486 = vadd.f32 0.0, %v6485
          %v6487 = vpop.f32.mrb[0].mxu0
          %v6488 = vpop.f32.mrb[0].mxu0
          %v6489 = vadd.f32 0.0, %v6488
          %v6490 = vpop.f32.mrb[0].mxu0
          %6491 = vmatprep.mubr.bf16.mxu0 0
          %6492 = vmatmul.mubr.bf16.gmra.mrb[0].mxu0 %v6381
          %v6493 = vpop.f32.mrb[0].mxu0
          %v6494 = vadd.f32 0.0, %v6493
          %v6495 = vpop.f32.mrb[0].mxu0
          %v6496 = vpop.f32.mrb[0].mxu0
          %v6497 = vadd.f32 0.0, %v6496
          %v6498 = vpop.f32.mrb[0].mxu0
          %6499 = vmatprep.mubr.bf16.mxu0 0
          %6500 = vmatmul.mubr.bf16.gmra.mrb[0].mxu0 %v6382
          %v6501 = vpop.f32.mrb[0].mxu0
          %v6502 = vadd.f32 0.0, %v6501
          %v6503 = vpop.f32.mrb[0].mxu0
          %v6504 = vpop.f32.mrb[0].mxu0
          %v6505 = vadd.f32 0.0, %v6504
          %v6506 = vpop.f32.mrb[0].mxu0
          %6507 = vmatprep.mubr.bf16.mxu0 0
          %6508 = vmatmul.mubr.bf16.gmra.mrb[0].mxu0 %v6383
          %v6509 = vpop.f32.mrb[0].mxu0
          %v6510 = vadd.f32 0.0, %v6509
          %v6511 = vpop.f32.mrb[0].mxu0
          %v6512 = vpop.f32.mrb[0].mxu0
          %v6513 = vadd.f32 0.0, %v6512
          %v6514 = vpop.f32.mrb[0].mxu0
          %6515 = vmatprep.mubr.bf16.mxu0 0
          %6516 = vmatmul.mubr.bf16.gmra.mrb[0].mxu0 %v6384
          %v6517 = vpop.f32.mrb[0].mxu0
          %v6518 = vadd.f32 0.0, %v6517
          %v6519 = vpop.f32.mrb[0].mxu0
          %v6520 = vpop.f32.mrb[0].mxu0
          %v6521 = vadd.f32 0.0, %v6520
          %v6522 = vpop.f32.mrb[0].mxu0
          %6523 = vmatprep.mubr.bf16.mxu0 0
          %6524 = vmatmul.mubr.bf16.gmra.mrb[0].mxu0 %v6385
          %v6525 = vpop.f32.mrb[0].mxu0
          %v6526 = vadd.f32 0.0, %v6525
          %v6527 = vpop.f32.mrb[0].mxu0
          %v6528 = vpop.f32.mrb[0].mxu0
          %v6529 = vadd.f32 0.0, %v6528
          %v6530 = vpop.f32.mrb[0].mxu0
          %6531 = vmatprep.mubr.bf16.mxu0 0
          %6532 = vmatmul.mubr.bf16.gmra.mrb[0].mxu0 %v6386
          %v6533 = vpop.f32.mrb[0].mxu0
          %v6534 = vadd.f32 0.0, %v6533
          %v6535 = vpop.f32.mrb[0].mxu0
          %v6536 = vpop.f32.mrb[0].mxu0
          %v6537 = vadd.f32 0.0, %v6536
          %v6538 = vpop.f32.mrb[0].mxu0
          %6539 = vdwg.mxu0
          %v6540 = vadd.f32 %v6294, %v6478
          %v6541 = vadd.f32 %v6295, %v6481
          %v6542 = vadd.f32 %v6296, %v6486
          %v6543 = vadd.f32 %v6297, %v6489
          %v6544 = vadd.f32 %v6298, %v6494
          %v6545 = vadd.f32 %v6299, %v6497
          %v6546 = vadd.f32 %v6300, %v6502
          %v6547 = vadd.f32 %v6301, %v6505
          %v6548 = vadd.f32 %v6302, %v6510
          %v6549 = vadd.f32 %v6303, %v6513
          %v6550 = vadd.f32 %v6304, %v6518
          %v6551 = vadd.f32 %v6305, %v6521
          %v6552 = vadd.f32 %v6306, %v6526
          %v6553 = vadd.f32 %v6307, %v6529
          %v6554 = vadd.f32 %v6308, %v6534
          %v6555 = vadd.f32 %v6309, %v6537
          %v6556 = vld [vmem:[%s6313] sm:$0xf]
          %v6557 = vld [vmem:[%s6313 + $0x4] sm:$0xf]
          %v6558 = vld [vmem:[%s6313 + $0x8] sm:$0x1]
          %v6559 = vld [vmem:[%s6313 + $0xc] sm:$0xf]
          %v6560 = vld [vmem:[%s6313 + $0x10] sm:$0xf]
          %v6561 = vld [vmem:[%s6313 + $0x14] sm:$0x1]
          %v6562 = vld [vmem:[%s6313 + $0x18] sm:$0xf]
          %v6563 = vld [vmem:[%s6313 + $0x1c] sm:$0xf]
          %v6564 = vld [vmem:[%s6313 + $0x20] sm:$0x1]
          %v6565 = vld [vmem:[%s6313 + $0x24] sm:$0xf]
          %v6566 = vld [vmem:[%s6313 + $0x28] sm:$0xf]
          %v6567 = vld [vmem:[%s6313 + $0x2c] sm:$0x1]
          %v6568 = vld [vmem:[%s6313 + $0x30] sm:$0xf]
          %v6569 = vld [vmem:[%s6313 + $0x34] sm:$0xf]
          %v6570 = vld [vmem:[%s6313 + $0x38] sm:$0x1]
          %v6571 = vld [vmem:[%s6313 + $0x3c] sm:$0xf]
          %v6572 = vld [vmem:[%s6313 + $0x40] sm:$0xf]
          %v6573 = vld [vmem:[%s6313 + $0x44] sm:$0x1]
          %v6574 = vld [vmem:[%s6313 + $0x48] sm:$0xf]
          %v6575 = vld [vmem:[%s6313 + $0x4c] sm:$0xf]
          %v6576 = vld [vmem:[%s6313 + $0x50] sm:$0x1]
          %v6577 = vld [vmem:[%s6313 + $0x54] sm:$0xf]
          %v6578 = vld [vmem:[%s6313 + $0x58] sm:$0xf]
          %v6579 = vld [vmem:[%s6313 + $0x5c] sm:$0x1]
          %v6581 = vshrl.u32 %v6556, 16
          %v6583 = vrot.slane %v6581, 4
          %v6584 = vshll.u32 %v6556, 16
          %v6586 = vrot.slane %v6584, 5
          %v6587 = vor.u32 %v6583, %v6586
          %v6588 = vrot.slane %v6587, 4
          %v6590 = vshll.u32 %v6557, 16
          %v6592 = vrot.slane %v6590, 5
          %v6593 = vsel %vm4467, %v6588, %v6592
          %v6594 = vshrl.u32 %v6557, 16
          %v6596 = vrot.slane %v6594, 4
          %v6597 = vor.u32 %v6596, %v6592
          %v6598 = vrot.slane %v6597, 4
          %v6600 = vshll.u32 %v6558, 16
          %v6602 = vrot.slane %v6600, 5
          %v6603 = vsel %vm4467, %v6598, %v6602
          %v6605 = vshrl.u32 %v6559, 16
          %v6607 = vrot.slane %v6605, 4
          %v6608 = vshll.u32 %v6559, 16
          %v6610 = vrot.slane %v6608, 5
          %v6611 = vor.u32 %v6607, %v6610
          %v6612 = vrot.slane %v6611, 4
          %v6614 = vshll.u32 %v6560, 16
          %v6616 = vrot.slane %v6614, 5
          %v6617 = vsel %vm4467, %v6612, %v6616
          %v6618 = vshrl.u32 %v6560, 16
          %v6620 = vrot.slane %v6618, 4
          %v6621 = vor.u32 %v6620, %v6616
          %v6622 = vrot.slane %v6621, 4
          %v6624 = vshll.u32 %v6561, 16
          %v6626 = vrot.slane %v6624, 5
          %v6627 = vsel %vm4467, %v6622, %v6626
          %v6629 = vshrl.u32 %v6562, 16
          %v6631 = vrot.slane %v6629, 4
          %v6632 = vshll.u32 %v6562, 16
          %v6634 = vrot.slane %v6632, 5
          %v6635 = vor.u32 %v6631, %v6634
          %v6636 = vrot.slane %v6635, 4
          %v6638 = vshll.u32 %v6563, 16
          %v6640 = vrot.slane %v6638, 5
          %v6641 = vsel %vm4467, %v6636, %v6640
          %v6642 = vshrl.u32 %v6563, 16
          %v6644 = vrot.slane %v6642, 4
          %v6645 = vor.u32 %v6644, %v6640
          %v6646 = vrot.slane %v6645, 4
          %v6648 = vshll.u32 %v6564, 16
          %v6650 = vrot.slane %v6648, 5
          %v6651 = vsel %vm4467, %v6646, %v6650
          %v6653 = vshrl.u32 %v6565, 16
          %v6655 = vrot.slane %v6653, 4
          %v6656 = vshll.u32 %v6565, 16
          %v6658 = vrot.slane %v6656, 5
          %v6659 = vor.u32 %v6655, %v6658
          %v6660 = vrot.slane %v6659, 4
          %v6662 = vshll.u32 %v6566, 16
          %v6664 = vrot.slane %v6662, 5
          %v6665 = vsel %vm4467, %v6660, %v6664
          %v6666 = vshrl.u32 %v6566, 16
          %v6668 = vrot.slane %v6666, 4
          %v6669 = vor.u32 %v6668, %v6664
          %v6670 = vrot.slane %v6669, 4
          %v6672 = vshll.u32 %v6567, 16
          %v6674 = vrot.slane %v6672, 5
          %v6675 = vsel %vm4467, %v6670, %v6674
          %v6677 = vshrl.u32 %v6568, 16
          %v6679 = vrot.slane %v6677, 4
          %v6680 = vshll.u32 %v6568, 16
          %v6682 = vrot.slane %v6680, 5
          %v6683 = vor.u32 %v6679, %v6682
          %v6684 = vrot.slane %v6683, 4
          %v6686 = vshll.u32 %v6569, 16
          %v6688 = vrot.slane %v6686, 5
          %v6689 = vsel %vm4467, %v6684, %v6688
          %v6690 = vshrl.u32 %v6569, 16
          %v6692 = vrot.slane %v6690, 4
          %v6693 = vor.u32 %v6692, %v6688
          %v6694 = vrot.slane %v6693, 4
          %v6696 = vshll.u32 %v6570, 16
          %v6698 = vrot.slane %v6696, 5
          %v6699 = vsel %vm4467, %v6694, %v6698
          %v6701 = vshrl.u32 %v6571, 16
          %v6703 = vrot.slane %v6701, 4
          %v6704 = vshll.u32 %v6571, 16
          %v6706 = vrot.slane %v6704, 5
          %v6707 = vor.u32 %v6703, %v6706
          %v6708 = vrot.slane %v6707, 4
          %v6710 = vshll.u32 %v6572, 16
          %v6712 = vrot.slane %v6710, 5
          %v6713 = vsel %vm4467, %v6708, %v6712
          %v6714 = vshrl.u32 %v6572, 16
          %v6716 = vrot.slane %v6714, 4
          %v6717 = vor.u32 %v6716, %v6712
          %v6718 = vrot.slane %v6717, 4
          %v6720 = vshll.u32 %v6573, 16
          %v6722 = vrot.slane %v6720, 5
          %v6723 = vsel %vm4467, %v6718, %v6722
          %v6725 = vshrl.u32 %v6574, 16
          %v6727 = vrot.slane %v6725, 4
          %v6728 = vshll.u32 %v6574, 16
          %v6730 = vrot.slane %v6728, 5
          %v6731 = vor.u32 %v6727, %v6730
          %v6732 = vrot.slane %v6731, 4
          %v6734 = vshll.u32 %v6575, 16
          %v6736 = vrot.slane %v6734, 5
          %v6737 = vsel %vm4467, %v6732, %v6736
          %v6738 = vshrl.u32 %v6575, 16
          %v6740 = vrot.slane %v6738, 4
          %v6741 = vor.u32 %v6740, %v6736
          %v6742 = vrot.slane %v6741, 4
          %v6744 = vshll.u32 %v6576, 16
          %v6746 = vrot.slane %v6744, 5
          %v6747 = vsel %vm4467, %v6742, %v6746
          %v6749 = vshrl.u32 %v6577, 16
          %v6751 = vrot.slane %v6749, 4
          %v6752 = vshll.u32 %v6577, 16
          %v6754 = vrot.slane %v6752, 5
          %v6755 = vor.u32 %v6751, %v6754
          %v6756 = vrot.slane %v6755, 4
          %v6758 = vshll.u32 %v6578, 16
          %v6760 = vrot.slane %v6758, 5
          %v6761 = vsel %vm4467, %v6756, %v6760
          %v6762 = vshrl.u32 %v6578, 16
          %v6764 = vrot.slane %v6762, 4
          %v6765 = vor.u32 %v6764, %v6760
          %v6766 = vrot.slane %v6765, 4
          %v6768 = vshll.u32 %v6579, 16
          %v6770 = vrot.slane %v6768, 5
          %v6771 = vsel %vm4467, %v6766, %v6770
          %s6772 = scalar_lea.vmem [#allocation10], 448
          %v6773 = vld [vmem:[%s6772] sm:$0xf]
          %v6774 = vld [vmem:[%s6772 + $0x4] sm:$0xf]
          %v6775 = vld [vmem:[%s6772 + $0x8] sm:$0xf]
          %v6776 = vld [vmem:[%s6772 + $0xc] sm:$0xf]
          %v6777 = vld [vmem:[%s6772 + $0x10] sm:$0xf]
          %v6778 = vld [vmem:[%s6772 + $0x14] sm:$0xf]
          %v6779 = vld [vmem:[%s6772 + $0x18] sm:$0xf]
          %v6780 = vld [vmem:[%s6772 + $0x1c] sm:$0xf]
          %v6781 = vld [vmem:[%s6772 + $0x20] sm:$0xf]
          %v6782 = vld [vmem:[%s6772 + $0x24] sm:$0xf]
          %v6783 = vld [vmem:[%s6772 + $0x28] sm:$0xf]
          %v6784 = vld [vmem:[%s6772 + $0x2c] sm:$0xf]
          %v6785 = vld [vmem:[%s6772 + $0x30] sm:$0xf]
          %v6786 = vld [vmem:[%s6772 + $0x34] sm:$0xf]
          %v6787 = vld [vmem:[%s6772 + $0x38] sm:$0xf]
          %v6788 = vld [vmem:[%s6772 + $0x3c] sm:$0xf]
          %v6789 = vunpack.c.l.b16 %v6593
          %v6790 = vunpack.c.l.b16 %v6603
          %v6791 = vunpack.c.l.b16 %v6617
          %v6792 = vunpack.c.l.b16 %v6627
          %v6793 = vunpack.c.l.b16 %v6641
          %v6794 = vunpack.c.l.b16 %v6651
          %v6795 = vunpack.c.l.b16 %v6665
          %v6796 = vunpack.c.l.b16 %v6675
          %v6797 = vunpack.c.l.b16 %v6689
          %v6798 = vunpack.c.l.b16 %v6699
          %v6799 = vunpack.c.l.b16 %v6713
          %v6800 = vunpack.c.l.b16 %v6723
          %v6801 = vunpack.c.l.b16 %v6737
          %v6802 = vunpack.c.l.b16 %v6747
          %v6803 = vunpack.c.l.b16 %v6761
          %v6804 = vunpack.c.l.b16 %v6771
          %v6805 = vpack.c.b16 %v6790, %v6789
          %v6806 = vpack.c.b16 %v6792, %v6791
          %v6807 = vpack.c.b16 %v6794, %v6793
          %v6808 = vpack.c.b16 %v6796, %v6795
          %v6809 = vpack.c.b16 %v6798, %v6797
          %v6810 = vpack.c.b16 %v6800, %v6799
          %v6811 = vpack.c.b16 %v6802, %v6801
          %v6812 = vpack.c.b16 %v6804, %v6803
          %v6837 = vunpack.c.l.b16 %v6773
          %v6838 = vunpack.c.l.b16 %v6774
          %v6839 = vunpack.c.l.b16 %v6775
          %v6840 = vunpack.c.l.b16 %v6776
          %v6841 = vunpack.c.l.b16 %v6777
          %v6842 = vunpack.c.l.b16 %v6778
          %v6843 = vunpack.c.l.b16 %v6779
          %v6844 = vunpack.c.l.b16 %v6780
          %v6845 = vunpack.c.l.b16 %v6781
          %v6846 = vunpack.c.l.b16 %v6782
          %v6847 = vunpack.c.l.b16 %v6783
          %v6848 = vunpack.c.l.b16 %v6784
          %v6849 = vunpack.c.l.b16 %v6785
          %v6850 = vunpack.c.l.b16 %v6786
          %v6851 = vunpack.c.l.b16 %v6787
          %v6852 = vunpack.c.l.b16 %v6788
          %v6853 = vpack.c.b16 %v6838, %v6837
          %v6854 = vpack.c.b16 %v6840, %v6839
          %v6855 = vpack.c.b16 %v6842, %v6841
          %v6856 = vpack.c.b16 %v6844, %v6843
          %v6857 = vpack.c.b16 %v6846, %v6845
          %v6858 = vpack.c.b16 %v6848, %v6847
          %v6859 = vpack.c.b16 %v6850, %v6849
          %v6860 = vpack.c.b16 %v6852, %v6851
          %6869 = vmatprep.subr.bf16.mxu0 0
          %6870 = vmatpush1.bf16.msra.mxu0 %v6853
          %6871 = vmatprep.subr.bf16.mxu0 0
          %6872 = vmatpush1.bf16.msra.mxu0 %v6854
          %6873 = vmatprep.subr.bf16.mxu0 0
          %6874 = vmatpush1.bf16.msra.mxu0 %v6855
          %6875 = vmatprep.subr.bf16.mxu0 0
          %6876 = vmatpush1.bf16.msra.mxu0 %v6856
          %6877 = vmatprep.subr.bf16.mxu0 0
          %6878 = vmatpush1.bf16.msra.mxu0 %v6857
          %6879 = vmatprep.subr.bf16.mxu0 0
          %6880 = vmatpush1.bf16.msra.mxu0 %v6858
          %6881 = vmatprep.subr.bf16.mxu0 0
          %6882 = vmatpush1.bf16.msra.mxu0 %v6859
          %6883 = vmatprep.subr.bf16.mxu0 0
          %6884 = vmatpush1.bf16.msra.mxu0 %v6860
          %6885 = vmatprep.subr.bf16.mxu0 0
          %6886 = vmatpush1.bf16.msra.mxu0 0
          %6887 = vmatprep.subr.bf16.mxu0 0
          %6888 = vmatpush1.bf16.msra.mxu0 0
          %6889 = vmatprep.subr.bf16.mxu0 0
          %6890 = vmatpush1.bf16.msra.mxu0 0
          %6891 = vmatprep.subr.bf16.mxu0 0
          %6892 = vmatpush1.bf16.msra.mxu0 0
          %6893 = vmatprep.subr.bf16.mxu0 0
          %6894 = vmatpush1.bf16.msra.mxu0 0
          %6895 = vmatprep.subr.bf16.mxu0 0
          %6896 = vmatpush1.bf16.msra.mxu0 0
          %6897 = vmatprep.subr.bf16.mxu0 0
          %6898 = vmatpush1.bf16.msra.mxu0 0
          %6899 = vmatprep.subr.bf16.mxu0 0
          %6900 = vmatpush1.bf16.msra.mxu0 0
          %6901 = vmatprep.mubr.bf16.mxu0 0
          %6902 = vmatmul.mubr.bf16.gmra.mrb[0].mxu0 %v6805
          %v6903 = vpop.f32.mrb[0].mxu0
          %v6904 = vadd.f32 0.0, %v6903
          %v6905 = vpop.f32.mrb[0].mxu0
          %v6906 = vpop.f32.mrb[0].mxu0
          %v6907 = vadd.f32 0.0, %v6906
          %v6908 = vpop.f32.mrb[0].mxu0
          %6909 = vmatprep.mubr.bf16.mxu0 0
          %6910 = vmatmul.mubr.bf16.gmra.mrb[0].mxu0 %v6806
          %v6911 = vpop.f32.mrb[0].mxu0
          %v6912 = vadd.f32 0.0, %v6911
          %v6913 = vpop.f32.mrb[0].mxu0
          %v6914 = vpop.f32.mrb[0].mxu0
          %v6915 = vadd.f32 0.0, %v6914
          %v6916 = vpop.f32.mrb[0].mxu0
          %6917 = vmatprep.mubr.bf16.mxu0 0
          %6918 = vmatmul.mubr.bf16.gmra.mrb[0].mxu0 %v6807
          %v6919 = vpop.f32.mrb[0].mxu0
          %v6920 = vadd.f32 0.0, %v6919
          %v6921 = vpop.f32.mrb[0].mxu0
          %v6922 = vpop.f32.mrb[0].mxu0
          %v6923 = vadd.f32 0.0, %v6922
          %v6924 = vpop.f32.mrb[0].mxu0
          %6925 = vmatprep.mubr.bf16.mxu0 0
          %6926 = vmatmul.mubr.bf16.gmra.mrb[0].mxu0 %v6808
          %v6927 = vpop.f32.mrb[0].mxu0
          %v6928 = vadd.f32 0.0, %v6927
          %v6929 = vpop.f32.mrb[0].mxu0
          %v6930 = vpop.f32.mrb[0].mxu0
          %v6931 = vadd.f32 0.0, %v6930
          %v6932 = vpop.f32.mrb[0].mxu0
          %6933 = vmatprep.mubr.bf16.mxu0 0
          %6934 = vmatmul.mubr.bf16.gmra.mrb[0].mxu0 %v6809
          %v6935 = vpop.f32.mrb[0].mxu0
          %v6936 = vadd.f32 0.0, %v6935
          %v6937 = vpop.f32.mrb[0].mxu0
          %v6938 = vpop.f32.mrb[0].mxu0
          %v6939 = vadd.f32 0.0, %v6938
          %v6940 = vpop.f32.mrb[0].mxu0
          %6941 = vmatprep.mubr.bf16.mxu0 0
          %6942 = vmatmul.mubr.bf16.gmra.mrb[0].mxu0 %v6810
          %v6943 = vpop.f32.mrb[0].mxu0
          %v6944 = vadd.f32 0.0, %v6943
          %v6945 = vpop.f32.mrb[0].mxu0
          %v6946 = vpop.f32.mrb[0].mxu0
          %v6947 = vadd.f32 0.0, %v6946
          %v6948 = vpop.f32.mrb[0].mxu0
          %6949 = vmatprep.mubr.bf16.mxu0 0
          %6950 = vmatmul.mubr.bf16.gmra.mrb[0].mxu0 %v6811
          %v6951 = vpop.f32.mrb[0].mxu0
          %v6952 = vadd.f32 0.0, %v6951
          %v6953 = vpop.f32.mrb[0].mxu0
          %v6954 = vpop.f32.mrb[0].mxu0
          %v6955 = vadd.f32 0.0, %v6954
          %v6956 = vpop.f32.mrb[0].mxu0
          %6957 = vmatprep.mubr.bf16.mxu0 0
          %6958 = vmatmul.mubr.bf16.gmra.mrb[0].mxu0 %v6812
          %v6959 = vpop.f32.mrb[0].mxu0
          %v6960 = vadd.f32 0.0, %v6959
          %v6961 = vpop.f32.mrb[0].mxu0
          %v6962 = vpop.f32.mrb[0].mxu0
          %v6963 = vadd.f32 0.0, %v6962
          %v6964 = vpop.f32.mrb[0].mxu0
          %6965 = vdwg.mxu0
          %v6966 = vadd.f32 %v6540, %v6904
          %v6967 = vadd.f32 %v6541, %v6907
          %v6968 = vadd.f32 %v6542, %v6912
          %v6969 = vadd.f32 %v6543, %v6915
          %v6970 = vadd.f32 %v6544, %v6920
          %v6971 = vadd.f32 %v6545, %v6923
          %v6972 = vadd.f32 %v6546, %v6928
          %v6973 = vadd.f32 %v6547, %v6931
          %v6974 = vadd.f32 %v6548, %v6936
          %v6975 = vadd.f32 %v6549, %v6939
          %v6976 = vadd.f32 %v6550, %v6944
          %v6977 = vadd.f32 %v6551, %v6947
          %v6978 = vadd.f32 %v6552, %v6952
          %v6979 = vadd.f32 %v6553, %v6955
          %v6980 = vadd.f32 %v6554, %v6960
          %v6981 = vadd.f32 %v6555, %v6963
          %v6982 = vld [vmem:[%s6313] sm:$0xe]
          %v6983 = vld [vmem:[%s6313 + $0xc] sm:$0xe]
          %v6984 = vld [vmem:[%s6313 + $0x18] sm:$0xe]
          %v6985 = vld [vmem:[%s6313 + $0x24] sm:$0xe]
          %v6986 = vld [vmem:[%s6313 + $0x30] sm:$0xe]
          %v6987 = vld [vmem:[%s6313 + $0x3c] sm:$0xe]
          %v6988 = vld [vmem:[%s6313 + $0x48] sm:$0xe]
          %v6989 = vld [vmem:[%s6313 + $0x54] sm:$0xe]
          %v7014 = vrot.slane %v6982, 5
          %v7015 = vrot.slane %v7014, 4
          %v7016 = vrot.slane %v6557, 5
          %v7017 = vsel %vm5073, %v7015, %v7016
          %v7018 = vrot.slane %v7016, 4
          %v7019 = vrot.slane %v6558, 5
          %v7020 = vsel %vm5073, %v7018, %v7019
          %v7021 = vrot.slane %v6983, 5
          %v7022 = vrot.slane %v7021, 4
          %v7023 = vrot.slane %v6560, 5
          %v7024 = vsel %vm5073, %v7022, %v7023
          %v7025 = vrot.slane %v7023, 4
          %v7026 = vrot.slane %v6561, 5
          %v7027 = vsel %vm5073, %v7025, %v7026
          %v7028 = vrot.slane %v6984, 5
          %v7029 = vrot.slane %v7028, 4
          %v7030 = vrot.slane %v6563, 5
          %v7031 = vsel %vm5073, %v7029, %v7030
          %v7032 = vrot.slane %v7030, 4
          %v7033 = vrot.slane %v6564, 5
          %v7034 = vsel %vm5073, %v7032, %v7033
          %v7035 = vrot.slane %v6985, 5
          %v7036 = vrot.slane %v7035, 4
          %v7037 = vrot.slane %v6566, 5
          %v7038 = vsel %vm5073, %v7036, %v7037
          %v7039 = vrot.slane %v7037, 4
          %v7040 = vrot.slane %v6567, 5
          %v7041 = vsel %vm5073, %v7039, %v7040
          %v7042 = vrot.slane %v6986, 5
          %v7043 = vrot.slane %v7042, 4
          %v7044 = vrot.slane %v6569, 5
          %v7045 = vsel %vm5073, %v7043, %v7044
          %v7046 = vrot.slane %v7044, 4
          %v7047 = vrot.slane %v6570, 5
          %v7048 = vsel %vm5073, %v7046, %v7047
          %v7049 = vrot.slane %v6987, 5
          %v7050 = vrot.slane %v7049, 4
          %v7051 = vrot.slane %v6572, 5
          %v7052 = vsel %vm5073, %v7050, %v7051
          %v7053 = vrot.slane %v7051, 4
          %v7054 = vrot.slane %v6573, 5
          %v7055 = vsel %vm5073, %v7053, %v7054
          %v7056 = vrot.slane %v6988, 5
          %v7057 = vrot.slane %v7056, 4
          %v7058 = vrot.slane %v6575, 5
          %v7059 = vsel %vm5073, %v7057, %v7058
          %v7060 = vrot.slane %v7058, 4
          %v7061 = vrot.slane %v6576, 5
          %v7062 = vsel %vm5073, %v7060, %v7061
          %v7063 = vrot.slane %v6989, 5
          %v7064 = vrot.slane %v7063, 4
          %v7065 = vrot.slane %v6578, 5
          %v7066 = vsel %vm5073, %v7064, %v7065
          %v7067 = vrot.slane %v7065, 4
          %v7068 = vrot.slane %v6579, 5
          %v7069 = vsel %vm5073, %v7067, %v7068
          %s7070 = scalar_lea.vmem [#allocation10], 512
          %v7071 = vld [vmem:[%s7070] sm:$0xf]
          %v7072 = vld [vmem:[%s7070 + $0x4] sm:$0xf]
          %v7073 = vld [vmem:[%s7070 + $0x8] sm:$0xf]
          %v7074 = vld [vmem:[%s7070 + $0xc] sm:$0xf]
          %v7075 = vld [vmem:[%s7070 + $0x10] sm:$0xf]
          %v7076 = vld [vmem:[%s7070 + $0x14] sm:$0xf]
          %v7077 = vld [vmem:[%s7070 + $0x18] sm:$0xf]
          %v7078 = vld [vmem:[%s7070 + $0x1c] sm:$0xf]
          %v7079 = vld [vmem:[%s7070 + $0x20] sm:$0xf]
          %v7080 = vld [vmem:[%s7070 + $0x24] sm:$0xf]
          %v7081 = vld [vmem:[%s7070 + $0x28] sm:$0xf]
          %v7082 = vld [vmem:[%s7070 + $0x2c] sm:$0xf]
          %v7083 = vld [vmem:[%s7070 + $0x30] sm:$0xf]
          %v7084 = vld [vmem:[%s7070 + $0x34] sm:$0xf]
          %v7085 = vld [vmem:[%s7070 + $0x38] sm:$0xf]
          %v7086 = vld [vmem:[%s7070 + $0x3c] sm:$0xf]
          %v7087 = vunpack.c.l.b16 %v7017
          %v7088 = vunpack.c.l.b16 %v7020
          %v7089 = vunpack.c.l.b16 %v7024
          %v7090 = vunpack.c.l.b16 %v7027
          %v7091 = vunpack.c.l.b16 %v7031
          %v7092 = vunpack.c.l.b16 %v7034
          %v7093 = vunpack.c.l.b16 %v7038
          %v7094 = vunpack.c.l.b16 %v7041
          %v7095 = vunpack.c.l.b16 %v7045
          %v7096 = vunpack.c.l.b16 %v7048
          %v7097 = vunpack.c.l.b16 %v7052
          %v7098 = vunpack.c.l.b16 %v7055
          %v7099 = vunpack.c.l.b16 %v7059
          %v7100 = vunpack.c.l.b16 %v7062
          %v7101 = vunpack.c.l.b16 %v7066
          %v7102 = vunpack.c.l.b16 %v7069
          %v7103 = vpack.c.b16 %v7088, %v7087
          %v7104 = vpack.c.b16 %v7090, %v7089
          %v7105 = vpack.c.b16 %v7092, %v7091
          %v7106 = vpack.c.b16 %v7094, %v7093
          %v7107 = vpack.c.b16 %v7096, %v7095
          %v7108 = vpack.c.b16 %v7098, %v7097
          %v7109 = vpack.c.b16 %v7100, %v7099
          %v7110 = vpack.c.b16 %v7102, %v7101
          %v7135 = vunpack.c.l.b16 %v7071
          %v7136 = vunpack.c.l.b16 %v7072
          %v7137 = vunpack.c.l.b16 %v7073
          %v7138 = vunpack.c.l.b16 %v7074
          %v7139 = vunpack.c.l.b16 %v7075
          %v7140 = vunpack.c.l.b16 %v7076
          %v7141 = vunpack.c.l.b16 %v7077
          %v7142 = vunpack.c.l.b16 %v7078
          %v7143 = vunpack.c.l.b16 %v7079
          %v7144 = vunpack.c.l.b16 %v7080
          %v7145 = vunpack.c.l.b16 %v7081
          %v7146 = vunpack.c.l.b16 %v7082
          %v7147 = vunpack.c.l.b16 %v7083
          %v7148 = vunpack.c.l.b16 %v7084
          %v7149 = vunpack.c.l.b16 %v7085
          %v7150 = vunpack.c.l.b16 %v7086
          %v7151 = vpack.c.b16 %v7136, %v7135
          %v7152 = vpack.c.b16 %v7138, %v7137
          %v7153 = vpack.c.b16 %v7140, %v7139
          %v7154 = vpack.c.b16 %v7142, %v7141
          %v7155 = vpack.c.b16 %v7144, %v7143
          %v7156 = vpack.c.b16 %v7146, %v7145
          %v7157 = vpack.c.b16 %v7148, %v7147
          %v7158 = vpack.c.b16 %v7150, %v7149
          %7167 = vmatprep.subr.bf16.mxu0 0
          %7168 = vmatpush1.bf16.msra.mxu0 %v7151
          %7169 = vmatprep.subr.bf16.mxu0 0
          %7170 = vmatpush1.bf16.msra.mxu0 %v7152
          %7171 = vmatprep.subr.bf16.mxu0 0
          %7172 = vmatpush1.bf16.msra.mxu0 %v7153
          %7173 = vmatprep.subr.bf16.mxu0 0
          %7174 = vmatpush1.bf16.msra.mxu0 %v7154
          %7175 = vmatprep.subr.bf16.mxu0 0
          %7176 = vmatpush1.bf16.msra.mxu0 %v7155
          %7177 = vmatprep.subr.bf16.mxu0 0
          %7178 = vmatpush1.bf16.msra.mxu0 %v7156
          %7179 = vmatprep.subr.bf16.mxu0 0
          %7180 = vmatpush1.bf16.msra.mxu0 %v7157
          %7181 = vmatprep.subr.bf16.mxu0 0
          %7182 = vmatpush1.bf16.msra.mxu0 %v7158
          %7183 = vmatprep.subr.bf16.mxu0 0
          %7184 = vmatpush1.bf16.msra.mxu0 0
          %7185 = vmatprep.subr.bf16.mxu0 0
          %7186 = vmatpush1.bf16.msra.mxu0 0
          %7187 = vmatprep.subr.bf16.mxu0 0
          %7188 = vmatpush1.bf16.msra.mxu0 0
          %7189 = vmatprep.subr.bf16.mxu0 0
          %7190 = vmatpush1.bf16.msra.mxu0 0
          %7191 = vmatprep.subr.bf16.mxu0 0
          %7192 = vmatpush1.bf16.msra.mxu0 0
          %7193 = vmatprep.subr.bf16.mxu0 0
          %7194 = vmatpush1.bf16.msra.mxu0 0
          %7195 = vmatprep.subr.bf16.mxu0 0
          %7196 = vmatpush1.bf16.msra.mxu0 0
          %7197 = vmatprep.subr.bf16.mxu0 0
          %7198 = vmatpush1.bf16.msra.mxu0 0
          %7199 = vmatprep.mubr.bf16.mxu0 0
          %7200 = vmatmul.mubr.bf16.gmra.mrb[0].mxu0 %v7103
          %v7201 = vpop.f32.mrb[0].mxu0
          %v7202 = vadd.f32 0.0, %v7201
          %v7203 = vpop.f32.mrb[0].mxu0
          %v7204 = vpop.f32.mrb[0].mxu0
          %v7205 = vadd.f32 0.0, %v7204
          %v7206 = vpop.f32.mrb[0].mxu0
          %7207 = vmatprep.mubr.bf16.mxu0 0
          %7208 = vmatmul.mubr.bf16.gmra.mrb[0].mxu0 %v7104
          %v7209 = vpop.f32.mrb[0].mxu0
          %v7210 = vadd.f32 0.0, %v7209
          %v7211 = vpop.f32.mrb[0].mxu0
          %v7212 = vpop.f32.mrb[0].mxu0
          %v7213 = vadd.f32 0.0, %v7212
          %v7214 = vpop.f32.mrb[0].mxu0
          %7215 = vmatprep.mubr.bf16.mxu0 0
          %7216 = vmatmul.mubr.bf16.gmra.mrb[0].mxu0 %v7105
          %v7217 = vpop.f32.mrb[0].mxu0
          %v7218 = vadd.f32 0.0, %v7217
          %v7219 = vpop.f32.mrb[0].mxu0
          %v7220 = vpop.f32.mrb[0].mxu0
          %v7221 = vadd.f32 0.0, %v7220
          %v7222 = vpop.f32.mrb[0].mxu0
          %7223 = vmatprep.mubr.bf16.mxu0 0
          %7224 = vmatmul.mubr.bf16.gmra.mrb[0].mxu0 %v7106
          %v7225 = vpop.f32.mrb[0].mxu0
          %v7226 = vadd.f32 0.0, %v7225
          %v7227 = vpop.f32.mrb[0].mxu0
          %v7228 = vpop.f32.mrb[0].mxu0
          %v7229 = vadd.f32 0.0, %v7228
          %v7230 = vpop.f32.mrb[0].mxu0
          %7231 = vmatprep.mubr.bf16.mxu0 0
          %7232 = vmatmul.mubr.bf16.gmra.mrb[0].mxu0 %v7107
          %v7233 = vpop.f32.mrb[0].mxu0
          %v7234 = vadd.f32 0.0, %v7233
          %v7235 = vpop.f32.mrb[0].mxu0
          %v7236 = vpop.f32.mrb[0].mxu0
          %v7237 = vadd.f32 0.0, %v7236
          %v7238 = vpop.f32.mrb[0].mxu0
          %7239 = vmatprep.mubr.bf16.mxu0 0
          %7240 = vmatmul.mubr.bf16.gmra.mrb[0].mxu0 %v7108
          %v7241 = vpop.f32.mrb[0].mxu0
          %v7242 = vadd.f32 0.0, %v7241
          %v7243 = vpop.f32.mrb[0].mxu0
          %v7244 = vpop.f32.mrb[0].mxu0
          %v7245 = vadd.f32 0.0, %v7244
          %v7246 = vpop.f32.mrb[0].mxu0
          %7247 = vmatprep.mubr.bf16.mxu0 0
          %7248 = vmatmul.mubr.bf16.gmra.mrb[0].mxu0 %v7109
          %v7249 = vpop.f32.mrb[0].mxu0
          %v7250 = vadd.f32 0.0, %v7249
          %v7251 = vpop.f32.mrb[0].mxu0
          %v7252 = vpop.f32.mrb[0].mxu0
          %v7253 = vadd.f32 0.0, %v7252
          %v7254 = vpop.f32.mrb[0].mxu0
          %7255 = vmatprep.mubr.bf16.mxu0 0
          %7256 = vmatmul.mubr.bf16.gmra.mrb[0].mxu0 %v7110
          %v7257 = vpop.f32.mrb[0].mxu0
          %v7258 = vadd.f32 0.0, %v7257
          %v7259 = vpop.f32.mrb[0].mxu0
          %v7260 = vpop.f32.mrb[0].mxu0
          %v7261 = vadd.f32 0.0, %v7260
          %v7262 = vpop.f32.mrb[0].mxu0
          %7263 = vdwg.mxu0
          %v7264 = vadd.f32 %v6966, %v7202
          %v7265 = vadd.f32 %v6967, %v7205
          %v7266 = vadd.f32 %v6968, %v7210
          %v7267 = vadd.f32 %v6969, %v7213
          %v7268 = vadd.f32 %v6970, %v7218
          %v7269 = vadd.f32 %v6971, %v7221
          %v7270 = vadd.f32 %v6972, %v7226
          %v7271 = vadd.f32 %v6973, %v7229
          %v7272 = vadd.f32 %v6974, %v7234
          %v7273 = vadd.f32 %v6975, %v7237
          %v7274 = vadd.f32 %v6976, %v7242
          %v7275 = vadd.f32 %v6977, %v7245
          %v7276 = vadd.f32 %v6978, %v7250
          %v7277 = vadd.f32 %v6979, %v7253
          %v7278 = vadd.f32 %v6980, %v7258
          %v7279 = vadd.f32 %v6981, %v7261
          %v7280 = vld [vmem:[#allocation12] sm:$0x1]
          %v7282 = vlaneseq
          %v7283 = vshrl.u32 %v7282, 7
          %v7284 = vsub.s32 0, %v7283
          %v7285 = vrot.slane %v7280, %v7284
          %v7287 = vadd.f32 %v7264, %v7285
          %v7288 = vadd.f32 %v7265, %v7285
          %v7289 = vadd.f32 %v7266, %v7285
          %v7290 = vadd.f32 %v7267, %v7285
          %v7291 = vadd.f32 %v7268, %v7285
          %v7292 = vadd.f32 %v7269, %v7285
          %v7293 = vadd.f32 %v7270, %v7285
          %v7294 = vadd.f32 %v7271, %v7285
          %v7295 = vadd.f32 %v7272, %v7285
          %v7296 = vadd.f32 %v7273, %v7285
          %v7297 = vadd.f32 %v7274, %v7285
          %v7298 = vadd.f32 %v7275, %v7285
          %v7299 = vadd.f32 %v7276, %v7285
          %v7300 = vadd.f32 %v7277, %v7285
          %v7301 = vadd.f32 %v7278, %v7285
          %v7302 = vadd.f32 %v7279, %v7285
          %v7303 = vmax.f32 %v7287, 0.0
          %v7304 = vmax.f32 %v7288, 0.0
          %v7305 = vmax.f32 %v7289, 0.0
          %v7306 = vmax.f32 %v7290, 0.0
          %v7307 = vmax.f32 %v7291, 0.0
          %v7308 = vmax.f32 %v7292, 0.0
          %v7309 = vmax.f32 %v7293, 0.0
          %v7310 = vmax.f32 %v7294, 0.0
          %v7311 = vmax.f32 %v7295, 0.0
          %v7312 = vmax.f32 %v7296, 0.0
          %v7313 = vmax.f32 %v7297, 0.0
          %v7314 = vmax.f32 %v7298, 0.0
          %v7315 = vmax.f32 %v7299, 0.0
          %v7316 = vmax.f32 %v7300, 0.0
          %v7317 = vmax.f32 %v7301, 0.0
          %v7318 = vmax.f32 %v7302, 0.0
          %v7319 = vpack.c.bf16 %v7304, %v7303
          %v7320 = vpack.c.bf16 %v7306, %v7305
          %v7321 = vpack.c.bf16 %v7308, %v7307
          %v7322 = vpack.c.bf16 %v7310, %v7309
          %v7323 = vpack.c.bf16 %v7312, %v7311
          %v7324 = vpack.c.bf16 %v7314, %v7313
          %v7325 = vpack.c.bf16 %v7316, %v7315
          %v7326 = vpack.c.bf16 %v7318, %v7317
          %v7335 = vunpack.c.l.b16 %v7319
          %v7336 = vunpack.c.h.b16 %v7319
          %v7337 = vunpack.c.l.b16 %v7320
          %v7338 = vunpack.c.h.b16 %v7320
          %v7339 = vunpack.c.l.b16 %v7321
          %v7340 = vunpack.c.h.b16 %v7321
          %v7341 = vunpack.c.l.b16 %v7322
          %v7342 = vunpack.c.h.b16 %v7322
          %v7343 = vunpack.c.l.b16 %v7323
          %v7344 = vunpack.c.h.b16 %v7323
          %v7345 = vunpack.c.l.b16 %v7324
          %v7346 = vunpack.c.h.b16 %v7324
          %v7347 = vunpack.c.l.b16 %v7325
          %v7348 = vunpack.c.h.b16 %v7325
          %v7349 = vunpack.c.l.b16 %v7326
          %v7350 = vunpack.c.h.b16 %v7326
          %v7351 = vpack.c.b16 %v7335, %v7335
          %v7352 = vpack.c.b16 %v7336, %v7336
          %v7353 = vpack.c.b16 %v7337, %v7337
          %v7354 = vpack.c.b16 %v7338, %v7338
          %v7355 = vpack.c.b16 %v7339, %v7339
          %v7356 = vpack.c.b16 %v7340, %v7340
          %v7357 = vpack.c.b16 %v7341, %v7341
          %v7358 = vpack.c.b16 %v7342, %v7342
          %v7359 = vpack.c.b16 %v7343, %v7343
          %v7360 = vpack.c.b16 %v7344, %v7344
          %v7361 = vpack.c.b16 %v7345, %v7345
          %v7362 = vpack.c.b16 %v7346, %v7346
          %v7363 = vpack.c.b16 %v7347, %v7347
          %v7364 = vpack.c.b16 %v7348, %v7348
          %v7365 = vpack.c.b16 %v7349, %v7349
          %v7366 = vpack.c.b16 %v7350, %v7350
          %v7368 = vshrl.u32 %v7351, 16
          %v7370 = vrot.slane %v7368, 7
          %v7371 = vshll.u32 %v7351, 16
          %v7373 = vor.u32 %v7370, %v7371
          %v7374 = vrot.slane %v7370, 4
          %v7376 = vshrl.u32 %v7352, 16
          %v7378 = vrot.slane %v7376, 7
          %v7379 = vshll.u32 %v7352, 16
          %v7381 = vor.u32 %v7378, %v7379
          %v7382 = vsel %vm809, %v7374, %v7381
          %v7383 = vrot.slane %v7378, 4
          %v7385 = vshrl.u32 %v7353, 16
          %v7387 = vrot.slane %v7385, 7
          %v7388 = vshll.u32 %v7353, 16
          %v7390 = vor.u32 %v7387, %v7388
          %v7391 = vrot.slane %v7387, 4
          %v7393 = vshrl.u32 %v7354, 16
          %v7395 = vrot.slane %v7393, 7
          %v7396 = vshll.u32 %v7354, 16
          %v7398 = vor.u32 %v7395, %v7396
          %v7399 = vsel %vm809, %v7391, %v7398
          %v7400 = vrot.slane %v7395, 4
          %v7402 = vshrl.u32 %v7355, 16
          %v7404 = vrot.slane %v7402, 7
          %v7405 = vshll.u32 %v7355, 16
          %v7407 = vor.u32 %v7404, %v7405
          %v7408 = vrot.slane %v7404, 4
          %v7410 = vshrl.u32 %v7356, 16
          %v7412 = vrot.slane %v7410, 7
          %v7413 = vshll.u32 %v7356, 16
          %v7415 = vor.u32 %v7412, %v7413
          %v7416 = vsel %vm809, %v7408, %v7415
          %v7417 = vrot.slane %v7412, 4
          %v7419 = vshrl.u32 %v7357, 16
          %v7421 = vrot.slane %v7419, 7
          %v7422 = vshll.u32 %v7357, 16
          %v7424 = vor.u32 %v7421, %v7422
          %v7425 = vrot.slane %v7421, 4
          %v7427 = vshrl.u32 %v7358, 16
          %v7429 = vrot.slane %v7427, 7
          %v7430 = vshll.u32 %v7358, 16
          %v7432 = vor.u32 %v7429, %v7430
          %v7433 = vsel %vm809, %v7425, %v7432
          %v7434 = vrot.slane %v7429, 4
          %v7436 = vshrl.u32 %v7359, 16
          %v7438 = vrot.slane %v7436, 7
          %v7439 = vshll.u32 %v7359, 16
          %v7441 = vor.u32 %v7438, %v7439
          %v7442 = vrot.slane %v7438, 4
          %v7444 = vshrl.u32 %v7360, 16
          %v7446 = vrot.slane %v7444, 7
          %v7447 = vshll.u32 %v7360, 16
          %v7449 = vor.u32 %v7446, %v7447
          %v7450 = vsel %vm809, %v7442, %v7449
          %v7451 = vrot.slane %v7446, 4
          %v7453 = vshrl.u32 %v7361, 16
          %v7455 = vrot.slane %v7453, 7
          %v7456 = vshll.u32 %v7361, 16
          %v7458 = vor.u32 %v7455, %v7456
          %v7459 = vrot.slane %v7455, 4
          %v7461 = vshrl.u32 %v7362, 16
          %v7463 = vrot.slane %v7461, 7
          %v7464 = vshll.u32 %v7362, 16
          %v7466 = vor.u32 %v7463, %v7464
          %v7467 = vsel %vm809, %v7459, %v7466
          %v7468 = vrot.slane %v7463, 4
          %v7470 = vshrl.u32 %v7363, 16
          %v7472 = vrot.slane %v7470, 7
          %v7473 = vshll.u32 %v7363, 16
          %v7475 = vor.u32 %v7472, %v7473
          %v7476 = vrot.slane %v7472, 4
          %v7478 = vshrl.u32 %v7364, 16
          %v7480 = vrot.slane %v7478, 7
          %v7481 = vshll.u32 %v7364, 16
          %v7483 = vor.u32 %v7480, %v7481
          %v7484 = vsel %vm809, %v7476, %v7483
          %v7485 = vrot.slane %v7480, 4
          %v7487 = vshrl.u32 %v7365, 16
          %v7489 = vrot.slane %v7487, 7
          %v7490 = vshll.u32 %v7365, 16
          %v7492 = vor.u32 %v7489, %v7490
          %v7493 = vrot.slane %v7489, 4
          %v7495 = vshrl.u32 %v7366, 16
          %v7497 = vrot.slane %v7495, 7
          %v7498 = vshll.u32 %v7366, 16
          %v7500 = vor.u32 %v7497, %v7498
          %v7501 = vsel %vm809, %v7493, %v7500
          %v7502 = vrot.slane %v7497, 4
          %s7527 = smul.addr %s5341, 4
          %s7528 = scalar_lea.vmem [#allocation2], %s7527
          %v7529 = vld [vmem:[%s7528] sm:$0xf]
          %v7530 = vsel %vm1132, %v7373, %v7529
          %7531 = vst [vmem:[%s7528] sm:$0xf] %v7530
          %7532 = vst [vmem:[%s7528 + $0x4] sm:$0xf] %v7382
          %v7533 = vld [vmem:[%s7528 + $0x8] sm:$0x1]
          %v7534 = vsel %vm550, %v7383, %v7533
          %7535 = vst [vmem:[%s7528 + $0x8] sm:$0x1] %v7534
          %v7536 = vld [vmem:[%s7528 + $0xc] sm:$0xf]
          %v7537 = vsel %vm1132, %v7390, %v7536
          %7538 = vst [vmem:[%s7528 + $0xc] sm:$0xf] %v7537
          %7539 = vst [vmem:[%s7528 + $0x10] sm:$0xf] %v7399
          %v7540 = vld [vmem:[%s7528 + $0x14] sm:$0x1]
          %v7541 = vsel %vm550, %v7400, %v7540
          %7542 = vst [vmem:[%s7528 + $0x14] sm:$0x1] %v7541
          %v7543 = vld [vmem:[%s7528 + $0x18] sm:$0xf]
          %v7544 = vsel %vm1132, %v7407, %v7543
          %7545 = vst [vmem:[%s7528 + $0x18] sm:$0xf] %v7544
          %7546 = vst [vmem:[%s7528 + $0x1c] sm:$0xf] %v7416
          %v7547 = vld [vmem:[%s7528 + $0x20] sm:$0x1]
          %v7548 = vsel %vm550, %v7417, %v7547
          %7549 = vst [vmem:[%s7528 + $0x20] sm:$0x1] %v7548
          %v7550 = vld [vmem:[%s7528 + $0x24] sm:$0xf]
          %v7551 = vsel %vm1132, %v7424, %v7550
          %7552 = vst [vmem:[%s7528 + $0x24] sm:$0xf] %v7551
          %7553 = vst [vmem:[%s7528 + $0x28] sm:$0xf] %v7433
          %v7554 = vld [vmem:[%s7528 + $0x2c] sm:$0x1]
          %v7555 = vsel %vm550, %v7434, %v7554
          %7556 = vst [vmem:[%s7528 + $0x2c] sm:$0x1] %v7555
          %v7557 = vld [vmem:[%s7528 + $0x30] sm:$0xf]
          %v7558 = vsel %vm1132, %v7441, %v7557
          %7559 = vst [vmem:[%s7528 + $0x30] sm:$0xf] %v7558
          %7560 = vst [vmem:[%s7528 + $0x34] sm:$0xf] %v7450
          %v7561 = vld [vmem:[%s7528 + $0x38] sm:$0x1]
          %v7562 = vsel %vm550, %v7451, %v7561
          %7563 = vst [vmem:[%s7528 + $0x38] sm:$0x1] %v7562
          %v7564 = vld [vmem:[%s7528 + $0x3c] sm:$0xf]
          %v7565 = vsel %vm1132, %v7458, %v7564
          %7566 = vst [vmem:[%s7528 + $0x3c] sm:$0xf] %v7565
          %7567 = vst [vmem:[%s7528 + $0x40] sm:$0xf] %v7467
          %v7568 = vld [vmem:[%s7528 + $0x44] sm:$0x1]
          %v7569 = vsel %vm550, %v7468, %v7568
          %7570 = vst [vmem:[%s7528 + $0x44] sm:$0x1] %v7569
          %v7571 = vld [vmem:[%s7528 + $0x48] sm:$0xf]
          %v7572 = vsel %vm1132, %v7475, %v7571
          %7573 = vst [vmem:[%s7528 + $0x48] sm:$0xf] %v7572
          %7574 = vst [vmem:[%s7528 + $0x4c] sm:$0xf] %v7484
          %v7575 = vld [vmem:[%s7528 + $0x50] sm:$0x1]
          %v7576 = vsel %vm550, %v7485, %v7575
          %7577 = vst [vmem:[%s7528 + $0x50] sm:$0x1] %v7576
          %v7578 = vld [vmem:[%s7528 + $0x54] sm:$0xf]
          %v7579 = vsel %vm1132, %v7492, %v7578
          %7580 = vst [vmem:[%s7528 + $0x54] sm:$0xf] %v7579
          %7581 = vst [vmem:[%s7528 + $0x58] sm:$0xf] %v7501
          %v7582 = vld [vmem:[%s7528 + $0x5c] sm:$0x1]
          %v7583 = vsel %vm550, %v7502, %v7582
          %7584 = vst [vmem:[%s7528 + $0x5c] sm:$0x1] %v7583
        $region120: #{tpu_custom_call.1} parent=63 // loop_footer
          %s4420 = sadd.s32 1, %s4416
        $region121: #{tpu_custom_call.1} parent=63 // loop_footer_branch
          %4415 = sbr.rel target = $region117
        $region122: #{tpu_custom_call.1} parent=63 // loop_exit
          _
        loop: start=0, step=1, limit=2
        $region123: #{tpu_custom_call.1} parent=63 // loop_pre_header
          _
        $region124: #{tpu_custom_call.1} parent=63 // loop_header
          %s7586 = sphi 0, %s7590
          %p7587 = scmp.ge.s32.totalorder %s7586, 2
        $region125: #{tpu_custom_call.1} parent=63 // loop_header_branch
          %7589 = sbr.rel (%p7587) target = $region129
        $region126: #{tpu_custom_call.1} parent=63 // loop_body
          %s7591 = smul.u32 %s7586, 8
          %s7592 = smul.u32 %s7591, 3
          %s7593 = smul.addr %s7592, 4
          %s7594 = scalar_lea.vmem [#allocation2], %s7593
          %v7595 = vld [vmem:[%s7594] sm:$0xf]
          %v7596 = vld [vmem:[%s7594 + $0x4] sm:$0xf]
          %v7597 = vld [vmem:[%s7594 + $0xc] sm:$0xf]
          %v7598 = vld [vmem:[%s7594 + $0x10] sm:$0xf]
          %v7599 = vld [vmem:[%s7594 + $0x18] sm:$0xf]
          %v7600 = vld [vmem:[%s7594 + $0x1c] sm:$0xf]
          %v7601 = vld [vmem:[%s7594 + $0x24] sm:$0xf]
          %v7602 = vld [vmem:[%s7594 + $0x28] sm:$0xf]
          %v7603 = vld [vmem:[%s7594 + $0x30] sm:$0xf]
          %v7604 = vld [vmem:[%s7594 + $0x34] sm:$0xf]
          %v7605 = vld [vmem:[%s7594 + $0x3c] sm:$0xf]
          %v7606 = vld [vmem:[%s7594 + $0x40] sm:$0xf]
          %v7607 = vld [vmem:[%s7594 + $0x48] sm:$0xf]
          %v7608 = vld [vmem:[%s7594 + $0x4c] sm:$0xf]
          %v7609 = vld [vmem:[%s7594 + $0x54] sm:$0xf]
          %v7610 = vld [vmem:[%s7594 + $0x58] sm:$0xf]
          %v7611 = vld [vmem:[#allocation13] sm:$0xf]
          %v7612 = vld [vmem:[#allocation13 + $0x4] sm:$0xf]
          %v7613 = vld [vmem:[#allocation13 + $0x8] sm:$0xf]
          %v7614 = vld [vmem:[#allocation13 + $0xc] sm:$0xf]
          %v7615 = vld [vmem:[#allocation13 + $0x10] sm:$0xf]
          %v7616 = vld [vmem:[#allocation13 + $0x14] sm:$0xf]
          %v7617 = vld [vmem:[#allocation13 + $0x18] sm:$0xf]
          %v7618 = vld [vmem:[#allocation13 + $0x1c] sm:$0xf]
          %v7619 = vld [vmem:[#allocation13 + $0x20] sm:$0xf]
          %v7620 = vld [vmem:[#allocation13 + $0x24] sm:$0xf]
          %v7621 = vld [vmem:[#allocation13 + $0x28] sm:$0xf]
          %v7622 = vld [vmem:[#allocation13 + $0x2c] sm:$0xf]
          %v7623 = vld [vmem:[#allocation13 + $0x30] sm:$0xf]
          %v7624 = vld [vmem:[#allocation13 + $0x34] sm:$0xf]
          %v7625 = vld [vmem:[#allocation13 + $0x38] sm:$0xf]
          %v7626 = vld [vmem:[#allocation13 + $0x3c] sm:$0xf]
          %v7627 = vld [vmem:[%s7594 + $0x8] sm:$0x1]
          %v7628 = vld [vmem:[%s7594 + $0x14] sm:$0x1]
          %v7629 = vld [vmem:[%s7594 + $0x20] sm:$0x1]
          %v7630 = vld [vmem:[%s7594 + $0x2c] sm:$0x1]
          %v7631 = vld [vmem:[%s7594 + $0x38] sm:$0x1]
          %v7632 = vld [vmem:[%s7594 + $0x44] sm:$0x1]
          %v7633 = vld [vmem:[%s7594 + $0x50] sm:$0x1]
          %v7634 = vld [vmem:[%s7594 + $0x5c] sm:$0x1]
          %vm7635 = vsmask.f32 3328
          %vm7636 = vsmask.f32 7440
          %vm7637 = vmor %vm7635, %vm7636
          %v7639 = vshrl.u32 %v7595, 16
          %v7641 = vrot.slane %v7639, 4
          %v7642 = vshll.u32 %v7595, 16
          %v7644 = vrot.slane %v7642, 5
          %v7645 = vor.u32 %v7641, %v7644
          %v7646 = vrot.slane %v7645, 4
          %v7648 = vshll.u32 %v7596, 16
          %v7650 = vrot.slane %v7648, 5
          %v7651 = vsel %vm7637, %v7646, %v7650
          %v7652 = vshrl.u32 %v7596, 16
          %v7654 = vrot.slane %v7652, 4
          %v7655 = vor.u32 %v7654, %v7650
          %v7656 = vrot.slane %v7655, 4
          %v7658 = vshll.u32 %v7627, 16
          %v7660 = vrot.slane %v7658, 5
          %v7661 = vsel %vm7637, %v7656, %v7660
          %v7663 = vshrl.u32 %v7597, 16
          %v7665 = vrot.slane %v7663, 4
          %v7666 = vshll.u32 %v7597, 16
          %v7668 = vrot.slane %v7666, 5
          %v7669 = vor.u32 %v7665, %v7668
          %v7670 = vrot.slane %v7669, 4
          %v7672 = vshll.u32 %v7598, 16
          %v7674 = vrot.slane %v7672, 5
          %v7675 = vsel %vm7637, %v7670, %v7674
          %v7676 = vshrl.u32 %v7598, 16
          %v7678 = vrot.slane %v7676, 4
          %v7679 = vor.u32 %v7678, %v7674
          %v7680 = vrot.slane %v7679, 4
          %v7682 = vshll.u32 %v7628, 16
          %v7684 = vrot.slane %v7682, 5
          %v7685 = vsel %vm7637, %v7680, %v7684
          %v7687 = vshrl.u32 %v7599, 16
          %v7689 = vrot.slane %v7687, 4
          %v7690 = vshll.u32 %v7599, 16
          %v7692 = vrot.slane %v7690, 5
          %v7693 = vor.u32 %v7689, %v7692
          %v7694 = vrot.slane %v7693, 4
          %v7696 = vshll.u32 %v7600, 16
          %v7698 = vrot.slane %v7696, 5
          %v7699 = vsel %vm7637, %v7694, %v7698
          %v7700 = vshrl.u32 %v7600, 16
          %v7702 = vrot.slane %v7700, 4
          %v7703 = vor.u32 %v7702, %v7698
          %v7704 = vrot.slane %v7703, 4
          %v7706 = vshll.u32 %v7629, 16
          %v7708 = vrot.slane %v7706, 5
          %v7709 = vsel %vm7637, %v7704, %v7708
          %v7711 = vshrl.u32 %v7601, 16
          %v7713 = vrot.slane %v7711, 4
          %v7714 = vshll.u32 %v7601, 16
          %v7716 = vrot.slane %v7714, 5
          %v7717 = vor.u32 %v7713, %v7716
          %v7718 = vrot.slane %v7717, 4
          %v7720 = vshll.u32 %v7602, 16
          %v7722 = vrot.slane %v7720, 5
          %v7723 = vsel %vm7637, %v7718, %v7722
          %v7724 = vshrl.u32 %v7602, 16
          %v7726 = vrot.slane %v7724, 4
          %v7727 = vor.u32 %v7726, %v7722
          %v7728 = vrot.slane %v7727, 4
          %v7730 = vshll.u32 %v7630, 16
          %v7732 = vrot.slane %v7730, 5
          %v7733 = vsel %vm7637, %v7728, %v7732
          %v7735 = vshrl.u32 %v7603, 16
          %v7737 = vrot.slane %v7735, 4
          %v7738 = vshll.u32 %v7603, 16
          %v7740 = vrot.slane %v7738, 5
          %v7741 = vor.u32 %v7737, %v7740
          %v7742 = vrot.slane %v7741, 4
          %v7744 = vshll.u32 %v7604, 16
          %v7746 = vrot.slane %v7744, 5
          %v7747 = vsel %vm7637, %v7742, %v7746
          %v7748 = vshrl.u32 %v7604, 16
          %v7750 = vrot.slane %v7748, 4
          %v7751 = vor.u32 %v7750, %v7746
          %v7752 = vrot.slane %v7751, 4
          %v7754 = vshll.u32 %v7631, 16
          %v7756 = vrot.slane %v7754, 5
          %v7757 = vsel %vm7637, %v7752, %v7756
          %v7759 = vshrl.u32 %v7605, 16
          %v7761 = vrot.slane %v7759, 4
          %v7762 = vshll.u32 %v7605, 16
          %v7764 = vrot.slane %v7762, 5
          %v7765 = vor.u32 %v7761, %v7764
          %v7766 = vrot.slane %v7765, 4
          %v7768 = vshll.u32 %v7606, 16
          %v7770 = vrot.slane %v7768, 5
          %v7771 = vsel %vm7637, %v7766, %v7770
          %v7772 = vshrl.u32 %v7606, 16
          %v7774 = vrot.slane %v7772, 4
          %v7775 = vor.u32 %v7774, %v7770
          %v7776 = vrot.slane %v7775, 4
          %v7778 = vshll.u32 %v7632, 16
          %v7780 = vrot.slane %v7778, 5
          %v7781 = vsel %vm7637, %v7776, %v7780
          %v7783 = vshrl.u32 %v7607, 16
          %v7785 = vrot.slane %v7783, 4
          %v7786 = vshll.u32 %v7607, 16
          %v7788 = vrot.slane %v7786, 5
          %v7789 = vor.u32 %v7785, %v7788
          %v7790 = vrot.slane %v7789, 4
          %v7792 = vshll.u32 %v7608, 16
          %v7794 = vrot.slane %v7792, 5
          %v7795 = vsel %vm7637, %v7790, %v7794
          %v7796 = vshrl.u32 %v7608, 16
          %v7798 = vrot.slane %v7796, 4
          %v7799 = vor.u32 %v7798, %v7794
          %v7800 = vrot.slane %v7799, 4
          %v7802 = vshll.u32 %v7633, 16
          %v7804 = vrot.slane %v7802, 5
          %v7805 = vsel %vm7637, %v7800, %v7804
          %v7807 = vshrl.u32 %v7609, 16
          %v7809 = vrot.slane %v7807, 4
          %v7810 = vshll.u32 %v7609, 16
          %v7812 = vrot.slane %v7810, 5
          %v7813 = vor.u32 %v7809, %v7812
          %v7814 = vrot.slane %v7813, 4
          %v7816 = vshll.u32 %v7610, 16
          %v7818 = vrot.slane %v7816, 5
          %v7819 = vsel %vm7637, %v7814, %v7818
          %v7820 = vshrl.u32 %v7610, 16
          %v7822 = vrot.slane %v7820, 4
          %v7823 = vor.u32 %v7822, %v7818
          %v7824 = vrot.slane %v7823, 4
          %v7826 = vshll.u32 %v7634, 16
          %v7828 = vrot.slane %v7826, 5
          %v7829 = vsel %vm7637, %v7824, %v7828
          %s7830 = scalar_lea.vmem [#allocation13], 64
          %v7831 = vld [vmem:[%s7830] sm:$0xf]
          %v7832 = vld [vmem:[%s7830 + $0x4] sm:$0xf]
          %v7833 = vld [vmem:[%s7830 + $0x8] sm:$0xf]
          %v7834 = vld [vmem:[%s7830 + $0xc] sm:$0xf]
          %v7835 = vld [vmem:[%s7830 + $0x10] sm:$0xf]
          %v7836 = vld [vmem:[%s7830 + $0x14] sm:$0xf]
          %v7837 = vld [vmem:[%s7830 + $0x18] sm:$0xf]
          %v7838 = vld [vmem:[%s7830 + $0x1c] sm:$0xf]
          %v7839 = vld [vmem:[%s7830 + $0x20] sm:$0xf]
          %v7840 = vld [vmem:[%s7830 + $0x24] sm:$0xf]
          %v7841 = vld [vmem:[%s7830 + $0x28] sm:$0xf]
          %v7842 = vld [vmem:[%s7830 + $0x2c] sm:$0xf]
          %v7843 = vld [vmem:[%s7830 + $0x30] sm:$0xf]
          %v7844 = vld [vmem:[%s7830 + $0x34] sm:$0xf]
          %v7845 = vld [vmem:[%s7830 + $0x38] sm:$0xf]
          %v7846 = vld [vmem:[%s7830 + $0x3c] sm:$0xf]
          %v7847 = vunpack.c.l.b16 %v7651
          %v7848 = vunpack.c.l.b16 %v7661
          %v7849 = vunpack.c.l.b16 %v7675
          %v7850 = vunpack.c.l.b16 %v7685
          %v7851 = vunpack.c.l.b16 %v7699
          %v7852 = vunpack.c.l.b16 %v7709
          %v7853 = vunpack.c.l.b16 %v7723
          %v7854 = vunpack.c.l.b16 %v7733
          %v7855 = vunpack.c.l.b16 %v7747
          %v7856 = vunpack.c.l.b16 %v7757
          %v7857 = vunpack.c.l.b16 %v7771
          %v7858 = vunpack.c.l.b16 %v7781
          %v7859 = vunpack.c.l.b16 %v7795
          %v7860 = vunpack.c.l.b16 %v7805
          %v7861 = vunpack.c.l.b16 %v7819
          %v7862 = vunpack.c.l.b16 %v7829
          %v7863 = vpack.c.b16 %v7848, %v7847
          %v7864 = vpack.c.b16 %v7850, %v7849
          %v7865 = vpack.c.b16 %v7852, %v7851
          %v7866 = vpack.c.b16 %v7854, %v7853
          %v7867 = vpack.c.b16 %v7856, %v7855
          %v7868 = vpack.c.b16 %v7858, %v7857
          %v7869 = vpack.c.b16 %v7860, %v7859
          %v7870 = vpack.c.b16 %v7862, %v7861
          %v7895 = vunpack.c.l.b16 %v7831
          %v7896 = vunpack.c.l.b16 %v7832
          %v7897 = vunpack.c.l.b16 %v7833
          %v7898 = vunpack.c.l.b16 %v7834
          %v7899 = vunpack.c.l.b16 %v7835
          %v7900 = vunpack.c.l.b16 %v7836
          %v7901 = vunpack.c.l.b16 %v7837
          %v7902 = vunpack.c.l.b16 %v7838
          %v7903 = vunpack.c.l.b16 %v7839
          %v7904 = vunpack.c.l.b16 %v7840
          %v7905 = vunpack.c.l.b16 %v7841
          %v7906 = vunpack.c.l.b16 %v7842
          %v7907 = vunpack.c.l.b16 %v7843
          %v7908 = vunpack.c.l.b16 %v7844
          %v7909 = vunpack.c.l.b16 %v7845
          %v7910 = vunpack.c.l.b16 %v7846
          %v7911 = vpack.c.b16 %v7896, %v7895
          %v7912 = vpack.c.b16 %v7898, %v7897
          %v7913 = vpack.c.b16 %v7900, %v7899
          %v7914 = vpack.c.b16 %v7902, %v7901
          %v7915 = vpack.c.b16 %v7904, %v7903
          %v7916 = vpack.c.b16 %v7906, %v7905
          %v7917 = vpack.c.b16 %v7908, %v7907
          %v7918 = vpack.c.b16 %v7910, %v7909
          %7927 = vmatprep.subr.bf16.mxu0 0
          %7928 = vmatpush1.bf16.msra.mxu0 %v7911
          %7929 = vmatprep.subr.bf16.mxu0 0
          %7930 = vmatpush1.bf16.msra.mxu0 %v7912
          %7931 = vmatprep.subr.bf16.mxu0 0
          %7932 = vmatpush1.bf16.msra.mxu0 %v7913
          %7933 = vmatprep.subr.bf16.mxu0 0
          %7934 = vmatpush1.bf16.msra.mxu0 %v7914
          %7935 = vmatprep.subr.bf16.mxu0 0
          %7936 = vmatpush1.bf16.msra.mxu0 %v7915
          %7937 = vmatprep.subr.bf16.mxu0 0
          %7938 = vmatpush1.bf16.msra.mxu0 %v7916
          %7939 = vmatprep.subr.bf16.mxu0 0
          %7940 = vmatpush1.bf16.msra.mxu0 %v7917
          %7941 = vmatprep.subr.bf16.mxu0 0
          %7942 = vmatpush1.bf16.msra.mxu0 %v7918
          %7943 = vmatprep.subr.bf16.mxu0 0
          %7944 = vmatpush1.bf16.msra.mxu0 0
          %7945 = vmatprep.subr.bf16.mxu0 0
          %7946 = vmatpush1.bf16.msra.mxu0 0
          %7947 = vmatprep.subr.bf16.mxu0 0
          %7948 = vmatpush1.bf16.msra.mxu0 0
          %7949 = vmatprep.subr.bf16.mxu0 0
          %7950 = vmatpush1.bf16.msra.mxu0 0
          %7951 = vmatprep.subr.bf16.mxu0 0
          %7952 = vmatpush1.bf16.msra.mxu0 0
          %7953 = vmatprep.subr.bf16.mxu0 0
          %7954 = vmatpush1.bf16.msra.mxu0 0
          %7955 = vmatprep.subr.bf16.mxu0 0
          %7956 = vmatpush1.bf16.msra.mxu0 0
          %7957 = vmatprep.subr.bf16.mxu0 0
          %7958 = vmatpush1.bf16.msra.mxu0 0
          %7959 = vmatprep.mubr.bf16.mxu0 0
          %7960 = vmatmul.mubr.bf16.gmra.mrb[0].mxu0 %v7863
          %v7961 = vpop.f32.mrb[0].mxu0
          %v7962 = vadd.f32 0.0, %v7961
          %v7963 = vpop.f32.mrb[0].mxu0
          %v7964 = vpop.f32.mrb[0].mxu0
          %v7965 = vadd.f32 0.0, %v7964
          %v7966 = vpop.f32.mrb[0].mxu0
          %7967 = vmatprep.mubr.bf16.mxu0 0
          %7968 = vmatmul.mubr.bf16.gmra.mrb[0].mxu0 %v7864
          %v7969 = vpop.f32.mrb[0].mxu0
          %v7970 = vadd.f32 0.0, %v7969
          %v7971 = vpop.f32.mrb[0].mxu0
          %v7972 = vpop.f32.mrb[0].mxu0
          %v7973 = vadd.f32 0.0, %v7972
          %v7974 = vpop.f32.mrb[0].mxu0
          %7975 = vmatprep.mubr.bf16.mxu0 0
          %7976 = vmatmul.mubr.bf16.gmra.mrb[0].mxu0 %v7865
          %v7977 = vpop.f32.mrb[0].mxu0
          %v7978 = vadd.f32 0.0, %v7977
          %v7979 = vpop.f32.mrb[0].mxu0
          %v7980 = vpop.f32.mrb[0].mxu0
          %v7981 = vadd.f32 0.0, %v7980
          %v7982 = vpop.f32.mrb[0].mxu0
          %7983 = vmatprep.mubr.bf16.mxu0 0
          %7984 = vmatmul.mubr.bf16.gmra.mrb[0].mxu0 %v7866
          %v7985 = vpop.f32.mrb[0].mxu0
          %v7986 = vadd.f32 0.0, %v7985
          %v7987 = vpop.f32.mrb[0].mxu0
          %v7988 = vpop.f32.mrb[0].mxu0
          %v7989 = vadd.f32 0.0, %v7988
          %v7990 = vpop.f32.mrb[0].mxu0
          %7991 = vmatprep.mubr.bf16.mxu0 0
          %7992 = vmatmul.mubr.bf16.gmra.mrb[0].mxu0 %v7867
          %v7993 = vpop.f32.mrb[0].mxu0
          %v7994 = vadd.f32 0.0, %v7993
          %v7995 = vpop.f32.mrb[0].mxu0
          %v7996 = vpop.f32.mrb[0].mxu0
          %v7997 = vadd.f32 0.0, %v7996
          %v7998 = vpop.f32.mrb[0].mxu0
          %7999 = vmatprep.mubr.bf16.mxu0 0
          %8000 = vmatmul.mubr.bf16.gmra.mrb[0].mxu0 %v7868
          %v8001 = vpop.f32.mrb[0].mxu0
          %v8002 = vadd.f32 0.0, %v8001
          %v8003 = vpop.f32.mrb[0].mxu0
          %v8004 = vpop.f32.mrb[0].mxu0
          %v8005 = vadd.f32 0.0, %v8004
          %v8006 = vpop.f32.mrb[0].mxu0
          %8007 = vmatprep.mubr.bf16.mxu0 0
          %8008 = vmatmul.mubr.bf16.gmra.mrb[0].mxu0 %v7869
          %v8009 = vpop.f32.mrb[0].mxu0
          %v8010 = vadd.f32 0.0, %v8009
          %v8011 = vpop.f32.mrb[0].mxu0
          %v8012 = vpop.f32.mrb[0].mxu0
          %v8013 = vadd.f32 0.0, %v8012
          %v8014 = vpop.f32.mrb[0].mxu0
          %8015 = vmatprep.mubr.bf16.mxu0 0
          %8016 = vmatmul.mubr.bf16.gmra.mrb[0].mxu0 %v7870
          %v8017 = vpop.f32.mrb[0].mxu0
          %v8018 = vadd.f32 0.0, %v8017
          %v8019 = vpop.f32.mrb[0].mxu0
          %v8020 = vpop.f32.mrb[0].mxu0
          %v8021 = vadd.f32 0.0, %v8020
          %v8022 = vpop.f32.mrb[0].mxu0
          %8023 = vdwg.mxu0
          %v8040 = vunpack.c.l.b16 %v7595
          %v8041 = vunpack.c.l.b16 %v7596
          %v8042 = vunpack.c.l.b16 %v7597
          %v8043 = vunpack.c.l.b16 %v7598
          %v8044 = vunpack.c.l.b16 %v7599
          %v8045 = vunpack.c.l.b16 %v7600
          %v8046 = vunpack.c.l.b16 %v7601
          %v8047 = vunpack.c.l.b16 %v7602
          %v8048 = vunpack.c.l.b16 %v7603
          %v8049 = vunpack.c.l.b16 %v7604
          %v8050 = vunpack.c.l.b16 %v7605
          %v8051 = vunpack.c.l.b16 %v7606
          %v8052 = vunpack.c.l.b16 %v7607
          %v8053 = vunpack.c.l.b16 %v7608
          %v8054 = vunpack.c.l.b16 %v7609
          %v8055 = vunpack.c.l.b16 %v7610
          %v8056 = vpack.c.b16 %v8041, %v8040
          %v8057 = vpack.c.b16 %v8043, %v8042
          %v8058 = vpack.c.b16 %v8045, %v8044
          %v8059 = vpack.c.b16 %v8047, %v8046
          %v8060 = vpack.c.b16 %v8049, %v8048
          %v8061 = vpack.c.b16 %v8051, %v8050
          %v8062 = vpack.c.b16 %v8053, %v8052
          %v8063 = vpack.c.b16 %v8055, %v8054
          %v8088 = vunpack.c.l.b16 %v7611
          %v8089 = vunpack.c.l.b16 %v7612
          %v8090 = vunpack.c.l.b16 %v7613
          %v8091 = vunpack.c.l.b16 %v7614
          %v8092 = vunpack.c.l.b16 %v7615
          %v8093 = vunpack.c.l.b16 %v7616
          %v8094 = vunpack.c.l.b16 %v7617
          %v8095 = vunpack.c.l.b16 %v7618
          %v8096 = vunpack.c.l.b16 %v7619
          %v8097 = vunpack.c.l.b16 %v7620
          %v8098 = vunpack.c.l.b16 %v7621
          %v8099 = vunpack.c.l.b16 %v7622
          %v8100 = vunpack.c.l.b16 %v7623
          %v8101 = vunpack.c.l.b16 %v7624
          %v8102 = vunpack.c.l.b16 %v7625
          %v8103 = vunpack.c.l.b16 %v7626
          %v8104 = vpack.c.b16 %v8089, %v8088
          %v8105 = vpack.c.b16 %v8091, %v8090
          %v8106 = vpack.c.b16 %v8093, %v8092
          %v8107 = vpack.c.b16 %v8095, %v8094
          %v8108 = vpack.c.b16 %v8097, %v8096
          %v8109 = vpack.c.b16 %v8099, %v8098
          %v8110 = vpack.c.b16 %v8101, %v8100
          %v8111 = vpack.c.b16 %v8103, %v8102
          %8120 = vmatprep.subr.bf16.mxu0 0
          %8121 = vmatpush1.bf16.msra.mxu0 %v8104
          %8122 = vmatprep.subr.bf16.mxu0 0
          %8123 = vmatpush1.bf16.msra.mxu0 %v8105
          %8124 = vmatprep.subr.bf16.mxu0 0
          %8125 = vmatpush1.bf16.msra.mxu0 %v8106
          %8126 = vmatprep.subr.bf16.mxu0 0
          %8127 = vmatpush1.bf16.msra.mxu0 %v8107
          %8128 = vmatprep.subr.bf16.mxu0 0
          %8129 = vmatpush1.bf16.msra.mxu0 %v8108
          %8130 = vmatprep.subr.bf16.mxu0 0
          %8131 = vmatpush1.bf16.msra.mxu0 %v8109
          %8132 = vmatprep.subr.bf16.mxu0 0
          %8133 = vmatpush1.bf16.msra.mxu0 %v8110
          %8134 = vmatprep.subr.bf16.mxu0 0
          %8135 = vmatpush1.bf16.msra.mxu0 %v8111
          %8136 = vmatprep.subr.bf16.mxu0 0
          %8137 = vmatpush1.bf16.msra.mxu0 0
          %8138 = vmatprep.subr.bf16.mxu0 0
          %8139 = vmatpush1.bf16.msra.mxu0 0
          %8140 = vmatprep.subr.bf16.mxu0 0
          %8141 = vmatpush1.bf16.msra.mxu0 0
          %8142 = vmatprep.subr.bf16.mxu0 0
          %8143 = vmatpush1.bf16.msra.mxu0 0
          %8144 = vmatprep.subr.bf16.mxu0 0
          %8145 = vmatpush1.bf16.msra.mxu0 0
          %8146 = vmatprep.subr.bf16.mxu0 0
          %8147 = vmatpush1.bf16.msra.mxu0 0
          %8148 = vmatprep.subr.bf16.mxu0 0
          %8149 = vmatpush1.bf16.msra.mxu0 0
          %8150 = vmatprep.subr.bf16.mxu0 0
          %8151 = vmatpush1.bf16.msra.mxu0 0
          %8152 = vmatprep.mubr.bf16.mxu0 0
          %8153 = vmatmul.mubr.bf16.gmra.mrb[0].mxu0 %v8056
          %v8154 = vpop.f32.mrb[0].mxu0
          %v8155 = vadd.f32 %v7962, %v8154
          %v8156 = vpop.f32.mrb[0].mxu0
          %v8157 = vpop.f32.mrb[0].mxu0
          %v8158 = vadd.f32 %v7965, %v8157
          %v8159 = vpop.f32.mrb[0].mxu0
          %8160 = vmatprep.mubr.bf16.mxu0 0
          %8161 = vmatmul.mubr.bf16.gmra.mrb[0].mxu0 %v8057
          %v8162 = vpop.f32.mrb[0].mxu0
          %v8163 = vadd.f32 %v7970, %v8162
          %v8164 = vpop.f32.mrb[0].mxu0
          %v8165 = vpop.f32.mrb[0].mxu0
          %v8166 = vadd.f32 %v7973, %v8165
          %v8167 = vpop.f32.mrb[0].mxu0
          %8168 = vmatprep.mubr.bf16.mxu0 0
          %8169 = vmatmul.mubr.bf16.gmra.mrb[0].mxu0 %v8058
          %v8170 = vpop.f32.mrb[0].mxu0
          %v8171 = vadd.f32 %v7978, %v8170
          %v8172 = vpop.f32.mrb[0].mxu0
          %v8173 = vpop.f32.mrb[0].mxu0
          %v8174 = vadd.f32 %v7981, %v8173
          %v8175 = vpop.f32.mrb[0].mxu0
          %8176 = vmatprep.mubr.bf16.mxu0 0
          %8177 = vmatmul.mubr.bf16.gmra.mrb[0].mxu0 %v8059
          %v8178 = vpop.f32.mrb[0].mxu0
          %v8179 = vadd.f32 %v7986, %v8178
          %v8180 = vpop.f32.mrb[0].mxu0
          %v8181 = vpop.f32.mrb[0].mxu0
          %v8182 = vadd.f32 %v7989, %v8181
          %v8183 = vpop.f32.mrb[0].mxu0
          %8184 = vmatprep.mubr.bf16.mxu0 0
          %8185 = vmatmul.mubr.bf16.gmra.mrb[0].mxu0 %v8060
          %v8186 = vpop.f32.mrb[0].mxu0
          %v8187 = vadd.f32 %v7994, %v8186
          %v8188 = vpop.f32.mrb[0].mxu0
          %v8189 = vpop.f32.mrb[0].mxu0
          %v8190 = vadd.f32 %v7997, %v8189
          %v8191 = vpop.f32.mrb[0].mxu0
          %8192 = vmatprep.mubr.bf16.mxu0 0
          %8193 = vmatmul.mubr.bf16.gmra.mrb[0].mxu0 %v8061
          %v8194 = vpop.f32.mrb[0].mxu0
          %v8195 = vadd.f32 %v8002, %v8194
          %v8196 = vpop.f32.mrb[0].mxu0
          %v8197 = vpop.f32.mrb[0].mxu0
          %v8198 = vadd.f32 %v8005, %v8197
          %v8199 = vpop.f32.mrb[0].mxu0
          %8200 = vmatprep.mubr.bf16.mxu0 0
          %8201 = vmatmul.mubr.bf16.gmra.mrb[0].mxu0 %v8062
          %v8202 = vpop.f32.mrb[0].mxu0
          %v8203 = vadd.f32 %v8010, %v8202
          %v8204 = vpop.f32.mrb[0].mxu0
          %v8205 = vpop.f32.mrb[0].mxu0
          %v8206 = vadd.f32 %v8013, %v8205
          %v8207 = vpop.f32.mrb[0].mxu0
          %8208 = vmatprep.mubr.bf16.mxu0 0
          %8209 = vmatmul.mubr.bf16.gmra.mrb[0].mxu0 %v8063
          %v8210 = vpop.f32.mrb[0].mxu0
          %v8211 = vadd.f32 %v8018, %v8210
          %v8212 = vpop.f32.mrb[0].mxu0
          %v8213 = vpop.f32.mrb[0].mxu0
          %v8214 = vadd.f32 %v8021, %v8213
          %v8215 = vpop.f32.mrb[0].mxu0
          %8216 = vdwg.mxu0
          %v8217 = vld [vmem:[%s7594] sm:$0xe]
          %v8218 = vld [vmem:[%s7594 + $0xc] sm:$0xe]
          %v8219 = vld [vmem:[%s7594 + $0x18] sm:$0xe]
          %v8220 = vld [vmem:[%s7594 + $0x24] sm:$0xe]
          %v8221 = vld [vmem:[%s7594 + $0x30] sm:$0xe]
          %v8222 = vld [vmem:[%s7594 + $0x3c] sm:$0xe]
          %v8223 = vld [vmem:[%s7594 + $0x48] sm:$0xe]
          %v8224 = vld [vmem:[%s7594 + $0x54] sm:$0xe]
          %vm8241 = vcmask 1042432
          %vm8242 = vcmask 1046532
          %vm8243 = vmor %vm8241, %vm8242
          %v8244 = vrot.slane %v8217, 5
          %v8245 = vrot.slane %v8244, 4
          %v8246 = vrot.slane %v7596, 5
          %v8247 = vsel %vm8243, %v8245, %v8246
          %v8248 = vrot.slane %v8246, 4
          %v8249 = vrot.slane %v7627, 5
          %v8250 = vsel %vm8243, %v8248, %v8249
          %v8251 = vrot.slane %v8218, 5
          %v8252 = vrot.slane %v8251, 4
          %v8253 = vrot.slane %v7598, 5
          %v8254 = vsel %vm8243, %v8252, %v8253
          %v8255 = vrot.slane %v8253, 4
          %v8256 = vrot.slane %v7628, 5
          %v8257 = vsel %vm8243, %v8255, %v8256
          %v8258 = vrot.slane %v8219, 5
          %v8259 = vrot.slane %v8258, 4
          %v8260 = vrot.slane %v7600, 5
          %v8261 = vsel %vm8243, %v8259, %v8260
          %v8262 = vrot.slane %v8260, 4
          %v8263 = vrot.slane %v7629, 5
          %v8264 = vsel %vm8243, %v8262, %v8263
          %v8265 = vrot.slane %v8220, 5
          %v8266 = vrot.slane %v8265, 4
          %v8267 = vrot.slane %v7602, 5
          %v8268 = vsel %vm8243, %v8266, %v8267
          %v8269 = vrot.slane %v8267, 4
          %v8270 = vrot.slane %v7630, 5
          %v8271 = vsel %vm8243, %v8269, %v8270
          %v8272 = vrot.slane %v8221, 5
          %v8273 = vrot.slane %v8272, 4
          %v8274 = vrot.slane %v7604, 5
          %v8275 = vsel %vm8243, %v8273, %v8274
          %v8276 = vrot.slane %v8274, 4
          %v8277 = vrot.slane %v7631, 5
          %v8278 = vsel %vm8243, %v8276, %v8277
          %v8279 = vrot.slane %v8222, 5
          %v8280 = vrot.slane %v8279, 4
          %v8281 = vrot.slane %v7606, 5
          %v8282 = vsel %vm8243, %v8280, %v8281
          %v8283 = vrot.slane %v8281, 4
          %v8284 = vrot.slane %v7632, 5
          %v8285 = vsel %vm8243, %v8283, %v8284
          %v8286 = vrot.slane %v8223, 5
          %v8287 = vrot.slane %v8286, 4
          %v8288 = vrot.slane %v7608, 5
          %v8289 = vsel %vm8243, %v8287, %v8288
          %v8290 = vrot.slane %v8288, 4
          %v8291 = vrot.slane %v7633, 5
          %v8292 = vsel %vm8243, %v8290, %v8291
          %v8293 = vrot.slane %v8224, 5
          %v8294 = vrot.slane %v8293, 4
          %v8295 = vrot.slane %v7610, 5
          %v8296 = vsel %vm8243, %v8294, %v8295
          %v8297 = vrot.slane %v8295, 4
          %v8298 = vrot.slane %v7634, 5
          %v8299 = vsel %vm8243, %v8297, %v8298
          %s8300 = scalar_lea.vmem [#allocation13], 128
          %v8301 = vld [vmem:[%s8300] sm:$0xf]
          %v8302 = vld [vmem:[%s8300 + $0x4] sm:$0xf]
          %v8303 = vld [vmem:[%s8300 + $0x8] sm:$0xf]
          %v8304 = vld [vmem:[%s8300 + $0xc] sm:$0xf]
          %v8305 = vld [vmem:[%s8300 + $0x10] sm:$0xf]
          %v8306 = vld [vmem:[%s8300 + $0x14] sm:$0xf]
          %v8307 = vld [vmem:[%s8300 + $0x18] sm:$0xf]
          %v8308 = vld [vmem:[%s8300 + $0x1c] sm:$0xf]
          %v8309 = vld [vmem:[%s8300 + $0x20] sm:$0xf]
          %v8310 = vld [vmem:[%s8300 + $0x24] sm:$0xf]
          %v8311 = vld [vmem:[%s8300 + $0x28] sm:$0xf]
          %v8312 = vld [vmem:[%s8300 + $0x2c] sm:$0xf]
          %v8313 = vld [vmem:[%s8300 + $0x30] sm:$0xf]
          %v8314 = vld [vmem:[%s8300 + $0x34] sm:$0xf]
          %v8315 = vld [vmem:[%s8300 + $0x38] sm:$0xf]
          %v8316 = vld [vmem:[%s8300 + $0x3c] sm:$0xf]
          %v8317 = vunpack.c.l.b16 %v8247
          %v8318 = vunpack.c.l.b16 %v8250
          %v8319 = vunpack.c.l.b16 %v8254
          %v8320 = vunpack.c.l.b16 %v8257
          %v8321 = vunpack.c.l.b16 %v8261
          %v8322 = vunpack.c.l.b16 %v8264
          %v8323 = vunpack.c.l.b16 %v8268
          %v8324 = vunpack.c.l.b16 %v8271
          %v8325 = vunpack.c.l.b16 %v8275
          %v8326 = vunpack.c.l.b16 %v8278
          %v8327 = vunpack.c.l.b16 %v8282
          %v8328 = vunpack.c.l.b16 %v8285
          %v8329 = vunpack.c.l.b16 %v8289
          %v8330 = vunpack.c.l.b16 %v8292
          %v8331 = vunpack.c.l.b16 %v8296
          %v8332 = vunpack.c.l.b16 %v8299
          %v8333 = vpack.c.b16 %v8318, %v8317
          %v8334 = vpack.c.b16 %v8320, %v8319
          %v8335 = vpack.c.b16 %v8322, %v8321
          %v8336 = vpack.c.b16 %v8324, %v8323
          %v8337 = vpack.c.b16 %v8326, %v8325
          %v8338 = vpack.c.b16 %v8328, %v8327
          %v8339 = vpack.c.b16 %v8330, %v8329
          %v8340 = vpack.c.b16 %v8332, %v8331
          %v8365 = vunpack.c.l.b16 %v8301
          %v8366 = vunpack.c.l.b16 %v8302
          %v8367 = vunpack.c.l.b16 %v8303
          %v8368 = vunpack.c.l.b16 %v8304
          %v8369 = vunpack.c.l.b16 %v8305
          %v8370 = vunpack.c.l.b16 %v8306
          %v8371 = vunpack.c.l.b16 %v8307
          %v8372 = vunpack.c.l.b16 %v8308
          %v8373 = vunpack.c.l.b16 %v8309
          %v8374 = vunpack.c.l.b16 %v8310
          %v8375 = vunpack.c.l.b16 %v8311
          %v8376 = vunpack.c.l.b16 %v8312
          %v8377 = vunpack.c.l.b16 %v8313
          %v8378 = vunpack.c.l.b16 %v8314
          %v8379 = vunpack.c.l.b16 %v8315
          %v8380 = vunpack.c.l.b16 %v8316
          %v8381 = vpack.c.b16 %v8366, %v8365
          %v8382 = vpack.c.b16 %v8368, %v8367
          %v8383 = vpack.c.b16 %v8370, %v8369
          %v8384 = vpack.c.b16 %v8372, %v8371
          %v8385 = vpack.c.b16 %v8374, %v8373
          %v8386 = vpack.c.b16 %v8376, %v8375
          %v8387 = vpack.c.b16 %v8378, %v8377
          %v8388 = vpack.c.b16 %v8380, %v8379
          %8397 = vmatprep.subr.bf16.mxu0 0
          %8398 = vmatpush1.bf16.msra.mxu0 %v8381
          %8399 = vmatprep.subr.bf16.mxu0 0
          %8400 = vmatpush1.bf16.msra.mxu0 %v8382
          %8401 = vmatprep.subr.bf16.mxu0 0
          %8402 = vmatpush1.bf16.msra.mxu0 %v8383
          %8403 = vmatprep.subr.bf16.mxu0 0
          %8404 = vmatpush1.bf16.msra.mxu0 %v8384
          %8405 = vmatprep.subr.bf16.mxu0 0
          %8406 = vmatpush1.bf16.msra.mxu0 %v8385
          %8407 = vmatprep.subr.bf16.mxu0 0
          %8408 = vmatpush1.bf16.msra.mxu0 %v8386
          %8409 = vmatprep.subr.bf16.mxu0 0
          %8410 = vmatpush1.bf16.msra.mxu0 %v8387
          %8411 = vmatprep.subr.bf16.mxu0 0
          %8412 = vmatpush1.bf16.msra.mxu0 %v8388
          %8413 = vmatprep.subr.bf16.mxu0 0
          %8414 = vmatpush1.bf16.msra.mxu0 0
          %8415 = vmatprep.subr.bf16.mxu0 0
          %8416 = vmatpush1.bf16.msra.mxu0 0
          %8417 = vmatprep.subr.bf16.mxu0 0
          %8418 = vmatpush1.bf16.msra.mxu0 0
          %8419 = vmatprep.subr.bf16.mxu0 0
          %8420 = vmatpush1.bf16.msra.mxu0 0
          %8421 = vmatprep.subr.bf16.mxu0 0
          %8422 = vmatpush1.bf16.msra.mxu0 0
          %8423 = vmatprep.subr.bf16.mxu0 0
          %8424 = vmatpush1.bf16.msra.mxu0 0
          %8425 = vmatprep.subr.bf16.mxu0 0
          %8426 = vmatpush1.bf16.msra.mxu0 0
          %8427 = vmatprep.subr.bf16.mxu0 0
          %8428 = vmatpush1.bf16.msra.mxu0 0
          %8429 = vmatprep.mubr.bf16.mxu0 0
          %8430 = vmatmul.mubr.bf16.gmra.mrb[0].mxu0 %v8333
          %v8431 = vpop.f32.mrb[0].mxu0
          %v8432 = vadd.f32 0.0, %v8431
          %v8433 = vpop.f32.mrb[0].mxu0
          %v8434 = vpop.f32.mrb[0].mxu0
          %v8435 = vadd.f32 0.0, %v8434
          %v8436 = vpop.f32.mrb[0].mxu0
          %8437 = vmatprep.mubr.bf16.mxu0 0
          %8438 = vmatmul.mubr.bf16.gmra.mrb[0].mxu0 %v8334
          %v8439 = vpop.f32.mrb[0].mxu0
          %v8440 = vadd.f32 0.0, %v8439
          %v8441 = vpop.f32.mrb[0].mxu0
          %v8442 = vpop.f32.mrb[0].mxu0
          %v8443 = vadd.f32 0.0, %v8442
          %v8444 = vpop.f32.mrb[0].mxu0
          %8445 = vmatprep.mubr.bf16.mxu0 0
          %8446 = vmatmul.mubr.bf16.gmra.mrb[0].mxu0 %v8335
          %v8447 = vpop.f32.mrb[0].mxu0
          %v8448 = vadd.f32 0.0, %v8447
          %v8449 = vpop.f32.mrb[0].mxu0
          %v8450 = vpop.f32.mrb[0].mxu0
          %v8451 = vadd.f32 0.0, %v8450
          %v8452 = vpop.f32.mrb[0].mxu0
          %8453 = vmatprep.mubr.bf16.mxu0 0
          %8454 = vmatmul.mubr.bf16.gmra.mrb[0].mxu0 %v8336
          %v8455 = vpop.f32.mrb[0].mxu0
          %v8456 = vadd.f32 0.0, %v8455
          %v8457 = vpop.f32.mrb[0].mxu0
          %v8458 = vpop.f32.mrb[0].mxu0
          %v8459 = vadd.f32 0.0, %v8458
          %v8460 = vpop.f32.mrb[0].mxu0
          %8461 = vmatprep.mubr.bf16.mxu0 0
          %8462 = vmatmul.mubr.bf16.gmra.mrb[0].mxu0 %v8337
          %v8463 = vpop.f32.mrb[0].mxu0
          %v8464 = vadd.f32 0.0, %v8463
          %v8465 = vpop.f32.mrb[0].mxu0
          %v8466 = vpop.f32.mrb[0].mxu0
          %v8467 = vadd.f32 0.0, %v8466
          %v8468 = vpop.f32.mrb[0].mxu0
          %8469 = vmatprep.mubr.bf16.mxu0 0
          %8470 = vmatmul.mubr.bf16.gmra.mrb[0].mxu0 %v8338
          %v8471 = vpop.f32.mrb[0].mxu0
          %v8472 = vadd.f32 0.0, %v8471
          %v8473 = vpop.f32.mrb[0].mxu0
          %v8474 = vpop.f32.mrb[0].mxu0
          %v8475 = vadd.f32 0.0, %v8474
          %v8476 = vpop.f32.mrb[0].mxu0
          %8477 = vmatprep.mubr.bf16.mxu0 0
          %8478 = vmatmul.mubr.bf16.gmra.mrb[0].mxu0 %v8339
          %v8479 = vpop.f32.mrb[0].mxu0
          %v8480 = vadd.f32 0.0, %v8479
          %v8481 = vpop.f32.mrb[0].mxu0
          %v8482 = vpop.f32.mrb[0].mxu0
          %v8483 = vadd.f32 0.0, %v8482
          %v8484 = vpop.f32.mrb[0].mxu0
          %8485 = vmatprep.mubr.bf16.mxu0 0
          %8486 = vmatmul.mubr.bf16.gmra.mrb[0].mxu0 %v8340
          %v8487 = vpop.f32.mrb[0].mxu0
          %v8488 = vadd.f32 0.0, %v8487
          %v8489 = vpop.f32.mrb[0].mxu0
          %v8490 = vpop.f32.mrb[0].mxu0
          %v8491 = vadd.f32 0.0, %v8490
          %v8492 = vpop.f32.mrb[0].mxu0
          %8493 = vdwg.mxu0
          %v8494 = vadd.f32 %v8155, %v8432
          %v8495 = vadd.f32 %v8158, %v8435
          %v8496 = vadd.f32 %v8163, %v8440
          %v8497 = vadd.f32 %v8166, %v8443
          %v8498 = vadd.f32 %v8171, %v8448
          %v8499 = vadd.f32 %v8174, %v8451
          %v8500 = vadd.f32 %v8179, %v8456
          %v8501 = vadd.f32 %v8182, %v8459
          %v8502 = vadd.f32 %v8187, %v8464
          %v8503 = vadd.f32 %v8190, %v8467
          %v8504 = vadd.f32 %v8195, %v8472
          %v8505 = vadd.f32 %v8198, %v8475
          %v8506 = vadd.f32 %v8203, %v8480
          %v8507 = vadd.f32 %v8206, %v8483
          %v8508 = vadd.f32 %v8211, %v8488
          %v8509 = vadd.f32 %v8214, %v8491
          %s8510 = sadd.s32 %s7591, 1
          %s8511 = smul.u32 %s8510, 3
          %s8512 = smul.addr %s8511, 4
          %s8513 = scalar_lea.vmem [#allocation2], %s8512
          %v8514 = vld [vmem:[%s8513] sm:$0xf]
          %v8515 = vld [vmem:[%s8513 + $0x4] sm:$0xf]
          %v8516 = vld [vmem:[%s8513 + $0xc] sm:$0xf]
          %v8517 = vld [vmem:[%s8513 + $0x10] sm:$0xf]
          %v8518 = vld [vmem:[%s8513 + $0x18] sm:$0xf]
          %v8519 = vld [vmem:[%s8513 + $0x1c] sm:$0xf]
          %v8520 = vld [vmem:[%s8513 + $0x24] sm:$0xf]
          %v8521 = vld [vmem:[%s8513 + $0x28] sm:$0xf]
          %v8522 = vld [vmem:[%s8513 + $0x30] sm:$0xf]
          %v8523 = vld [vmem:[%s8513 + $0x34] sm:$0xf]
          %v8524 = vld [vmem:[%s8513 + $0x3c] sm:$0xf]
          %v8525 = vld [vmem:[%s8513 + $0x40] sm:$0xf]
          %v8526 = vld [vmem:[%s8513 + $0x48] sm:$0xf]
          %v8527 = vld [vmem:[%s8513 + $0x4c] sm:$0xf]
          %v8528 = vld [vmem:[%s8513 + $0x54] sm:$0xf]
          %v8529 = vld [vmem:[%s8513 + $0x58] sm:$0xf]
          %s8530 = scalar_lea.vmem [#allocation13], 192
          %v8531 = vld [vmem:[%s8530] sm:$0xf]
          %v8532 = vld [vmem:[%s8530 + $0x4] sm:$0xf]
          %v8533 = vld [vmem:[%s8530 + $0x8] sm:$0xf]
          %v8534 = vld [vmem:[%s8530 + $0xc] sm:$0xf]
          %v8535 = vld [vmem:[%s8530 + $0x10] sm:$0xf]
          %v8536 = vld [vmem:[%s8530 + $0x14] sm:$0xf]
          %v8537 = vld [vmem:[%s8530 + $0x18] sm:$0xf]
          %v8538 = vld [vmem:[%s8530 + $0x1c] sm:$0xf]
          %v8539 = vld [vmem:[%s8530 + $0x20] sm:$0xf]
          %v8540 = vld [vmem:[%s8530 + $0x24] sm:$0xf]
          %v8541 = vld [vmem:[%s8530 + $0x28] sm:$0xf]
          %v8542 = vld [vmem:[%s8530 + $0x2c] sm:$0xf]
          %v8543 = vld [vmem:[%s8530 + $0x30] sm:$0xf]
          %v8544 = vld [vmem:[%s8530 + $0x34] sm:$0xf]
          %v8545 = vld [vmem:[%s8530 + $0x38] sm:$0xf]
          %v8546 = vld [vmem:[%s8530 + $0x3c] sm:$0xf]
          %v8563 = vunpack.c.l.b16 %v8514
          %v8564 = vunpack.c.l.b16 %v8515
          %v8565 = vunpack.c.l.b16 %v8516
          %v8566 = vunpack.c.l.b16 %v8517
          %v8567 = vunpack.c.l.b16 %v8518
          %v8568 = vunpack.c.l.b16 %v8519
          %v8569 = vunpack.c.l.b16 %v8520
          %v8570 = vunpack.c.l.b16 %v8521
          %v8571 = vunpack.c.l.b16 %v8522
          %v8572 = vunpack.c.l.b16 %v8523
          %v8573 = vunpack.c.l.b16 %v8524
          %v8574 = vunpack.c.l.b16 %v8525
          %v8575 = vunpack.c.l.b16 %v8526
          %v8576 = vunpack.c.l.b16 %v8527
          %v8577 = vunpack.c.l.b16 %v8528
          %v8578 = vunpack.c.l.b16 %v8529
          %v8579 = vpack.c.b16 %v8564, %v8563
          %v8580 = vpack.c.b16 %v8566, %v8565
          %v8581 = vpack.c.b16 %v8568, %v8567
          %v8582 = vpack.c.b16 %v8570, %v8569
          %v8583 = vpack.c.b16 %v8572, %v8571
          %v8584 = vpack.c.b16 %v8574, %v8573
          %v8585 = vpack.c.b16 %v8576, %v8575
          %v8586 = vpack.c.b16 %v8578, %v8577
          %v8611 = vunpack.c.l.b16 %v8531
          %v8612 = vunpack.c.l.b16 %v8532
          %v8613 = vunpack.c.l.b16 %v8533
          %v8614 = vunpack.c.l.b16 %v8534
          %v8615 = vunpack.c.l.b16 %v8535
          %v8616 = vunpack.c.l.b16 %v8536
          %v8617 = vunpack.c.l.b16 %v8537
          %v8618 = vunpack.c.l.b16 %v8538
          %v8619 = vunpack.c.l.b16 %v8539
          %v8620 = vunpack.c.l.b16 %v8540
          %v8621 = vunpack.c.l.b16 %v8541
          %v8622 = vunpack.c.l.b16 %v8542
          %v8623 = vunpack.c.l.b16 %v8543
          %v8624 = vunpack.c.l.b16 %v8544
          %v8625 = vunpack.c.l.b16 %v8545
          %v8626 = vunpack.c.l.b16 %v8546
          %v8627 = vpack.c.b16 %v8612, %v8611
          %v8628 = vpack.c.b16 %v8614, %v8613
          %v8629 = vpack.c.b16 %v8616, %v8615
          %v8630 = vpack.c.b16 %v8618, %v8617
          %v8631 = vpack.c.b16 %v8620, %v8619
          %v8632 = vpack.c.b16 %v8622, %v8621
          %v8633 = vpack.c.b16 %v8624, %v8623
          %v8634 = vpack.c.b16 %v8626, %v8625
          %8643 = vmatprep.subr.bf16.mxu0 0
          %8644 = vmatpush1.bf16.msra.mxu0 %v8627
          %8645 = vmatprep.subr.bf16.mxu0 0
          %8646 = vmatpush1.bf16.msra.mxu0 %v8628
          %8647 = vmatprep.subr.bf16.mxu0 0
          %8648 = vmatpush1.bf16.msra.mxu0 %v8629
          %8649 = vmatprep.subr.bf16.mxu0 0
          %8650 = vmatpush1.bf16.msra.mxu0 %v8630
          %8651 = vmatprep.subr.bf16.mxu0 0
          %8652 = vmatpush1.bf16.msra.mxu0 %v8631
          %8653 = vmatprep.subr.bf16.mxu0 0
          %8654 = vmatpush1.bf16.msra.mxu0 %v8632
          %8655 = vmatprep.subr.bf16.mxu0 0
          %8656 = vmatpush1.bf16.msra.mxu0 %v8633
          %8657 = vmatprep.subr.bf16.mxu0 0
          %8658 = vmatpush1.bf16.msra.mxu0 %v8634
          %8659 = vmatprep.subr.bf16.mxu0 0
          %8660 = vmatpush1.bf16.msra.mxu0 0
          %8661 = vmatprep.subr.bf16.mxu0 0
          %8662 = vmatpush1.bf16.msra.mxu0 0
          %8663 = vmatprep.subr.bf16.mxu0 0
          %8664 = vmatpush1.bf16.msra.mxu0 0
          %8665 = vmatprep.subr.bf16.mxu0 0
          %8666 = vmatpush1.bf16.msra.mxu0 0
          %8667 = vmatprep.subr.bf16.mxu0 0
          %8668 = vmatpush1.bf16.msra.mxu0 0
          %8669 = vmatprep.subr.bf16.mxu0 0
          %8670 = vmatpush1.bf16.msra.mxu0 0
          %8671 = vmatprep.subr.bf16.mxu0 0
          %8672 = vmatpush1.bf16.msra.mxu0 0
          %8673 = vmatprep.subr.bf16.mxu0 0
          %8674 = vmatpush1.bf16.msra.mxu0 0
          %8675 = vmatprep.mubr.bf16.mxu0 0
          %8676 = vmatmul.mubr.bf16.gmra.mrb[0].mxu0 %v8579
          %v8677 = vpop.f32.mrb[0].mxu0
          %v8678 = vadd.f32 0.0, %v8677
          %v8679 = vpop.f32.mrb[0].mxu0
          %v8680 = vpop.f32.mrb[0].mxu0
          %v8681 = vadd.f32 0.0, %v8680
          %v8682 = vpop.f32.mrb[0].mxu0
          %8683 = vmatprep.mubr.bf16.mxu0 0
          %8684 = vmatmul.mubr.bf16.gmra.mrb[0].mxu0 %v8580
          %v8685 = vpop.f32.mrb[0].mxu0
          %v8686 = vadd.f32 0.0, %v8685
          %v8687 = vpop.f32.mrb[0].mxu0
          %v8688 = vpop.f32.mrb[0].mxu0
          %v8689 = vadd.f32 0.0, %v8688
          %v8690 = vpop.f32.mrb[0].mxu0
          %8691 = vmatprep.mubr.bf16.mxu0 0
          %8692 = vmatmul.mubr.bf16.gmra.mrb[0].mxu0 %v8581
          %v8693 = vpop.f32.mrb[0].mxu0
          %v8694 = vadd.f32 0.0, %v8693
          %v8695 = vpop.f32.mrb[0].mxu0
          %v8696 = vpop.f32.mrb[0].mxu0
          %v8697 = vadd.f32 0.0, %v8696
          %v8698 = vpop.f32.mrb[0].mxu0
          %8699 = vmatprep.mubr.bf16.mxu0 0
          %8700 = vmatmul.mubr.bf16.gmra.mrb[0].mxu0 %v8582
          %v8701 = vpop.f32.mrb[0].mxu0
          %v8702 = vadd.f32 0.0, %v8701
          %v8703 = vpop.f32.mrb[0].mxu0
          %v8704 = vpop.f32.mrb[0].mxu0
          %v8705 = vadd.f32 0.0, %v8704
          %v8706 = vpop.f32.mrb[0].mxu0
          %8707 = vmatprep.mubr.bf16.mxu0 0
          %8708 = vmatmul.mubr.bf16.gmra.mrb[0].mxu0 %v8583
          %v8709 = vpop.f32.mrb[0].mxu0
          %v8710 = vadd.f32 0.0, %v8709
          %v8711 = vpop.f32.mrb[0].mxu0
          %v8712 = vpop.f32.mrb[0].mxu0
          %v8713 = vadd.f32 0.0, %v8712
          %v8714 = vpop.f32.mrb[0].mxu0
          %8715 = vmatprep.mubr.bf16.mxu0 0
          %8716 = vmatmul.mubr.bf16.gmra.mrb[0].mxu0 %v8584
          %v8717 = vpop.f32.mrb[0].mxu0
          %v8718 = vadd.f32 0.0, %v8717
          %v8719 = vpop.f32.mrb[0].mxu0
          %v8720 = vpop.f32.mrb[0].mxu0
          %v8721 = vadd.f32 0.0, %v8720
          %v8722 = vpop.f32.mrb[0].mxu0
          %8723 = vmatprep.mubr.bf16.mxu0 0
          %8724 = vmatmul.mubr.bf16.gmra.mrb[0].mxu0 %v8585
          %v8725 = vpop.f32.mrb[0].mxu0
          %v8726 = vadd.f32 0.0, %v8725
          %v8727 = vpop.f32.mrb[0].mxu0
          %v8728 = vpop.f32.mrb[0].mxu0
          %v8729 = vadd.f32 0.0, %v8728
          %v8730 = vpop.f32.mrb[0].mxu0
          %8731 = vmatprep.mubr.bf16.mxu0 0
          %8732 = vmatmul.mubr.bf16.gmra.mrb[0].mxu0 %v8586
          %v8733 = vpop.f32.mrb[0].mxu0
          %v8734 = vadd.f32 0.0, %v8733
          %v8735 = vpop.f32.mrb[0].mxu0
          %v8736 = vpop.f32.mrb[0].mxu0
          %v8737 = vadd.f32 0.0, %v8736
          %v8738 = vpop.f32.mrb[0].mxu0
          %8739 = vdwg.mxu0
          %v8740 = vadd.f32 %v8494, %v8678
          %v8741 = vadd.f32 %v8495, %v8681
          %v8742 = vadd.f32 %v8496, %v8686
          %v8743 = vadd.f32 %v8497, %v8689
          %v8744 = vadd.f32 %v8498, %v8694
          %v8745 = vadd.f32 %v8499, %v8697
          %v8746 = vadd.f32 %v8500, %v8702
          %v8747 = vadd.f32 %v8501, %v8705
          %v8748 = vadd.f32 %v8502, %v8710
          %v8749 = vadd.f32 %v8503, %v8713
          %v8750 = vadd.f32 %v8504, %v8718
          %v8751 = vadd.f32 %v8505, %v8721
          %v8752 = vadd.f32 %v8506, %v8726
          %v8753 = vadd.f32 %v8507, %v8729
          %v8754 = vadd.f32 %v8508, %v8734
          %v8755 = vadd.f32 %v8509, %v8737
          %v8756 = vld [vmem:[%s8513] sm:$0xf]
          %v8757 = vld [vmem:[%s8513 + $0x4] sm:$0xf]
          %v8758 = vld [vmem:[%s8513 + $0x8] sm:$0x1]
          %v8759 = vld [vmem:[%s8513 + $0xc] sm:$0xf]
          %v8760 = vld [vmem:[%s8513 + $0x10] sm:$0xf]
          %v8761 = vld [vmem:[%s8513 + $0x14] sm:$0x1]
          %v8762 = vld [vmem:[%s8513 + $0x18] sm:$0xf]
          %v8763 = vld [vmem:[%s8513 + $0x1c] sm:$0xf]
          %v8764 = vld [vmem:[%s8513 + $0x20] sm:$0x1]
          %v8765 = vld [vmem:[%s8513 + $0x24] sm:$0xf]
          %v8766 = vld [vmem:[%s8513 + $0x28] sm:$0xf]
          %v8767 = vld [vmem:[%s8513 + $0x2c] sm:$0x1]
          %v8768 = vld [vmem:[%s8513 + $0x30] sm:$0xf]
          %v8769 = vld [vmem:[%s8513 + $0x34] sm:$0xf]
          %v8770 = vld [vmem:[%s8513 + $0x38] sm:$0x1]
          %v8771 = vld [vmem:[%s8513 + $0x3c] sm:$0xf]
          %v8772 = vld [vmem:[%s8513 + $0x40] sm:$0xf]
          %v8773 = vld [vmem:[%s8513 + $0x44] sm:$0x1]
          %v8774 = vld [vmem:[%s8513 + $0x48] sm:$0xf]
          %v8775 = vld [vmem:[%s8513 + $0x4c] sm:$0xf]
          %v8776 = vld [vmem:[%s8513 + $0x50] sm:$0x1]
          %v8777 = vld [vmem:[%s8513 + $0x54] sm:$0xf]
          %v8778 = vld [vmem:[%s8513 + $0x58] sm:$0xf]
          %v8779 = vld [vmem:[%s8513 + $0x5c] sm:$0x1]
          %v8781 = vshrl.u32 %v8756, 16
          %v8783 = vrot.slane %v8781, 4
          %v8784 = vshll.u32 %v8756, 16
          %v8786 = vrot.slane %v8784, 5
          %v8787 = vor.u32 %v8783, %v8786
          %v8788 = vrot.slane %v8787, 4
          %v8790 = vshll.u32 %v8757, 16
          %v8792 = vrot.slane %v8790, 5
          %v8793 = vsel %vm7637, %v8788, %v8792
          %v8794 = vshrl.u32 %v8757, 16
          %v8796 = vrot.slane %v8794, 4
          %v8797 = vor.u32 %v8796, %v8792
          %v8798 = vrot.slane %v8797, 4
          %v8800 = vshll.u32 %v8758, 16
          %v8802 = vrot.slane %v8800, 5
          %v8803 = vsel %vm7637, %v8798, %v8802
          %v8805 = vshrl.u32 %v8759, 16
          %v8807 = vrot.slane %v8805, 4
          %v8808 = vshll.u32 %v8759, 16
          %v8810 = vrot.slane %v8808, 5
          %v8811 = vor.u32 %v8807, %v8810
          %v8812 = vrot.slane %v8811, 4
          %v8814 = vshll.u32 %v8760, 16
          %v8816 = vrot.slane %v8814, 5
          %v8817 = vsel %vm7637, %v8812, %v8816
          %v8818 = vshrl.u32 %v8760, 16
          %v8820 = vrot.slane %v8818, 4
          %v8821 = vor.u32 %v8820, %v8816
          %v8822 = vrot.slane %v8821, 4
          %v8824 = vshll.u32 %v8761, 16
          %v8826 = vrot.slane %v8824, 5
          %v8827 = vsel %vm7637, %v8822, %v8826
          %v8829 = vshrl.u32 %v8762, 16
          %v8831 = vrot.slane %v8829, 4
          %v8832 = vshll.u32 %v8762, 16
          %v8834 = vrot.slane %v8832, 5
          %v8835 = vor.u32 %v8831, %v8834
          %v8836 = vrot.slane %v8835, 4
          %v8838 = vshll.u32 %v8763, 16
          %v8840 = vrot.slane %v8838, 5
          %v8841 = vsel %vm7637, %v8836, %v8840
          %v8842 = vshrl.u32 %v8763, 16
          %v8844 = vrot.slane %v8842, 4
          %v8845 = vor.u32 %v8844, %v8840
          %v8846 = vrot.slane %v8845, 4
          %v8848 = vshll.u32 %v8764, 16
          %v8850 = vrot.slane %v8848, 5
          %v8851 = vsel %vm7637, %v8846, %v8850
          %v8853 = vshrl.u32 %v8765, 16
          %v8855 = vrot.slane %v8853, 4
          %v8856 = vshll.u32 %v8765, 16
          %v8858 = vrot.slane %v8856, 5
          %v8859 = vor.u32 %v8855, %v8858
          %v8860 = vrot.slane %v8859, 4
          %v8862 = vshll.u32 %v8766, 16
          %v8864 = vrot.slane %v8862, 5
          %v8865 = vsel %vm7637, %v8860, %v8864
          %v8866 = vshrl.u32 %v8766, 16
          %v8868 = vrot.slane %v8866, 4
          %v8869 = vor.u32 %v8868, %v8864
          %v8870 = vrot.slane %v8869, 4
          %v8872 = vshll.u32 %v8767, 16
          %v8874 = vrot.slane %v8872, 5
          %v8875 = vsel %vm7637, %v8870, %v8874
          %v8877 = vshrl.u32 %v8768, 16
          %v8879 = vrot.slane %v8877, 4
          %v8880 = vshll.u32 %v8768, 16
          %v8882 = vrot.slane %v8880, 5
          %v8883 = vor.u32 %v8879, %v8882
          %v8884 = vrot.slane %v8883, 4
          %v8886 = vshll.u32 %v8769, 16
          %v8888 = vrot.slane %v8886, 5
          %v8889 = vsel %vm7637, %v8884, %v8888
          %v8890 = vshrl.u32 %v8769, 16
          %v8892 = vrot.slane %v8890, 4
          %v8893 = vor.u32 %v8892, %v8888
          %v8894 = vrot.slane %v8893, 4
          %v8896 = vshll.u32 %v8770, 16
          %v8898 = vrot.slane %v8896, 5
          %v8899 = vsel %vm7637, %v8894, %v8898
          %v8901 = vshrl.u32 %v8771, 16
          %v8903 = vrot.slane %v8901, 4
          %v8904 = vshll.u32 %v8771, 16
          %v8906 = vrot.slane %v8904, 5
          %v8907 = vor.u32 %v8903, %v8906
          %v8908 = vrot.slane %v8907, 4
          %v8910 = vshll.u32 %v8772, 16
          %v8912 = vrot.slane %v8910, 5
          %v8913 = vsel %vm7637, %v8908, %v8912
          %v8914 = vshrl.u32 %v8772, 16
          %v8916 = vrot.slane %v8914, 4
          %v8917 = vor.u32 %v8916, %v8912
          %v8918 = vrot.slane %v8917, 4
          %v8920 = vshll.u32 %v8773, 16
          %v8922 = vrot.slane %v8920, 5
          %v8923 = vsel %vm7637, %v8918, %v8922
          %v8925 = vshrl.u32 %v8774, 16
          %v8927 = vrot.slane %v8925, 4
          %v8928 = vshll.u32 %v8774, 16
          %v8930 = vrot.slane %v8928, 5
          %v8931 = vor.u32 %v8927, %v8930
          %v8932 = vrot.slane %v8931, 4
          %v8934 = vshll.u32 %v8775, 16
          %v8936 = vrot.slane %v8934, 5
          %v8937 = vsel %vm7637, %v8932, %v8936
          %v8938 = vshrl.u32 %v8775, 16
          %v8940 = vrot.slane %v8938, 4
          %v8941 = vor.u32 %v8940, %v8936
          %v8942 = vrot.slane %v8941, 4
          %v8944 = vshll.u32 %v8776, 16
          %v8946 = vrot.slane %v8944, 5
          %v8947 = vsel %vm7637, %v8942, %v8946
          %v8949 = vshrl.u32 %v8777, 16
          %v8951 = vrot.slane %v8949, 4
          %v8952 = vshll.u32 %v8777, 16
          %v8954 = vrot.slane %v8952, 5
          %v8955 = vor.u32 %v8951, %v8954
          %v8956 = vrot.slane %v8955, 4
          %v8958 = vshll.u32 %v8778, 16
          %v8960 = vrot.slane %v8958, 5
          %v8961 = vsel %vm7637, %v8956, %v8960
          %v8962 = vshrl.u32 %v8778, 16
          %v8964 = vrot.slane %v8962, 4
          %v8965 = vor.u32 %v8964, %v8960
          %v8966 = vrot.slane %v8965, 4
          %v8968 = vshll.u32 %v8779, 16
          %v8970 = vrot.slane %v8968, 5
          %v8971 = vsel %vm7637, %v8966, %v8970
          %s8972 = scalar_lea.vmem [#allocation13], 256
          %v8973 = vld [vmem:[%s8972] sm:$0xf]
          %v8974 = vld [vmem:[%s8972 + $0x4] sm:$0xf]
          %v8975 = vld [vmem:[%s8972 + $0x8] sm:$0xf]
          %v8976 = vld [vmem:[%s8972 + $0xc] sm:$0xf]
          %v8977 = vld [vmem:[%s8972 + $0x10] sm:$0xf]
          %v8978 = vld [vmem:[%s8972 + $0x14] sm:$0xf]
          %v8979 = vld [vmem:[%s8972 + $0x18] sm:$0xf]
          %v8980 = vld [vmem:[%s8972 + $0x1c] sm:$0xf]
          %v8981 = vld [vmem:[%s8972 + $0x20] sm:$0xf]
          %v8982 = vld [vmem:[%s8972 + $0x24] sm:$0xf]
          %v8983 = vld [vmem:[%s8972 + $0x28] sm:$0xf]
          %v8984 = vld [vmem:[%s8972 + $0x2c] sm:$0xf]
          %v8985 = vld [vmem:[%s8972 + $0x30] sm:$0xf]
          %v8986 = vld [vmem:[%s8972 + $0x34] sm:$0xf]
          %v8987 = vld [vmem:[%s8972 + $0x38] sm:$0xf]
          %v8988 = vld [vmem:[%s8972 + $0x3c] sm:$0xf]
          %v8989 = vunpack.c.l.b16 %v8793
          %v8990 = vunpack.c.l.b16 %v8803
          %v8991 = vunpack.c.l.b16 %v8817
          %v8992 = vunpack.c.l.b16 %v8827
          %v8993 = vunpack.c.l.b16 %v8841
          %v8994 = vunpack.c.l.b16 %v8851
          %v8995 = vunpack.c.l.b16 %v8865
          %v8996 = vunpack.c.l.b16 %v8875
          %v8997 = vunpack.c.l.b16 %v8889
          %v8998 = vunpack.c.l.b16 %v8899
          %v8999 = vunpack.c.l.b16 %v8913
          %v9000 = vunpack.c.l.b16 %v8923
          %v9001 = vunpack.c.l.b16 %v8937
          %v9002 = vunpack.c.l.b16 %v8947
          %v9003 = vunpack.c.l.b16 %v8961
          %v9004 = vunpack.c.l.b16 %v8971
          %v9005 = vpack.c.b16 %v8990, %v8989
          %v9006 = vpack.c.b16 %v8992, %v8991
          %v9007 = vpack.c.b16 %v8994, %v8993
          %v9008 = vpack.c.b16 %v8996, %v8995
          %v9009 = vpack.c.b16 %v8998, %v8997
          %v9010 = vpack.c.b16 %v9000, %v8999
          %v9011 = vpack.c.b16 %v9002, %v9001
          %v9012 = vpack.c.b16 %v9004, %v9003
          %v9037 = vunpack.c.l.b16 %v8973
          %v9038 = vunpack.c.l.b16 %v8974
          %v9039 = vunpack.c.l.b16 %v8975
          %v9040 = vunpack.c.l.b16 %v8976
          %v9041 = vunpack.c.l.b16 %v8977
          %v9042 = vunpack.c.l.b16 %v8978
          %v9043 = vunpack.c.l.b16 %v8979
          %v9044 = vunpack.c.l.b16 %v8980
          %v9045 = vunpack.c.l.b16 %v8981
          %v9046 = vunpack.c.l.b16 %v8982
          %v9047 = vunpack.c.l.b16 %v8983
          %v9048 = vunpack.c.l.b16 %v8984
          %v9049 = vunpack.c.l.b16 %v8985
          %v9050 = vunpack.c.l.b16 %v8986
          %v9051 = vunpack.c.l.b16 %v8987
          %v9052 = vunpack.c.l.b16 %v8988
          %v9053 = vpack.c.b16 %v9038, %v9037
          %v9054 = vpack.c.b16 %v9040, %v9039
          %v9055 = vpack.c.b16 %v9042, %v9041
          %v9056 = vpack.c.b16 %v9044, %v9043
          %v9057 = vpack.c.b16 %v9046, %v9045
          %v9058 = vpack.c.b16 %v9048, %v9047
          %v9059 = vpack.c.b16 %v9050, %v9049
          %v9060 = vpack.c.b16 %v9052, %v9051
          %9069 = vmatprep.subr.bf16.mxu0 0
          %9070 = vmatpush1.bf16.msra.mxu0 %v9053
          %9071 = vmatprep.subr.bf16.mxu0 0
          %9072 = vmatpush1.bf16.msra.mxu0 %v9054
          %9073 = vmatprep.subr.bf16.mxu0 0
          %9074 = vmatpush1.bf16.msra.mxu0 %v9055
          %9075 = vmatprep.subr.bf16.mxu0 0
          %9076 = vmatpush1.bf16.msra.mxu0 %v9056
          %9077 = vmatprep.subr.bf16.mxu0 0
          %9078 = vmatpush1.bf16.msra.mxu0 %v9057
          %9079 = vmatprep.subr.bf16.mxu0 0
          %9080 = vmatpush1.bf16.msra.mxu0 %v9058
          %9081 = vmatprep.subr.bf16.mxu0 0
          %9082 = vmatpush1.bf16.msra.mxu0 %v9059
          %9083 = vmatprep.subr.bf16.mxu0 0
          %9084 = vmatpush1.bf16.msra.mxu0 %v9060
          %9085 = vmatprep.subr.bf16.mxu0 0
          %9086 = vmatpush1.bf16.msra.mxu0 0
          %9087 = vmatprep.subr.bf16.mxu0 0
          %9088 = vmatpush1.bf16.msra.mxu0 0
          %9089 = vmatprep.subr.bf16.mxu0 0
          %9090 = vmatpush1.bf16.msra.mxu0 0
          %9091 = vmatprep.subr.bf16.mxu0 0
          %9092 = vmatpush1.bf16.msra.mxu0 0
          %9093 = vmatprep.subr.bf16.mxu0 0
          %9094 = vmatpush1.bf16.msra.mxu0 0
          %9095 = vmatprep.subr.bf16.mxu0 0
          %9096 = vmatpush1.bf16.msra.mxu0 0
          %9097 = vmatprep.subr.bf16.mxu0 0
          %9098 = vmatpush1.bf16.msra.mxu0 0
          %9099 = vmatprep.subr.bf16.mxu0 0
          %9100 = vmatpush1.bf16.msra.mxu0 0
          %9101 = vmatprep.mubr.bf16.mxu0 0
          %9102 = vmatmul.mubr.bf16.gmra.mrb[0].mxu0 %v9005
          %v9103 = vpop.f32.mrb[0].mxu0
          %v9104 = vadd.f32 0.0, %v9103
          %v9105 = vpop.f32.mrb[0].mxu0
          %v9106 = vpop.f32.mrb[0].mxu0
          %v9107 = vadd.f32 0.0, %v9106
          %v9108 = vpop.f32.mrb[0].mxu0
          %9109 = vmatprep.mubr.bf16.mxu0 0
          %9110 = vmatmul.mubr.bf16.gmra.mrb[0].mxu0 %v9006
          %v9111 = vpop.f32.mrb[0].mxu0
          %v9112 = vadd.f32 0.0, %v9111
          %v9113 = vpop.f32.mrb[0].mxu0
          %v9114 = vpop.f32.mrb[0].mxu0
          %v9115 = vadd.f32 0.0, %v9114
          %v9116 = vpop.f32.mrb[0].mxu0
          %9117 = vmatprep.mubr.bf16.mxu0 0
          %9118 = vmatmul.mubr.bf16.gmra.mrb[0].mxu0 %v9007
          %v9119 = vpop.f32.mrb[0].mxu0
          %v9120 = vadd.f32 0.0, %v9119
          %v9121 = vpop.f32.mrb[0].mxu0
          %v9122 = vpop.f32.mrb[0].mxu0
          %v9123 = vadd.f32 0.0, %v9122
          %v9124 = vpop.f32.mrb[0].mxu0
          %9125 = vmatprep.mubr.bf16.mxu0 0
          %9126 = vmatmul.mubr.bf16.gmra.mrb[0].mxu0 %v9008
          %v9127 = vpop.f32.mrb[0].mxu0
          %v9128 = vadd.f32 0.0, %v9127
          %v9129 = vpop.f32.mrb[0].mxu0
          %v9130 = vpop.f32.mrb[0].mxu0
          %v9131 = vadd.f32 0.0, %v9130
          %v9132 = vpop.f32.mrb[0].mxu0
          %9133 = vmatprep.mubr.bf16.mxu0 0
          %9134 = vmatmul.mubr.bf16.gmra.mrb[0].mxu0 %v9009
          %v9135 = vpop.f32.mrb[0].mxu0
          %v9136 = vadd.f32 0.0, %v9135
          %v9137 = vpop.f32.mrb[0].mxu0
          %v9138 = vpop.f32.mrb[0].mxu0
          %v9139 = vadd.f32 0.0, %v9138
          %v9140 = vpop.f32.mrb[0].mxu0
          %9141 = vmatprep.mubr.bf16.mxu0 0
          %9142 = vmatmul.mubr.bf16.gmra.mrb[0].mxu0 %v9010
          %v9143 = vpop.f32.mrb[0].mxu0
          %v9144 = vadd.f32 0.0, %v9143
          %v9145 = vpop.f32.mrb[0].mxu0
          %v9146 = vpop.f32.mrb[0].mxu0
          %v9147 = vadd.f32 0.0, %v9146
          %v9148 = vpop.f32.mrb[0].mxu0
          %9149 = vmatprep.mubr.bf16.mxu0 0
          %9150 = vmatmul.mubr.bf16.gmra.mrb[0].mxu0 %v9011
          %v9151 = vpop.f32.mrb[0].mxu0
          %v9152 = vadd.f32 0.0, %v9151
          %v9153 = vpop.f32.mrb[0].mxu0
          %v9154 = vpop.f32.mrb[0].mxu0
          %v9155 = vadd.f32 0.0, %v9154
          %v9156 = vpop.f32.mrb[0].mxu0
          %9157 = vmatprep.mubr.bf16.mxu0 0
          %9158 = vmatmul.mubr.bf16.gmra.mrb[0].mxu0 %v9012
          %v9159 = vpop.f32.mrb[0].mxu0
          %v9160 = vadd.f32 0.0, %v9159
          %v9161 = vpop.f32.mrb[0].mxu0
          %v9162 = vpop.f32.mrb[0].mxu0
          %v9163 = vadd.f32 0.0, %v9162
          %v9164 = vpop.f32.mrb[0].mxu0
          %9165 = vdwg.mxu0
          %v9166 = vadd.f32 %v8740, %v9104
          %v9167 = vadd.f32 %v8741, %v9107
          %v9168 = vadd.f32 %v8742, %v9112
          %v9169 = vadd.f32 %v8743, %v9115
          %v9170 = vadd.f32 %v8744, %v9120
          %v9171 = vadd.f32 %v8745, %v9123
          %v9172 = vadd.f32 %v8746, %v9128
          %v9173 = vadd.f32 %v8747, %v9131
          %v9174 = vadd.f32 %v8748, %v9136
          %v9175 = vadd.f32 %v8749, %v9139
          %v9176 = vadd.f32 %v8750, %v9144
          %v9177 = vadd.f32 %v8751, %v9147
          %v9178 = vadd.f32 %v8752, %v9152
          %v9179 = vadd.f32 %v8753, %v9155
          %v9180 = vadd.f32 %v8754, %v9160
          %v9181 = vadd.f32 %v8755, %v9163
          %v9182 = vld [vmem:[%s8513] sm:$0xe]
          %v9183 = vld [vmem:[%s8513 + $0xc] sm:$0xe]
          %v9184 = vld [vmem:[%s8513 + $0x18] sm:$0xe]
          %v9185 = vld [vmem:[%s8513 + $0x24] sm:$0xe]
          %v9186 = vld [vmem:[%s8513 + $0x30] sm:$0xe]
          %v9187 = vld [vmem:[%s8513 + $0x3c] sm:$0xe]
          %v9188 = vld [vmem:[%s8513 + $0x48] sm:$0xe]
          %v9189 = vld [vmem:[%s8513 + $0x54] sm:$0xe]
          %v9214 = vrot.slane %v9182, 5
          %v9215 = vrot.slane %v9214, 4
          %v9216 = vrot.slane %v8757, 5
          %v9217 = vsel %vm8243, %v9215, %v9216
          %v9218 = vrot.slane %v9216, 4
          %v9219 = vrot.slane %v8758, 5
          %v9220 = vsel %vm8243, %v9218, %v9219
          %v9221 = vrot.slane %v9183, 5
          %v9222 = vrot.slane %v9221, 4
          %v9223 = vrot.slane %v8760, 5
          %v9224 = vsel %vm8243, %v9222, %v9223
          %v9225 = vrot.slane %v9223, 4
          %v9226 = vrot.slane %v8761, 5
          %v9227 = vsel %vm8243, %v9225, %v9226
          %v9228 = vrot.slane %v9184, 5
          %v9229 = vrot.slane %v9228, 4
          %v9230 = vrot.slane %v8763, 5
          %v9231 = vsel %vm8243, %v9229, %v9230
          %v9232 = vrot.slane %v9230, 4
          %v9233 = vrot.slane %v8764, 5
          %v9234 = vsel %vm8243, %v9232, %v9233
          %v9235 = vrot.slane %v9185, 5
          %v9236 = vrot.slane %v9235, 4
          %v9237 = vrot.slane %v8766, 5
          %v9238 = vsel %vm8243, %v9236, %v9237
          %v9239 = vrot.slane %v9237, 4
          %v9240 = vrot.slane %v8767, 5
          %v9241 = vsel %vm8243, %v9239, %v9240
          %v9242 = vrot.slane %v9186, 5
          %v9243 = vrot.slane %v9242, 4
          %v9244 = vrot.slane %v8769, 5
          %v9245 = vsel %vm8243, %v9243, %v9244
          %v9246 = vrot.slane %v9244, 4
          %v9247 = vrot.slane %v8770, 5
          %v9248 = vsel %vm8243, %v9246, %v9247
          %v9249 = vrot.slane %v9187, 5
          %v9250 = vrot.slane %v9249, 4
          %v9251 = vrot.slane %v8772, 5
          %v9252 = vsel %vm8243, %v9250, %v9251
          %v9253 = vrot.slane %v9251, 4
          %v9254 = vrot.slane %v8773, 5
          %v9255 = vsel %vm8243, %v9253, %v9254
          %v9256 = vrot.slane %v9188, 5
          %v9257 = vrot.slane %v9256, 4
          %v9258 = vrot.slane %v8775, 5
          %v9259 = vsel %vm8243, %v9257, %v9258
          %v9260 = vrot.slane %v9258, 4
          %v9261 = vrot.slane %v8776, 5
          %v9262 = vsel %vm8243, %v9260, %v9261
          %v9263 = vrot.slane %v9189, 5
          %v9264 = vrot.slane %v9263, 4
          %v9265 = vrot.slane %v8778, 5
          %v9266 = vsel %vm8243, %v9264, %v9265
          %v9267 = vrot.slane %v9265, 4
          %v9268 = vrot.slane %v8779, 5
          %v9269 = vsel %vm8243, %v9267, %v9268
          %s9270 = scalar_lea.vmem [#allocation13], 320
          %v9271 = vld [vmem:[%s9270] sm:$0xf]
          %v9272 = vld [vmem:[%s9270 + $0x4] sm:$0xf]
          %v9273 = vld [vmem:[%s9270 + $0x8] sm:$0xf]
          %v9274 = vld [vmem:[%s9270 + $0xc] sm:$0xf]
          %v9275 = vld [vmem:[%s9270 + $0x10] sm:$0xf]
          %v9276 = vld [vmem:[%s9270 + $0x14] sm:$0xf]
          %v9277 = vld [vmem:[%s9270 + $0x18] sm:$0xf]
          %v9278 = vld [vmem:[%s9270 + $0x1c] sm:$0xf]
          %v9279 = vld [vmem:[%s9270 + $0x20] sm:$0xf]
          %v9280 = vld [vmem:[%s9270 + $0x24] sm:$0xf]
          %v9281 = vld [vmem:[%s9270 + $0x28] sm:$0xf]
          %v9282 = vld [vmem:[%s9270 + $0x2c] sm:$0xf]
          %v9283 = vld [vmem:[%s9270 + $0x30] sm:$0xf]
          %v9284 = vld [vmem:[%s9270 + $0x34] sm:$0xf]
          %v9285 = vld [vmem:[%s9270 + $0x38] sm:$0xf]
          %v9286 = vld [vmem:[%s9270 + $0x3c] sm:$0xf]
          %v9287 = vunpack.c.l.b16 %v9217
          %v9288 = vunpack.c.l.b16 %v9220
          %v9289 = vunpack.c.l.b16 %v9224
          %v9290 = vunpack.c.l.b16 %v9227
          %v9291 = vunpack.c.l.b16 %v9231
          %v9292 = vunpack.c.l.b16 %v9234
          %v9293 = vunpack.c.l.b16 %v9238
          %v9294 = vunpack.c.l.b16 %v9241
          %v9295 = vunpack.c.l.b16 %v9245
          %v9296 = vunpack.c.l.b16 %v9248
          %v9297 = vunpack.c.l.b16 %v9252
          %v9298 = vunpack.c.l.b16 %v9255
          %v9299 = vunpack.c.l.b16 %v9259
          %v9300 = vunpack.c.l.b16 %v9262
          %v9301 = vunpack.c.l.b16 %v9266
          %v9302 = vunpack.c.l.b16 %v9269
          %v9303 = vpack.c.b16 %v9288, %v9287
          %v9304 = vpack.c.b16 %v9290, %v9289
          %v9305 = vpack.c.b16 %v9292, %v9291
          %v9306 = vpack.c.b16 %v9294, %v9293
          %v9307 = vpack.c.b16 %v9296, %v9295
          %v9308 = vpack.c.b16 %v9298, %v9297
          %v9309 = vpack.c.b16 %v9300, %v9299
          %v9310 = vpack.c.b16 %v9302, %v9301
          %v9335 = vunpack.c.l.b16 %v9271
          %v9336 = vunpack.c.l.b16 %v9272
          %v9337 = vunpack.c.l.b16 %v9273
          %v9338 = vunpack.c.l.b16 %v9274
          %v9339 = vunpack.c.l.b16 %v9275
          %v9340 = vunpack.c.l.b16 %v9276
          %v9341 = vunpack.c.l.b16 %v9277
          %v9342 = vunpack.c.l.b16 %v9278
          %v9343 = vunpack.c.l.b16 %v9279
          %v9344 = vunpack.c.l.b16 %v9280
          %v9345 = vunpack.c.l.b16 %v9281
          %v9346 = vunpack.c.l.b16 %v9282
          %v9347 = vunpack.c.l.b16 %v9283
          %v9348 = vunpack.c.l.b16 %v9284
          %v9349 = vunpack.c.l.b16 %v9285
          %v9350 = vunpack.c.l.b16 %v9286
          %v9351 = vpack.c.b16 %v9336, %v9335
          %v9352 = vpack.c.b16 %v9338, %v9337
          %v9353 = vpack.c.b16 %v9340, %v9339
          %v9354 = vpack.c.b16 %v9342, %v9341
          %v9355 = vpack.c.b16 %v9344, %v9343
          %v9356 = vpack.c.b16 %v9346, %v9345
          %v9357 = vpack.c.b16 %v9348, %v9347
          %v9358 = vpack.c.b16 %v9350, %v9349
          %9367 = vmatprep.subr.bf16.mxu0 0
          %9368 = vmatpush1.bf16.msra.mxu0 %v9351
          %9369 = vmatprep.subr.bf16.mxu0 0
          %9370 = vmatpush1.bf16.msra.mxu0 %v9352
          %9371 = vmatprep.subr.bf16.mxu0 0
          %9372 = vmatpush1.bf16.msra.mxu0 %v9353
          %9373 = vmatprep.subr.bf16.mxu0 0
          %9374 = vmatpush1.bf16.msra.mxu0 %v9354
          %9375 = vmatprep.subr.bf16.mxu0 0
          %9376 = vmatpush1.bf16.msra.mxu0 %v9355
          %9377 = vmatprep.subr.bf16.mxu0 0
          %9378 = vmatpush1.bf16.msra.mxu0 %v9356
          %9379 = vmatprep.subr.bf16.mxu0 0
          %9380 = vmatpush1.bf16.msra.mxu0 %v9357
          %9381 = vmatprep.subr.bf16.mxu0 0
          %9382 = vmatpush1.bf16.msra.mxu0 %v9358
          %9383 = vmatprep.subr.bf16.mxu0 0
          %9384 = vmatpush1.bf16.msra.mxu0 0
          %9385 = vmatprep.subr.bf16.mxu0 0
          %9386 = vmatpush1.bf16.msra.mxu0 0
          %9387 = vmatprep.subr.bf16.mxu0 0
          %9388 = vmatpush1.bf16.msra.mxu0 0
          %9389 = vmatprep.subr.bf16.mxu0 0
          %9390 = vmatpush1.bf16.msra.mxu0 0
          %9391 = vmatprep.subr.bf16.mxu0 0
          %9392 = vmatpush1.bf16.msra.mxu0 0
          %9393 = vmatprep.subr.bf16.mxu0 0
          %9394 = vmatpush1.bf16.msra.mxu0 0
          %9395 = vmatprep.subr.bf16.mxu0 0
          %9396 = vmatpush1.bf16.msra.mxu0 0
          %9397 = vmatprep.subr.bf16.mxu0 0
          %9398 = vmatpush1.bf16.msra.mxu0 0
          %9399 = vmatprep.mubr.bf16.mxu0 0
          %9400 = vmatmul.mubr.bf16.gmra.mrb[0].mxu0 %v9303
          %v9401 = vpop.f32.mrb[0].mxu0
          %v9402 = vadd.f32 0.0, %v9401
          %v9403 = vpop.f32.mrb[0].mxu0
          %v9404 = vpop.f32.mrb[0].mxu0
          %v9405 = vadd.f32 0.0, %v9404
          %v9406 = vpop.f32.mrb[0].mxu0
          %9407 = vmatprep.mubr.bf16.mxu0 0
          %9408 = vmatmul.mubr.bf16.gmra.mrb[0].mxu0 %v9304
          %v9409 = vpop.f32.mrb[0].mxu0
          %v9410 = vadd.f32 0.0, %v9409
          %v9411 = vpop.f32.mrb[0].mxu0
          %v9412 = vpop.f32.mrb[0].mxu0
          %v9413 = vadd.f32 0.0, %v9412
          %v9414 = vpop.f32.mrb[0].mxu0
          %9415 = vmatprep.mubr.bf16.mxu0 0
          %9416 = vmatmul.mubr.bf16.gmra.mrb[0].mxu0 %v9305
          %v9417 = vpop.f32.mrb[0].mxu0
          %v9418 = vadd.f32 0.0, %v9417
          %v9419 = vpop.f32.mrb[0].mxu0
          %v9420 = vpop.f32.mrb[0].mxu0
          %v9421 = vadd.f32 0.0, %v9420
          %v9422 = vpop.f32.mrb[0].mxu0
          %9423 = vmatprep.mubr.bf16.mxu0 0
          %9424 = vmatmul.mubr.bf16.gmra.mrb[0].mxu0 %v9306
          %v9425 = vpop.f32.mrb[0].mxu0
          %v9426 = vadd.f32 0.0, %v9425
          %v9427 = vpop.f32.mrb[0].mxu0
          %v9428 = vpop.f32.mrb[0].mxu0
          %v9429 = vadd.f32 0.0, %v9428
          %v9430 = vpop.f32.mrb[0].mxu0
          %9431 = vmatprep.mubr.bf16.mxu0 0
          %9432 = vmatmul.mubr.bf16.gmra.mrb[0].mxu0 %v9307
          %v9433 = vpop.f32.mrb[0].mxu0
          %v9434 = vadd.f32 0.0, %v9433
          %v9435 = vpop.f32.mrb[0].mxu0
          %v9436 = vpop.f32.mrb[0].mxu0
          %v9437 = vadd.f32 0.0, %v9436
          %v9438 = vpop.f32.mrb[0].mxu0
          %9439 = vmatprep.mubr.bf16.mxu0 0
          %9440 = vmatmul.mubr.bf16.gmra.mrb[0].mxu0 %v9308
          %v9441 = vpop.f32.mrb[0].mxu0
          %v9442 = vadd.f32 0.0, %v9441
          %v9443 = vpop.f32.mrb[0].mxu0
          %v9444 = vpop.f32.mrb[0].mxu0
          %v9445 = vadd.f32 0.0, %v9444
          %v9446 = vpop.f32.mrb[0].mxu0
          %9447 = vmatprep.mubr.bf16.mxu0 0
          %9448 = vmatmul.mubr.bf16.gmra.mrb[0].mxu0 %v9309
          %v9449 = vpop.f32.mrb[0].mxu0
          %v9450 = vadd.f32 0.0, %v9449
          %v9451 = vpop.f32.mrb[0].mxu0
          %v9452 = vpop.f32.mrb[0].mxu0
          %v9453 = vadd.f32 0.0, %v9452
          %v9454 = vpop.f32.mrb[0].mxu0
          %9455 = vmatprep.mubr.bf16.mxu0 0
          %9456 = vmatmul.mubr.bf16.gmra.mrb[0].mxu0 %v9310
          %v9457 = vpop.f32.mrb[0].mxu0
          %v9458 = vadd.f32 0.0, %v9457
          %v9459 = vpop.f32.mrb[0].mxu0
          %v9460 = vpop.f32.mrb[0].mxu0
          %v9461 = vadd.f32 0.0, %v9460
          %v9462 = vpop.f32.mrb[0].mxu0
          %9463 = vdwg.mxu0
          %v9464 = vadd.f32 %v9166, %v9402
          %v9465 = vadd.f32 %v9167, %v9405
          %v9466 = vadd.f32 %v9168, %v9410
          %v9467 = vadd.f32 %v9169, %v9413
          %v9468 = vadd.f32 %v9170, %v9418
          %v9469 = vadd.f32 %v9171, %v9421
          %v9470 = vadd.f32 %v9172, %v9426
          %v9471 = vadd.f32 %v9173, %v9429
          %v9472 = vadd.f32 %v9174, %v9434
          %v9473 = vadd.f32 %v9175, %v9437
          %v9474 = vadd.f32 %v9176, %v9442
          %v9475 = vadd.f32 %v9177, %v9445
          %v9476 = vadd.f32 %v9178, %v9450
          %v9477 = vadd.f32 %v9179, %v9453
          %v9478 = vadd.f32 %v9180, %v9458
          %v9479 = vadd.f32 %v9181, %v9461
          %s9480 = sadd.s32 %s7591, 2
          %s9481 = smul.u32 %s9480, 3
          %s9482 = smul.addr %s9481, 4
          %s9483 = scalar_lea.vmem [#allocation2], %s9482
          %v9484 = vld [vmem:[%s9483] sm:$0xf]
          %v9485 = vld [vmem:[%s9483 + $0x4] sm:$0xf]
          %v9486 = vld [vmem:[%s9483 + $0xc] sm:$0xf]
          %v9487 = vld [vmem:[%s9483 + $0x10] sm:$0xf]
          %v9488 = vld [vmem:[%s9483 + $0x18] sm:$0xf]
          %v9489 = vld [vmem:[%s9483 + $0x1c] sm:$0xf]
          %v9490 = vld [vmem:[%s9483 + $0x24] sm:$0xf]
          %v9491 = vld [vmem:[%s9483 + $0x28] sm:$0xf]
          %v9492 = vld [vmem:[%s9483 + $0x30] sm:$0xf]
          %v9493 = vld [vmem:[%s9483 + $0x34] sm:$0xf]
          %v9494 = vld [vmem:[%s9483 + $0x3c] sm:$0xf]
          %v9495 = vld [vmem:[%s9483 + $0x40] sm:$0xf]
          %v9496 = vld [vmem:[%s9483 + $0x48] sm:$0xf]
          %v9497 = vld [vmem:[%s9483 + $0x4c] sm:$0xf]
          %v9498 = vld [vmem:[%s9483 + $0x54] sm:$0xf]
          %v9499 = vld [vmem:[%s9483 + $0x58] sm:$0xf]
          %s9500 = scalar_lea.vmem [#allocation13], 384
          %v9501 = vld [vmem:[%s9500] sm:$0xf]
          %v9502 = vld [vmem:[%s9500 + $0x4] sm:$0xf]
          %v9503 = vld [vmem:[%s9500 + $0x8] sm:$0xf]
          %v9504 = vld [vmem:[%s9500 + $0xc] sm:$0xf]
          %v9505 = vld [vmem:[%s9500 + $0x10] sm:$0xf]
          %v9506 = vld [vmem:[%s9500 + $0x14] sm:$0xf]
          %v9507 = vld [vmem:[%s9500 + $0x18] sm:$0xf]
          %v9508 = vld [vmem:[%s9500 + $0x1c] sm:$0xf]
          %v9509 = vld [vmem:[%s9500 + $0x20] sm:$0xf]
          %v9510 = vld [vmem:[%s9500 + $0x24] sm:$0xf]
          %v9511 = vld [vmem:[%s9500 + $0x28] sm:$0xf]
          %v9512 = vld [vmem:[%s9500 + $0x2c] sm:$0xf]
          %v9513 = vld [vmem:[%s9500 + $0x30] sm:$0xf]
          %v9514 = vld [vmem:[%s9500 + $0x34] sm:$0xf]
          %v9515 = vld [vmem:[%s9500 + $0x38] sm:$0xf]
          %v9516 = vld [vmem:[%s9500 + $0x3c] sm:$0xf]
          %v9533 = vunpack.c.l.b16 %v9484
          %v9534 = vunpack.c.l.b16 %v9485
          %v9535 = vunpack.c.l.b16 %v9486
          %v9536 = vunpack.c.l.b16 %v9487
          %v9537 = vunpack.c.l.b16 %v9488
          %v9538 = vunpack.c.l.b16 %v9489
          %v9539 = vunpack.c.l.b16 %v9490
          %v9540 = vunpack.c.l.b16 %v9491
          %v9541 = vunpack.c.l.b16 %v9492
          %v9542 = vunpack.c.l.b16 %v9493
          %v9543 = vunpack.c.l.b16 %v9494
          %v9544 = vunpack.c.l.b16 %v9495
          %v9545 = vunpack.c.l.b16 %v9496
          %v9546 = vunpack.c.l.b16 %v9497
          %v9547 = vunpack.c.l.b16 %v9498
          %v9548 = vunpack.c.l.b16 %v9499
          %v9549 = vpack.c.b16 %v9534, %v9533
          %v9550 = vpack.c.b16 %v9536, %v9535
          %v9551 = vpack.c.b16 %v9538, %v9537
          %v9552 = vpack.c.b16 %v9540, %v9539
          %v9553 = vpack.c.b16 %v9542, %v9541
          %v9554 = vpack.c.b16 %v9544, %v9543
          %v9555 = vpack.c.b16 %v9546, %v9545
          %v9556 = vpack.c.b16 %v9548, %v9547
          %v9581 = vunpack.c.l.b16 %v9501
          %v9582 = vunpack.c.l.b16 %v9502
          %v9583 = vunpack.c.l.b16 %v9503
          %v9584 = vunpack.c.l.b16 %v9504
          %v9585 = vunpack.c.l.b16 %v9505
          %v9586 = vunpack.c.l.b16 %v9506
          %v9587 = vunpack.c.l.b16 %v9507
          %v9588 = vunpack.c.l.b16 %v9508
          %v9589 = vunpack.c.l.b16 %v9509
          %v9590 = vunpack.c.l.b16 %v9510
          %v9591 = vunpack.c.l.b16 %v9511
          %v9592 = vunpack.c.l.b16 %v9512
          %v9593 = vunpack.c.l.b16 %v9513
          %v9594 = vunpack.c.l.b16 %v9514
          %v9595 = vunpack.c.l.b16 %v9515
          %v9596 = vunpack.c.l.b16 %v9516
          %v9597 = vpack.c.b16 %v9582, %v9581
          %v9598 = vpack.c.b16 %v9584, %v9583
          %v9599 = vpack.c.b16 %v9586, %v9585
          %v9600 = vpack.c.b16 %v9588, %v9587
          %v9601 = vpack.c.b16 %v9590, %v9589
          %v9602 = vpack.c.b16 %v9592, %v9591
          %v9603 = vpack.c.b16 %v9594, %v9593
          %v9604 = vpack.c.b16 %v9596, %v9595
          %9613 = vmatprep.subr.bf16.mxu0 0
          %9614 = vmatpush1.bf16.msra.mxu0 %v9597
          %9615 = vmatprep.subr.bf16.mxu0 0
          %9616 = vmatpush1.bf16.msra.mxu0 %v9598
          %9617 = vmatprep.subr.bf16.mxu0 0
          %9618 = vmatpush1.bf16.msra.mxu0 %v9599
          %9619 = vmatprep.subr.bf16.mxu0 0
          %9620 = vmatpush1.bf16.msra.mxu0 %v9600
          %9621 = vmatprep.subr.bf16.mxu0 0
          %9622 = vmatpush1.bf16.msra.mxu0 %v9601
          %9623 = vmatprep.subr.bf16.mxu0 0
          %9624 = vmatpush1.bf16.msra.mxu0 %v9602
          %9625 = vmatprep.subr.bf16.mxu0 0
          %9626 = vmatpush1.bf16.msra.mxu0 %v9603
          %9627 = vmatprep.subr.bf16.mxu0 0
          %9628 = vmatpush1.bf16.msra.mxu0 %v9604
          %9629 = vmatprep.subr.bf16.mxu0 0
          %9630 = vmatpush1.bf16.msra.mxu0 0
          %9631 = vmatprep.subr.bf16.mxu0 0
          %9632 = vmatpush1.bf16.msra.mxu0 0
          %9633 = vmatprep.subr.bf16.mxu0 0
          %9634 = vmatpush1.bf16.msra.mxu0 0
          %9635 = vmatprep.subr.bf16.mxu0 0
          %9636 = vmatpush1.bf16.msra.mxu0 0
          %9637 = vmatprep.subr.bf16.mxu0 0
          %9638 = vmatpush1.bf16.msra.mxu0 0
          %9639 = vmatprep.subr.bf16.mxu0 0
          %9640 = vmatpush1.bf16.msra.mxu0 0
          %9641 = vmatprep.subr.bf16.mxu0 0
          %9642 = vmatpush1.bf16.msra.mxu0 0
          %9643 = vmatprep.subr.bf16.mxu0 0
          %9644 = vmatpush1.bf16.msra.mxu0 0
          %9645 = vmatprep.mubr.bf16.mxu0 0
          %9646 = vmatmul.mubr.bf16.gmra.mrb[0].mxu0 %v9549
          %v9647 = vpop.f32.mrb[0].mxu0
          %v9648 = vadd.f32 0.0, %v9647
          %v9649 = vpop.f32.mrb[0].mxu0
          %v9650 = vpop.f32.mrb[0].mxu0
          %v9651 = vadd.f32 0.0, %v9650
          %v9652 = vpop.f32.mrb[0].mxu0
          %9653 = vmatprep.mubr.bf16.mxu0 0
          %9654 = vmatmul.mubr.bf16.gmra.mrb[0].mxu0 %v9550
          %v9655 = vpop.f32.mrb[0].mxu0
          %v9656 = vadd.f32 0.0, %v9655
          %v9657 = vpop.f32.mrb[0].mxu0
          %v9658 = vpop.f32.mrb[0].mxu0
          %v9659 = vadd.f32 0.0, %v9658
          %v9660 = vpop.f32.mrb[0].mxu0
          %9661 = vmatprep.mubr.bf16.mxu0 0
          %9662 = vmatmul.mubr.bf16.gmra.mrb[0].mxu0 %v9551
          %v9663 = vpop.f32.mrb[0].mxu0
          %v9664 = vadd.f32 0.0, %v9663
          %v9665 = vpop.f32.mrb[0].mxu0
          %v9666 = vpop.f32.mrb[0].mxu0
          %v9667 = vadd.f32 0.0, %v9666
          %v9668 = vpop.f32.mrb[0].mxu0
          %9669 = vmatprep.mubr.bf16.mxu0 0
          %9670 = vmatmul.mubr.bf16.gmra.mrb[0].mxu0 %v9552
          %v9671 = vpop.f32.mrb[0].mxu0
          %v9672 = vadd.f32 0.0, %v9671
          %v9673 = vpop.f32.mrb[0].mxu0
          %v9674 = vpop.f32.mrb[0].mxu0
          %v9675 = vadd.f32 0.0, %v9674
          %v9676 = vpop.f32.mrb[0].mxu0
          %9677 = vmatprep.mubr.bf16.mxu0 0
          %9678 = vmatmul.mubr.bf16.gmra.mrb[0].mxu0 %v9553
          %v9679 = vpop.f32.mrb[0].mxu0
          %v9680 = vadd.f32 0.0, %v9679
          %v9681 = vpop.f32.mrb[0].mxu0
          %v9682 = vpop.f32.mrb[0].mxu0
          %v9683 = vadd.f32 0.0, %v9682
          %v9684 = vpop.f32.mrb[0].mxu0
          %9685 = vmatprep.mubr.bf16.mxu0 0
          %9686 = vmatmul.mubr.bf16.gmra.mrb[0].mxu0 %v9554
          %v9687 = vpop.f32.mrb[0].mxu0
          %v9688 = vadd.f32 0.0, %v9687
          %v9689 = vpop.f32.mrb[0].mxu0
          %v9690 = vpop.f32.mrb[0].mxu0
          %v9691 = vadd.f32 0.0, %v9690
          %v9692 = vpop.f32.mrb[0].mxu0
          %9693 = vmatprep.mubr.bf16.mxu0 0
          %9694 = vmatmul.mubr.bf16.gmra.mrb[0].mxu0 %v9555
          %v9695 = vpop.f32.mrb[0].mxu0
          %v9696 = vadd.f32 0.0, %v9695
          %v9697 = vpop.f32.mrb[0].mxu0
          %v9698 = vpop.f32.mrb[0].mxu0
          %v9699 = vadd.f32 0.0, %v9698
          %v9700 = vpop.f32.mrb[0].mxu0
          %9701 = vmatprep.mubr.bf16.mxu0 0
          %9702 = vmatmul.mubr.bf16.gmra.mrb[0].mxu0 %v9556
          %v9703 = vpop.f32.mrb[0].mxu0
          %v9704 = vadd.f32 0.0, %v9703
          %v9705 = vpop.f32.mrb[0].mxu0
          %v9706 = vpop.f32.mrb[0].mxu0
          %v9707 = vadd.f32 0.0, %v9706
          %v9708 = vpop.f32.mrb[0].mxu0
          %9709 = vdwg.mxu0
          %v9710 = vadd.f32 %v9464, %v9648
          %v9711 = vadd.f32 %v9465, %v9651
          %v9712 = vadd.f32 %v9466, %v9656
          %v9713 = vadd.f32 %v9467, %v9659
          %v9714 = vadd.f32 %v9468, %v9664
          %v9715 = vadd.f32 %v9469, %v9667
          %v9716 = vadd.f32 %v9470, %v9672
          %v9717 = vadd.f32 %v9471, %v9675
          %v9718 = vadd.f32 %v9472, %v9680
          %v9719 = vadd.f32 %v9473, %v9683
          %v9720 = vadd.f32 %v9474, %v9688
          %v9721 = vadd.f32 %v9475, %v9691
          %v9722 = vadd.f32 %v9476, %v9696
          %v9723 = vadd.f32 %v9477, %v9699
          %v9724 = vadd.f32 %v9478, %v9704
          %v9725 = vadd.f32 %v9479, %v9707
          %v9726 = vld [vmem:[%s9483] sm:$0xf]
          %v9727 = vld [vmem:[%s9483 + $0x4] sm:$0xf]
          %v9728 = vld [vmem:[%s9483 + $0x8] sm:$0x1]
          %v9729 = vld [vmem:[%s9483 + $0xc] sm:$0xf]
          %v9730 = vld [vmem:[%s9483 + $0x10] sm:$0xf]
          %v9731 = vld [vmem:[%s9483 + $0x14] sm:$0x1]
          %v9732 = vld [vmem:[%s9483 + $0x18] sm:$0xf]
          %v9733 = vld [vmem:[%s9483 + $0x1c] sm:$0xf]
          %v9734 = vld [vmem:[%s9483 + $0x20] sm:$0x1]
          %v9735 = vld [vmem:[%s9483 + $0x24] sm:$0xf]
          %v9736 = vld [vmem:[%s9483 + $0x28] sm:$0xf]
          %v9737 = vld [vmem:[%s9483 + $0x2c] sm:$0x1]
          %v9738 = vld [vmem:[%s9483 + $0x30] sm:$0xf]
          %v9739 = vld [vmem:[%s9483 + $0x34] sm:$0xf]
          %v9740 = vld [vmem:[%s9483 + $0x38] sm:$0x1]
          %v9741 = vld [vmem:[%s9483 + $0x3c] sm:$0xf]
          %v9742 = vld [vmem:[%s9483 + $0x40] sm:$0xf]
          %v9743 = vld [vmem:[%s9483 + $0x44] sm:$0x1]
          %v9744 = vld [vmem:[%s9483 + $0x48] sm:$0xf]
          %v9745 = vld [vmem:[%s9483 + $0x4c] sm:$0xf]
          %v9746 = vld [vmem:[%s9483 + $0x50] sm:$0x1]
          %v9747 = vld [vmem:[%s9483 + $0x54] sm:$0xf]
          %v9748 = vld [vmem:[%s9483 + $0x58] sm:$0xf]
          %v9749 = vld [vmem:[%s9483 + $0x5c] sm:$0x1]
          %v9751 = vshrl.u32 %v9726, 16
          %v9753 = vrot.slane %v9751, 4
          %v9754 = vshll.u32 %v9726, 16
          %v9756 = vrot.slane %v9754, 5
          %v9757 = vor.u32 %v9753, %v9756
          %v9758 = vrot.slane %v9757, 4
          %v9760 = vshll.u32 %v9727, 16
          %v9762 = vrot.slane %v9760, 5
          %v9763 = vsel %vm7637, %v9758, %v9762
          %v9764 = vshrl.u32 %v9727, 16
          %v9766 = vrot.slane %v9764, 4
          %v9767 = vor.u32 %v9766, %v9762
          %v9768 = vrot.slane %v9767, 4
          %v9770 = vshll.u32 %v9728, 16
          %v9772 = vrot.slane %v9770, 5
          %v9773 = vsel %vm7637, %v9768, %v9772
          %v9775 = vshrl.u32 %v9729, 16
          %v9777 = vrot.slane %v9775, 4
          %v9778 = vshll.u32 %v9729, 16
          %v9780 = vrot.slane %v9778, 5
          %v9781 = vor.u32 %v9777, %v9780
          %v9782 = vrot.slane %v9781, 4
          %v9784 = vshll.u32 %v9730, 16
          %v9786 = vrot.slane %v9784, 5
          %v9787 = vsel %vm7637, %v9782, %v9786
          %v9788 = vshrl.u32 %v9730, 16
          %v9790 = vrot.slane %v9788, 4
          %v9791 = vor.u32 %v9790, %v9786
          %v9792 = vrot.slane %v9791, 4
          %v9794 = vshll.u32 %v9731, 16
          %v9796 = vrot.slane %v9794, 5
          %v9797 = vsel %vm7637, %v9792, %v9796
          %v9799 = vshrl.u32 %v9732, 16
          %v9801 = vrot.slane %v9799, 4
          %v9802 = vshll.u32 %v9732, 16
          %v9804 = vrot.slane %v9802, 5
          %v9805 = vor.u32 %v9801, %v9804
          %v9806 = vrot.slane %v9805, 4
          %v9808 = vshll.u32 %v9733, 16
          %v9810 = vrot.slane %v9808, 5
          %v9811 = vsel %vm7637, %v9806, %v9810
          %v9812 = vshrl.u32 %v9733, 16
          %v9814 = vrot.slane %v9812, 4
          %v9815 = vor.u32 %v9814, %v9810
          %v9816 = vrot.slane %v9815, 4
          %v9818 = vshll.u32 %v9734, 16
          %v9820 = vrot.slane %v9818, 5
          %v9821 = vsel %vm7637, %v9816, %v9820
          %v9823 = vshrl.u32 %v9735, 16
          %v9825 = vrot.slane %v9823, 4
          %v9826 = vshll.u32 %v9735, 16
          %v9828 = vrot.slane %v9826, 5
          %v9829 = vor.u32 %v9825, %v9828
          %v9830 = vrot.slane %v9829, 4
          %v9832 = vshll.u32 %v9736, 16
          %v9834 = vrot.slane %v9832, 5
          %v9835 = vsel %vm7637, %v9830, %v9834
          %v9836 = vshrl.u32 %v9736, 16
          %v9838 = vrot.slane %v9836, 4
          %v9839 = vor.u32 %v9838, %v9834
          %v9840 = vrot.slane %v9839, 4
          %v9842 = vshll.u32 %v9737, 16
          %v9844 = vrot.slane %v9842, 5
          %v9845 = vsel %vm7637, %v9840, %v9844
          %v9847 = vshrl.u32 %v9738, 16
          %v9849 = vrot.slane %v9847, 4
          %v9850 = vshll.u32 %v9738, 16
          %v9852 = vrot.slane %v9850, 5
          %v9853 = vor.u32 %v9849, %v9852
          %v9854 = vrot.slane %v9853, 4
          %v9856 = vshll.u32 %v9739, 16
          %v9858 = vrot.slane %v9856, 5
          %v9859 = vsel %vm7637, %v9854, %v9858
          %v9860 = vshrl.u32 %v9739, 16
          %v9862 = vrot.slane %v9860, 4
          %v9863 = vor.u32 %v9862, %v9858
          %v9864 = vrot.slane %v9863, 4
          %v9866 = vshll.u32 %v9740, 16
          %v9868 = vrot.slane %v9866, 5
          %v9869 = vsel %vm7637, %v9864, %v9868
          %v9871 = vshrl.u32 %v9741, 16
          %v9873 = vrot.slane %v9871, 4
          %v9874 = vshll.u32 %v9741, 16
          %v9876 = vrot.slane %v9874, 5
          %v9877 = vor.u32 %v9873, %v9876
          %v9878 = vrot.slane %v9877, 4
          %v9880 = vshll.u32 %v9742, 16
          %v9882 = vrot.slane %v9880, 5
          %v9883 = vsel %vm7637, %v9878, %v9882
          %v9884 = vshrl.u32 %v9742, 16
          %v9886 = vrot.slane %v9884, 4
          %v9887 = vor.u32 %v9886, %v9882
          %v9888 = vrot.slane %v9887, 4
          %v9890 = vshll.u32 %v9743, 16
          %v9892 = vrot.slane %v9890, 5
          %v9893 = vsel %vm7637, %v9888, %v9892
          %v9895 = vshrl.u32 %v9744, 16
          %v9897 = vrot.slane %v9895, 4
          %v9898 = vshll.u32 %v9744, 16
          %v9900 = vrot.slane %v9898, 5
          %v9901 = vor.u32 %v9897, %v9900
          %v9902 = vrot.slane %v9901, 4
          %v9904 = vshll.u32 %v9745, 16
          %v9906 = vrot.slane %v9904, 5
          %v9907 = vsel %vm7637, %v9902, %v9906
          %v9908 = vshrl.u32 %v9745, 16
          %v9910 = vrot.slane %v9908, 4
          %v9911 = vor.u32 %v9910, %v9906
          %v9912 = vrot.slane %v9911, 4
          %v9914 = vshll.u32 %v9746, 16
          %v9916 = vrot.slane %v9914, 5
          %v9917 = vsel %vm7637, %v9912, %v9916
          %v9919 = vshrl.u32 %v9747, 16
          %v9921 = vrot.slane %v9919, 4
          %v9922 = vshll.u32 %v9747, 16
          %v9924 = vrot.slane %v9922, 5
          %v9925 = vor.u32 %v9921, %v9924
          %v9926 = vrot.slane %v9925, 4
          %v9928 = vshll.u32 %v9748, 16
          %v9930 = vrot.slane %v9928, 5
          %v9931 = vsel %vm7637, %v9926, %v9930
          %v9932 = vshrl.u32 %v9748, 16
          %v9934 = vrot.slane %v9932, 4
          %v9935 = vor.u32 %v9934, %v9930
          %v9936 = vrot.slane %v9935, 4
          %v9938 = vshll.u32 %v9749, 16
          %v9940 = vrot.slane %v9938, 5
          %v9941 = vsel %vm7637, %v9936, %v9940
          %s9942 = scalar_lea.vmem [#allocation13], 448
          %v9943 = vld [vmem:[%s9942] sm:$0xf]
          %v9944 = vld [vmem:[%s9942 + $0x4] sm:$0xf]
          %v9945 = vld [vmem:[%s9942 + $0x8] sm:$0xf]
          %v9946 = vld [vmem:[%s9942 + $0xc] sm:$0xf]
          %v9947 = vld [vmem:[%s9942 + $0x10] sm:$0xf]
          %v9948 = vld [vmem:[%s9942 + $0x14] sm:$0xf]
          %v9949 = vld [vmem:[%s9942 + $0x18] sm:$0xf]
          %v9950 = vld [vmem:[%s9942 + $0x1c] sm:$0xf]
          %v9951 = vld [vmem:[%s9942 + $0x20] sm:$0xf]
          %v9952 = vld [vmem:[%s9942 + $0x24] sm:$0xf]
          %v9953 = vld [vmem:[%s9942 + $0x28] sm:$0xf]
          %v9954 = vld [vmem:[%s9942 + $0x2c] sm:$0xf]
          %v9955 = vld [vmem:[%s9942 + $0x30] sm:$0xf]
          %v9956 = vld [vmem:[%s9942 + $0x34] sm:$0xf]
          %v9957 = vld [vmem:[%s9942 + $0x38] sm:$0xf]
          %v9958 = vld [vmem:[%s9942 + $0x3c] sm:$0xf]
          %v9959 = vunpack.c.l.b16 %v9763
          %v9960 = vunpack.c.l.b16 %v9773
          %v9961 = vunpack.c.l.b16 %v9787
          %v9962 = vunpack.c.l.b16 %v9797
          %v9963 = vunpack.c.l.b16 %v9811
          %v9964 = vunpack.c.l.b16 %v9821
          %v9965 = vunpack.c.l.b16 %v9835
          %v9966 = vunpack.c.l.b16 %v9845
          %v9967 = vunpack.c.l.b16 %v9859
          %v9968 = vunpack.c.l.b16 %v9869
          %v9969 = vunpack.c.l.b16 %v9883
          %v9970 = vunpack.c.l.b16 %v9893
          %v9971 = vunpack.c.l.b16 %v9907
          %v9972 = vunpack.c.l.b16 %v9917
          %v9973 = vunpack.c.l.b16 %v9931
          %v9974 = vunpack.c.l.b16 %v9941
          %v9975 = vpack.c.b16 %v9960, %v9959
          %v9976 = vpack.c.b16 %v9962, %v9961
          %v9977 = vpack.c.b16 %v9964, %v9963
          %v9978 = vpack.c.b16 %v9966, %v9965
          %v9979 = vpack.c.b16 %v9968, %v9967
          %v9980 = vpack.c.b16 %v9970, %v9969
          %v9981 = vpack.c.b16 %v9972, %v9971
          %v9982 = vpack.c.b16 %v9974, %v9973
          %v10007 = vunpack.c.l.b16 %v9943
          %v10008 = vunpack.c.l.b16 %v9944
          %v10009 = vunpack.c.l.b16 %v9945
          %v10010 = vunpack.c.l.b16 %v9946
          %v10011 = vunpack.c.l.b16 %v9947
          %v10012 = vunpack.c.l.b16 %v9948
          %v10013 = vunpack.c.l.b16 %v9949
          %v10014 = vunpack.c.l.b16 %v9950
          %v10015 = vunpack.c.l.b16 %v9951
          %v10016 = vunpack.c.l.b16 %v9952
          %v10017 = vunpack.c.l.b16 %v9953
          %v10018 = vunpack.c.l.b16 %v9954
          %v10019 = vunpack.c.l.b16 %v9955
          %v10020 = vunpack.c.l.b16 %v9956
          %v10021 = vunpack.c.l.b16 %v9957
          %v10022 = vunpack.c.l.b16 %v9958
          %v10023 = vpack.c.b16 %v10008, %v10007
          %v10024 = vpack.c.b16 %v10010, %v10009
          %v10025 = vpack.c.b16 %v10012, %v10011
          %v10026 = vpack.c.b16 %v10014, %v10013
          %v10027 = vpack.c.b16 %v10016, %v10015
          %v10028 = vpack.c.b16 %v10018, %v10017
          %v10029 = vpack.c.b16 %v10020, %v10019
          %v10030 = vpack.c.b16 %v10022, %v10021
          %10039 = vmatprep.subr.bf16.mxu0 0
          %10040 = vmatpush1.bf16.msra.mxu0 %v10023
          %10041 = vmatprep.subr.bf16.mxu0 0
          %10042 = vmatpush1.bf16.msra.mxu0 %v10024
          %10043 = vmatprep.subr.bf16.mxu0 0
          %10044 = vmatpush1.bf16.msra.mxu0 %v10025
          %10045 = vmatprep.subr.bf16.mxu0 0
          %10046 = vmatpush1.bf16.msra.mxu0 %v10026
          %10047 = vmatprep.subr.bf16.mxu0 0
          %10048 = vmatpush1.bf16.msra.mxu0 %v10027
          %10049 = vmatprep.subr.bf16.mxu0 0
          %10050 = vmatpush1.bf16.msra.mxu0 %v10028
          %10051 = vmatprep.subr.bf16.mxu0 0
          %10052 = vmatpush1.bf16.msra.mxu0 %v10029
          %10053 = vmatprep.subr.bf16.mxu0 0
          %10054 = vmatpush1.bf16.msra.mxu0 %v10030
          %10055 = vmatprep.subr.bf16.mxu0 0
          %10056 = vmatpush1.bf16.msra.mxu0 0
          %10057 = vmatprep.subr.bf16.mxu0 0
          %10058 = vmatpush1.bf16.msra.mxu0 0
          %10059 = vmatprep.subr.bf16.mxu0 0
          %10060 = vmatpush1.bf16.msra.mxu0 0
          %10061 = vmatprep.subr.bf16.mxu0 0
          %10062 = vmatpush1.bf16.msra.mxu0 0
          %10063 = vmatprep.subr.bf16.mxu0 0
          %10064 = vmatpush1.bf16.msra.mxu0 0
          %10065 = vmatprep.subr.bf16.mxu0 0
          %10066 = vmatpush1.bf16.msra.mxu0 0
          %10067 = vmatprep.subr.bf16.mxu0 0
          %10068 = vmatpush1.bf16.msra.mxu0 0
          %10069 = vmatprep.subr.bf16.mxu0 0
          %10070 = vmatpush1.bf16.msra.mxu0 0
          %10071 = vmatprep.mubr.bf16.mxu0 0
          %10072 = vmatmul.mubr.bf16.gmra.mrb[0].mxu0 %v9975
          %v10073 = vpop.f32.mrb[0].mxu0
          %v10074 = vadd.f32 0.0, %v10073
          %v10075 = vpop.f32.mrb[0].mxu0
          %v10076 = vpop.f32.mrb[0].mxu0
          %v10077 = vadd.f32 0.0, %v10076
          %v10078 = vpop.f32.mrb[0].mxu0
          %10079 = vmatprep.mubr.bf16.mxu0 0
          %10080 = vmatmul.mubr.bf16.gmra.mrb[0].mxu0 %v9976
          %v10081 = vpop.f32.mrb[0].mxu0
          %v10082 = vadd.f32 0.0, %v10081
          %v10083 = vpop.f32.mrb[0].mxu0
          %v10084 = vpop.f32.mrb[0].mxu0
          %v10085 = vadd.f32 0.0, %v10084
          %v10086 = vpop.f32.mrb[0].mxu0
          %10087 = vmatprep.mubr.bf16.mxu0 0
          %10088 = vmatmul.mubr.bf16.gmra.mrb[0].mxu0 %v9977
          %v10089 = vpop.f32.mrb[0].mxu0
          %v10090 = vadd.f32 0.0, %v10089
          %v10091 = vpop.f32.mrb[0].mxu0
          %v10092 = vpop.f32.mrb[0].mxu0
          %v10093 = vadd.f32 0.0, %v10092
          %v10094 = vpop.f32.mrb[0].mxu0
          %10095 = vmatprep.mubr.bf16.mxu0 0
          %10096 = vmatmul.mubr.bf16.gmra.mrb[0].mxu0 %v9978
          %v10097 = vpop.f32.mrb[0].mxu0
          %v10098 = vadd.f32 0.0, %v10097
          %v10099 = vpop.f32.mrb[0].mxu0
          %v10100 = vpop.f32.mrb[0].mxu0
          %v10101 = vadd.f32 0.0, %v10100
          %v10102 = vpop.f32.mrb[0].mxu0
          %10103 = vmatprep.mubr.bf16.mxu0 0
          %10104 = vmatmul.mubr.bf16.gmra.mrb[0].mxu0 %v9979
          %v10105 = vpop.f32.mrb[0].mxu0
          %v10106 = vadd.f32 0.0, %v10105
          %v10107 = vpop.f32.mrb[0].mxu0
          %v10108 = vpop.f32.mrb[0].mxu0
          %v10109 = vadd.f32 0.0, %v10108
          %v10110 = vpop.f32.mrb[0].mxu0
          %10111 = vmatprep.mubr.bf16.mxu0 0
          %10112 = vmatmul.mubr.bf16.gmra.mrb[0].mxu0 %v9980
          %v10113 = vpop.f32.mrb[0].mxu0
          %v10114 = vadd.f32 0.0, %v10113
          %v10115 = vpop.f32.mrb[0].mxu0
          %v10116 = vpop.f32.mrb[0].mxu0
          %v10117 = vadd.f32 0.0, %v10116
          %v10118 = vpop.f32.mrb[0].mxu0
          %10119 = vmatprep.mubr.bf16.mxu0 0
          %10120 = vmatmul.mubr.bf16.gmra.mrb[0].mxu0 %v9981
          %v10121 = vpop.f32.mrb[0].mxu0
          %v10122 = vadd.f32 0.0, %v10121
          %v10123 = vpop.f32.mrb[0].mxu0
          %v10124 = vpop.f32.mrb[0].mxu0
          %v10125 = vadd.f32 0.0, %v10124
          %v10126 = vpop.f32.mrb[0].mxu0
          %10127 = vmatprep.mubr.bf16.mxu0 0
          %10128 = vmatmul.mubr.bf16.gmra.mrb[0].mxu0 %v9982
          %v10129 = vpop.f32.mrb[0].mxu0
          %v10130 = vadd.f32 0.0, %v10129
          %v10131 = vpop.f32.mrb[0].mxu0
          %v10132 = vpop.f32.mrb[0].mxu0
          %v10133 = vadd.f32 0.0, %v10132
          %v10134 = vpop.f32.mrb[0].mxu0
          %10135 = vdwg.mxu0
          %v10136 = vadd.f32 %v9710, %v10074
          %v10137 = vadd.f32 %v9711, %v10077
          %v10138 = vadd.f32 %v9712, %v10082
          %v10139 = vadd.f32 %v9713, %v10085
          %v10140 = vadd.f32 %v9714, %v10090
          %v10141 = vadd.f32 %v9715, %v10093
          %v10142 = vadd.f32 %v9716, %v10098
          %v10143 = vadd.f32 %v9717, %v10101
          %v10144 = vadd.f32 %v9718, %v10106
          %v10145 = vadd.f32 %v9719, %v10109
          %v10146 = vadd.f32 %v9720, %v10114
          %v10147 = vadd.f32 %v9721, %v10117
          %v10148 = vadd.f32 %v9722, %v10122
          %v10149 = vadd.f32 %v9723, %v10125
          %v10150 = vadd.f32 %v9724, %v10130
          %v10151 = vadd.f32 %v9725, %v10133
          %v10152 = vld [vmem:[%s9483] sm:$0xe]
          %v10153 = vld [vmem:[%s9483 + $0xc] sm:$0xe]
          %v10154 = vld [vmem:[%s9483 + $0x18] sm:$0xe]
          %v10155 = vld [vmem:[%s9483 + $0x24] sm:$0xe]
          %v10156 = vld [vmem:[%s9483 + $0x30] sm:$0xe]
          %v10157 = vld [vmem:[%s9483 + $0x3c] sm:$0xe]
          %v10158 = vld [vmem:[%s9483 + $0x48] sm:$0xe]
          %v10159 = vld [vmem:[%s9483 + $0x54] sm:$0xe]
          %v10184 = vrot.slane %v10152, 5
          %v10185 = vrot.slane %v10184, 4
          %v10186 = vrot.slane %v9727, 5
          %v10187 = vsel %vm8243, %v10185, %v10186
          %v10188 = vrot.slane %v10186, 4
          %v10189 = vrot.slane %v9728, 5
          %v10190 = vsel %vm8243, %v10188, %v10189
          %v10191 = vrot.slane %v10153, 5
          %v10192 = vrot.slane %v10191, 4
          %v10193 = vrot.slane %v9730, 5
          %v10194 = vsel %vm8243, %v10192, %v10193
          %v10195 = vrot.slane %v10193, 4
          %v10196 = vrot.slane %v9731, 5
          %v10197 = vsel %vm8243, %v10195, %v10196
          %v10198 = vrot.slane %v10154, 5
          %v10199 = vrot.slane %v10198, 4
          %v10200 = vrot.slane %v9733, 5
          %v10201 = vsel %vm8243, %v10199, %v10200
          %v10202 = vrot.slane %v10200, 4
          %v10203 = vrot.slane %v9734, 5
          %v10204 = vsel %vm8243, %v10202, %v10203
          %v10205 = vrot.slane %v10155, 5
          %v10206 = vrot.slane %v10205, 4
          %v10207 = vrot.slane %v9736, 5
          %v10208 = vsel %vm8243, %v10206, %v10207
          %v10209 = vrot.slane %v10207, 4
          %v10210 = vrot.slane %v9737, 5
          %v10211 = vsel %vm8243, %v10209, %v10210
          %v10212 = vrot.slane %v10156, 5
          %v10213 = vrot.slane %v10212, 4
          %v10214 = vrot.slane %v9739, 5
          %v10215 = vsel %vm8243, %v10213, %v10214
          %v10216 = vrot.slane %v10214, 4
          %v10217 = vrot.slane %v9740, 5
          %v10218 = vsel %vm8243, %v10216, %v10217
          %v10219 = vrot.slane %v10157, 5
          %v10220 = vrot.slane %v10219, 4
          %v10221 = vrot.slane %v9742, 5
          %v10222 = vsel %vm8243, %v10220, %v10221
          %v10223 = vrot.slane %v10221, 4
          %v10224 = vrot.slane %v9743, 5
          %v10225 = vsel %vm8243, %v10223, %v10224
          %v10226 = vrot.slane %v10158, 5
          %v10227 = vrot.slane %v10226, 4
          %v10228 = vrot.slane %v9745, 5
          %v10229 = vsel %vm8243, %v10227, %v10228
          %v10230 = vrot.slane %v10228, 4
          %v10231 = vrot.slane %v9746, 5
          %v10232 = vsel %vm8243, %v10230, %v10231
          %v10233 = vrot.slane %v10159, 5
          %v10234 = vrot.slane %v10233, 4
          %v10235 = vrot.slane %v9748, 5
          %v10236 = vsel %vm8243, %v10234, %v10235
          %v10237 = vrot.slane %v10235, 4
          %v10238 = vrot.slane %v9749, 5
          %v10239 = vsel %vm8243, %v10237, %v10238
          %s10240 = scalar_lea.vmem [#allocation13], 512
          %v10241 = vld [vmem:[%s10240] sm:$0xf]
          %v10242 = vld [vmem:[%s10240 + $0x4] sm:$0xf]
          %v10243 = vld [vmem:[%s10240 + $0x8] sm:$0xf]
          %v10244 = vld [vmem:[%s10240 + $0xc] sm:$0xf]
          %v10245 = vld [vmem:[%s10240 + $0x10] sm:$0xf]
          %v10246 = vld [vmem:[%s10240 + $0x14] sm:$0xf]
          %v10247 = vld [vmem:[%s10240 + $0x18] sm:$0xf]
          %v10248 = vld [vmem:[%s10240 + $0x1c] sm:$0xf]
          %v10249 = vld [vmem:[%s10240 + $0x20] sm:$0xf]
          %v10250 = vld [vmem:[%s10240 + $0x24] sm:$0xf]
          %v10251 = vld [vmem:[%s10240 + $0x28] sm:$0xf]
          %v10252 = vld [vmem:[%s10240 + $0x2c] sm:$0xf]
          %v10253 = vld [vmem:[%s10240 + $0x30] sm:$0xf]
          %v10254 = vld [vmem:[%s10240 + $0x34] sm:$0xf]
          %v10255 = vld [vmem:[%s10240 + $0x38] sm:$0xf]
          %v10256 = vld [vmem:[%s10240 + $0x3c] sm:$0xf]
          %v10257 = vunpack.c.l.b16 %v10187
          %v10258 = vunpack.c.l.b16 %v10190
          %v10259 = vunpack.c.l.b16 %v10194
          %v10260 = vunpack.c.l.b16 %v10197
          %v10261 = vunpack.c.l.b16 %v10201
          %v10262 = vunpack.c.l.b16 %v10204
          %v10263 = vunpack.c.l.b16 %v10208
          %v10264 = vunpack.c.l.b16 %v10211
          %v10265 = vunpack.c.l.b16 %v10215
          %v10266 = vunpack.c.l.b16 %v10218
          %v10267 = vunpack.c.l.b16 %v10222
          %v10268 = vunpack.c.l.b16 %v10225
          %v10269 = vunpack.c.l.b16 %v10229
          %v10270 = vunpack.c.l.b16 %v10232
          %v10271 = vunpack.c.l.b16 %v10236
          %v10272 = vunpack.c.l.b16 %v10239
          %v10273 = vpack.c.b16 %v10258, %v10257
          %v10274 = vpack.c.b16 %v10260, %v10259
          %v10275 = vpack.c.b16 %v10262, %v10261
          %v10276 = vpack.c.b16 %v10264, %v10263
          %v10277 = vpack.c.b16 %v10266, %v10265
          %v10278 = vpack.c.b16 %v10268, %v10267
          %v10279 = vpack.c.b16 %v10270, %v10269
          %v10280 = vpack.c.b16 %v10272, %v10271
          %v10305 = vunpack.c.l.b16 %v10241
          %v10306 = vunpack.c.l.b16 %v10242
          %v10307 = vunpack.c.l.b16 %v10243
          %v10308 = vunpack.c.l.b16 %v10244
          %v10309 = vunpack.c.l.b16 %v10245
          %v10310 = vunpack.c.l.b16 %v10246
          %v10311 = vunpack.c.l.b16 %v10247
          %v10312 = vunpack.c.l.b16 %v10248
          %v10313 = vunpack.c.l.b16 %v10249
          %v10314 = vunpack.c.l.b16 %v10250
          %v10315 = vunpack.c.l.b16 %v10251
          %v10316 = vunpack.c.l.b16 %v10252
          %v10317 = vunpack.c.l.b16 %v10253
          %v10318 = vunpack.c.l.b16 %v10254
          %v10319 = vunpack.c.l.b16 %v10255
          %v10320 = vunpack.c.l.b16 %v10256
          %v10321 = vpack.c.b16 %v10306, %v10305
          %v10322 = vpack.c.b16 %v10308, %v10307
          %v10323 = vpack.c.b16 %v10310, %v10309
          %v10324 = vpack.c.b16 %v10312, %v10311
          %v10325 = vpack.c.b16 %v10314, %v10313
          %v10326 = vpack.c.b16 %v10316, %v10315
          %v10327 = vpack.c.b16 %v10318, %v10317
          %v10328 = vpack.c.b16 %v10320, %v10319
          %10337 = vmatprep.subr.bf16.mxu0 0
          %10338 = vmatpush1.bf16.msra.mxu0 %v10321
          %10339 = vmatprep.subr.bf16.mxu0 0
          %10340 = vmatpush1.bf16.msra.mxu0 %v10322
          %10341 = vmatprep.subr.bf16.mxu0 0
          %10342 = vmatpush1.bf16.msra.mxu0 %v10323
          %10343 = vmatprep.subr.bf16.mxu0 0
          %10344 = vmatpush1.bf16.msra.mxu0 %v10324
          %10345 = vmatprep.subr.bf16.mxu0 0
          %10346 = vmatpush1.bf16.msra.mxu0 %v10325
          %10347 = vmatprep.subr.bf16.mxu0 0
          %10348 = vmatpush1.bf16.msra.mxu0 %v10326
          %10349 = vmatprep.subr.bf16.mxu0 0
          %10350 = vmatpush1.bf16.msra.mxu0 %v10327
          %10351 = vmatprep.subr.bf16.mxu0 0
          %10352 = vmatpush1.bf16.msra.mxu0 %v10328
          %10353 = vmatprep.subr.bf16.mxu0 0
          %10354 = vmatpush1.bf16.msra.mxu0 0
          %10355 = vmatprep.subr.bf16.mxu0 0
          %10356 = vmatpush1.bf16.msra.mxu0 0
          %10357 = vmatprep.subr.bf16.mxu0 0
          %10358 = vmatpush1.bf16.msra.mxu0 0
          %10359 = vmatprep.subr.bf16.mxu0 0
          %10360 = vmatpush1.bf16.msra.mxu0 0
          %10361 = vmatprep.subr.bf16.mxu0 0
          %10362 = vmatpush1.bf16.msra.mxu0 0
          %10363 = vmatprep.subr.bf16.mxu0 0
          %10364 = vmatpush1.bf16.msra.mxu0 0
          %10365 = vmatprep.subr.bf16.mxu0 0
          %10366 = vmatpush1.bf16.msra.mxu0 0
          %10367 = vmatprep.subr.bf16.mxu0 0
          %10368 = vmatpush1.bf16.msra.mxu0 0
          %10369 = vmatprep.mubr.bf16.mxu0 0
          %10370 = vmatmul.mubr.bf16.gmra.mrb[0].mxu0 %v10273
          %v10371 = vpop.f32.mrb[0].mxu0
          %v10372 = vadd.f32 0.0, %v10371
          %v10373 = vpop.f32.mrb[0].mxu0
          %v10374 = vpop.f32.mrb[0].mxu0
          %v10375 = vadd.f32 0.0, %v10374
          %v10376 = vpop.f32.mrb[0].mxu0
          %10377 = vmatprep.mubr.bf16.mxu0 0
          %10378 = vmatmul.mubr.bf16.gmra.mrb[0].mxu0 %v10274
          %v10379 = vpop.f32.mrb[0].mxu0
          %v10380 = vadd.f32 0.0, %v10379
          %v10381 = vpop.f32.mrb[0].mxu0
          %v10382 = vpop.f32.mrb[0].mxu0
          %v10383 = vadd.f32 0.0, %v10382
          %v10384 = vpop.f32.mrb[0].mxu0
          %10385 = vmatprep.mubr.bf16.mxu0 0
          %10386 = vmatmul.mubr.bf16.gmra.mrb[0].mxu0 %v10275
          %v10387 = vpop.f32.mrb[0].mxu0
          %v10388 = vadd.f32 0.0, %v10387
          %v10389 = vpop.f32.mrb[0].mxu0
          %v10390 = vpop.f32.mrb[0].mxu0
          %v10391 = vadd.f32 0.0, %v10390
          %v10392 = vpop.f32.mrb[0].mxu0
          %10393 = vmatprep.mubr.bf16.mxu0 0
          %10394 = vmatmul.mubr.bf16.gmra.mrb[0].mxu0 %v10276
          %v10395 = vpop.f32.mrb[0].mxu0
          %v10396 = vadd.f32 0.0, %v10395
          %v10397 = vpop.f32.mrb[0].mxu0
          %v10398 = vpop.f32.mrb[0].mxu0
          %v10399 = vadd.f32 0.0, %v10398
          %v10400 = vpop.f32.mrb[0].mxu0
          %10401 = vmatprep.mubr.bf16.mxu0 0
          %10402 = vmatmul.mubr.bf16.gmra.mrb[0].mxu0 %v10277
          %v10403 = vpop.f32.mrb[0].mxu0
          %v10404 = vadd.f32 0.0, %v10403
          %v10405 = vpop.f32.mrb[0].mxu0
          %v10406 = vpop.f32.mrb[0].mxu0
          %v10407 = vadd.f32 0.0, %v10406
          %v10408 = vpop.f32.mrb[0].mxu0
          %10409 = vmatprep.mubr.bf16.mxu0 0
          %10410 = vmatmul.mubr.bf16.gmra.mrb[0].mxu0 %v10278
          %v10411 = vpop.f32.mrb[0].mxu0
          %v10412 = vadd.f32 0.0, %v10411
          %v10413 = vpop.f32.mrb[0].mxu0
          %v10414 = vpop.f32.mrb[0].mxu0
          %v10415 = vadd.f32 0.0, %v10414
          %v10416 = vpop.f32.mrb[0].mxu0
          %10417 = vmatprep.mubr.bf16.mxu0 0
          %10418 = vmatmul.mubr.bf16.gmra.mrb[0].mxu0 %v10279
          %v10419 = vpop.f32.mrb[0].mxu0
          %v10420 = vadd.f32 0.0, %v10419
          %v10421 = vpop.f32.mrb[0].mxu0
          %v10422 = vpop.f32.mrb[0].mxu0
          %v10423 = vadd.f32 0.0, %v10422
          %v10424 = vpop.f32.mrb[0].mxu0
          %10425 = vmatprep.mubr.bf16.mxu0 0
          %10426 = vmatmul.mubr.bf16.gmra.mrb[0].mxu0 %v10280
          %v10427 = vpop.f32.mrb[0].mxu0
          %v10428 = vadd.f32 0.0, %v10427
          %v10429 = vpop.f32.mrb[0].mxu0
          %v10430 = vpop.f32.mrb[0].mxu0
          %v10431 = vadd.f32 0.0, %v10430
          %v10432 = vpop.f32.mrb[0].mxu0
          %10433 = vdwg.mxu0
          %v10434 = vadd.f32 %v10136, %v10372
          %v10435 = vadd.f32 %v10137, %v10375
          %v10436 = vadd.f32 %v10138, %v10380
          %v10437 = vadd.f32 %v10139, %v10383
          %v10438 = vadd.f32 %v10140, %v10388
          %v10439 = vadd.f32 %v10141, %v10391
          %v10440 = vadd.f32 %v10142, %v10396
          %v10441 = vadd.f32 %v10143, %v10399
          %v10442 = vadd.f32 %v10144, %v10404
          %v10443 = vadd.f32 %v10145, %v10407
          %v10444 = vadd.f32 %v10146, %v10412
          %v10445 = vadd.f32 %v10147, %v10415
          %v10446 = vadd.f32 %v10148, %v10420
          %v10447 = vadd.f32 %v10149, %v10423
          %v10448 = vadd.f32 %v10150, %v10428
          %v10449 = vadd.f32 %v10151, %v10431
          %v10450 = vld [vmem:[#allocation15] sm:$0x1]
          %v10452 = vlaneseq
          %v10453 = vshrl.u32 %v10452, 7
          %v10454 = vsub.s32 0, %v10453
          %v10455 = vrot.slane %v10450, %v10454
          %v10457 = vadd.f32 %v10434, %v10455
          %v10458 = vadd.f32 %v10435, %v10455
          %v10459 = vadd.f32 %v10436, %v10455
          %v10460 = vadd.f32 %v10437, %v10455
          %v10461 = vadd.f32 %v10438, %v10455
          %v10462 = vadd.f32 %v10439, %v10455
          %v10463 = vadd.f32 %v10440, %v10455
          %v10464 = vadd.f32 %v10441, %v10455
          %v10465 = vadd.f32 %v10442, %v10455
          %v10466 = vadd.f32 %v10443, %v10455
          %v10467 = vadd.f32 %v10444, %v10455
          %v10468 = vadd.f32 %v10445, %v10455
          %v10469 = vadd.f32 %v10446, %v10455
          %v10470 = vadd.f32 %v10447, %v10455
          %v10471 = vadd.f32 %v10448, %v10455
          %v10472 = vadd.f32 %v10449, %v10455
          %v10473 = vmax.f32 %v10457, 0.0
          %v10474 = vmax.f32 %v10458, 0.0
          %v10475 = vmax.f32 %v10459, 0.0
          %v10476 = vmax.f32 %v10460, 0.0
          %v10477 = vmax.f32 %v10461, 0.0
          %v10478 = vmax.f32 %v10462, 0.0
          %v10479 = vmax.f32 %v10463, 0.0
          %v10480 = vmax.f32 %v10464, 0.0
          %v10481 = vmax.f32 %v10465, 0.0
          %v10482 = vmax.f32 %v10466, 0.0
          %v10483 = vmax.f32 %v10467, 0.0
          %v10484 = vmax.f32 %v10468, 0.0
          %v10485 = vmax.f32 %v10469, 0.0
          %v10486 = vmax.f32 %v10470, 0.0
          %v10487 = vmax.f32 %v10471, 0.0
          %v10488 = vmax.f32 %v10472, 0.0
          %v10489 = vpack.c.bf16 %v10474, %v10473
          %v10490 = vpack.c.bf16 %v10476, %v10475
          %v10491 = vpack.c.bf16 %v10478, %v10477
          %v10492 = vpack.c.bf16 %v10480, %v10479
          %v10493 = vpack.c.bf16 %v10482, %v10481
          %v10494 = vpack.c.bf16 %v10484, %v10483
          %v10495 = vpack.c.bf16 %v10486, %v10485
          %v10496 = vpack.c.bf16 %v10488, %v10487
          %v10497 = vld [vmem:[#allocation16] sm:$0xff]
          %v10498 = vld [vmem:[#allocation16 + $0x8] sm:$0xff]
          %v10499 = vld [vmem:[#allocation16 + $0x10] sm:$0xff]
          %v10500 = vld [vmem:[#allocation16 + $0x18] sm:$0xff]
          %v10501 = vld [vmem:[#allocation16 + $0x20] sm:$0xff]
          %v10502 = vld [vmem:[#allocation16 + $0x28] sm:$0xff]
          %v10503 = vld [vmem:[#allocation16 + $0x30] sm:$0xff]
          %v10504 = vld [vmem:[#allocation16 + $0x38] sm:$0xff]
          %v10505 = vld [vmem:[#allocation16 + $0x40] sm:$0xff]
          %v10506 = vld [vmem:[#allocation16 + $0x48] sm:$0xff]
          %v10507 = vld [vmem:[#allocation16 + $0x50] sm:$0xff]
          %v10508 = vld [vmem:[#allocation16 + $0x58] sm:$0xff]
          %v10509 = vld [vmem:[#allocation16 + $0x60] sm:$0xff]
          %v10510 = vld [vmem:[#allocation16 + $0x68] sm:$0xff]
          %v10511 = vld [vmem:[#allocation16 + $0x70] sm:$0xff]
          %v10512 = vld [vmem:[#allocation16 + $0x78] sm:$0xff]
          %v10513 = vld [vmem:[#allocation16 + $0x80] sm:$0xff]
          %v10514 = vld [vmem:[#allocation16 + $0x88] sm:$0xff]
          %v10515 = vld [vmem:[#allocation16 + $0x90] sm:$0xff]
          %v10516 = vld [vmem:[#allocation16 + $0x98] sm:$0xff]
          %v10517 = vld [vmem:[#allocation16 + $0xa0] sm:$0xff]
          %v10518 = vld [vmem:[#allocation16 + $0xa8] sm:$0xff]
          %v10519 = vld [vmem:[#allocation16 + $0xb0] sm:$0xff]
          %v10520 = vld [vmem:[#allocation16 + $0xb8] sm:$0xff]
          %v10521 = vld [vmem:[#allocation16 + $0xc0] sm:$0xff]
          %v10522 = vld [vmem:[#allocation16 + $0xc8] sm:$0xff]
          %v10523 = vld [vmem:[#allocation16 + $0xd0] sm:$0xff]
          %v10524 = vld [vmem:[#allocation16 + $0xd8] sm:$0xff]
          %v10525 = vld [vmem:[#allocation16 + $0xe0] sm:$0xff]
          %v10526 = vld [vmem:[#allocation16 + $0xe8] sm:$0xff]
          %v10527 = vld [vmem:[#allocation16 + $0xf0] sm:$0xff]
          %v10528 = vld [vmem:[#allocation16 + $0xf8] sm:$0xff]
          %v10529 = vld [vmem:[#allocation18] sm:$0xf]
          %v10531 = vlaneseq
          %v10532 = vshrl.u32 %v10531, 7
          %v10533 = vsub.s32 0, %v10532
          %v10534 = vrot.slane %v10529, %v10533
          %v10535 = vlaneseq
          %v10536 = vshrl.u32 %v10535, 7
          %v10537 = vsub.s32 1, %v10536
          %v10538 = vrot.slane %v10529, %v10537
          %v10539 = vlaneseq
          %v10540 = vshrl.u32 %v10539, 7
          %v10541 = vsub.s32 2, %v10540
          %v10542 = vrot.slane %v10529, %v10541
          %v10543 = vlaneseq
          %v10544 = vshrl.u32 %v10543, 7
          %v10545 = vsub.s32 3, %v10544
          %v10546 = vrot.slane %v10529, %v10545
          %v10583 = vunpack.c.l.b16 %v10497
          %v10584 = vunpack.c.h.b16 %v10497
          %v10585 = vunpack.c.l.b16 %v10498
          %v10586 = vunpack.c.h.b16 %v10498
          %v10587 = vunpack.c.l.b16 %v10499
          %v10588 = vunpack.c.h.b16 %v10499
          %v10589 = vunpack.c.l.b16 %v10500
          %v10590 = vunpack.c.h.b16 %v10500
          %v10591 = vunpack.c.l.b16 %v10501
          %v10592 = vunpack.c.h.b16 %v10501
          %v10593 = vunpack.c.l.b16 %v10502
          %v10594 = vunpack.c.h.b16 %v10502
          %v10595 = vunpack.c.l.b16 %v10503
          %v10596 = vunpack.c.h.b16 %v10503
          %v10597 = vunpack.c.l.b16 %v10504
          %v10598 = vunpack.c.h.b16 %v10504
          %v10599 = vunpack.c.l.b16 %v10505
          %v10600 = vunpack.c.h.b16 %v10505
          %v10601 = vunpack.c.l.b16 %v10506
          %v10602 = vunpack.c.h.b16 %v10506
          %v10603 = vunpack.c.l.b16 %v10507
          %v10604 = vunpack.c.h.b16 %v10507
          %v10605 = vunpack.c.l.b16 %v10508
          %v10606 = vunpack.c.h.b16 %v10508
          %v10607 = vunpack.c.l.b16 %v10509
          %v10608 = vunpack.c.h.b16 %v10509
          %v10609 = vunpack.c.l.b16 %v10510
          %v10610 = vunpack.c.h.b16 %v10510
          %v10611 = vunpack.c.l.b16 %v10511
          %v10612 = vunpack.c.h.b16 %v10511
          %v10613 = vunpack.c.l.b16 %v10512
          %v10614 = vunpack.c.h.b16 %v10512
          %v10615 = vunpack.c.l.b16 %v10513
          %v10616 = vunpack.c.h.b16 %v10513
          %v10617 = vunpack.c.l.b16 %v10514
          %v10618 = vunpack.c.h.b16 %v10514
          %v10619 = vunpack.c.l.b16 %v10515
          %v10620 = vunpack.c.h.b16 %v10515
          %v10621 = vunpack.c.l.b16 %v10516
          %v10622 = vunpack.c.h.b16 %v10516
          %v10623 = vunpack.c.l.b16 %v10517
          %v10624 = vunpack.c.h.b16 %v10517
          %v10625 = vunpack.c.l.b16 %v10518
          %v10626 = vunpack.c.h.b16 %v10518
          %v10627 = vunpack.c.l.b16 %v10519
          %v10628 = vunpack.c.h.b16 %v10519
          %v10629 = vunpack.c.l.b16 %v10520
          %v10630 = vunpack.c.h.b16 %v10520
          %v10631 = vunpack.c.l.b16 %v10521
          %v10632 = vunpack.c.h.b16 %v10521
          %v10633 = vunpack.c.l.b16 %v10522
          %v10634 = vunpack.c.h.b16 %v10522
          %v10635 = vunpack.c.l.b16 %v10523
          %v10636 = vunpack.c.h.b16 %v10523
          %v10637 = vunpack.c.l.b16 %v10524
          %v10638 = vunpack.c.h.b16 %v10524
          %v10639 = vunpack.c.l.b16 %v10525
          %v10640 = vunpack.c.h.b16 %v10525
          %v10641 = vunpack.c.l.b16 %v10526
          %v10642 = vunpack.c.h.b16 %v10526
          %v10643 = vunpack.c.l.b16 %v10527
          %v10644 = vunpack.c.h.b16 %v10527
          %v10645 = vunpack.c.l.b16 %v10528
          %v10646 = vunpack.c.h.b16 %v10528
          %v10647 = vpack.c.b16 %v10587, %v10583
          %v10648 = vpack.c.b16 %v10588, %v10584
          %v10649 = vpack.c.b16 %v10589, %v10585
          %v10650 = vpack.c.b16 %v10590, %v10586
          %v10651 = vpack.c.b16 %v10595, %v10591
          %v10652 = vpack.c.b16 %v10596, %v10592
          %v10653 = vpack.c.b16 %v10597, %v10593
          %v10654 = vpack.c.b16 %v10598, %v10594
          %v10655 = vpack.c.b16 %v10603, %v10599
          %v10656 = vpack.c.b16 %v10604, %v10600
          %v10657 = vpack.c.b16 %v10605, %v10601
          %v10658 = vpack.c.b16 %v10606, %v10602
          %v10659 = vpack.c.b16 %v10611, %v10607
          %v10660 = vpack.c.b16 %v10612, %v10608
          %v10661 = vpack.c.b16 %v10613, %v10609
          %v10662 = vpack.c.b16 %v10614, %v10610
          %v10663 = vpack.c.b16 %v10619, %v10615
          %v10664 = vpack.c.b16 %v10620, %v10616
          %v10665 = vpack.c.b16 %v10621, %v10617
          %v10666 = vpack.c.b16 %v10622, %v10618
          %v10667 = vpack.c.b16 %v10627, %v10623
          %v10668 = vpack.c.b16 %v10628, %v10624
          %v10669 = vpack.c.b16 %v10629, %v10625
          %v10670 = vpack.c.b16 %v10630, %v10626
          %v10671 = vpack.c.b16 %v10635, %v10631
          %v10672 = vpack.c.b16 %v10636, %v10632
          %v10673 = vpack.c.b16 %v10637, %v10633
          %v10674 = vpack.c.b16 %v10638, %v10634
          %v10675 = vpack.c.b16 %v10643, %v10639
          %v10676 = vpack.c.b16 %v10644, %v10640
          %v10677 = vpack.c.b16 %v10645, %v10641
          %v10678 = vpack.c.b16 %v10646, %v10642
          %10711 = vmatprep.subr.bf16.mxu0 %v10648
          %10712 = vmatpush1.bf16.msra.mxu0 %v10647
          %10713 = vmatprep.subr.bf16.mxu0 %v10652
          %10714 = vmatpush1.bf16.msra.mxu0 %v10651
          %10715 = vmatprep.subr.bf16.mxu0 %v10656
          %10716 = vmatpush1.bf16.msra.mxu0 %v10655
          %10717 = vmatprep.subr.bf16.mxu0 %v10660
          %10718 = vmatpush1.bf16.msra.mxu0 %v10659
          %10719 = vmatprep.subr.bf16.mxu0 %v10664
          %10720 = vmatpush1.bf16.msra.mxu0 %v10663
          %10721 = vmatprep.subr.bf16.mxu0 %v10668
          %10722 = vmatpush1.bf16.msra.mxu0 %v10667
          %10723 = vmatprep.subr.bf16.mxu0 %v10672
          %10724 = vmatpush1.bf16.msra.mxu0 %v10671
          %10725 = vmatprep.subr.bf16.mxu0 %v10676
          %10726 = vmatpush1.bf16.msra.mxu0 %v10675
          %10727 = vmatprep.subr.bf16.mxu0 0
          %10728 = vmatpush1.bf16.msra.mxu0 0
          %10729 = vmatprep.subr.bf16.mxu0 0
          %10730 = vmatpush1.bf16.msra.mxu0 0
          %10731 = vmatprep.subr.bf16.mxu0 0
          %10732 = vmatpush1.bf16.msra.mxu0 0
          %10733 = vmatprep.subr.bf16.mxu0 0
          %10734 = vmatpush1.bf16.msra.mxu0 0
          %10735 = vmatprep.subr.bf16.mxu0 0
          %10736 = vmatpush1.bf16.msra.mxu0 0
          %10737 = vmatprep.subr.bf16.mxu0 0
          %10738 = vmatpush1.bf16.msra.mxu0 0
          %10739 = vmatprep.subr.bf16.mxu0 0
          %10740 = vmatpush1.bf16.msra.mxu0 0
          %10741 = vmatprep.subr.bf16.mxu0 0
          %10742 = vmatpush1.bf16.msra.mxu0 0
          %10743 = vmatprep.mubr.bf16.mxu0 0
          %10744 = vmatmul.mubr.bf16.gmra.mrb[0].mxu0 %v10489
          %v10745 = vpop.f32.mrb[0].mxu0
          %v10746 = vadd.f32 %v10534, %v10745
          %v10747 = vpop.f32.mrb[0].mxu0
          %v10748 = vadd.f32 %v10538, %v10747
          %v10749 = vpop.f32.mrb[0].mxu0
          %v10750 = vadd.f32 %v10534, %v10749
          %v10751 = vpop.f32.mrb[0].mxu0
          %v10752 = vadd.f32 %v10538, %v10751
          %10753 = vmatprep.mubr.bf16.mxu0 0
          %10754 = vmatmul.mubr.bf16.gmra.mrb[0].mxu0 %v10490
          %v10755 = vpop.f32.mrb[0].mxu0
          %v10756 = vadd.f32 %v10534, %v10755
          %v10757 = vpop.f32.mrb[0].mxu0
          %v10758 = vadd.f32 %v10538, %v10757
          %v10759 = vpop.f32.mrb[0].mxu0
          %v10760 = vadd.f32 %v10534, %v10759
          %v10761 = vpop.f32.mrb[0].mxu0
          %v10762 = vadd.f32 %v10538, %v10761
          %10763 = vmatprep.mubr.bf16.mxu0 0
          %10764 = vmatmul.mubr.bf16.gmra.mrb[0].mxu0 %v10491
          %v10765 = vpop.f32.mrb[0].mxu0
          %v10766 = vadd.f32 %v10534, %v10765
          %v10767 = vpop.f32.mrb[0].mxu0
          %v10768 = vadd.f32 %v10538, %v10767
          %v10769 = vpop.f32.mrb[0].mxu0
          %v10770 = vadd.f32 %v10534, %v10769
          %v10771 = vpop.f32.mrb[0].mxu0
          %v10772 = vadd.f32 %v10538, %v10771
          %10773 = vmatprep.mubr.bf16.mxu0 0
          %10774 = vmatmul.mubr.bf16.gmra.mrb[0].mxu0 %v10492
          %v10775 = vpop.f32.mrb[0].mxu0
          %v10776 = vadd.f32 %v10534, %v10775
          %v10777 = vpop.f32.mrb[0].mxu0
          %v10778 = vadd.f32 %v10538, %v10777
          %v10779 = vpop.f32.mrb[0].mxu0
          %v10780 = vadd.f32 %v10534, %v10779
          %v10781 = vpop.f32.mrb[0].mxu0
          %v10782 = vadd.f32 %v10538, %v10781
          %10783 = vmatprep.mubr.bf16.mxu0 0
          %10784 = vmatmul.mubr.bf16.gmra.mrb[0].mxu0 %v10493
          %v10785 = vpop.f32.mrb[0].mxu0
          %v10786 = vadd.f32 %v10534, %v10785
          %v10787 = vpop.f32.mrb[0].mxu0
          %v10788 = vadd.f32 %v10538, %v10787
          %v10789 = vpop.f32.mrb[0].mxu0
          %v10790 = vadd.f32 %v10534, %v10789
          %v10791 = vpop.f32.mrb[0].mxu0
          %v10792 = vadd.f32 %v10538, %v10791
          %10793 = vmatprep.mubr.bf16.mxu0 0
          %10794 = vmatmul.mubr.bf16.gmra.mrb[0].mxu0 %v10494
          %v10795 = vpop.f32.mrb[0].mxu0
          %v10796 = vadd.f32 %v10534, %v10795
          %v10797 = vpop.f32.mrb[0].mxu0
          %v10798 = vadd.f32 %v10538, %v10797
          %v10799 = vpop.f32.mrb[0].mxu0
          %v10800 = vadd.f32 %v10534, %v10799
          %v10801 = vpop.f32.mrb[0].mxu0
          %v10802 = vadd.f32 %v10538, %v10801
          %10803 = vmatprep.mubr.bf16.mxu0 0
          %10804 = vmatmul.mubr.bf16.gmra.mrb[0].mxu0 %v10495
          %v10805 = vpop.f32.mrb[0].mxu0
          %v10806 = vadd.f32 %v10534, %v10805
          %v10807 = vpop.f32.mrb[0].mxu0
          %v10808 = vadd.f32 %v10538, %v10807
          %v10809 = vpop.f32.mrb[0].mxu0
          %v10810 = vadd.f32 %v10534, %v10809
          %v10811 = vpop.f32.mrb[0].mxu0
          %v10812 = vadd.f32 %v10538, %v10811
          %10813 = vmatprep.mubr.bf16.mxu0 0
          %10814 = vmatmul.mubr.bf16.gmra.mrb[0].mxu0 %v10496
          %v10815 = vpop.f32.mrb[0].mxu0
          %v10816 = vadd.f32 %v10534, %v10815
          %v10817 = vpop.f32.mrb[0].mxu0
          %v10818 = vadd.f32 %v10538, %v10817
          %v10819 = vpop.f32.mrb[0].mxu0
          %v10820 = vadd.f32 %v10534, %v10819
          %v10821 = vpop.f32.mrb[0].mxu0
          %v10822 = vadd.f32 %v10538, %v10821
          %10823 = vdwg.mxu0
          %10824 = vmatprep.subr.bf16.mxu0 %v10650
          %10825 = vmatpush1.bf16.msra.mxu0 %v10649
          %10826 = vmatprep.subr.bf16.mxu0 %v10654
          %10827 = vmatpush1.bf16.msra.mxu0 %v10653
          %10828 = vmatprep.subr.bf16.mxu0 %v10658
          %10829 = vmatpush1.bf16.msra.mxu0 %v10657
          %10830 = vmatprep.subr.bf16.mxu0 %v10662
          %10831 = vmatpush1.bf16.msra.mxu0 %v10661
          %10832 = vmatprep.subr.bf16.mxu0 %v10666
          %10833 = vmatpush1.bf16.msra.mxu0 %v10665
          %10834 = vmatprep.subr.bf16.mxu0 %v10670
          %10835 = vmatpush1.bf16.msra.mxu0 %v10669
          %10836 = vmatprep.subr.bf16.mxu0 %v10674
          %10837 = vmatpush1.bf16.msra.mxu0 %v10673
          %10838 = vmatprep.subr.bf16.mxu0 %v10678
          %10839 = vmatpush1.bf16.msra.mxu0 %v10677
          %10840 = vmatprep.subr.bf16.mxu0 0
          %10841 = vmatpush1.bf16.msra.mxu0 0
          %10842 = vmatprep.subr.bf16.mxu0 0
          %10843 = vmatpush1.bf16.msra.mxu0 0
          %10844 = vmatprep.subr.bf16.mxu0 0
          %10845 = vmatpush1.bf16.msra.mxu0 0
          %10846 = vmatprep.subr.bf16.mxu0 0
          %10847 = vmatpush1.bf16.msra.mxu0 0
          %10848 = vmatprep.subr.bf16.mxu0 0
          %10849 = vmatpush1.bf16.msra.mxu0 0
          %10850 = vmatprep.subr.bf16.mxu0 0
          %10851 = vmatpush1.bf16.msra.mxu0 0
          %10852 = vmatprep.subr.bf16.mxu0 0
          %10853 = vmatpush1.bf16.msra.mxu0 0
          %10854 = vmatprep.subr.bf16.mxu0 0
          %10855 = vmatpush1.bf16.msra.mxu0 0
          %10856 = vmatprep.mubr.bf16.mxu0 0
          %10857 = vmatmul.mubr.bf16.gmra.mrb[0].mxu0 %v10489
          %v10858 = vpop.f32.mrb[0].mxu0
          %v10859 = vadd.f32 %v10542, %v10858
          %v10860 = vpop.f32.mrb[0].mxu0
          %v10861 = vadd.f32 %v10546, %v10860
          %v10862 = vpop.f32.mrb[0].mxu0
          %v10863 = vadd.f32 %v10542, %v10862
          %v10864 = vpop.f32.mrb[0].mxu0
          %v10865 = vadd.f32 %v10546, %v10864
          %10866 = vmatprep.mubr.bf16.mxu0 0
          %10867 = vmatmul.mubr.bf16.gmra.mrb[0].mxu0 %v10490
          %v10868 = vpop.f32.mrb[0].mxu0
          %v10869 = vadd.f32 %v10542, %v10868
          %v10870 = vpop.f32.mrb[0].mxu0
          %v10871 = vadd.f32 %v10546, %v10870
          %v10872 = vpop.f32.mrb[0].mxu0
          %v10873 = vadd.f32 %v10542, %v10872
          %v10874 = vpop.f32.mrb[0].mxu0
          %v10875 = vadd.f32 %v10546, %v10874
          %10876 = vmatprep.mubr.bf16.mxu0 0
          %10877 = vmatmul.mubr.bf16.gmra.mrb[0].mxu0 %v10491
          %v10878 = vpop.f32.mrb[0].mxu0
          %v10879 = vadd.f32 %v10542, %v10878
          %v10880 = vpop.f32.mrb[0].mxu0
          %v10881 = vadd.f32 %v10546, %v10880
          %v10882 = vpop.f32.mrb[0].mxu0
          %v10883 = vadd.f32 %v10542, %v10882
          %v10884 = vpop.f32.mrb[0].mxu0
          %v10885 = vadd.f32 %v10546, %v10884
          %10886 = vmatprep.mubr.bf16.mxu0 0
          %10887 = vmatmul.mubr.bf16.gmra.mrb[0].mxu0 %v10492
          %v10888 = vpop.f32.mrb[0].mxu0
          %v10889 = vadd.f32 %v10542, %v10888
          %v10890 = vpop.f32.mrb[0].mxu0
          %v10891 = vadd.f32 %v10546, %v10890
          %v10892 = vpop.f32.mrb[0].mxu0
          %v10893 = vadd.f32 %v10542, %v10892
          %v10894 = vpop.f32.mrb[0].mxu0
          %v10895 = vadd.f32 %v10546, %v10894
          %10896 = vmatprep.mubr.bf16.mxu0 0
          %10897 = vmatmul.mubr.bf16.gmra.mrb[0].mxu0 %v10493
          %v10898 = vpop.f32.mrb[0].mxu0
          %v10899 = vadd.f32 %v10542, %v10898
          %v10900 = vpop.f32.mrb[0].mxu0
          %v10901 = vadd.f32 %v10546, %v10900
          %v10902 = vpop.f32.mrb[0].mxu0
          %v10903 = vadd.f32 %v10542, %v10902
          %v10904 = vpop.f32.mrb[0].mxu0
          %v10905 = vadd.f32 %v10546, %v10904
          %10906 = vmatprep.mubr.bf16.mxu0 0
          %10907 = vmatmul.mubr.bf16.gmra.mrb[0].mxu0 %v10494
          %v10908 = vpop.f32.mrb[0].mxu0
          %v10909 = vadd.f32 %v10542, %v10908
          %v10910 = vpop.f32.mrb[0].mxu0
          %v10911 = vadd.f32 %v10546, %v10910
          %v10912 = vpop.f32.mrb[0].mxu0
          %v10913 = vadd.f32 %v10542, %v10912
          %v10914 = vpop.f32.mrb[0].mxu0
          %v10915 = vadd.f32 %v10546, %v10914
          %10916 = vmatprep.mubr.bf16.mxu0 0
          %10917 = vmatmul.mubr.bf16.gmra.mrb[0].mxu0 %v10495
          %v10918 = vpop.f32.mrb[0].mxu0
          %v10919 = vadd.f32 %v10542, %v10918
          %v10920 = vpop.f32.mrb[0].mxu0
          %v10921 = vadd.f32 %v10546, %v10920
          %v10922 = vpop.f32.mrb[0].mxu0
          %v10923 = vadd.f32 %v10542, %v10922
          %v10924 = vpop.f32.mrb[0].mxu0
          %v10925 = vadd.f32 %v10546, %v10924
          %10926 = vmatprep.mubr.bf16.mxu0 0
          %10927 = vmatmul.mubr.bf16.gmra.mrb[0].mxu0 %v10496
          %v10928 = vpop.f32.mrb[0].mxu0
          %v10929 = vadd.f32 %v10542, %v10928
          %v10930 = vpop.f32.mrb[0].mxu0
          %v10931 = vadd.f32 %v10546, %v10930
          %v10932 = vpop.f32.mrb[0].mxu0
          %v10933 = vadd.f32 %v10542, %v10932
          %v10934 = vpop.f32.mrb[0].mxu0
          %v10935 = vadd.f32 %v10546, %v10934
          %10936 = vdwg.mxu0
          %v10937 = vmax.f32 %v10746, 0.0
          %v10938 = vmax.f32 %v10748, 0.0
          %v10939 = vmax.f32 %v10859, 0.0
          %v10940 = vmax.f32 %v10861, 0.0
          %v10941 = vmax.f32 %v10750, 0.0
          %v10942 = vmax.f32 %v10752, 0.0
          %v10943 = vmax.f32 %v10863, 0.0
          %v10944 = vmax.f32 %v10865, 0.0
          %v10945 = vmax.f32 %v10756, 0.0
          %v10946 = vmax.f32 %v10758, 0.0
          %v10947 = vmax.f32 %v10869, 0.0
          %v10948 = vmax.f32 %v10871, 0.0
          %v10949 = vmax.f32 %v10760, 0.0
          %v10950 = vmax.f32 %v10762, 0.0
          %v10951 = vmax.f32 %v10873, 0.0
          %v10952 = vmax.f32 %v10875, 0.0
          %v10953 = vmax.f32 %v10766, 0.0
          %v10954 = vmax.f32 %v10768, 0.0
          %v10955 = vmax.f32 %v10879, 0.0
          %v10956 = vmax.f32 %v10881, 0.0
          %v10957 = vmax.f32 %v10770, 0.0
          %v10958 = vmax.f32 %v10772, 0.0
          %v10959 = vmax.f32 %v10883, 0.0
          %v10960 = vmax.f32 %v10885, 0.0
          %v10961 = vmax.f32 %v10776, 0.0
          %v10962 = vmax.f32 %v10778, 0.0
          %v10963 = vmax.f32 %v10889, 0.0
          %v10964 = vmax.f32 %v10891, 0.0
          %v10965 = vmax.f32 %v10780, 0.0
          %v10966 = vmax.f32 %v10782, 0.0
          %v10967 = vmax.f32 %v10893, 0.0
          %v10968 = vmax.f32 %v10895, 0.0
          %v10969 = vmax.f32 %v10786, 0.0
          %v10970 = vmax.f32 %v10788, 0.0
          %v10971 = vmax.f32 %v10899, 0.0
          %v10972 = vmax.f32 %v10901, 0.0
          %v10973 = vmax.f32 %v10790, 0.0
          %v10974 = vmax.f32 %v10792, 0.0
          %v10975 = vmax.f32 %v10903, 0.0
          %v10976 = vmax.f32 %v10905, 0.0
          %v10977 = vmax.f32 %v10796, 0.0
          %v10978 = vmax.f32 %v10798, 0.0
          %v10979 = vmax.f32 %v10909, 0.0
          %v10980 = vmax.f32 %v10911, 0.0
          %v10981 = vmax.f32 %v10800, 0.0
          %v10982 = vmax.f32 %v10802, 0.0
          %v10983 = vmax.f32 %v10913, 0.0
          %v10984 = vmax.f32 %v10915, 0.0
          %v10985 = vmax.f32 %v10806, 0.0
          %v10986 = vmax.f32 %v10808, 0.0
          %v10987 = vmax.f32 %v10919, 0.0
          %v10988 = vmax.f32 %v10921, 0.0
          %v10989 = vmax.f32 %v10810, 0.0
          %v10990 = vmax.f32 %v10812, 0.0
          %v10991 = vmax.f32 %v10923, 0.0
          %v10992 = vmax.f32 %v10925, 0.0
          %v10993 = vmax.f32 %v10816, 0.0
          %v10994 = vmax.f32 %v10818, 0.0
          %v10995 = vmax.f32 %v10929, 0.0
          %v10996 = vmax.f32 %v10931, 0.0
          %v10997 = vmax.f32 %v10820, 0.0
          %v10998 = vmax.f32 %v10822, 0.0
          %v10999 = vmax.f32 %v10933, 0.0
          %v11000 = vmax.f32 %v10935, 0.0
          %v11001 = vpack.c.bf16 %v10941, %v10937
          %v11002 = vpack.c.bf16 %v10942, %v10938
          %v11003 = vpack.c.bf16 %v10943, %v10939
          %v11004 = vpack.c.bf16 %v10944, %v10940
          %v11005 = vpack.c.bf16 %v10949, %v10945
          %v11006 = vpack.c.bf16 %v10950, %v10946
          %v11007 = vpack.c.bf16 %v10951, %v10947
          %v11008 = vpack.c.bf16 %v10952, %v10948
          %v11009 = vpack.c.bf16 %v10957, %v10953
          %v11010 = vpack.c.bf16 %v10958, %v10954
          %v11011 = vpack.c.bf16 %v10959, %v10955
          %v11012 = vpack.c.bf16 %v10960, %v10956
          %v11013 = vpack.c.bf16 %v10965, %v10961
          %v11014 = vpack.c.bf16 %v10966, %v10962
          %v11015 = vpack.c.bf16 %v10967, %v10963
          %v11016 = vpack.c.bf16 %v10968, %v10964
          %v11017 = vpack.c.bf16 %v10973, %v10969
          %v11018 = vpack.c.bf16 %v10974, %v10970
          %v11019 = vpack.c.bf16 %v10975, %v10971
          %v11020 = vpack.c.bf16 %v10976, %v10972
          %v11021 = vpack.c.bf16 %v10981, %v10977
          %v11022 = vpack.c.bf16 %v10982, %v10978
          %v11023 = vpack.c.bf16 %v10983, %v10979
          %v11024 = vpack.c.bf16 %v10984, %v10980
          %v11025 = vpack.c.bf16 %v10989, %v10985
          %v11026 = vpack.c.bf16 %v10990, %v10986
          %v11027 = vpack.c.bf16 %v10991, %v10987
          %v11028 = vpack.c.bf16 %v10992, %v10988
          %v11029 = vpack.c.bf16 %v10997, %v10993
          %v11030 = vpack.c.bf16 %v10998, %v10994
          %v11031 = vpack.c.bf16 %v10999, %v10995
          %v11032 = vpack.c.bf16 %v11000, %v10996
          %v11033 = vld [vmem:[#allocation19] sm:$0xf]
          %v11034 = vld [vmem:[#allocation19 + $0x4] sm:$0xf]
          %v11035 = vld [vmem:[#allocation19 + $0x8] sm:$0xf]
          %v11036 = vld [vmem:[#allocation19 + $0xc] sm:$0xf]
          %v11037 = vld [vmem:[#allocation19 + $0x10] sm:$0xf]
          %v11038 = vld [vmem:[#allocation19 + $0x14] sm:$0xf]
          %v11039 = vld [vmem:[#allocation19 + $0x18] sm:$0xf]
          %v11040 = vld [vmem:[#allocation19 + $0x1c] sm:$0xf]
          %v11041 = vld [vmem:[#allocation19 + $0x20] sm:$0xf]
          %v11042 = vld [vmem:[#allocation19 + $0x24] sm:$0xf]
          %v11043 = vld [vmem:[#allocation19 + $0x28] sm:$0xf]
          %v11044 = vld [vmem:[#allocation19 + $0x2c] sm:$0xf]
          %v11045 = vld [vmem:[#allocation19 + $0x30] sm:$0xf]
          %v11046 = vld [vmem:[#allocation19 + $0x34] sm:$0xf]
          %v11047 = vld [vmem:[#allocation19 + $0x38] sm:$0xf]
          %v11048 = vld [vmem:[#allocation19 + $0x3c] sm:$0xf]
          %v11049 = vld [vmem:[#allocation19 + $0x40] sm:$0xf]
          %v11050 = vld [vmem:[#allocation19 + $0x44] sm:$0xf]
          %v11051 = vld [vmem:[#allocation19 + $0x48] sm:$0xf]
          %v11052 = vld [vmem:[#allocation19 + $0x4c] sm:$0xf]
          %v11053 = vld [vmem:[#allocation19 + $0x50] sm:$0xf]
          %v11054 = vld [vmem:[#allocation19 + $0x54] sm:$0xf]
          %v11055 = vld [vmem:[#allocation19 + $0x58] sm:$0xf]
          %v11056 = vld [vmem:[#allocation19 + $0x5c] sm:$0xf]
          %v11057 = vld [vmem:[#allocation19 + $0x60] sm:$0xf]
          %v11058 = vld [vmem:[#allocation19 + $0x64] sm:$0xf]
          %v11059 = vld [vmem:[#allocation19 + $0x68] sm:$0xf]
          %v11060 = vld [vmem:[#allocation19 + $0x6c] sm:$0xf]
          %v11061 = vld [vmem:[#allocation19 + $0x70] sm:$0xf]
          %v11062 = vld [vmem:[#allocation19 + $0x74] sm:$0xf]
          %v11063 = vld [vmem:[#allocation19 + $0x78] sm:$0xf]
          %v11064 = vld [vmem:[#allocation19 + $0x7c] sm:$0xf]
          %v11065 = vld [vmem:[#allocation19 + $0x80] sm:$0xf]
          %v11066 = vld [vmem:[#allocation19 + $0x84] sm:$0xf]
          %v11067 = vld [vmem:[#allocation19 + $0x88] sm:$0xf]
          %v11068 = vld [vmem:[#allocation19 + $0x8c] sm:$0xf]
          %v11069 = vld [vmem:[#allocation19 + $0x90] sm:$0xf]
          %v11070 = vld [vmem:[#allocation19 + $0x94] sm:$0xf]
          %v11071 = vld [vmem:[#allocation19 + $0x98] sm:$0xf]
          %v11072 = vld [vmem:[#allocation19 + $0x9c] sm:$0xf]
          %v11073 = vld [vmem:[#allocation19 + $0xa0] sm:$0xf]
          %v11074 = vld [vmem:[#allocation19 + $0xa4] sm:$0xf]
          %v11075 = vld [vmem:[#allocation19 + $0xa8] sm:$0xf]
          %v11076 = vld [vmem:[#allocation19 + $0xac] sm:$0xf]
          %v11077 = vld [vmem:[#allocation19 + $0xb0] sm:$0xf]
          %v11078 = vld [vmem:[#allocation19 + $0xb4] sm:$0xf]
          %v11079 = vld [vmem:[#allocation19 + $0xb8] sm:$0xf]
          %v11080 = vld [vmem:[#allocation19 + $0xbc] sm:$0xf]
          %v11081 = vld [vmem:[#allocation19 + $0xc0] sm:$0xf]
          %v11082 = vld [vmem:[#allocation19 + $0xc4] sm:$0xf]
          %v11083 = vld [vmem:[#allocation19 + $0xc8] sm:$0xf]
          %v11084 = vld [vmem:[#allocation19 + $0xcc] sm:$0xf]
          %v11085 = vld [vmem:[#allocation19 + $0xd0] sm:$0xf]
          %v11086 = vld [vmem:[#allocation19 + $0xd4] sm:$0xf]
          %v11087 = vld [vmem:[#allocation19 + $0xd8] sm:$0xf]
          %v11088 = vld [vmem:[#allocation19 + $0xdc] sm:$0xf]
          %v11089 = vld [vmem:[#allocation19 + $0xe0] sm:$0xf]
          %v11090 = vld [vmem:[#allocation19 + $0xe4] sm:$0xf]
          %v11091 = vld [vmem:[#allocation19 + $0xe8] sm:$0xf]
          %v11092 = vld [vmem:[#allocation19 + $0xec] sm:$0xf]
          %v11093 = vld [vmem:[#allocation19 + $0xf0] sm:$0xf]
          %v11094 = vld [vmem:[#allocation19 + $0xf4] sm:$0xf]
          %v11095 = vld [vmem:[#allocation19 + $0xf8] sm:$0xf]
          %v11096 = vld [vmem:[#allocation19 + $0xfc] sm:$0xf]
          %v11097 = vld [vmem:[#allocation21] sm:$0x1]
          %v11099 = vlaneseq
          %v11100 = vshrl.u32 %v11099, 7
          %v11101 = vsub.s32 0, %v11100
          %v11102 = vrot.slane %v11097, %v11101
          %v11168 = vunpack.c.l.b16 %v11033
          %v11169 = vunpack.c.l.b16 %v11034
          %v11170 = vunpack.c.l.b16 %v11035
          %v11171 = vunpack.c.l.b16 %v11036
          %v11172 = vunpack.c.l.b16 %v11037
          %v11173 = vunpack.c.l.b16 %v11038
          %v11174 = vunpack.c.l.b16 %v11039
          %v11175 = vunpack.c.l.b16 %v11040
          %v11176 = vunpack.c.l.b16 %v11041
          %v11177 = vunpack.c.l.b16 %v11042
          %v11178 = vunpack.c.l.b16 %v11043
          %v11179 = vunpack.c.l.b16 %v11044
          %v11180 = vunpack.c.l.b16 %v11045
          %v11181 = vunpack.c.l.b16 %v11046
          %v11182 = vunpack.c.l.b16 %v11047
          %v11183 = vunpack.c.l.b16 %v11048
          %v11184 = vunpack.c.l.b16 %v11049
          %v11185 = vunpack.c.l.b16 %v11050
          %v11186 = vunpack.c.l.b16 %v11051
          %v11187 = vunpack.c.l.b16 %v11052
          %v11188 = vunpack.c.l.b16 %v11053
          %v11189 = vunpack.c.l.b16 %v11054
          %v11190 = vunpack.c.l.b16 %v11055
          %v11191 = vunpack.c.l.b16 %v11056
          %v11192 = vunpack.c.l.b16 %v11057
          %v11193 = vunpack.c.l.b16 %v11058
          %v11194 = vunpack.c.l.b16 %v11059
          %v11195 = vunpack.c.l.b16 %v11060
          %v11196 = vunpack.c.l.b16 %v11061
          %v11197 = vunpack.c.l.b16 %v11062
          %v11198 = vunpack.c.l.b16 %v11063
          %v11199 = vunpack.c.l.b16 %v11064
          %v11200 = vunpack.c.l.b16 %v11065
          %v11201 = vunpack.c.l.b16 %v11066
          %v11202 = vunpack.c.l.b16 %v11067
          %v11203 = vunpack.c.l.b16 %v11068
          %v11204 = vunpack.c.l.b16 %v11069
          %v11205 = vunpack.c.l.b16 %v11070
          %v11206 = vunpack.c.l.b16 %v11071
          %v11207 = vunpack.c.l.b16 %v11072
          %v11208 = vunpack.c.l.b16 %v11073
          %v11209 = vunpack.c.l.b16 %v11074
          %v11210 = vunpack.c.l.b16 %v11075
          %v11211 = vunpack.c.l.b16 %v11076
          %v11212 = vunpack.c.l.b16 %v11077
          %v11213 = vunpack.c.l.b16 %v11078
          %v11214 = vunpack.c.l.b16 %v11079
          %v11215 = vunpack.c.l.b16 %v11080
          %v11216 = vunpack.c.l.b16 %v11081
          %v11217 = vunpack.c.l.b16 %v11082
          %v11218 = vunpack.c.l.b16 %v11083
          %v11219 = vunpack.c.l.b16 %v11084
          %v11220 = vunpack.c.l.b16 %v11085
          %v11221 = vunpack.c.l.b16 %v11086
          %v11222 = vunpack.c.l.b16 %v11087
          %v11223 = vunpack.c.l.b16 %v11088
          %v11224 = vunpack.c.l.b16 %v11089
          %v11225 = vunpack.c.l.b16 %v11090
          %v11226 = vunpack.c.l.b16 %v11091
          %v11227 = vunpack.c.l.b16 %v11092
          %v11228 = vunpack.c.l.b16 %v11093
          %v11229 = vunpack.c.l.b16 %v11094
          %v11230 = vunpack.c.l.b16 %v11095
          %v11231 = vunpack.c.l.b16 %v11096
          %v11232 = vpack.c.b16 %v11169, %v11168
          %v11233 = vpack.c.b16 %v11171, %v11170
          %v11234 = vpack.c.b16 %v11173, %v11172
          %v11235 = vpack.c.b16 %v11175, %v11174
          %v11236 = vpack.c.b16 %v11177, %v11176
          %v11237 = vpack.c.b16 %v11179, %v11178
          %v11238 = vpack.c.b16 %v11181, %v11180
          %v11239 = vpack.c.b16 %v11183, %v11182
          %v11240 = vpack.c.b16 %v11185, %v11184
          %v11241 = vpack.c.b16 %v11187, %v11186
          %v11242 = vpack.c.b16 %v11189, %v11188
          %v11243 = vpack.c.b16 %v11191, %v11190
          %v11244 = vpack.c.b16 %v11193, %v11192
          %v11245 = vpack.c.b16 %v11195, %v11194
          %v11246 = vpack.c.b16 %v11197, %v11196
          %v11247 = vpack.c.b16 %v11199, %v11198
          %v11248 = vpack.c.b16 %v11201, %v11200
          %v11249 = vpack.c.b16 %v11203, %v11202
          %v11250 = vpack.c.b16 %v11205, %v11204
          %v11251 = vpack.c.b16 %v11207, %v11206
          %v11252 = vpack.c.b16 %v11209, %v11208
          %v11253 = vpack.c.b16 %v11211, %v11210
          %v11254 = vpack.c.b16 %v11213, %v11212
          %v11255 = vpack.c.b16 %v11215, %v11214
          %v11256 = vpack.c.b16 %v11217, %v11216
          %v11257 = vpack.c.b16 %v11219, %v11218
          %v11258 = vpack.c.b16 %v11221, %v11220
          %v11259 = vpack.c.b16 %v11223, %v11222
          %v11260 = vpack.c.b16 %v11225, %v11224
          %v11261 = vpack.c.b16 %v11227, %v11226
          %v11262 = vpack.c.b16 %v11229, %v11228
          %v11263 = vpack.c.b16 %v11231, %v11230
          %11296 = vmatprep.subr.bf16.mxu0 0
          %11297 = vmatpush1.bf16.msra.mxu0 %v11232
          %11298 = vmatprep.subr.bf16.mxu0 0
          %11299 = vmatpush1.bf16.msra.mxu0 %v11233
          %11300 = vmatprep.subr.bf16.mxu0 0
          %11301 = vmatpush1.bf16.msra.mxu0 %v11234
          %11302 = vmatprep.subr.bf16.mxu0 0
          %11303 = vmatpush1.bf16.msra.mxu0 %v11235
          %11304 = vmatprep.subr.bf16.mxu0 0
          %11305 = vmatpush1.bf16.msra.mxu0 %v11236
          %11306 = vmatprep.subr.bf16.mxu0 0
          %11307 = vmatpush1.bf16.msra.mxu0 %v11237
          %11308 = vmatprep.subr.bf16.mxu0 0
          %11309 = vmatpush1.bf16.msra.mxu0 %v11238
          %11310 = vmatprep.subr.bf16.mxu0 0
          %11311 = vmatpush1.bf16.msra.mxu0 %v11239
          %11312 = vmatprep.subr.bf16.mxu0 0
          %11313 = vmatpush1.bf16.msra.mxu0 %v11240
          %11314 = vmatprep.subr.bf16.mxu0 0
          %11315 = vmatpush1.bf16.msra.mxu0 %v11241
          %11316 = vmatprep.subr.bf16.mxu0 0
          %11317 = vmatpush1.bf16.msra.mxu0 %v11242
          %11318 = vmatprep.subr.bf16.mxu0 0
          %11319 = vmatpush1.bf16.msra.mxu0 %v11243
          %11320 = vmatprep.subr.bf16.mxu0 0
          %11321 = vmatpush1.bf16.msra.mxu0 %v11244
          %11322 = vmatprep.subr.bf16.mxu0 0
          %11323 = vmatpush1.bf16.msra.mxu0 %v11245
          %11324 = vmatprep.subr.bf16.mxu0 0
          %11325 = vmatpush1.bf16.msra.mxu0 %v11246
          %11326 = vmatprep.subr.bf16.mxu0 0
          %11327 = vmatpush1.bf16.msra.mxu0 %v11247
          %11328 = vmatprep.mubr.bf16.mxu0 %v11002
          %11329 = vmatmul.mubr.bf16.gmra.mrb[0].mxu0 %v11001
          %v11330 = vpop.f32.mrb[0].mxu0
          %v11331 = vadd.f32 %v11102, %v11330
          %v11332 = vpop.f32.mrb[0].mxu0
          %v11333 = vpop.f32.mrb[0].mxu0
          %v11334 = vadd.f32 %v11102, %v11333
          %v11335 = vpop.f32.mrb[0].mxu0
          %11336 = vmatprep.mubr.bf16.mxu0 %v11006
          %11337 = vmatmul.mubr.bf16.gmra.mrb[0].mxu0 %v11005
          %v11338 = vpop.f32.mrb[0].mxu0
          %v11339 = vadd.f32 %v11102, %v11338
          %v11340 = vpop.f32.mrb[0].mxu0
          %v11341 = vpop.f32.mrb[0].mxu0
          %v11342 = vadd.f32 %v11102, %v11341
          %v11343 = vpop.f32.mrb[0].mxu0
          %11344 = vmatprep.mubr.bf16.mxu0 %v11010
          %11345 = vmatmul.mubr.bf16.gmra.mrb[0].mxu0 %v11009
          %v11346 = vpop.f32.mrb[0].mxu0
          %v11347 = vadd.f32 %v11102, %v11346
          %v11348 = vpop.f32.mrb[0].mxu0
          %v11349 = vpop.f32.mrb[0].mxu0
          %v11350 = vadd.f32 %v11102, %v11349
          %v11351 = vpop.f32.mrb[0].mxu0
          %11352 = vmatprep.mubr.bf16.mxu0 %v11014
          %11353 = vmatmul.mubr.bf16.gmra.mrb[0].mxu0 %v11013
          %v11354 = vpop.f32.mrb[0].mxu0
          %v11355 = vadd.f32 %v11102, %v11354
          %v11356 = vpop.f32.mrb[0].mxu0
          %v11357 = vpop.f32.mrb[0].mxu0
          %v11358 = vadd.f32 %v11102, %v11357
          %v11359 = vpop.f32.mrb[0].mxu0
          %11360 = vmatprep.mubr.bf16.mxu0 %v11018
          %11361 = vmatmul.mubr.bf16.gmra.mrb[0].mxu0 %v11017
          %v11362 = vpop.f32.mrb[0].mxu0
          %v11363 = vadd.f32 %v11102, %v11362
          %v11364 = vpop.f32.mrb[0].mxu0
          %v11365 = vpop.f32.mrb[0].mxu0
          %v11366 = vadd.f32 %v11102, %v11365
          %v11367 = vpop.f32.mrb[0].mxu0
          %11368 = vmatprep.mubr.bf16.mxu0 %v11022
          %11369 = vmatmul.mubr.bf16.gmra.mrb[0].mxu0 %v11021
          %v11370 = vpop.f32.mrb[0].mxu0
          %v11371 = vadd.f32 %v11102, %v11370
          %v11372 = vpop.f32.mrb[0].mxu0
          %v11373 = vpop.f32.mrb[0].mxu0
          %v11374 = vadd.f32 %v11102, %v11373
          %v11375 = vpop.f32.mrb[0].mxu0
          %11376 = vmatprep.mubr.bf16.mxu0 %v11026
          %11377 = vmatmul.mubr.bf16.gmra.mrb[0].mxu0 %v11025
          %v11378 = vpop.f32.mrb[0].mxu0
          %v11379 = vadd.f32 %v11102, %v11378
          %v11380 = vpop.f32.mrb[0].mxu0
          %v11381 = vpop.f32.mrb[0].mxu0
          %v11382 = vadd.f32 %v11102, %v11381
          %v11383 = vpop.f32.mrb[0].mxu0
          %11384 = vmatprep.mubr.bf16.mxu0 %v11030
          %11385 = vmatmul.mubr.bf16.gmra.mrb[0].mxu0 %v11029
          %v11386 = vpop.f32.mrb[0].mxu0
          %v11387 = vadd.f32 %v11102, %v11386
          %v11388 = vpop.f32.mrb[0].mxu0
          %v11389 = vpop.f32.mrb[0].mxu0
          %v11390 = vadd.f32 %v11102, %v11389
          %v11391 = vpop.f32.mrb[0].mxu0
          %11392 = vdwg.mxu0
          %11393 = vmatprep.subr.bf16.mxu0 0
          %11394 = vmatpush1.bf16.msra.mxu0 %v11248
          %11395 = vmatprep.subr.bf16.mxu0 0
          %11396 = vmatpush1.bf16.msra.mxu0 %v11249
          %11397 = vmatprep.subr.bf16.mxu0 0
          %11398 = vmatpush1.bf16.msra.mxu0 %v11250
          %11399 = vmatprep.subr.bf16.mxu0 0
          %11400 = vmatpush1.bf16.msra.mxu0 %v11251
          %11401 = vmatprep.subr.bf16.mxu0 0
          %11402 = vmatpush1.bf16.msra.mxu0 %v11252
          %11403 = vmatprep.subr.bf16.mxu0 0
          %11404 = vmatpush1.bf16.msra.mxu0 %v11253
          %11405 = vmatprep.subr.bf16.mxu0 0
          %11406 = vmatpush1.bf16.msra.mxu0 %v11254
          %11407 = vmatprep.subr.bf16.mxu0 0
          %11408 = vmatpush1.bf16.msra.mxu0 %v11255
          %11409 = vmatprep.subr.bf16.mxu0 0
          %11410 = vmatpush1.bf16.msra.mxu0 %v11256
          %11411 = vmatprep.subr.bf16.mxu0 0
          %11412 = vmatpush1.bf16.msra.mxu0 %v11257
          %11413 = vmatprep.subr.bf16.mxu0 0
          %11414 = vmatpush1.bf16.msra.mxu0 %v11258
          %11415 = vmatprep.subr.bf16.mxu0 0
          %11416 = vmatpush1.bf16.msra.mxu0 %v11259
          %11417 = vmatprep.subr.bf16.mxu0 0
          %11418 = vmatpush1.bf16.msra.mxu0 %v11260
          %11419 = vmatprep.subr.bf16.mxu0 0
          %11420 = vmatpush1.bf16.msra.mxu0 %v11261
          %11421 = vmatprep.subr.bf16.mxu0 0
          %11422 = vmatpush1.bf16.msra.mxu0 %v11262
          %11423 = vmatprep.subr.bf16.mxu0 0
          %11424 = vmatpush1.bf16.msra.mxu0 %v11263
          %11425 = vmatprep.mubr.bf16.mxu0 %v11004
          %11426 = vmatmul.mubr.bf16.gmra.mrb[0].mxu0 %v11003
          %v11427 = vpop.f32.mrb[0].mxu0
          %v11428 = vadd.f32 %v11331, %v11427
          %v11429 = vpop.f32.mrb[0].mxu0
          %v11430 = vpop.f32.mrb[0].mxu0
          %v11431 = vadd.f32 %v11334, %v11430
          %v11432 = vpop.f32.mrb[0].mxu0
          %11433 = vmatprep.mubr.bf16.mxu0 %v11008
          %11434 = vmatmul.mubr.bf16.gmra.mrb[0].mxu0 %v11007
          %v11435 = vpop.f32.mrb[0].mxu0
          %v11436 = vadd.f32 %v11339, %v11435
          %v11437 = vpop.f32.mrb[0].mxu0
          %v11438 = vpop.f32.mrb[0].mxu0
          %v11439 = vadd.f32 %v11342, %v11438
          %v11440 = vpop.f32.mrb[0].mxu0
          %11441 = vmatprep.mubr.bf16.mxu0 %v11012
          %11442 = vmatmul.mubr.bf16.gmra.mrb[0].mxu0 %v11011
          %v11443 = vpop.f32.mrb[0].mxu0
          %v11444 = vadd.f32 %v11347, %v11443
          %v11445 = vpop.f32.mrb[0].mxu0
          %v11446 = vpop.f32.mrb[0].mxu0
          %v11447 = vadd.f32 %v11350, %v11446
          %v11448 = vpop.f32.mrb[0].mxu0
          %11449 = vmatprep.mubr.bf16.mxu0 %v11016
          %11450 = vmatmul.mubr.bf16.gmra.mrb[0].mxu0 %v11015
          %v11451 = vpop.f32.mrb[0].mxu0
          %v11452 = vadd.f32 %v11355, %v11451
          %v11453 = vpop.f32.mrb[0].mxu0
          %v11454 = vpop.f32.mrb[0].mxu0
          %v11455 = vadd.f32 %v11358, %v11454
          %v11456 = vpop.f32.mrb[0].mxu0
          %11457 = vmatprep.mubr.bf16.mxu0 %v11020
          %11458 = vmatmul.mubr.bf16.gmra.mrb[0].mxu0 %v11019
          %v11459 = vpop.f32.mrb[0].mxu0
          %v11460 = vadd.f32 %v11363, %v11459
          %v11461 = vpop.f32.mrb[0].mxu0
          %v11462 = vpop.f32.mrb[0].mxu0
          %v11463 = vadd.f32 %v11366, %v11462
          %v11464 = vpop.f32.mrb[0].mxu0
          %11465 = vmatprep.mubr.bf16.mxu0 %v11024
          %11466 = vmatmul.mubr.bf16.gmra.mrb[0].mxu0 %v11023
          %v11467 = vpop.f32.mrb[0].mxu0
          %v11468 = vadd.f32 %v11371, %v11467
          %v11469 = vpop.f32.mrb[0].mxu0
          %v11470 = vpop.f32.mrb[0].mxu0
          %v11471 = vadd.f32 %v11374, %v11470
          %v11472 = vpop.f32.mrb[0].mxu0
          %11473 = vmatprep.mubr.bf16.mxu0 %v11028
          %11474 = vmatmul.mubr.bf16.gmra.mrb[0].mxu0 %v11027
          %v11475 = vpop.f32.mrb[0].mxu0
          %v11476 = vadd.f32 %v11379, %v11475
          %v11477 = vpop.f32.mrb[0].mxu0
          %v11478 = vpop.f32.mrb[0].mxu0
          %v11479 = vadd.f32 %v11382, %v11478
          %v11480 = vpop.f32.mrb[0].mxu0
          %11481 = vmatprep.mubr.bf16.mxu0 %v11032
          %11482 = vmatmul.mubr.bf16.gmra.mrb[0].mxu0 %v11031
          %v11483 = vpop.f32.mrb[0].mxu0
          %v11484 = vadd.f32 %v11387, %v11483
          %v11485 = vpop.f32.mrb[0].mxu0
          %v11486 = vpop.f32.mrb[0].mxu0
          %v11487 = vadd.f32 %v11390, %v11486
          %v11488 = vpop.f32.mrb[0].mxu0
          %11489 = vdwg.mxu0
          %s11490 = smul.u32 %s7591, 16
          %s11491 = scalar_lea.vmem %s539, %s11490 [#allocation22]
          %11492 = vst [vmem:[%s11491] sm:$0xff] %v11428
          %11493 = vst [vmem:[%s11491 + $0x8] sm:$0xff] %v11431
          %11494 = vst [vmem:[%s11491 + $0x10] sm:$0xff] %v11436
          %11495 = vst [vmem:[%s11491 + $0x18] sm:$0xff] %v11439
          %11496 = vst [vmem:[%s11491 + $0x20] sm:$0xff] %v11444
          %11497 = vst [vmem:[%s11491 + $0x28] sm:$0xff] %v11447
          %11498 = vst [vmem:[%s11491 + $0x30] sm:$0xff] %v11452
          %11499 = vst [vmem:[%s11491 + $0x38] sm:$0xff] %v11455
          %11500 = vst [vmem:[%s11491 + $0x40] sm:$0xff] %v11460
          %11501 = vst [vmem:[%s11491 + $0x48] sm:$0xff] %v11463
          %11502 = vst [vmem:[%s11491 + $0x50] sm:$0xff] %v11468
          %11503 = vst [vmem:[%s11491 + $0x58] sm:$0xff] %v11471
          %11504 = vst [vmem:[%s11491 + $0x60] sm:$0xff] %v11476
          %11505 = vst [vmem:[%s11491 + $0x68] sm:$0xff] %v11479
          %11506 = vst [vmem:[%s11491 + $0x70] sm:$0xff] %v11484
          %11507 = vst [vmem:[%s11491 + $0x78] sm:$0xff] %v11487
        $region127: #{tpu_custom_call.1} parent=63 // loop_footer
          %s7590 = sadd.s32 1, %s7586
        $region128: #{tpu_custom_call.1} parent=63 // loop_footer_branch
          %7585 = sbr.rel target = $region124
        $region129: #{tpu_custom_call.1} parent=63 // loop_exit
          _
        %s11508 = sand.u32 %s277, 1
        %s11509 = scalar_lea.sflag [#allocation6], %s11508
        %s11510 = sand.u32 %s277, 1
        %s11511 = smul.addr %s11510, 256
        %s11512 = scalar_lea.vmem [#allocation22], %s11511
        // Predicated region
        $region130: #{tpu_custom_call.1} parent=63 // pred_check
          %p11513 = pneg %p287
        $region131: #{tpu_custom_call.1} parent=63 // pred_check_branch
          %11515 = sbr.rel (%p11513) target = $region133
        $region132: #{tpu_custom_call.1} parent=63 // pred_region
          %s11517 = ssub.s32 4096, 4096
          %11518 = vsyncadd %s11509, %s11517
          %s11519 = smul.addr %s33, 32
          %s11520 = smul.addr %s11519, 128
          %s11521 = scalar_lea.hbm %s11, %s11520
          %s11522 = sshll.u32 %s11512, 4
          %s11523 = int_to_ptr.vmem [resolvable:$true] %s11522
          %11528 = dma.vmem_to_hbm [thread:$0]  %s11523, 4096, %s11521, %s11509, 128, 128, 8
        $region133: #{tpu_custom_call.1} parent=63 // pred_fallthru
          _
      $region64: #{tpu_custom_call.1} parent=5 // pred_fallthru
        _
      %p11529 = scmp.le.s32.totalorder 2, %s28
      // Predicated region
      $region134: #{tpu_custom_call.1} parent=5 // pred_check
        %p11530 = pneg %p11529
      $region135: #{tpu_custom_call.1} parent=5 // pred_check_branch
        %11532 = sbr.rel (%p11530) target = $region137
      $region136: #{tpu_custom_call.1} parent=5 // pred_region
        %s11533 = ssub.s32 %s28, 2
        // Predicated region
        $region138: #{tpu_custom_call.1} parent=136 // pred_check
          %p11534 = pneg %p293
        $region139: #{tpu_custom_call.1} parent=136 // pred_check_branch
          %11536 = sbr.rel (%p11534) target = $region141
        $region140: #{tpu_custom_call.1} parent=136 // pred_region
          %s11537 = sand.u32 %s278, 1
          %s11538 = scalar_lea.sflag [#allocation6], %s11537
          %s11539 = sand.u32 %s278, 1
          %s11540 = smul.addr %s11539, 256
          %s11541 = scalar_lea.vmem [#allocation22], %s11540
          %11542 = dma.done %s11538, 4096
        $region141: #{tpu_custom_call.1} parent=136 // pred_fallthru
          _
      $region137: #{tpu_custom_call.1} parent=5 // pred_fallthru
        _
    $region6: #{tpu_custom_call.1} parent=1 // loop_footer
      %s32 = sadd.s32 1, %s28
    $region7: #{tpu_custom_call.1} parent=1 // loop_footer_branch
      %27 = sbr.rel target = $region3
    $region8: #{tpu_custom_call.1} parent=1 // loop_exit
      _
    %11543 = vsyncpa [#allocation5], 1
    %s11544 = scalar_lea.sflag [#allocation5], 1
    %11545 = vsyncpa %s11544, 1
    %11546 = vsyncpa [#allocation8], 1
    %11547 = vsyncpa [#allocation11], 1
    %11548 = vsyncpa [#allocation14], 1
    %11549 = vsyncpa [#allocation17], 1
    %11550 = vsyncpa [#allocation20], 1
    %11551 = vsyncpa [#allocation6], 1
    %s11552 = scalar_lea.sflag [#allocation6], 1
    %11553 = vsyncpa %s11552, 1

</llo_original>
